<compile_context>
chip_gen: v7x
topology: tpu7x:2x2x1
jax: 0.10.0
libtpu: 0.0.40
codegen_flags: <defaults>
</compile_context>

<pallas_src>
import numpy as np
import jax
import jax.numpy as jnp
from jax import lax
from jax.experimental import pallas as pl
from jax.experimental.pallas import tpu as pltpu

# ---- module "hyper-parameters" (deterministic, set in-script) ---------------
D = 3                       # encoding.n_input_dims
N_FREQS = 4                 # VanillaFrequency n_frequencies
INCLUDE_XYZ = True
XYZ_SCALE = 2.0
XYZ_OFFSET = -1.0
FREQ_BANDS = tuple(float(2.0 ** k) for k in range(N_FREQS))  # 2**linspace(0, L-1, L)
ENC_OUT = D * 2 * N_FREQS   # encoding.n_output_dims
N_XYZ = D if INCLUDE_XYZ else 0
OUT_DIM = N_XYZ + ENC_OUT   # CompositeEncoding.n_output_dims
N_REPS = OUT_DIM // D       # sublane tile factor of x

_HALF_PI = float(np.pi / 2.0)
_INNER_N = 1024             # lanes per in-kernel chunk (bounds live vreg set)
_MIN_TILE = 512             # don't split work below this many lanes per core


def _row_constants():
    """Per-output-row (is_xyz_mask, coef, bias): output row r equals
    coef[r]*x[r % D] + bias[r] on the xyz rows and sin(coef[r]*x[r % D] +
    bias[r]) on the encoding rows (cos == sin phase-shifted by pi/2, which
    preserves the module's [sin_f, cos_f] interleaving with ONE packed sin).

    Built from a 2-D iota plus a handful of static selects, so only plain,
    always-supported VPU ops are needed (no dense vector constants, no integer
    division).  Shape is (OUT_DIM, 1) — a single vreg — and it is hoisted out
    of the per-chunk lane loop."""
    row = lax.broadcasted_iota(jnp.int32, (OUT_DIM, 1), 0)
    enc_row = row - N_XYZ                                   # negative on xyz rows
    coef = jnp.full((OUT_DIM, 1), FREQ_BANDS[-1], jnp.float32)
    for idx in range(N_FREQS - 2, -1, -1):                  # descending so the lowest band wins
        coef = jnp.where(enc_row < (idx + 1) * 2 * D,
                         jnp.float32(FREQ_BANDS[idx]), coef)
    bias = jnp.zeros((OUT_DIM, 1), jnp.float32)
    for idx in range(N_FREQS):                              # cos rows get +pi/2 phase
        lo, hi = idx * 2 * D + D, (idx + 1) * 2 * D
        bias = jnp.where((enc_row >= lo) & (enc_row < hi),
                         jnp.float32(_HALF_PI), bias)
    is_xyz = row < N_XYZ
    if INCLUDE_XYZ:
        coef = jnp.where(is_xyz, jnp.float32(XYZ_SCALE), coef)
        bias = jnp.where(is_xyz, jnp.float32(XYZ_OFFSET), bias)
    return is_xyz, coef, bias


def composite_encoding_kernel(x_ref, o_ref):
    """One grid step, channel-major.

    x_ref: (D, TILE)        f32 in VMEM   (points on the 128-wide lane axis)
    o_ref: (OUT_DIM, TILE)  f32/bf16 in VMEM (lane-dense, unmasked stores)
    """
    is_xyz, coef, bias = _row_constants()        # (OUT_DIM, 1), hoisted
    tile = x_ref.shape[1]
    inner = min(_INNER_N, tile)
    n_chunks = tile // inner                     # wrapper guarantees divisibility

    def chunk(c, carry):
        start = pl.multiple_of(c * inner, inner)
        x = x_ref[:, pl.ds(start, inner)].astype(jnp.float32)   # (D, inner)
        xt = jnp.tile(x, (N_REPS, 1))                           # (OUT_DIM, inner)
        arg = coef * xt + bias                                  # one packed VPU mul+add
        trig = jnp.sin(arg)                                     # ONE packed transcendental pass
        # TODO(synk): on v7x (HBM no longer binding once out_dtype=bf16) reorder
        # the xyz rows last, skip sin on those 3 rows and drop this select,
        # folding the channel permutation into the first MLP weight.
        out = trig if N_XYZ == 0 else jnp.where(is_xyz, arg, trig)
        o_ref[:, pl.ds(start, inner)] = out.astype(o_ref.dtype)
        return carry

    lax.fori_loop(0, n_chunks, chunk, 0, unroll=True)


def _round_up(a, b):
    return b * ((a + b - 1) // b)


def _choose_tile(n, tile_n):
    """Big tiles (amortize ~0.35us per grid step; 64-128 KiB per output-row DMA
    segment) but keep >= 2 grid steps when there is enough work so the
    'parallel' grid axis can shard across both v7x TensorCores."""
    steps = pl.cdiv(n, tile_n)
    if steps < 2 and n > 2 * _MIN_TILE:
        steps = 2
    tile = pl.cdiv(n, steps)
    tile = _round_up(tile, _INNER_N if tile > _INNER_N else 128)
    return max(tile, 128)


def composite_encoding_cm(x_cm, *, tile_n=16384, out_dtype=None):
    """Channel-major entry point (production path): (D, N) -> (OUT_DIM, N).
    Pass out_dtype=jnp.bfloat16 when the consumer takes bf16 — the (OUT_DIM, N)
    writeback is ~90% of the HBM bytes, so halving it is ~2x on v5e/v6e."""
    d, n = x_cm.shape
    assert d == D, f"expected {D} input channels, got {d}"
    out_dtype = x_cm.dtype if out_dtype is None else jnp.dtype(out_dtype)

    tile = _choose_tile(n, tile_n)
    n_pad = tile * pl.cdiv(n, tile)
    if n_pad != n:
        # TODO(synk): minor — handle the ragged last tile in-kernel (lane-masked
        # store on the final grid step) instead of re-copying the input via pad.
        x_cm = jnp.pad(x_cm, ((0, 0), (0, n_pad - n)))

    out_block = OUT_DIM * tile * jnp.dtype(out_dtype).itemsize
    in_block = D * tile * jnp.dtype(x_cm.dtype).itemsize
    vmem_need = 2 * (out_block + in_block)             # double-buffered operands
    cparams = {"dimension_semantics": ("parallel",)}
    if vmem_need > (14 << 20):                         # near v5e's 16 MiB scoped default
        cparams["vmem_limit_bytes"] = min(int(vmem_need * 1.25) + (2 << 20), 64 << 20)

    out = pl.pallas_call(
        composite_encoding_kernel,
        out_shape=jax.ShapeDtypeStruct((OUT_DIM, n_pad), out_dtype),
        grid_spec=pltpu.PrefetchScalarGridSpec(
            num_scalar_prefetch=0,
            grid=(n_pad // tile,),
            in_specs=[pl.BlockSpec((D, tile), lambda i: (0, i))],
            out_specs=pl.BlockSpec((OUT_DIM, tile), lambda i: (0, i)),
        ),
        compiler_params=pltpu.CompilerParams(**cparams),
    )(x_cm)

    return out[:, :n] if n_pad != n else out


def composite_encoding(x, *, tile_n=16384, out_dtype=None):
    """Row-major drop-in for the PyTorch module: (N, D) -> (N, OUT_DIM).
    NOTE: the trailing .T re-reads/re-writes the whole (27, N) output (~2x the
    kernel's own HBM traffic).  Prefer composite_encoding_cm and consume the
    channel-major result directly (dot_general contracting axis 0 in the first
    MLP layer)."""
    return composite_encoding_cm(x.T, tile_n=tile_n, out_dtype=out_dtype).T


def composite_encoding_ref(x):
    """Pure-JAX reference mirroring the PyTorch forward."""
    outs = []
    if INCLUDE_XYZ:
        outs.append(x * XYZ_SCALE + XYZ_OFFSET)
    for f in FREQ_BANDS:
        outs.append(jnp.sin(f * x))
        outs.append(jnp.cos(f * x))
    return jnp.concatenate(outs, axis=-1)


if __name__ == "__main__":
    key = jax.random.PRNGKey(0)
    k1, k2 = jax.random.split(key)

    # aligned batch: wrapper picks tile=2048 -> grid of 2 "parallel" steps
    N = 4096
    x = jax.random.uniform(k1, (N, D), dtype=jnp.float32)
    ref = composite_encoding_ref(x)

    out = jax.block_until_ready(composite_encoding(x))
    assert out.shape == (N, OUT_DIM), out.shape
    assert jnp.allclose(out, ref, atol=5e-5, rtol=5e-5), "mismatch vs reference (f32)"

    # channel-major production path: no output transpose
    out_cm = jax.block_until_ready(composite_encoding_cm(x.T))
    assert out_cm.shape == (OUT_DIM, N), out_cm.shape
    assert jnp.allclose(out_cm, ref.T, atol=5e-5, rtol=5e-5), "mismatch vs reference (cm)"

    # ragged batch: padded in the wrapper, no divisibility requirement
    N2 = 1000
    x2 = jax.random.uniform(k2, (N2, D), dtype=jnp.float32)
    out2 = jax.block_until_ready(composite_encoding(x2))
    assert out2.shape == (N2, OUT_DIM), out2.shape
    assert jnp.allclose(out2, composite_encoding_ref(x2), atol=5e-5, rtol=5e-5), \
        "mismatch vs reference (ragged)"

    # bf16 writeback: halves the dominant HBM byte stream, math stays f32
    out_bf16 = jax.block_until_ready(composite_encoding(x, out_dtype=jnp.bfloat16))
    assert out_bf16.dtype == jnp.bfloat16
    assert jnp.allclose(out_bf16.astype(jnp.float32), ref, atol=1e-2, rtol=1e-2), \
        "mismatch vs reference (bf16 store)"

    print("KERNEL_OK")
</pallas_src>

<mosaic_0001>
module attributes {stable_mosaic.version = 11 : i64} {
  func.func @composite_encoding_kernel(%arg0: i32, %arg1: memref<3x2048xf32, #tpu.memory_space<vmem>>, %arg2: memref<27x2048xf32, #tpu.memory_space<vmem>>) attributes {dimension_semantics = [#tpu.dimension_semantics<parallel>], iteration_bounds = array<i64: 2>, scalar_prefetch = 0 : i64, scratch_operands = 0 : i64, tpu.core_type = #tpu.core_type<tc>, window_params = [{transform_indices = @transform_0, window_bounds = array<i64: 3, 2048>}, {transform_indices = @transform_1, window_bounds = array<i64: 27, 2048>}]} {
    %0 = tpu.iota {dimensions = array<i32: 0>} : vector<27x1xi32>
    %c3_i32 = arith.constant 3 : i32
    %1 = vector.broadcast %c3_i32 : i32 to vector<27x1xi32>
    %2 = arith.subi %0, %1 : vector<27x1xi32>
    %cst = arith.constant 8.000000e+00 : f32
    %3 = vector.broadcast %cst : f32 to vector<27x1xf32>
    %c18_i32 = arith.constant 18 : i32
    %4 = vector.broadcast %c18_i32 : i32 to vector<27x1xi32>
    %5 = arith.cmpi slt, %2, %4 : vector<27x1xi32>
    %cst_0 = arith.constant 4.000000e+00 : f32
    %6 = vector.broadcast %cst_0 : f32 to vector<27x1xf32>
    %7 = arith.select %5, %6, %3 : vector<27x1xi1>, vector<27x1xf32>
    %c12_i32 = arith.constant 12 : i32
    %8 = vector.broadcast %c12_i32 : i32 to vector<27x1xi32>
    %9 = arith.cmpi slt, %2, %8 : vector<27x1xi32>
    %cst_1 = arith.constant 2.000000e+00 : f32
    %10 = vector.broadcast %cst_1 : f32 to vector<27x1xf32>
    %11 = arith.select %9, %10, %7 : vector<27x1xi1>, vector<27x1xf32>
    %c6_i32 = arith.constant 6 : i32
    %12 = vector.broadcast %c6_i32 : i32 to vector<27x1xi32>
    %13 = arith.cmpi slt, %2, %12 : vector<27x1xi32>
    %cst_2 = arith.constant 1.000000e+00 : f32
    %14 = vector.broadcast %cst_2 : f32 to vector<27x1xf32>
    %15 = arith.select %13, %14, %11 : vector<27x1xi1>, vector<27x1xf32>
    %cst_3 = arith.constant 0.000000e+00 : f32
    %16 = vector.broadcast %cst_3 : f32 to vector<27x1xf32>
    %c3_i32_4 = arith.constant 3 : i32
    %17 = vector.broadcast %c3_i32_4 : i32 to vector<27x1xi32>
    %18 = arith.cmpi sge, %2, %17 : vector<27x1xi32>
    %c6_i32_5 = arith.constant 6 : i32
    %19 = vector.broadcast %c6_i32_5 : i32 to vector<27x1xi32>
    %20 = arith.cmpi slt, %2, %19 : vector<27x1xi32>
    %21 = arith.andi %18, %20 : vector<27x1xi1>
    %cst_6 = arith.constant 1.57079637 : f32
    %22 = vector.broadcast %cst_6 : f32 to vector<27x1xf32>
    %23 = arith.select %21, %22, %16 : vector<27x1xi1>, vector<27x1xf32>
    %c9_i32 = arith.constant 9 : i32
    %24 = vector.broadcast %c9_i32 : i32 to vector<27x1xi32>
    %25 = arith.cmpi sge, %2, %24 : vector<27x1xi32>
    %c12_i32_7 = arith.constant 12 : i32
    %26 = vector.broadcast %c12_i32_7 : i32 to vector<27x1xi32>
    %27 = arith.cmpi slt, %2, %26 : vector<27x1xi32>
    %28 = arith.andi %25, %27 : vector<27x1xi1>
    %cst_8 = arith.constant 1.57079637 : f32
    %29 = vector.broadcast %cst_8 : f32 to vector<27x1xf32>
    %30 = arith.select %28, %29, %23 : vector<27x1xi1>, vector<27x1xf32>
    %c15_i32 = arith.constant 15 : i32
    %31 = vector.broadcast %c15_i32 : i32 to vector<27x1xi32>
    %32 = arith.cmpi sge, %2, %31 : vector<27x1xi32>
    %c18_i32_9 = arith.constant 18 : i32
    %33 = vector.broadcast %c18_i32_9 : i32 to vector<27x1xi32>
    %34 = arith.cmpi slt, %2, %33 : vector<27x1xi32>
    %35 = arith.andi %32, %34 : vector<27x1xi1>
    %cst_10 = arith.constant 1.57079637 : f32
    %36 = vector.broadcast %cst_10 : f32 to vector<27x1xf32>
    %37 = arith.select %35, %36, %30 : vector<27x1xi1>, vector<27x1xf32>
    %c21_i32 = arith.constant 21 : i32
    %38 = vector.broadcast %c21_i32 : i32 to vector<27x1xi32>
    %39 = arith.cmpi sge, %2, %38 : vector<27x1xi32>
    %c24_i32 = arith.constant 24 : i32
    %40 = vector.broadcast %c24_i32 : i32 to vector<27x1xi32>
    %41 = arith.cmpi slt, %2, %40 : vector<27x1xi32>
    %42 = arith.andi %39, %41 : vector<27x1xi1>
    %cst_11 = arith.constant 1.57079637 : f32
    %43 = vector.broadcast %cst_11 : f32 to vector<27x1xf32>
    %44 = arith.select %42, %43, %37 : vector<27x1xi1>, vector<27x1xf32>
    %c3_i32_12 = arith.constant 3 : i32
    %45 = vector.broadcast %c3_i32_12 : i32 to vector<27x1xi32>
    %46 = arith.cmpi slt, %0, %45 : vector<27x1xi32>
    %cst_13 = arith.constant 2.000000e+00 : f32
    %47 = vector.broadcast %cst_13 : f32 to vector<27x1xf32>
    %48 = arith.select %46, %47, %15 : vector<27x1xi1>, vector<27x1xf32>
    %cst_14 = arith.constant -1.000000e+00 : f32
    %49 = vector.broadcast %cst_14 : f32 to vector<27x1xf32>
    %50 = arith.select %46, %49, %44 : vector<27x1xi1>, vector<27x1xf32>
    %c0_i32 = arith.constant 0 : i32
    %c1024_i32 = arith.constant 1024 : i32
    %51 = arith.muli %c0_i32, %c1024_i32 : i32
    %52 = tpu.assume_multiple %51, 1024 : i32
    %c0 = arith.constant 0 : index
    %53 = arith.index_cast %52 : i32 to index
    %54 = vector.load %arg1[%c0, %53] : memref<3x2048xf32, #tpu.memory_space<vmem>>, vector<3x1024xf32>
    %55 = tpu.concatenate %54, %54, %54, %54, %54, %54, %54, %54, %54 in 0 : vector<3x1024xf32>, vector<3x1024xf32>, vector<3x1024xf32>, vector<3x1024xf32>, vector<3x1024xf32>, vector<3x1024xf32>, vector<3x1024xf32>, vector<3x1024xf32>, vector<3x1024xf32> -> vector<27x1024xf32>
    %56 = vector.broadcast %48 : vector<27x1xf32> to vector<27x1024xf32>
    %57 = arith.mulf %56, %55 : vector<27x1024xf32>
    %58 = vector.broadcast %50 : vector<27x1xf32> to vector<27x1024xf32>
    %59 = arith.addf %57, %58 : vector<27x1024xf32>
    %60 = math.sin %59 : vector<27x1024xf32>
    %61 = vector.shape_cast %46 : vector<27x1xi1> to vector<27x1xi1>
    %62 = vector.broadcast %61 : vector<27x1xi1> to vector<27x1024xi1>
    %63 = arith.select %62, %59, %60 : vector<27x1024xi1>, vector<27x1024xf32>
    %c0_15 = arith.constant 0 : index
    %64 = arith.index_cast %52 : i32 to index
    %65 = vector.load %arg2[%c0_15, %64] : memref<27x2048xf32, #tpu.memory_space<vmem>>, vector<27x1024xf32>
    tpu.vector_store %arg2[%c0_15, %64], %63 {strides = array<i32>} : memref<27x2048xf32, #tpu.memory_space<vmem>>, vector<27x1024xf32>,
    %c1_i32 = arith.constant 1 : i32
    %c1024_i32_16 = arith.constant 1024 : i32
    %66 = arith.muli %c1_i32, %c1024_i32_16 : i32
    %67 = tpu.assume_multiple %66, 1024 : i32
    %c0_17 = arith.constant 0 : index
    %68 = arith.index_cast %67 : i32 to index
    %69 = vector.load %arg1[%c0_17, %68] : memref<3x2048xf32, #tpu.memory_space<vmem>>, vector<3x1024xf32>
    %70 = tpu.concatenate %69, %69, %69, %69, %69, %69, %69, %69, %69 in 0 : vector<3x1024xf32>, vector<3x1024xf32>, vector<3x1024xf32>, vector<3x1024xf32>, vector<3x1024xf32>, vector<3x1024xf32>, vector<3x1024xf32>, vector<3x1024xf32>, vector<3x1024xf32> -> vector<27x1024xf32>
    %71 = vector.broadcast %48 : vector<27x1xf32> to vector<27x1024xf32>
    %72 = arith.mulf %71, %70 : vector<27x1024xf32>
    %73 = vector.broadcast %50 : vector<27x1xf32> to vector<27x1024xf32>
    %74 = arith.addf %72, %73 : vector<27x1024xf32>
    %75 = math.sin %74 : vector<27x1024xf32>
    %76 = vector.shape_cast %46 : vector<27x1xi1> to vector<27x1xi1>
    %77 = vector.broadcast %76 : vector<27x1xi1> to vector<27x1024xi1>
    %78 = arith.select %77, %74, %75 : vector<27x1024xi1>, vector<27x1024xf32>
    %c0_18 = arith.constant 0 : index
    %79 = arith.index_cast %67 : i32 to index
    %80 = vector.load %arg2[%c0_18, %79] : memref<27x2048xf32, #tpu.memory_space<vmem>>, vector<27x1024xf32>
    tpu.vector_store %arg2[%c0_18, %79], %78 {strides = array<i32>} : memref<27x2048xf32, #tpu.memory_space<vmem>>, vector<27x1024xf32>,
    %c2_i32 = arith.constant 2 : i32
    return
  }
  func.func @transform_0(%arg0: i32) -> (i32, i32) {
    %c0_i32 = arith.constant 0 : i32
    %c0_i32_0 = arith.constant 0 : i32
    return %c0_i32, %arg0 : i32, i32
  }
  func.func @transform_1(%arg0: i32) -> (i32, i32) {
    %c0_i32 = arith.constant 0 : i32
    %c0_i32_0 = arith.constant 0 : i32
    return %c0_i32, %arg0 : i32, i32
  }
}

</mosaic_0001>

<llo_original>
// kernel: tpu_custom_call.1
$region0: #{tpu_custom_call.1}
  #allocation0 [shape = 'u32[]', space=smem, size = 0x4, offset = 0x4, fixed_abs, tag = 'smem constant byte address 0x4 - core index']
  #allocation1 [shape = 'u32[144,128]{1,0:T(1,128)}', space=vmem, size = 0x12000, scoped, tag = 'internal scratch']
  %s0 = inlined_call_operand.hbm [shape: f32[3,4096], index: 0, kind: input, shape index: {}]
  %s1 = inlined_call_operand.hbm [shape: f32[27,4096], index: 1, kind: output, shape index: {}]
  %s2 = sld [smem:[#allocation0]]
  $region41: #{tpu_custom_call.1} parent=0
    _
  %s4 = ssub.s32 1, %s2
  %s5 = scalar_select 0, %s4, %s2
  $region1: #{tpu_custom_call.1} parent=0
    #allocation2 [shape = 'u8[65536]{0}', space=vmem, size = 0x10000, scoped, tag = 'input window, operand 0']
    #allocation3 [shape = 's32[2]{0}', space=sflag, size = 0x8, scoped, tag = 'scoped memory for tpu_custom_call.1']
    #allocation4 [shape = 's32[2]{0}', space=sflag, size = 0x8, scoped, tag = 'scoped memory for tpu_custom_call.1']
    #allocation5 [shape = 'u8[524288]{0}', space=vmem, size = 0x80000, scoped, tag = 'output window, operand 0']
    %6 = vsyncpa [#allocation3], 0
    %s7 = scalar_lea.sflag [#allocation3], 1
    %8 = vsyncpa %s7, 0
    %9 = vsyncpa [#allocation4], 0
    %s10 = scalar_lea.sflag [#allocation4], 1
    %11 = vsyncpa %s10, 0
    loop: start=0, step=1, limit=4
    $region2: #{tpu_custom_call.1} parent=1 // loop_pre_header
      _
    $region3: #{tpu_custom_call.1} parent=1 // loop_header
      %s13 = sphi 0, %s17
      %p14 = scmp.ge.s32.totalorder %s13, 4
      %s23 = sphi 0, %s25
      %s26 = sphi 0, %s23
      %s27 = sphi 0, %s26
      %s43 = sphi 0, %s27
      %s49 = sphi 0, %s51
      %s52 = sphi 0, %s49
      %s53 = sphi 0, %s52
      %s69 = sphi 0, %s53
    $region4: #{tpu_custom_call.1} parent=1 // loop_header_branch
      %16 = sbr.rel (%p14) target = $region8
    $region5: #{tpu_custom_call.1} parent=1 // loop_body
      %s18 = ssub.s32 %s13, 1
      %s19 = ssub.s32 %s13, 2
      %s20 = sadd.s32 %s13, 1
      %s21 = ssub.s32 %s13, %s20
      %p22 = scmp.eq.s32.totalorder %s21, 0
      %s24 = sadd.s32 %s23, 1
      %s25 = scalar_select %p22, %s23, %s24
      %p28 = pneg %p22
      %p29 = scmp.eq.s32.totalorder %s13, 1
      %p30 = por %p28, %p29
      %p31 = scmp.ne.s32.totalorder %s23, %s26
      %p32 = scmp.eq.s32.totalorder %s13, 0
      %p33 = por %p31, %p32
      %p34 = scmp.ne.s32.totalorder %s23, %s26
      %p35 = scmp.eq.s32.totalorder %s18, 1
      %p36 = por %p34, %p35
      %p37 = scmp.ne.s32.totalorder %s26, %s27
      %p38 = scmp.eq.s32.totalorder %s18, 0
      %p39 = por %p37, %p38
      %p40 = scmp.ne.s32.totalorder %s26, %s27
      %p41 = scmp.eq.s32.totalorder %s19, 1
      %p42 = por %p40, %p41
      %p44 = scmp.ne.s32.totalorder %s27, %s43
      %p45 = scmp.eq.s32.totalorder %s19, 0
      %p46 = por %p44, %p45
      %s47 = ssub.s32 %s13, %s20
      %p48 = scmp.eq.s32.totalorder %s47, 0
      %s50 = sadd.s32 %s49, 1
      %s51 = scalar_select %p48, %s49, %s50
      %p54 = pneg %p48
      %p55 = scmp.eq.s32.totalorder %s13, 1
      %p56 = por %p54, %p55
      %p57 = scmp.ne.s32.totalorder %s49, %s52
      %p58 = scmp.eq.s32.totalorder %s13, 0
      %p59 = por %p57, %p58
      %p60 = scmp.ne.s32.totalorder %s49, %s52
      %p61 = scmp.eq.s32.totalorder %s18, 1
      %p62 = por %p60, %p61
      %p63 = scmp.ne.s32.totalorder %s52, %s53
      %p64 = scmp.eq.s32.totalorder %s18, 0
      %p65 = por %p63, %p64
      %p66 = scmp.ne.s32.totalorder %s52, %s53
      %p67 = scmp.eq.s32.totalorder %s19, 1
      %p68 = por %p66, %p67
      %p70 = scmp.ne.s32.totalorder %s53, %s69
      %p71 = scmp.eq.s32.totalorder %s19, 0
      %p72 = por %p70, %p71
      %p73 = scmp.le.s32.totalorder 1, %s13
      %p74 = scmp.lt.s32.totalorder %s13, 3
      %p75 = pnand %p73, %p74
      %p76 = pneg %p75
      // Predicated region
      $region9: #{tpu_custom_call.1} parent=5 // pred_check
        _
      $region10: #{tpu_custom_call.1} parent=5 // pred_check_branch
        %78 = sbr.rel (%p75) target = $region12
      $region11: #{tpu_custom_call.1} parent=5 // pred_region
        %s79 = ssub.s32 %s13, 1
      $region12: #{tpu_custom_call.1} parent=5 // pred_fallthru
        _
      %p80 = scmp.lt.s32.totalorder %s13, 2
      // Predicated region
      $region13: #{tpu_custom_call.1} parent=5 // pred_check
        %p81 = pneg %p80
      $region14: #{tpu_custom_call.1} parent=5 // pred_check_branch
        %83 = sbr.rel (%p81) target = $region16
      $region15: #{tpu_custom_call.1} parent=5 // pred_region
        // Predicated region
        $region17: #{tpu_custom_call.1} parent=15 // pred_check
          %p84 = pneg %p33
        $region18: #{tpu_custom_call.1} parent=15 // pred_check_branch
          %86 = sbr.rel (%p84) target = $region20
        $region19: #{tpu_custom_call.1} parent=15 // pred_region
          %s87 = sand.u32 %s23, 1
          %s88 = scalar_lea.sflag [#allocation3], %s87
          %s89 = sand.u32 %s23, 1
          %s90 = smul.addr %s89, 64
          %s91 = scalar_lea.vmem [#allocation2], %s90
          %s92 = smul.u32 16, %s13
          %s94 = ssub.s32 1024, 1024
          %95 = vsyncadd %s88, %s94
          %s96 = smul.addr %s92, 64
          %s97 = scalar_lea.hbm %s0, %s96
          %s99 = sshll.u32 %s91, 4
          %s100 = int_to_ptr.vmem [resolvable:$true] %s99
          %102 = dma.hbm_to_vmem [thread:$0]  %s97, 1024, %s100, %s88
        $region20: #{tpu_custom_call.1} parent=15 // pred_fallthru
          _
      $region16: #{tpu_custom_call.1} parent=5 // pred_fallthru
        _
      %p103 = scmp.le.s32.totalorder 1, %s13
      %p104 = scmp.lt.s32.totalorder %s13, 3
      %p105 = pnand %p103, %p104
      %p106 = pneg %p105
      // Predicated region
      $region21: #{tpu_custom_call.1} parent=5 // pred_check
        _
      $region22: #{tpu_custom_call.1} parent=5 // pred_check_branch
        %108 = sbr.rel (%p105) target = $region24
      $region23: #{tpu_custom_call.1} parent=5 // pred_region
        %s109 = ssub.s32 %s13, 1
        %s110 = sand.u32 %s26, 1
        %s111 = scalar_lea.sflag [#allocation3], %s110
        %s112 = sand.u32 %s26, 1
        %s113 = smul.addr %s112, 64
        %s114 = scalar_lea.vmem [#allocation2], %s113
        // Predicated region
        $region25: #{tpu_custom_call.1} parent=23 // pred_check
          %p115 = pneg %p39
        $region26: #{tpu_custom_call.1} parent=23 // pred_check_branch
          %117 = sbr.rel (%p115) target = $region28
        $region27: #{tpu_custom_call.1} parent=23 // pred_region
          %118 = dma.done %s111, 1024
        $region28: #{tpu_custom_call.1} parent=23 // pred_fallthru
          _
        %s119 = sand.u32 %s26, 1
        %s120 = scalar_lea.sflag [#allocation3], %s119
        %s121 = sand.u32 %s26, 1
        %s122 = smul.addr %s121, 64
        %s123 = scalar_lea.vmem [#allocation2], %s122
        %p124 = pneg %p39
        %p125 = pneg %p36
        %p126 = pneg %p65
        %p127 = pneg %p62
        %s128 = sand.u32 %s52, 1
        %s129 = scalar_lea.sflag [#allocation4], %s128
        %s130 = sand.u32 %s52, 1
        %s131 = smul.addr %s130, 512
        %s132 = scalar_lea.vmem [#allocation5], %s131
        %s133 = smul.u32 16, %s18
        %s134 = smul.u32 16, %s18
        %v135 = vlaneseq
        %v136 = vshrl.u32 %v135, 7
        %v137 = vadd.s32 %v136, 8
        %v138 = vadd.s32 %v136, 16
        %v139 = vadd.s32 %v136, 24
        %v140 = vsub.s32 %v136, 3
        %v141 = vsub.s32 %v137, 3
        %v142 = vsub.s32 %v138, 3
        %v143 = vsub.s32 %v139, 3
        %vm144 = vcmp.lt.s32.totalorder %v140, 18
        %vm145 = vcmp.lt.s32.totalorder %v141, 18
        %vm146 = vcmp.lt.s32.totalorder %v142, 18
        %vm147 = vcmp.lt.s32.totalorder %v143, 18
        %v148 = vsel %vm144, 4.0, 8.0
        %v149 = vsel %vm145, 4.0, 8.0
        %v150 = vsel %vm146, 4.0, 8.0
        %v151 = vsel %vm147, 4.0, 8.0
        %vm152 = vcmp.lt.s32.totalorder %v140, 12
        %vm153 = vcmp.lt.s32.totalorder %v141, 12
        %vm154 = vcmp.lt.s32.totalorder %v142, 12
        %vm155 = vcmp.lt.s32.totalorder %v143, 12
        %v156 = vsel %vm152, 2.0, %v148
        %v157 = vsel %vm153, 2.0, %v149
        %v158 = vsel %vm154, 2.0, %v150
        %v159 = vsel %vm155, 2.0, %v151
        %vm160 = vcmp.lt.s32.totalorder %v140, 6
        %vm161 = vcmp.lt.s32.totalorder %v141, 6
        %vm162 = vcmp.lt.s32.totalorder %v142, 6
        %vm163 = vcmp.lt.s32.totalorder %v143, 6
        %v164 = vsel %vm160, 1.0, %v156
        %v165 = vsel %vm161, 1.0, %v157
        %v166 = vsel %vm162, 1.0, %v158
        %v167 = vsel %vm163, 1.0, %v159
        %vm168 = vcmp.ge.s32.totalorder %v140, 3
        %vm169 = vcmp.ge.s32.totalorder %v141, 3
        %vm170 = vcmp.ge.s32.totalorder %v142, 3
        %vm171 = vcmp.ge.s32.totalorder %v143, 3
        %vm172 = vmand %vm168, %vm160
        %vm173 = vmand %vm169, %vm161
        %vm174 = vmand %vm170, %vm162
        %vm175 = vmand %vm171, %vm163
        %v176 = vsel %vm172, 1.5707964, 0.0
        %v177 = vsel %vm173, 1.5707964, 0.0
        %v178 = vsel %vm174, 1.5707964, 0.0
        %v179 = vsel %vm175, 1.5707964, 0.0
        %vm180 = vcmp.ge.s32.totalorder %v140, 9
        %vm181 = vcmp.ge.s32.totalorder %v141, 9
        %vm182 = vcmp.ge.s32.totalorder %v142, 9
        %vm183 = vcmp.ge.s32.totalorder %v143, 9
        %vm184 = vmand %vm180, %vm152
        %vm185 = vmand %vm181, %vm153
        %vm186 = vmand %vm182, %vm154
        %vm187 = vmand %vm183, %vm155
        %v188 = vsel %vm184, 1.5707964, %v176
        %v189 = vsel %vm185, 1.5707964, %v177
        %v190 = vsel %vm186, 1.5707964, %v178
        %v191 = vsel %vm187, 1.5707964, %v179
        %vm192 = vcmp.ge.s32.totalorder %v140, 15
        %vm193 = vcmp.ge.s32.totalorder %v141, 15
        %vm194 = vcmp.ge.s32.totalorder %v142, 15
        %vm195 = vcmp.ge.s32.totalorder %v143, 15
        %vm196 = vmand %vm192, %vm144
        %vm197 = vmand %vm193, %vm145
        %vm198 = vmand %vm194, %vm146
        %vm199 = vmand %vm195, %vm147
        %v200 = vsel %vm196, 1.5707964, %v188
        %v201 = vsel %vm197, 1.5707964, %v189
        %v202 = vsel %vm198, 1.5707964, %v190
        %v203 = vsel %vm199, 1.5707964, %v191
        %vm204 = vcmp.ge.s32.totalorder %v140, 21
        %vm205 = vcmp.ge.s32.totalorder %v141, 21
        %vm206 = vcmp.ge.s32.totalorder %v142, 21
        %vm207 = vcmp.ge.s32.totalorder %v143, 21
        %vm208 = vcmp.lt.s32.totalorder %v140, 24
        %vm209 = vcmp.lt.s32.totalorder %v141, 24
        %vm210 = vcmp.lt.s32.totalorder %v142, 24
        %vm211 = vcmp.lt.s32.totalorder %v143, 24
        %vm212 = vmand %vm204, %vm208
        %vm213 = vmand %vm205, %vm209
        %vm214 = vmand %vm206, %vm210
        %vm215 = vmand %vm207, %vm211
        %v216 = vsel %vm212, 1.5707964, %v200
        %v217 = vsel %vm213, 1.5707964, %v201
        %v218 = vsel %vm214, 1.5707964, %v202
        %v219 = vsel %vm215, 1.5707964, %v203
        %vm220 = vcmp.lt.s32.totalorder %v136, 3
        %vm221 = vcmp.lt.s32.totalorder %v137, 3
        %vm222 = vcmp.lt.s32.totalorder %v138, 3
        %vm223 = vcmp.lt.s32.totalorder %v139, 3
        %v224 = vsel %vm220, 2.0, %v164
        %v225 = vsel %vm221, 2.0, %v165
        %v226 = vsel %vm222, 2.0, %v166
        %v227 = vsel %vm223, 2.0, %v167
        %v228 = vsel %vm220, -1.0, %v216
        %v229 = vsel %vm221, -1.0, %v217
        %v230 = vsel %vm222, -1.0, %v218
        %v231 = vsel %vm223, -1.0, %v219
        %v232 = vld [vmem:[%s114] sm:$0x77]
        %v233 = vld [vmem:[%s114 + $0x8] sm:$0x77]
        %v234 = vld [vmem:[%s114 + $0x10] sm:$0x77]
        %v235 = vld [vmem:[%s114 + $0x18] sm:$0x77]
        %v240 = vcombine.high %v232, %v232
        %v241 = vcombine.high %v233, %v233
        %v242 = vcombine.high %v234, %v234
        %v243 = vcombine.high %v235, %v235
        %v248 = vrot.slane %v232, 5
        %v249 = vrot.slane %v240, 5
        %v250 = vrot.slane %v233, 5
        %v251 = vrot.slane %v241, 5
        %v252 = vrot.slane %v234, 5
        %v253 = vrot.slane %v242, 5
        %v254 = vrot.slane %v235, 5
        %v255 = vrot.slane %v243, 5
        %v264 = vrot.slane %v232, 2
        %v265 = vrot.slane %v240, 2
        %v266 = vrot.slane %v233, 2
        %v267 = vrot.slane %v241, 2
        %v268 = vrot.slane %v234, 2
        %v269 = vrot.slane %v242, 2
        %v270 = vrot.slane %v235, 2
        %v271 = vrot.slane %v243, 2
        %v280 = vrot.slane %v232, 7
        %v281 = vrot.slane %v240, 7
        %v282 = vrot.slane %v233, 7
        %v283 = vrot.slane %v241, 7
        %v284 = vrot.slane %v234, 7
        %v285 = vrot.slane %v242, 7
        %v286 = vrot.slane %v235, 7
        %v287 = vrot.slane %v243, 7
        %v296 = vcombine.low %v232, %v232
        %v297 = vcombine.low %v233, %v233
        %v298 = vcombine.low %v234, %v234
        %v299 = vcombine.low %v235, %v235
        %v304 = vrot.slane %v232, 1
        %v305 = vrot.slane %v240, 1
        %v306 = vrot.slane %v233, 1
        %v307 = vrot.slane %v241, 1
        %v308 = vrot.slane %v234, 1
        %v309 = vrot.slane %v242, 1
        %v310 = vrot.slane %v235, 1
        %v311 = vrot.slane %v243, 1
        %v320 = vrot.slane %v232, 6
        %v321 = vrot.slane %v240, 6
        %v322 = vrot.slane %v233, 6
        %v323 = vrot.slane %v241, 6
        %v324 = vrot.slane %v234, 6
        %v325 = vrot.slane %v242, 6
        %v326 = vrot.slane %v235, 6
        %v327 = vrot.slane %v243, 6
        %v336 = vrot.slane %v232, 3
        %v337 = vrot.slane %v240, 3
        %v338 = vrot.slane %v233, 3
        %v339 = vrot.slane %v241, 3
        %v340 = vrot.slane %v234, 3
        %v341 = vrot.slane %v242, 3
        %v342 = vrot.slane %v235, 3
        %v343 = vrot.slane %v243, 3
        %vm352 = vcmask 1042432
        %v353 = vsel %vm352, %v232, %v248
        %v354 = vsel %vm352, %v240, %v249
        %v355 = vsel %vm352, %v233, %v250
        %v356 = vsel %vm352, %v241, %v251
        %v357 = vsel %vm352, %v234, %v252
        %v358 = vsel %vm352, %v242, %v253
        %v359 = vsel %vm352, %v235, %v254
        %v360 = vsel %vm352, %v243, %v255
        %vm361 = vcmask 1045504
        %v362 = vsel %vm361, %v353, %v264
        %v363 = vsel %vm361, %v354, %v265
        %v364 = vsel %vm361, %v355, %v266
        %v365 = vsel %vm361, %v356, %v267
        %v366 = vsel %vm361, %v357, %v268
        %v367 = vsel %vm361, %v358, %v269
        %v368 = vsel %vm361, %v359, %v270
        %v369 = vsel %vm361, %v360, %v271
        %vm370 = vcmask 1040384
        %v371 = vsel %vm370, %v264, %v280
        %v372 = vsel %vm370, %v265, %v281
        %v373 = vsel %vm370, %v266, %v282
        %v374 = vsel %vm370, %v267, %v283
        %v375 = vsel %vm370, %v268, %v284
        %v376 = vsel %vm370, %v269, %v285
        %v377 = vsel %vm370, %v270, %v286
        %v378 = vsel %vm370, %v271, %v287
        %vm379 = vcmask 1043456
        %v380 = vsel %vm379, %v371, %v296
        %v381 = vsel %vm379, %v372, %v232
        %v382 = vsel %vm379, %v373, %v297
        %v383 = vsel %vm379, %v374, %v233
        %v384 = vsel %vm379, %v375, %v298
        %v385 = vsel %vm379, %v376, %v234
        %v386 = vsel %vm379, %v377, %v299
        %v387 = vsel %vm379, %v378, %v235
        %vm388 = vcmask 1046528
        %v389 = vsel %vm388, %v380, %v304
        %v390 = vsel %vm388, %v381, %v305
        %v391 = vsel %vm388, %v382, %v306
        %v392 = vsel %vm388, %v383, %v307
        %v393 = vsel %vm388, %v384, %v308
        %v394 = vsel %vm388, %v385, %v309
        %v395 = vsel %vm388, %v386, %v310
        %v396 = vsel %vm388, %v387, %v311
        %vm397 = vcmask 1041408
        %v398 = vsel %vm397, %v304, %v320
        %v399 = vsel %vm397, %v305, %v321
        %v400 = vsel %vm397, %v306, %v322
        %v401 = vsel %vm397, %v307, %v323
        %v402 = vsel %vm397, %v308, %v324
        %v403 = vsel %vm397, %v309, %v325
        %v404 = vsel %vm397, %v310, %v326
        %v405 = vsel %vm397, %v311, %v327
        %vm406 = vcmask 1044480
        %v407 = vsel %vm406, %v398, %v336
        %v408 = vsel %vm406, %v399, %v337
        %v409 = vsel %vm406, %v400, %v338
        %v410 = vsel %vm406, %v401, %v339
        %v411 = vsel %vm406, %v402, %v340
        %v412 = vsel %vm406, %v403, %v341
        %v413 = vsel %vm406, %v404, %v342
        %v414 = vsel %vm406, %v405, %v343
        %v415 = vmul.f32 %v224, %v362
        %v416 = vmul.f32 %v224, %v363
        %v417 = vmul.f32 %v224, %v364
        %v418 = vmul.f32 %v224, %v365
        %v419 = vmul.f32 %v224, %v366
        %v420 = vmul.f32 %v224, %v367
        %v421 = vmul.f32 %v224, %v368
        %v422 = vmul.f32 %v224, %v369
        %v423 = vmul.f32 %v225, %v389
        %v424 = vmul.f32 %v225, %v390
        %v425 = vmul.f32 %v225, %v391
        %v426 = vmul.f32 %v225, %v392
        %v427 = vmul.f32 %v225, %v393
        %v428 = vmul.f32 %v225, %v394
        %v429 = vmul.f32 %v225, %v395
        %v430 = vmul.f32 %v225, %v396
        %v431 = vmul.f32 %v226, %v407
        %v432 = vmul.f32 %v226, %v408
        %v433 = vmul.f32 %v226, %v409
        %v434 = vmul.f32 %v226, %v410
        %v435 = vmul.f32 %v226, %v411
        %v436 = vmul.f32 %v226, %v412
        %v437 = vmul.f32 %v226, %v413
        %v438 = vmul.f32 %v226, %v414
        %v439 = vmul.f32 %v227, %v232
        %v440 = vmul.f32 %v227, %v240
        %v441 = vmul.f32 %v227, %v233
        %v442 = vmul.f32 %v227, %v241
        %v443 = vmul.f32 %v227, %v234
        %v444 = vmul.f32 %v227, %v242
        %v445 = vmul.f32 %v227, %v235
        %v446 = vmul.f32 %v227, %v243
        %v447 = vadd.f32 %v415, %v228
        %v448 = vadd.f32 %v416, %v228
        %v449 = vadd.f32 %v417, %v228
        %v450 = vadd.f32 %v418, %v228
        %v451 = vadd.f32 %v419, %v228
        %v452 = vadd.f32 %v420, %v228
        %v453 = vadd.f32 %v421, %v228
        %v454 = vadd.f32 %v422, %v228
        %v455 = vadd.f32 %v423, %v229
        %v456 = vadd.f32 %v424, %v229
        %v457 = vadd.f32 %v425, %v229
        %v458 = vadd.f32 %v426, %v229
        %v459 = vadd.f32 %v427, %v229
        %v460 = vadd.f32 %v428, %v229
        %v461 = vadd.f32 %v429, %v229
        %v462 = vadd.f32 %v430, %v229
        %v463 = vadd.f32 %v431, %v230
        %v464 = vadd.f32 %v432, %v230
        %v465 = vadd.f32 %v433, %v230
        %v466 = vadd.f32 %v434, %v230
        %v467 = vadd.f32 %v435, %v230
        %v468 = vadd.f32 %v436, %v230
        %v469 = vadd.f32 %v437, %v230
        %v470 = vadd.f32 %v438, %v230
        %v471 = vadd.f32 %v439, %v231
        %v472 = vadd.f32 %v440, %v231
        %v473 = vadd.f32 %v441, %v231
        %v474 = vadd.f32 %v442, %v231
        %v475 = vadd.f32 %v443, %v231
        %v476 = vadd.f32 %v444, %v231
        %v477 = vadd.f32 %v445, %v231
        %v478 = vadd.f32 %v446, %v231
        %v479 = vand.u32 2147483647, %v447
        %vm480 = vcmp.le.f32.partialorder %v479, 0.7853982
        %vm481 = vcmp.lt.s32.totalorder %v447, 0
        %v482 = vand.u32 %v447, 2139095040
        %v483 = vshrl.u32 %v482, 23
        %v484 = vsub.s32 %v483, 127
        %v485 = vand.u32 2147483647, %v447
        %v486 = vand.u32 %v485, 8388607
        %v487 = vor.u32 %v486, 8388608
        %v488 = vsub.s32 0, %v487
        %v489 = vadd.s32 %v484, 1
        %vm490 = vcmp.gt.s32.totalorder %v489, 0
        %v491 = vsel %vm490, %v489, 0
        %v492 = vshrl.u32 %v491, 5
        %v493 = vand.u32 %v491, 31
        %v494 = vsub.s32 32, %v493
        %v495 = vshrl.u32 683565275, %v494
        %v496 = vshll.u32 683565275, %v493
        %v497 = vshrl.u32 2475754826, %v494
        %v498 = vor.u32 %v496, %v497
        %v499 = vshll.u32 2475754826, %v493
        %v500 = vshrl.u32 2131351028, %v494
        %v501 = vor.u32 %v499, %v500
        %v502 = vshll.u32 2131351028, %v493
        %v503 = vshrl.u32 2102212464, %v494
        %v504 = vor.u32 %v502, %v503
        %v505 = vshll.u32 2102212464, %v493
        %v506 = vshrl.u32 920167782, %v494
        %v507 = vor.u32 %v505, %v506
        %v508 = vshll.u32 920167782, %v493
        %v509 = vshrl.u32 1326507024, %v494
        %v510 = vor.u32 %v508, %v509
        %vm511 = vcmp.lt.s32.totalorder %v492, 1
        %vm512 = vcmp.lt.s32.totalorder %v492, 2
        %vm513 = vcmp.lt.s32.totalorder %v492, 3
        %vm514 = vcmp.lt.s32.totalorder %v492, 4
        %v515 = vsel %vm511, %v495, %v498
        %v516 = vsel %vm514, %v504, 2102212464
        %v517 = vsel %vm513, %v501, %v516
        %v518 = vsel %vm512, %v515, %v517
        %v519 = vsel %vm511, %v498, %v501
        %v520 = vsel %vm514, %v507, 920167782
        %v521 = vsel %vm513, %v504, %v520
        %v522 = vsel %vm512, %v519, %v521
        %v523 = vsel %vm511, %v501, %v504
        %v524 = vsel %vm514, %v510, 1326507024
        %v525 = vsel %vm513, %v507, %v524
        %v526 = vsel %vm512, %v523, %v525
        %v527 = vshll.u32 %v487, 8
        %v528 = vmul.u32.u64.compose %v527, %v526
        %v529 = vextract.low.u32 %v528
        %v530 = vextract.high.u32 %v528
        %v531 = vmul.u32.u64.compose %v527, %v522
        %v532 = vextract.low.u32 %v531
        %v533 = vextract.high.u32 %v531
        %v534 = vmul.u32 %v527, %v518
        %v535 = vadd.s32 %v530, %v532
        %vm536 = vc.u32 %v530, %v532
        %v537 = vadd.s32 %v533, 1
        %v538 = vsel %vm536, %v537, %v533
        %v539 = vadd.s32 %v534, %v538
        %v540 = vadd.s32 %v539, 536870912
        %v541 = vshrl.u32 %v540, 30
        %v542 = vshll.u32 %v541, 30
        %v543 = vsub.s32 %v539, %v542
        %vm544 = vcmp.lt.s32.totalorder %v543, 0
        %v545 = vsub.s32 0, %v543
        %v546 = vsel %vm544, %v545, %v543
        %v547 = vclz %v546
        %v548 = vsub.s32 %v547, 2
        %vm549 = vcmp.gt.s32.totalorder 0, %v548
        %v550 = vsel %vm549, 0, %v548
        %v551 = vsub.s32 32, %v550
        %v552 = vshll.u32 %v543, %v550
        %v553 = vshrl.u32 %v535, %v551
        %v554 = vor.u32 %v552, %v553
        %v555 = vsub.s32 4294967266, %v550
        %v556 = vadd.s32 %v555, 127
        %v557 = vshll.u32 %v556, 23
        %v558 = vor.u32 4788187, %v557
        %v559 = vand.u32 2147483647, %v558
        %v561 = vcvt.s32.f32 %v554
        %v562 = vmul.f32 %v561, %v559
        %v563 = vxor.u32 %v562, 2147483648
        %v564 = vsel %vm481, %v563, %v562
        %v565 = vsub.s32 4, %v541
        %v566 = vsel %vm481, %v565, %v541
        %v567 = vsel %vm480, %v447, %v564
        %v568 = vsel %vm480, 0, %v566
        %v569 = vcosq.f32.pop %v567
        %v570 = vsinq.f32.pop %v567
        %vm571 = vweird.f32 %v447
        %v572 = vadd.s32 %v568, 3
        %v573 = vand.u32 %v572, 3
        %vm574 = vcmp.lt.s32.totalorder %v573, 2
        %vm575 = vcmp.eq.s32.totalorder %v573, 0
        %v576 = vxor.u32 %v570, 2147483648
        %v577 = vsel %vm575, %v569, %v576
        %vm578 = vcmp.eq.s32.totalorder %v573, 2
        %v579 = vxor.u32 %v569, 2147483648
        %v580 = vsel %vm578, %v579, %v570
        %v581 = vsel %vm574, %v577, %v580
        %v582 = vsel %vm571, nan, %v581
        %v583 = vand.u32 2147483647, %v448
        %vm584 = vcmp.le.f32.partialorder %v583, 0.7853982
        %vm585 = vcmp.lt.s32.totalorder %v448, 0
        %v586 = vand.u32 %v448, 2139095040
        %v587 = vshrl.u32 %v586, 23
        %v588 = vsub.s32 %v587, 127
        %v589 = vand.u32 2147483647, %v448
        %v590 = vand.u32 %v589, 8388607
        %v591 = vor.u32 %v590, 8388608
        %v592 = vsub.s32 0, %v591
        %v593 = vadd.s32 %v588, 1
        %vm594 = vcmp.gt.s32.totalorder %v593, 0
        %v595 = vsel %vm594, %v593, 0
        %v596 = vshrl.u32 %v595, 5
        %v597 = vand.u32 %v595, 31
        %v598 = vsub.s32 32, %v597
        %v599 = vshrl.u32 683565275, %v598
        %v600 = vshll.u32 683565275, %v597
        %v601 = vshrl.u32 2475754826, %v598
        %v602 = vor.u32 %v600, %v601
        %v603 = vshll.u32 2475754826, %v597
        %v604 = vshrl.u32 2131351028, %v598
        %v605 = vor.u32 %v603, %v604
        %v606 = vshll.u32 2131351028, %v597
        %v607 = vshrl.u32 2102212464, %v598
        %v608 = vor.u32 %v606, %v607
        %v609 = vshll.u32 2102212464, %v597
        %v610 = vshrl.u32 920167782, %v598
        %v611 = vor.u32 %v609, %v610
        %v612 = vshll.u32 920167782, %v597
        %v613 = vshrl.u32 1326507024, %v598
        %v614 = vor.u32 %v612, %v613
        %vm615 = vcmp.lt.s32.totalorder %v596, 1
        %vm616 = vcmp.lt.s32.totalorder %v596, 2
        %vm617 = vcmp.lt.s32.totalorder %v596, 3
        %vm618 = vcmp.lt.s32.totalorder %v596, 4
        %v619 = vsel %vm615, %v599, %v602
        %v620 = vsel %vm618, %v608, 2102212464
        %v621 = vsel %vm617, %v605, %v620
        %v622 = vsel %vm616, %v619, %v621
        %v623 = vsel %vm615, %v602, %v605
        %v624 = vsel %vm618, %v611, 920167782
        %v625 = vsel %vm617, %v608, %v624
        %v626 = vsel %vm616, %v623, %v625
        %v627 = vsel %vm615, %v605, %v608
        %v628 = vsel %vm618, %v614, 1326507024
        %v629 = vsel %vm617, %v611, %v628
        %v630 = vsel %vm616, %v627, %v629
        %v631 = vshll.u32 %v591, 8
        %v632 = vmul.u32.u64.compose %v631, %v630
        %v633 = vextract.low.u32 %v632
        %v634 = vextract.high.u32 %v632
        %v635 = vmul.u32.u64.compose %v631, %v626
        %v636 = vextract.low.u32 %v635
        %v637 = vextract.high.u32 %v635
        %v638 = vmul.u32 %v631, %v622
        %v639 = vadd.s32 %v634, %v636
        %vm640 = vc.u32 %v634, %v636
        %v641 = vadd.s32 %v637, 1
        %v642 = vsel %vm640, %v641, %v637
        %v643 = vadd.s32 %v638, %v642
        %v644 = vadd.s32 %v643, 536870912
        %v645 = vshrl.u32 %v644, 30
        %v646 = vshll.u32 %v645, 30
        %v647 = vsub.s32 %v643, %v646
        %vm648 = vcmp.lt.s32.totalorder %v647, 0
        %v649 = vsub.s32 0, %v647
        %v650 = vsel %vm648, %v649, %v647
        %v651 = vclz %v650
        %v652 = vsub.s32 %v651, 2
        %vm653 = vcmp.gt.s32.totalorder 0, %v652
        %v654 = vsel %vm653, 0, %v652
        %v655 = vsub.s32 32, %v654
        %v656 = vshll.u32 %v647, %v654
        %v657 = vshrl.u32 %v639, %v655
        %v658 = vor.u32 %v656, %v657
        %v659 = vsub.s32 4294967266, %v654
        %v660 = vadd.s32 %v659, 127
        %v661 = vshll.u32 %v660, 23
        %v662 = vor.u32 4788187, %v661
        %v663 = vand.u32 2147483647, %v662
        %v665 = vcvt.s32.f32 %v658
        %v666 = vmul.f32 %v665, %v663
        %v667 = vxor.u32 %v666, 2147483648
        %v668 = vsel %vm585, %v667, %v666
        %v669 = vsub.s32 4, %v645
        %v670 = vsel %vm585, %v669, %v645
        %v671 = vsel %vm584, %v448, %v668
        %v672 = vsel %vm584, 0, %v670
        %v673 = vcosq.f32.pop %v671
        %v674 = vsinq.f32.pop %v671
        %vm675 = vweird.f32 %v448
        %v676 = vadd.s32 %v672, 3
        %v677 = vand.u32 %v676, 3
        %vm678 = vcmp.lt.s32.totalorder %v677, 2
        %vm679 = vcmp.eq.s32.totalorder %v677, 0
        %v680 = vxor.u32 %v674, 2147483648
        %v681 = vsel %vm679, %v673, %v680
        %vm682 = vcmp.eq.s32.totalorder %v677, 2
        %v683 = vxor.u32 %v673, 2147483648
        %v684 = vsel %vm682, %v683, %v674
        %v685 = vsel %vm678, %v681, %v684
        %v686 = vsel %vm675, nan, %v685
        %v687 = vand.u32 2147483647, %v449
        %vm688 = vcmp.le.f32.partialorder %v687, 0.7853982
        %vm689 = vcmp.lt.s32.totalorder %v449, 0
        %v690 = vand.u32 %v449, 2139095040
        %v691 = vshrl.u32 %v690, 23
        %v692 = vsub.s32 %v691, 127
        %v693 = vand.u32 2147483647, %v449
        %v694 = vand.u32 %v693, 8388607
        %v695 = vor.u32 %v694, 8388608
        %v696 = vsub.s32 0, %v695
        %v697 = vadd.s32 %v692, 1
        %vm698 = vcmp.gt.s32.totalorder %v697, 0
        %v699 = vsel %vm698, %v697, 0
        %v700 = vshrl.u32 %v699, 5
        %v701 = vand.u32 %v699, 31
        %v702 = vsub.s32 32, %v701
        %v703 = vshrl.u32 683565275, %v702
        %v704 = vshll.u32 683565275, %v701
        %v705 = vshrl.u32 2475754826, %v702
        %v706 = vor.u32 %v704, %v705
        %v707 = vshll.u32 2475754826, %v701
        %v708 = vshrl.u32 2131351028, %v702
        %v709 = vor.u32 %v707, %v708
        %v710 = vshll.u32 2131351028, %v701
        %v711 = vshrl.u32 2102212464, %v702
        %v712 = vor.u32 %v710, %v711
        %v713 = vshll.u32 2102212464, %v701
        %v714 = vshrl.u32 920167782, %v702
        %v715 = vor.u32 %v713, %v714
        %v716 = vshll.u32 920167782, %v701
        %v717 = vshrl.u32 1326507024, %v702
        %v718 = vor.u32 %v716, %v717
        %vm719 = vcmp.lt.s32.totalorder %v700, 1
        %vm720 = vcmp.lt.s32.totalorder %v700, 2
        %vm721 = vcmp.lt.s32.totalorder %v700, 3
        %vm722 = vcmp.lt.s32.totalorder %v700, 4
        %v723 = vsel %vm719, %v703, %v706
        %v724 = vsel %vm722, %v712, 2102212464
        %v725 = vsel %vm721, %v709, %v724
        %v726 = vsel %vm720, %v723, %v725
        %v727 = vsel %vm719, %v706, %v709
        %v728 = vsel %vm722, %v715, 920167782
        %v729 = vsel %vm721, %v712, %v728
        %v730 = vsel %vm720, %v727, %v729
        %v731 = vsel %vm719, %v709, %v712
        %v732 = vsel %vm722, %v718, 1326507024
        %v733 = vsel %vm721, %v715, %v732
        %v734 = vsel %vm720, %v731, %v733
        %v735 = vshll.u32 %v695, 8
        %v736 = vmul.u32.u64.compose %v735, %v734
        %v737 = vextract.low.u32 %v736
        %v738 = vextract.high.u32 %v736
        %v739 = vmul.u32.u64.compose %v735, %v730
        %v740 = vextract.low.u32 %v739
        %v741 = vextract.high.u32 %v739
        %v742 = vmul.u32 %v735, %v726
        %v743 = vadd.s32 %v738, %v740
        %vm744 = vc.u32 %v738, %v740
        %v745 = vadd.s32 %v741, 1
        %v746 = vsel %vm744, %v745, %v741
        %v747 = vadd.s32 %v742, %v746
        %v748 = vadd.s32 %v747, 536870912
        %v749 = vshrl.u32 %v748, 30
        %v750 = vshll.u32 %v749, 30
        %v751 = vsub.s32 %v747, %v750
        %vm752 = vcmp.lt.s32.totalorder %v751, 0
        %v753 = vsub.s32 0, %v751
        %v754 = vsel %vm752, %v753, %v751
        %v755 = vclz %v754
        %v756 = vsub.s32 %v755, 2
        %vm757 = vcmp.gt.s32.totalorder 0, %v756
        %v758 = vsel %vm757, 0, %v756
        %v759 = vsub.s32 32, %v758
        %v760 = vshll.u32 %v751, %v758
        %v761 = vshrl.u32 %v743, %v759
        %v762 = vor.u32 %v760, %v761
        %v763 = vsub.s32 4294967266, %v758
        %v764 = vadd.s32 %v763, 127
        %v765 = vshll.u32 %v764, 23
        %v766 = vor.u32 4788187, %v765
        %v767 = vand.u32 2147483647, %v766
        %v769 = vcvt.s32.f32 %v762
        %v770 = vmul.f32 %v769, %v767
        %v771 = vxor.u32 %v770, 2147483648
        %v772 = vsel %vm689, %v771, %v770
        %v773 = vsub.s32 4, %v749
        %v774 = vsel %vm689, %v773, %v749
        %v775 = vsel %vm688, %v449, %v772
        %v776 = vsel %vm688, 0, %v774
        %v777 = vcosq.f32.pop %v775
        %v778 = vsinq.f32.pop %v775
        %vm779 = vweird.f32 %v449
        %v780 = vadd.s32 %v776, 3
        %v781 = vand.u32 %v780, 3
        %vm782 = vcmp.lt.s32.totalorder %v781, 2
        %vm783 = vcmp.eq.s32.totalorder %v781, 0
        %v784 = vxor.u32 %v778, 2147483648
        %v785 = vsel %vm783, %v777, %v784
        %vm786 = vcmp.eq.s32.totalorder %v781, 2
        %v787 = vxor.u32 %v777, 2147483648
        %v788 = vsel %vm786, %v787, %v778
        %v789 = vsel %vm782, %v785, %v788
        %v790 = vsel %vm779, nan, %v789
        %v791 = vand.u32 2147483647, %v450
        %vm792 = vcmp.le.f32.partialorder %v791, 0.7853982
        %vm793 = vcmp.lt.s32.totalorder %v450, 0
        %v794 = vand.u32 %v450, 2139095040
        %v795 = vshrl.u32 %v794, 23
        %v796 = vsub.s32 %v795, 127
        %v797 = vand.u32 2147483647, %v450
        %v798 = vand.u32 %v797, 8388607
        %v799 = vor.u32 %v798, 8388608
        %v800 = vsub.s32 0, %v799
        %v801 = vadd.s32 %v796, 1
        %vm802 = vcmp.gt.s32.totalorder %v801, 0
        %v803 = vsel %vm802, %v801, 0
        %v804 = vshrl.u32 %v803, 5
        %v805 = vand.u32 %v803, 31
        %v806 = vsub.s32 32, %v805
        %v807 = vshrl.u32 683565275, %v806
        %v808 = vshll.u32 683565275, %v805
        %v809 = vshrl.u32 2475754826, %v806
        %v810 = vor.u32 %v808, %v809
        %v811 = vshll.u32 2475754826, %v805
        %v812 = vshrl.u32 2131351028, %v806
        %v813 = vor.u32 %v811, %v812
        %v814 = vshll.u32 2131351028, %v805
        %v815 = vshrl.u32 2102212464, %v806
        %v816 = vor.u32 %v814, %v815
        %v817 = vshll.u32 2102212464, %v805
        %v818 = vshrl.u32 920167782, %v806
        %v819 = vor.u32 %v817, %v818
        %v820 = vshll.u32 920167782, %v805
        %v821 = vshrl.u32 1326507024, %v806
        %v822 = vor.u32 %v820, %v821
        %vm823 = vcmp.lt.s32.totalorder %v804, 1
        %vm824 = vcmp.lt.s32.totalorder %v804, 2
        %vm825 = vcmp.lt.s32.totalorder %v804, 3
        %vm826 = vcmp.lt.s32.totalorder %v804, 4
        %v827 = vsel %vm823, %v807, %v810
        %v828 = vsel %vm826, %v816, 2102212464
        %v829 = vsel %vm825, %v813, %v828
        %v830 = vsel %vm824, %v827, %v829
        %v831 = vsel %vm823, %v810, %v813
        %v832 = vsel %vm826, %v819, 920167782
        %v833 = vsel %vm825, %v816, %v832
        %v834 = vsel %vm824, %v831, %v833
        %v835 = vsel %vm823, %v813, %v816
        %v836 = vsel %vm826, %v822, 1326507024
        %v837 = vsel %vm825, %v819, %v836
        %v838 = vsel %vm824, %v835, %v837
        %v839 = vshll.u32 %v799, 8
        %v840 = vmul.u32.u64.compose %v839, %v838
        %v841 = vextract.low.u32 %v840
        %v842 = vextract.high.u32 %v840
        %v843 = vmul.u32.u64.compose %v839, %v834
        %v844 = vextract.low.u32 %v843
        %v845 = vextract.high.u32 %v843
        %v846 = vmul.u32 %v839, %v830
        %v847 = vadd.s32 %v842, %v844
        %vm848 = vc.u32 %v842, %v844
        %v849 = vadd.s32 %v845, 1
        %v850 = vsel %vm848, %v849, %v845
        %v851 = vadd.s32 %v846, %v850
        %v852 = vadd.s32 %v851, 536870912
        %v853 = vshrl.u32 %v852, 30
        %v854 = vshll.u32 %v853, 30
        %v855 = vsub.s32 %v851, %v854
        %vm856 = vcmp.lt.s32.totalorder %v855, 0
        %v857 = vsub.s32 0, %v855
        %v858 = vsel %vm856, %v857, %v855
        %v859 = vclz %v858
        %v860 = vsub.s32 %v859, 2
        %vm861 = vcmp.gt.s32.totalorder 0, %v860
        %v862 = vsel %vm861, 0, %v860
        %v863 = vsub.s32 32, %v862
        %v864 = vshll.u32 %v855, %v862
        %v865 = vshrl.u32 %v847, %v863
        %v866 = vor.u32 %v864, %v865
        %v867 = vsub.s32 4294967266, %v862
        %v868 = vadd.s32 %v867, 127
        %v869 = vshll.u32 %v868, 23
        %v870 = vor.u32 4788187, %v869
        %v871 = vand.u32 2147483647, %v870
        %v873 = vcvt.s32.f32 %v866
        %v874 = vmul.f32 %v873, %v871
        %v875 = vxor.u32 %v874, 2147483648
        %v876 = vsel %vm793, %v875, %v874
        %v877 = vsub.s32 4, %v853
        %v878 = vsel %vm793, %v877, %v853
        %v879 = vsel %vm792, %v450, %v876
        %v880 = vsel %vm792, 0, %v878
        %v881 = vcosq.f32.pop %v879
        %v882 = vsinq.f32.pop %v879
        %vm883 = vweird.f32 %v450
        %v884 = vadd.s32 %v880, 3
        %v885 = vand.u32 %v884, 3
        %vm886 = vcmp.lt.s32.totalorder %v885, 2
        %vm887 = vcmp.eq.s32.totalorder %v885, 0
        %v888 = vxor.u32 %v882, 2147483648
        %v889 = vsel %vm887, %v881, %v888
        %vm890 = vcmp.eq.s32.totalorder %v885, 2
        %v891 = vxor.u32 %v881, 2147483648
        %v892 = vsel %vm890, %v891, %v882
        %v893 = vsel %vm886, %v889, %v892
        %v894 = vsel %vm883, nan, %v893
        %v895 = vand.u32 2147483647, %v451
        %vm896 = vcmp.le.f32.partialorder %v895, 0.7853982
        %vm897 = vcmp.lt.s32.totalorder %v451, 0
        %v898 = vand.u32 %v451, 2139095040
        %v899 = vshrl.u32 %v898, 23
        %v900 = vsub.s32 %v899, 127
        %v901 = vand.u32 2147483647, %v451
        %v902 = vand.u32 %v901, 8388607
        %v903 = vor.u32 %v902, 8388608
        %v904 = vsub.s32 0, %v903
        %v905 = vadd.s32 %v900, 1
        %vm906 = vcmp.gt.s32.totalorder %v905, 0
        %v907 = vsel %vm906, %v905, 0
        %v908 = vshrl.u32 %v907, 5
        %v909 = vand.u32 %v907, 31
        %v910 = vsub.s32 32, %v909
        %v911 = vshrl.u32 683565275, %v910
        %v912 = vshll.u32 683565275, %v909
        %v913 = vshrl.u32 2475754826, %v910
        %v914 = vor.u32 %v912, %v913
        %v915 = vshll.u32 2475754826, %v909
        %v916 = vshrl.u32 2131351028, %v910
        %v917 = vor.u32 %v915, %v916
        %v918 = vshll.u32 2131351028, %v909
        %v919 = vshrl.u32 2102212464, %v910
        %v920 = vor.u32 %v918, %v919
        %v921 = vshll.u32 2102212464, %v909
        %v922 = vshrl.u32 920167782, %v910
        %v923 = vor.u32 %v921, %v922
        %v924 = vshll.u32 920167782, %v909
        %v925 = vshrl.u32 1326507024, %v910
        %v926 = vor.u32 %v924, %v925
        %vm927 = vcmp.lt.s32.totalorder %v908, 1
        %vm928 = vcmp.lt.s32.totalorder %v908, 2
        %vm929 = vcmp.lt.s32.totalorder %v908, 3
        %vm930 = vcmp.lt.s32.totalorder %v908, 4
        %v931 = vsel %vm927, %v911, %v914
        %v932 = vsel %vm930, %v920, 2102212464
        %v933 = vsel %vm929, %v917, %v932
        %v934 = vsel %vm928, %v931, %v933
        %v935 = vsel %vm927, %v914, %v917
        %v936 = vsel %vm930, %v923, 920167782
        %v937 = vsel %vm929, %v920, %v936
        %v938 = vsel %vm928, %v935, %v937
        %v939 = vsel %vm927, %v917, %v920
        %v940 = vsel %vm930, %v926, 1326507024
        %v941 = vsel %vm929, %v923, %v940
        %v942 = vsel %vm928, %v939, %v941
        %v943 = vshll.u32 %v903, 8
        %v944 = vmul.u32.u64.compose %v943, %v942
        %v945 = vextract.low.u32 %v944
        %v946 = vextract.high.u32 %v944
        %v947 = vmul.u32.u64.compose %v943, %v938
        %v948 = vextract.low.u32 %v947
        %v949 = vextract.high.u32 %v947
        %v950 = vmul.u32 %v943, %v934
        %v951 = vadd.s32 %v946, %v948
        %vm952 = vc.u32 %v946, %v948
        %v953 = vadd.s32 %v949, 1
        %v954 = vsel %vm952, %v953, %v949
        %v955 = vadd.s32 %v950, %v954
        %v956 = vadd.s32 %v955, 536870912
        %v957 = vshrl.u32 %v956, 30
        %v958 = vshll.u32 %v957, 30
        %v959 = vsub.s32 %v955, %v958
        %vm960 = vcmp.lt.s32.totalorder %v959, 0
        %v961 = vsub.s32 0, %v959
        %v962 = vsel %vm960, %v961, %v959
        %v963 = vclz %v962
        %v964 = vsub.s32 %v963, 2
        %vm965 = vcmp.gt.s32.totalorder 0, %v964
        %v966 = vsel %vm965, 0, %v964
        %v967 = vsub.s32 32, %v966
        %v968 = vshll.u32 %v959, %v966
        %v969 = vshrl.u32 %v951, %v967
        %v970 = vor.u32 %v968, %v969
        %v971 = vsub.s32 4294967266, %v966
        %v972 = vadd.s32 %v971, 127
        %v973 = vshll.u32 %v972, 23
        %v974 = vor.u32 4788187, %v973
        %v975 = vand.u32 2147483647, %v974
        %v977 = vcvt.s32.f32 %v970
        %v978 = vmul.f32 %v977, %v975
        %v979 = vxor.u32 %v978, 2147483648
        %v980 = vsel %vm897, %v979, %v978
        %v981 = vsub.s32 4, %v957
        %v982 = vsel %vm897, %v981, %v957
        %v983 = vsel %vm896, %v451, %v980
        %v984 = vsel %vm896, 0, %v982
        %v985 = vcosq.f32.pop %v983
        %v986 = vsinq.f32.pop %v983
        %vm987 = vweird.f32 %v451
        %v988 = vadd.s32 %v984, 3
        %v989 = vand.u32 %v988, 3
        %vm990 = vcmp.lt.s32.totalorder %v989, 2
        %vm991 = vcmp.eq.s32.totalorder %v989, 0
        %v992 = vxor.u32 %v986, 2147483648
        %v993 = vsel %vm991, %v985, %v992
        %vm994 = vcmp.eq.s32.totalorder %v989, 2
        %v995 = vxor.u32 %v985, 2147483648
        %v996 = vsel %vm994, %v995, %v986
        %v997 = vsel %vm990, %v993, %v996
        %v998 = vsel %vm987, nan, %v997
        %v999 = vand.u32 2147483647, %v452
        %vm1000 = vcmp.le.f32.partialorder %v999, 0.7853982
        %vm1001 = vcmp.lt.s32.totalorder %v452, 0
        %v1002 = vand.u32 %v452, 2139095040
        %v1003 = vshrl.u32 %v1002, 23
        %v1004 = vsub.s32 %v1003, 127
        %v1005 = vand.u32 2147483647, %v452
        %v1006 = vand.u32 %v1005, 8388607
        %v1007 = vor.u32 %v1006, 8388608
        %v1008 = vsub.s32 0, %v1007
        %v1009 = vadd.s32 %v1004, 1
        %vm1010 = vcmp.gt.s32.totalorder %v1009, 0
        %v1011 = vsel %vm1010, %v1009, 0
        %v1012 = vshrl.u32 %v1011, 5
        %v1013 = vand.u32 %v1011, 31
        %v1014 = vsub.s32 32, %v1013
        %v1015 = vshrl.u32 683565275, %v1014
        %v1016 = vshll.u32 683565275, %v1013
        %v1017 = vshrl.u32 2475754826, %v1014
        %v1018 = vor.u32 %v1016, %v1017
        %v1019 = vshll.u32 2475754826, %v1013
        %v1020 = vshrl.u32 2131351028, %v1014
        %v1021 = vor.u32 %v1019, %v1020
        %v1022 = vshll.u32 2131351028, %v1013
        %v1023 = vshrl.u32 2102212464, %v1014
        %v1024 = vor.u32 %v1022, %v1023
        %v1025 = vshll.u32 2102212464, %v1013
        %v1026 = vshrl.u32 920167782, %v1014
        %v1027 = vor.u32 %v1025, %v1026
        %v1028 = vshll.u32 920167782, %v1013
        %v1029 = vshrl.u32 1326507024, %v1014
        %v1030 = vor.u32 %v1028, %v1029
        %vm1031 = vcmp.lt.s32.totalorder %v1012, 1
        %vm1032 = vcmp.lt.s32.totalorder %v1012, 2
        %vm1033 = vcmp.lt.s32.totalorder %v1012, 3
        %vm1034 = vcmp.lt.s32.totalorder %v1012, 4
        %v1035 = vsel %vm1031, %v1015, %v1018
        %v1036 = vsel %vm1034, %v1024, 2102212464
        %v1037 = vsel %vm1033, %v1021, %v1036
        %v1038 = vsel %vm1032, %v1035, %v1037
        %v1039 = vsel %vm1031, %v1018, %v1021
        %v1040 = vsel %vm1034, %v1027, 920167782
        %v1041 = vsel %vm1033, %v1024, %v1040
        %v1042 = vsel %vm1032, %v1039, %v1041
        %v1043 = vsel %vm1031, %v1021, %v1024
        %v1044 = vsel %vm1034, %v1030, 1326507024
        %v1045 = vsel %vm1033, %v1027, %v1044
        %v1046 = vsel %vm1032, %v1043, %v1045
        %v1047 = vshll.u32 %v1007, 8
        %v1048 = vmul.u32.u64.compose %v1047, %v1046
        %v1049 = vextract.low.u32 %v1048
        %v1050 = vextract.high.u32 %v1048
        %v1051 = vmul.u32.u64.compose %v1047, %v1042
        %v1052 = vextract.low.u32 %v1051
        %v1053 = vextract.high.u32 %v1051
        %v1054 = vmul.u32 %v1047, %v1038
        %v1055 = vadd.s32 %v1050, %v1052
        %vm1056 = vc.u32 %v1050, %v1052
        %v1057 = vadd.s32 %v1053, 1
        %v1058 = vsel %vm1056, %v1057, %v1053
        %v1059 = vadd.s32 %v1054, %v1058
        %v1060 = vadd.s32 %v1059, 536870912
        %v1061 = vshrl.u32 %v1060, 30
        %v1062 = vshll.u32 %v1061, 30
        %v1063 = vsub.s32 %v1059, %v1062
        %vm1064 = vcmp.lt.s32.totalorder %v1063, 0
        %v1065 = vsub.s32 0, %v1063
        %v1066 = vsel %vm1064, %v1065, %v1063
        %v1067 = vclz %v1066
        %v1068 = vsub.s32 %v1067, 2
        %vm1069 = vcmp.gt.s32.totalorder 0, %v1068
        %v1070 = vsel %vm1069, 0, %v1068
        %v1071 = vsub.s32 32, %v1070
        %v1072 = vshll.u32 %v1063, %v1070
        %v1073 = vshrl.u32 %v1055, %v1071
        %v1074 = vor.u32 %v1072, %v1073
        %v1075 = vsub.s32 4294967266, %v1070
        %v1076 = vadd.s32 %v1075, 127
        %v1077 = vshll.u32 %v1076, 23
        %v1078 = vor.u32 4788187, %v1077
        %v1079 = vand.u32 2147483647, %v1078
        %v1081 = vcvt.s32.f32 %v1074
        %v1082 = vmul.f32 %v1081, %v1079
        %v1083 = vxor.u32 %v1082, 2147483648
        %v1084 = vsel %vm1001, %v1083, %v1082
        %v1085 = vsub.s32 4, %v1061
        %v1086 = vsel %vm1001, %v1085, %v1061
        %v1087 = vsel %vm1000, %v452, %v1084
        %v1088 = vsel %vm1000, 0, %v1086
        %v1089 = vcosq.f32.pop %v1087
        %v1090 = vsinq.f32.pop %v1087
        %vm1091 = vweird.f32 %v452
        %v1092 = vadd.s32 %v1088, 3
        %v1093 = vand.u32 %v1092, 3
        %vm1094 = vcmp.lt.s32.totalorder %v1093, 2
        %vm1095 = vcmp.eq.s32.totalorder %v1093, 0
        %v1096 = vxor.u32 %v1090, 2147483648
        %v1097 = vsel %vm1095, %v1089, %v1096
        %vm1098 = vcmp.eq.s32.totalorder %v1093, 2
        %v1099 = vxor.u32 %v1089, 2147483648
        %v1100 = vsel %vm1098, %v1099, %v1090
        %v1101 = vsel %vm1094, %v1097, %v1100
        %v1102 = vsel %vm1091, nan, %v1101
        %v1103 = vand.u32 2147483647, %v453
        %vm1104 = vcmp.le.f32.partialorder %v1103, 0.7853982
        %vm1105 = vcmp.lt.s32.totalorder %v453, 0
        %v1106 = vand.u32 %v453, 2139095040
        %v1107 = vshrl.u32 %v1106, 23
        %v1108 = vsub.s32 %v1107, 127
        %v1109 = vand.u32 2147483647, %v453
        %v1110 = vand.u32 %v1109, 8388607
        %v1111 = vor.u32 %v1110, 8388608
        %v1112 = vsub.s32 0, %v1111
        %v1113 = vadd.s32 %v1108, 1
        %vm1114 = vcmp.gt.s32.totalorder %v1113, 0
        %v1115 = vsel %vm1114, %v1113, 0
        %v1116 = vshrl.u32 %v1115, 5
        %v1117 = vand.u32 %v1115, 31
        %v1118 = vsub.s32 32, %v1117
        %v1119 = vshrl.u32 683565275, %v1118
        %v1120 = vshll.u32 683565275, %v1117
        %v1121 = vshrl.u32 2475754826, %v1118
        %v1122 = vor.u32 %v1120, %v1121
        %v1123 = vshll.u32 2475754826, %v1117
        %v1124 = vshrl.u32 2131351028, %v1118
        %v1125 = vor.u32 %v1123, %v1124
        %v1126 = vshll.u32 2131351028, %v1117
        %v1127 = vshrl.u32 2102212464, %v1118
        %v1128 = vor.u32 %v1126, %v1127
        %v1129 = vshll.u32 2102212464, %v1117
        %v1130 = vshrl.u32 920167782, %v1118
        %v1131 = vor.u32 %v1129, %v1130
        %v1132 = vshll.u32 920167782, %v1117
        %v1133 = vshrl.u32 1326507024, %v1118
        %v1134 = vor.u32 %v1132, %v1133
        %vm1135 = vcmp.lt.s32.totalorder %v1116, 1
        %vm1136 = vcmp.lt.s32.totalorder %v1116, 2
        %vm1137 = vcmp.lt.s32.totalorder %v1116, 3
        %vm1138 = vcmp.lt.s32.totalorder %v1116, 4
        %v1139 = vsel %vm1135, %v1119, %v1122
        %v1140 = vsel %vm1138, %v1128, 2102212464
        %v1141 = vsel %vm1137, %v1125, %v1140
        %v1142 = vsel %vm1136, %v1139, %v1141
        %v1143 = vsel %vm1135, %v1122, %v1125
        %v1144 = vsel %vm1138, %v1131, 920167782
        %v1145 = vsel %vm1137, %v1128, %v1144
        %v1146 = vsel %vm1136, %v1143, %v1145
        %v1147 = vsel %vm1135, %v1125, %v1128
        %v1148 = vsel %vm1138, %v1134, 1326507024
        %v1149 = vsel %vm1137, %v1131, %v1148
        %v1150 = vsel %vm1136, %v1147, %v1149
        %v1151 = vshll.u32 %v1111, 8
        %v1152 = vmul.u32.u64.compose %v1151, %v1150
        %v1153 = vextract.low.u32 %v1152
        %v1154 = vextract.high.u32 %v1152
        %v1155 = vmul.u32.u64.compose %v1151, %v1146
        %v1156 = vextract.low.u32 %v1155
        %v1157 = vextract.high.u32 %v1155
        %v1158 = vmul.u32 %v1151, %v1142
        %v1159 = vadd.s32 %v1154, %v1156
        %vm1160 = vc.u32 %v1154, %v1156
        %v1161 = vadd.s32 %v1157, 1
        %v1162 = vsel %vm1160, %v1161, %v1157
        %v1163 = vadd.s32 %v1158, %v1162
        %v1164 = vadd.s32 %v1163, 536870912
        %v1165 = vshrl.u32 %v1164, 30
        %v1166 = vshll.u32 %v1165, 30
        %v1167 = vsub.s32 %v1163, %v1166
        %vm1168 = vcmp.lt.s32.totalorder %v1167, 0
        %v1169 = vsub.s32 0, %v1167
        %v1170 = vsel %vm1168, %v1169, %v1167
        %v1171 = vclz %v1170
        %v1172 = vsub.s32 %v1171, 2
        %vm1173 = vcmp.gt.s32.totalorder 0, %v1172
        %v1174 = vsel %vm1173, 0, %v1172
        %v1175 = vsub.s32 32, %v1174
        %v1176 = vshll.u32 %v1167, %v1174
        %v1177 = vshrl.u32 %v1159, %v1175
        %v1178 = vor.u32 %v1176, %v1177
        %v1179 = vsub.s32 4294967266, %v1174
        %v1180 = vadd.s32 %v1179, 127
        %v1181 = vshll.u32 %v1180, 23
        %v1182 = vor.u32 4788187, %v1181
        %v1183 = vand.u32 2147483647, %v1182
        %v1185 = vcvt.s32.f32 %v1178
        %v1186 = vmul.f32 %v1185, %v1183
        %v1187 = vxor.u32 %v1186, 2147483648
        %v1188 = vsel %vm1105, %v1187, %v1186
        %v1189 = vsub.s32 4, %v1165
        %v1190 = vsel %vm1105, %v1189, %v1165
        %v1191 = vsel %vm1104, %v453, %v1188
        %v1192 = vsel %vm1104, 0, %v1190
        %v1193 = vcosq.f32.pop %v1191
        %v1194 = vsinq.f32.pop %v1191
        %vm1195 = vweird.f32 %v453
        %v1196 = vadd.s32 %v1192, 3
        %v1197 = vand.u32 %v1196, 3
        %vm1198 = vcmp.lt.s32.totalorder %v1197, 2
        %vm1199 = vcmp.eq.s32.totalorder %v1197, 0
        %v1200 = vxor.u32 %v1194, 2147483648
        %v1201 = vsel %vm1199, %v1193, %v1200
        %vm1202 = vcmp.eq.s32.totalorder %v1197, 2
        %v1203 = vxor.u32 %v1193, 2147483648
        %v1204 = vsel %vm1202, %v1203, %v1194
        %v1205 = vsel %vm1198, %v1201, %v1204
        %v1206 = vsel %vm1195, nan, %v1205
        %v1207 = vand.u32 2147483647, %v454
        %vm1208 = vcmp.le.f32.partialorder %v1207, 0.7853982
        %vm1209 = vcmp.lt.s32.totalorder %v454, 0
        %v1210 = vand.u32 %v454, 2139095040
        %v1211 = vshrl.u32 %v1210, 23
        %v1212 = vsub.s32 %v1211, 127
        %v1213 = vand.u32 2147483647, %v454
        %v1214 = vand.u32 %v1213, 8388607
        %v1215 = vor.u32 %v1214, 8388608
        %v1216 = vsub.s32 0, %v1215
        %v1217 = vadd.s32 %v1212, 1
        %vm1218 = vcmp.gt.s32.totalorder %v1217, 0
        %v1219 = vsel %vm1218, %v1217, 0
        %v1220 = vshrl.u32 %v1219, 5
        %v1221 = vand.u32 %v1219, 31
        %v1222 = vsub.s32 32, %v1221
        %v1223 = vshrl.u32 683565275, %v1222
        %v1224 = vshll.u32 683565275, %v1221
        %v1225 = vshrl.u32 2475754826, %v1222
        %v1226 = vor.u32 %v1224, %v1225
        %v1227 = vshll.u32 2475754826, %v1221
        %v1228 = vshrl.u32 2131351028, %v1222
        %v1229 = vor.u32 %v1227, %v1228
        %v1230 = vshll.u32 2131351028, %v1221
        %v1231 = vshrl.u32 2102212464, %v1222
        %v1232 = vor.u32 %v1230, %v1231
        %v1233 = vshll.u32 2102212464, %v1221
        %v1234 = vshrl.u32 920167782, %v1222
        %v1235 = vor.u32 %v1233, %v1234
        %v1236 = vshll.u32 920167782, %v1221
        %v1237 = vshrl.u32 1326507024, %v1222
        %v1238 = vor.u32 %v1236, %v1237
        %vm1239 = vcmp.lt.s32.totalorder %v1220, 1
        %vm1240 = vcmp.lt.s32.totalorder %v1220, 2
        %vm1241 = vcmp.lt.s32.totalorder %v1220, 3
        %vm1242 = vcmp.lt.s32.totalorder %v1220, 4
        %v1243 = vsel %vm1239, %v1223, %v1226
        %v1244 = vsel %vm1242, %v1232, 2102212464
        %v1245 = vsel %vm1241, %v1229, %v1244
        %v1246 = vsel %vm1240, %v1243, %v1245
        %v1247 = vsel %vm1239, %v1226, %v1229
        %v1248 = vsel %vm1242, %v1235, 920167782
        %v1249 = vsel %vm1241, %v1232, %v1248
        %v1250 = vsel %vm1240, %v1247, %v1249
        %v1251 = vsel %vm1239, %v1229, %v1232
        %v1252 = vsel %vm1242, %v1238, 1326507024
        %v1253 = vsel %vm1241, %v1235, %v1252
        %v1254 = vsel %vm1240, %v1251, %v1253
        %v1255 = vshll.u32 %v1215, 8
        %v1256 = vmul.u32.u64.compose %v1255, %v1254
        %v1257 = vextract.low.u32 %v1256
        %v1258 = vextract.high.u32 %v1256
        %v1259 = vmul.u32.u64.compose %v1255, %v1250
        %v1260 = vextract.low.u32 %v1259
        %v1261 = vextract.high.u32 %v1259
        %v1262 = vmul.u32 %v1255, %v1246
        %v1263 = vadd.s32 %v1258, %v1260
        %vm1264 = vc.u32 %v1258, %v1260
        %v1265 = vadd.s32 %v1261, 1
        %v1266 = vsel %vm1264, %v1265, %v1261
        %v1267 = vadd.s32 %v1262, %v1266
        %v1268 = vadd.s32 %v1267, 536870912
        %v1269 = vshrl.u32 %v1268, 30
        %v1270 = vshll.u32 %v1269, 30
        %v1271 = vsub.s32 %v1267, %v1270
        %vm1272 = vcmp.lt.s32.totalorder %v1271, 0
        %v1273 = vsub.s32 0, %v1271
        %v1274 = vsel %vm1272, %v1273, %v1271
        %v1275 = vclz %v1274
        %v1276 = vsub.s32 %v1275, 2
        %vm1277 = vcmp.gt.s32.totalorder 0, %v1276
        %v1278 = vsel %vm1277, 0, %v1276
        %v1279 = vsub.s32 32, %v1278
        %v1280 = vshll.u32 %v1271, %v1278
        %v1281 = vshrl.u32 %v1263, %v1279
        %v1282 = vor.u32 %v1280, %v1281
        %v1283 = vsub.s32 4294967266, %v1278
        %v1284 = vadd.s32 %v1283, 127
        %v1285 = vshll.u32 %v1284, 23
        %v1286 = vor.u32 4788187, %v1285
        %v1287 = vand.u32 2147483647, %v1286
        %v1289 = vcvt.s32.f32 %v1282
        %v1290 = vmul.f32 %v1289, %v1287
        %v1291 = vxor.u32 %v1290, 2147483648
        %v1292 = vsel %vm1209, %v1291, %v1290
        %v1293 = vsub.s32 4, %v1269
        %v1294 = vsel %vm1209, %v1293, %v1269
        %v1295 = vsel %vm1208, %v454, %v1292
        %v1296 = vsel %vm1208, 0, %v1294
        %v1297 = vcosq.f32.pop %v1295
        %v1298 = vsinq.f32.pop %v1295
        %vm1299 = vweird.f32 %v454
        %v1300 = vadd.s32 %v1296, 3
        %v1301 = vand.u32 %v1300, 3
        %vm1302 = vcmp.lt.s32.totalorder %v1301, 2
        %vm1303 = vcmp.eq.s32.totalorder %v1301, 0
        %v1304 = vxor.u32 %v1298, 2147483648
        %v1305 = vsel %vm1303, %v1297, %v1304
        %vm1306 = vcmp.eq.s32.totalorder %v1301, 2
        %v1307 = vxor.u32 %v1297, 2147483648
        %v1308 = vsel %vm1306, %v1307, %v1298
        %v1309 = vsel %vm1302, %v1305, %v1308
        %v1310 = vsel %vm1299, nan, %v1309
        %v1311 = vand.u32 2147483647, %v455
        %vm1312 = vcmp.le.f32.partialorder %v1311, 0.7853982
        %vm1313 = vcmp.lt.s32.totalorder %v455, 0
        %v1314 = vand.u32 %v455, 2139095040
        %v1315 = vshrl.u32 %v1314, 23
        %v1316 = vsub.s32 %v1315, 127
        %v1317 = vand.u32 2147483647, %v455
        %v1318 = vand.u32 %v1317, 8388607
        %v1319 = vor.u32 %v1318, 8388608
        %v1320 = vsub.s32 0, %v1319
        %v1321 = vadd.s32 %v1316, 1
        %vm1322 = vcmp.gt.s32.totalorder %v1321, 0
        %v1323 = vsel %vm1322, %v1321, 0
        %v1324 = vshrl.u32 %v1323, 5
        %v1325 = vand.u32 %v1323, 31
        %v1326 = vsub.s32 32, %v1325
        %v1327 = vshrl.u32 683565275, %v1326
        %v1328 = vshll.u32 683565275, %v1325
        %v1329 = vshrl.u32 2475754826, %v1326
        %v1330 = vor.u32 %v1328, %v1329
        %v1331 = vshll.u32 2475754826, %v1325
        %v1332 = vshrl.u32 2131351028, %v1326
        %v1333 = vor.u32 %v1331, %v1332
        %v1334 = vshll.u32 2131351028, %v1325
        %v1335 = vshrl.u32 2102212464, %v1326
        %v1336 = vor.u32 %v1334, %v1335
        %v1337 = vshll.u32 2102212464, %v1325
        %v1338 = vshrl.u32 920167782, %v1326
        %v1339 = vor.u32 %v1337, %v1338
        %v1340 = vshll.u32 920167782, %v1325
        %v1341 = vshrl.u32 1326507024, %v1326
        %v1342 = vor.u32 %v1340, %v1341
        %vm1343 = vcmp.lt.s32.totalorder %v1324, 1
        %vm1344 = vcmp.lt.s32.totalorder %v1324, 2
        %vm1345 = vcmp.lt.s32.totalorder %v1324, 3
        %vm1346 = vcmp.lt.s32.totalorder %v1324, 4
        %v1347 = vsel %vm1343, %v1327, %v1330
        %v1348 = vsel %vm1346, %v1336, 2102212464
        %v1349 = vsel %vm1345, %v1333, %v1348
        %v1350 = vsel %vm1344, %v1347, %v1349
        %v1351 = vsel %vm1343, %v1330, %v1333
        %v1352 = vsel %vm1346, %v1339, 920167782
        %v1353 = vsel %vm1345, %v1336, %v1352
        %v1354 = vsel %vm1344, %v1351, %v1353
        %v1355 = vsel %vm1343, %v1333, %v1336
        %v1356 = vsel %vm1346, %v1342, 1326507024
        %v1357 = vsel %vm1345, %v1339, %v1356
        %v1358 = vsel %vm1344, %v1355, %v1357
        %v1359 = vshll.u32 %v1319, 8
        %v1360 = vmul.u32.u64.compose %v1359, %v1358
        %v1361 = vextract.low.u32 %v1360
        %v1362 = vextract.high.u32 %v1360
        %v1363 = vmul.u32.u64.compose %v1359, %v1354
        %v1364 = vextract.low.u32 %v1363
        %v1365 = vextract.high.u32 %v1363
        %v1366 = vmul.u32 %v1359, %v1350
        %v1367 = vadd.s32 %v1362, %v1364
        %vm1368 = vc.u32 %v1362, %v1364
        %v1369 = vadd.s32 %v1365, 1
        %v1370 = vsel %vm1368, %v1369, %v1365
        %v1371 = vadd.s32 %v1366, %v1370
        %v1372 = vadd.s32 %v1371, 536870912
        %v1373 = vshrl.u32 %v1372, 30
        %v1374 = vshll.u32 %v1373, 30
        %v1375 = vsub.s32 %v1371, %v1374
        %vm1376 = vcmp.lt.s32.totalorder %v1375, 0
        %v1377 = vsub.s32 0, %v1375
        %v1378 = vsel %vm1376, %v1377, %v1375
        %v1379 = vclz %v1378
        %v1380 = vsub.s32 %v1379, 2
        %vm1381 = vcmp.gt.s32.totalorder 0, %v1380
        %v1382 = vsel %vm1381, 0, %v1380
        %v1383 = vsub.s32 32, %v1382
        %v1384 = vshll.u32 %v1375, %v1382
        %v1385 = vshrl.u32 %v1367, %v1383
        %v1386 = vor.u32 %v1384, %v1385
        %v1387 = vsub.s32 4294967266, %v1382
        %v1388 = vadd.s32 %v1387, 127
        %v1389 = vshll.u32 %v1388, 23
        %v1390 = vor.u32 4788187, %v1389
        %v1391 = vand.u32 2147483647, %v1390
        %v1393 = vcvt.s32.f32 %v1386
        %v1394 = vmul.f32 %v1393, %v1391
        %v1395 = vxor.u32 %v1394, 2147483648
        %v1396 = vsel %vm1313, %v1395, %v1394
        %v1397 = vsub.s32 4, %v1373
        %v1398 = vsel %vm1313, %v1397, %v1373
        %v1399 = vsel %vm1312, %v455, %v1396
        %v1400 = vsel %vm1312, 0, %v1398
        %v1401 = vcosq.f32.pop %v1399
        %v1402 = vsinq.f32.pop %v1399
        %vm1403 = vweird.f32 %v455
        %v1404 = vadd.s32 %v1400, 3
        %v1405 = vand.u32 %v1404, 3
        %vm1406 = vcmp.lt.s32.totalorder %v1405, 2
        %vm1407 = vcmp.eq.s32.totalorder %v1405, 0
        %v1408 = vxor.u32 %v1402, 2147483648
        %v1409 = vsel %vm1407, %v1401, %v1408
        %vm1410 = vcmp.eq.s32.totalorder %v1405, 2
        %v1411 = vxor.u32 %v1401, 2147483648
        %v1412 = vsel %vm1410, %v1411, %v1402
        %v1413 = vsel %vm1406, %v1409, %v1412
        %v1414 = vsel %vm1403, nan, %v1413
        %v1415 = vand.u32 2147483647, %v456
        %vm1416 = vcmp.le.f32.partialorder %v1415, 0.7853982
        %vm1417 = vcmp.lt.s32.totalorder %v456, 0
        %v1418 = vand.u32 %v456, 2139095040
        %v1419 = vshrl.u32 %v1418, 23
        %v1420 = vsub.s32 %v1419, 127
        %v1421 = vand.u32 2147483647, %v456
        %v1422 = vand.u32 %v1421, 8388607
        %v1423 = vor.u32 %v1422, 8388608
        %v1424 = vsub.s32 0, %v1423
        %v1425 = vadd.s32 %v1420, 1
        %vm1426 = vcmp.gt.s32.totalorder %v1425, 0
        %v1427 = vsel %vm1426, %v1425, 0
        %v1428 = vshrl.u32 %v1427, 5
        %v1429 = vand.u32 %v1427, 31
        %v1430 = vsub.s32 32, %v1429
        %v1431 = vshrl.u32 683565275, %v1430
        %v1432 = vshll.u32 683565275, %v1429
        %v1433 = vshrl.u32 2475754826, %v1430
        %v1434 = vor.u32 %v1432, %v1433
        %v1435 = vshll.u32 2475754826, %v1429
        %v1436 = vshrl.u32 2131351028, %v1430
        %v1437 = vor.u32 %v1435, %v1436
        %v1438 = vshll.u32 2131351028, %v1429
        %v1439 = vshrl.u32 2102212464, %v1430
        %v1440 = vor.u32 %v1438, %v1439
        %v1441 = vshll.u32 2102212464, %v1429
        %v1442 = vshrl.u32 920167782, %v1430
        %v1443 = vor.u32 %v1441, %v1442
        %v1444 = vshll.u32 920167782, %v1429
        %v1445 = vshrl.u32 1326507024, %v1430
        %v1446 = vor.u32 %v1444, %v1445
        %vm1447 = vcmp.lt.s32.totalorder %v1428, 1
        %vm1448 = vcmp.lt.s32.totalorder %v1428, 2
        %vm1449 = vcmp.lt.s32.totalorder %v1428, 3
        %vm1450 = vcmp.lt.s32.totalorder %v1428, 4
        %v1451 = vsel %vm1447, %v1431, %v1434
        %v1452 = vsel %vm1450, %v1440, 2102212464
        %v1453 = vsel %vm1449, %v1437, %v1452
        %v1454 = vsel %vm1448, %v1451, %v1453
        %v1455 = vsel %vm1447, %v1434, %v1437
        %v1456 = vsel %vm1450, %v1443, 920167782
        %v1457 = vsel %vm1449, %v1440, %v1456
        %v1458 = vsel %vm1448, %v1455, %v1457
        %v1459 = vsel %vm1447, %v1437, %v1440
        %v1460 = vsel %vm1450, %v1446, 1326507024
        %v1461 = vsel %vm1449, %v1443, %v1460
        %v1462 = vsel %vm1448, %v1459, %v1461
        %v1463 = vshll.u32 %v1423, 8
        %v1464 = vmul.u32.u64.compose %v1463, %v1462
        %v1465 = vextract.low.u32 %v1464
        %v1466 = vextract.high.u32 %v1464
        %v1467 = vmul.u32.u64.compose %v1463, %v1458
        %v1468 = vextract.low.u32 %v1467
        %v1469 = vextract.high.u32 %v1467
        %v1470 = vmul.u32 %v1463, %v1454
        %v1471 = vadd.s32 %v1466, %v1468
        %vm1472 = vc.u32 %v1466, %v1468
        %v1473 = vadd.s32 %v1469, 1
        %v1474 = vsel %vm1472, %v1473, %v1469
        %v1475 = vadd.s32 %v1470, %v1474
        %v1476 = vadd.s32 %v1475, 536870912
        %v1477 = vshrl.u32 %v1476, 30
        %v1478 = vshll.u32 %v1477, 30
        %v1479 = vsub.s32 %v1475, %v1478
        %vm1480 = vcmp.lt.s32.totalorder %v1479, 0
        %v1481 = vsub.s32 0, %v1479
        %v1482 = vsel %vm1480, %v1481, %v1479
        %v1483 = vclz %v1482
        %v1484 = vsub.s32 %v1483, 2
        %vm1485 = vcmp.gt.s32.totalorder 0, %v1484
        %v1486 = vsel %vm1485, 0, %v1484
        %v1487 = vsub.s32 32, %v1486
        %v1488 = vshll.u32 %v1479, %v1486
        %v1489 = vshrl.u32 %v1471, %v1487
        %v1490 = vor.u32 %v1488, %v1489
        %v1491 = vsub.s32 4294967266, %v1486
        %v1492 = vadd.s32 %v1491, 127
        %v1493 = vshll.u32 %v1492, 23
        %v1494 = vor.u32 4788187, %v1493
        %v1495 = vand.u32 2147483647, %v1494
        %v1497 = vcvt.s32.f32 %v1490
        %v1498 = vmul.f32 %v1497, %v1495
        %v1499 = vxor.u32 %v1498, 2147483648
        %v1500 = vsel %vm1417, %v1499, %v1498
        %v1501 = vsub.s32 4, %v1477
        %v1502 = vsel %vm1417, %v1501, %v1477
        %v1503 = vsel %vm1416, %v456, %v1500
        %v1504 = vsel %vm1416, 0, %v1502
        %v1505 = vcosq.f32.pop %v1503
        %v1506 = vsinq.f32.pop %v1503
        %vm1507 = vweird.f32 %v456
        %v1508 = vadd.s32 %v1504, 3
        %v1509 = vand.u32 %v1508, 3
        %vm1510 = vcmp.lt.s32.totalorder %v1509, 2
        %vm1511 = vcmp.eq.s32.totalorder %v1509, 0
        %v1512 = vxor.u32 %v1506, 2147483648
        %v1513 = vsel %vm1511, %v1505, %v1512
        %vm1514 = vcmp.eq.s32.totalorder %v1509, 2
        %v1515 = vxor.u32 %v1505, 2147483648
        %v1516 = vsel %vm1514, %v1515, %v1506
        %v1517 = vsel %vm1510, %v1513, %v1516
        %v1518 = vsel %vm1507, nan, %v1517
        %v1519 = vand.u32 2147483647, %v457
        %vm1520 = vcmp.le.f32.partialorder %v1519, 0.7853982
        %vm1521 = vcmp.lt.s32.totalorder %v457, 0
        %v1522 = vand.u32 %v457, 2139095040
        %v1523 = vshrl.u32 %v1522, 23
        %v1524 = vsub.s32 %v1523, 127
        %v1525 = vand.u32 2147483647, %v457
        %v1526 = vand.u32 %v1525, 8388607
        %v1527 = vor.u32 %v1526, 8388608
        %v1528 = vsub.s32 0, %v1527
        %v1529 = vadd.s32 %v1524, 1
        %vm1530 = vcmp.gt.s32.totalorder %v1529, 0
        %v1531 = vsel %vm1530, %v1529, 0
        %v1532 = vshrl.u32 %v1531, 5
        %v1533 = vand.u32 %v1531, 31
        %v1534 = vsub.s32 32, %v1533
        %v1535 = vshrl.u32 683565275, %v1534
        %v1536 = vshll.u32 683565275, %v1533
        %v1537 = vshrl.u32 2475754826, %v1534
        %v1538 = vor.u32 %v1536, %v1537
        %v1539 = vshll.u32 2475754826, %v1533
        %v1540 = vshrl.u32 2131351028, %v1534
        %v1541 = vor.u32 %v1539, %v1540
        %v1542 = vshll.u32 2131351028, %v1533
        %v1543 = vshrl.u32 2102212464, %v1534
        %v1544 = vor.u32 %v1542, %v1543
        %v1545 = vshll.u32 2102212464, %v1533
        %v1546 = vshrl.u32 920167782, %v1534
        %v1547 = vor.u32 %v1545, %v1546
        %v1548 = vshll.u32 920167782, %v1533
        %v1549 = vshrl.u32 1326507024, %v1534
        %v1550 = vor.u32 %v1548, %v1549
        %vm1551 = vcmp.lt.s32.totalorder %v1532, 1
        %vm1552 = vcmp.lt.s32.totalorder %v1532, 2
        %vm1553 = vcmp.lt.s32.totalorder %v1532, 3
        %vm1554 = vcmp.lt.s32.totalorder %v1532, 4
        %v1555 = vsel %vm1551, %v1535, %v1538
        %v1556 = vsel %vm1554, %v1544, 2102212464
        %v1557 = vsel %vm1553, %v1541, %v1556
        %v1558 = vsel %vm1552, %v1555, %v1557
        %v1559 = vsel %vm1551, %v1538, %v1541
        %v1560 = vsel %vm1554, %v1547, 920167782
        %v1561 = vsel %vm1553, %v1544, %v1560
        %v1562 = vsel %vm1552, %v1559, %v1561
        %v1563 = vsel %vm1551, %v1541, %v1544
        %v1564 = vsel %vm1554, %v1550, 1326507024
        %v1565 = vsel %vm1553, %v1547, %v1564
        %v1566 = vsel %vm1552, %v1563, %v1565
        %v1567 = vshll.u32 %v1527, 8
        %v1568 = vmul.u32.u64.compose %v1567, %v1566
        %v1569 = vextract.low.u32 %v1568
        %v1570 = vextract.high.u32 %v1568
        %v1571 = vmul.u32.u64.compose %v1567, %v1562
        %v1572 = vextract.low.u32 %v1571
        %v1573 = vextract.high.u32 %v1571
        %v1574 = vmul.u32 %v1567, %v1558
        %v1575 = vadd.s32 %v1570, %v1572
        %vm1576 = vc.u32 %v1570, %v1572
        %v1577 = vadd.s32 %v1573, 1
        %v1578 = vsel %vm1576, %v1577, %v1573
        %v1579 = vadd.s32 %v1574, %v1578
        %v1580 = vadd.s32 %v1579, 536870912
        %v1581 = vshrl.u32 %v1580, 30
        %v1582 = vshll.u32 %v1581, 30
        %v1583 = vsub.s32 %v1579, %v1582
        %vm1584 = vcmp.lt.s32.totalorder %v1583, 0
        %v1585 = vsub.s32 0, %v1583
        %v1586 = vsel %vm1584, %v1585, %v1583
        %v1587 = vclz %v1586
        %v1588 = vsub.s32 %v1587, 2
        %vm1589 = vcmp.gt.s32.totalorder 0, %v1588
        %v1590 = vsel %vm1589, 0, %v1588
        %v1591 = vsub.s32 32, %v1590
        %v1592 = vshll.u32 %v1583, %v1590
        %v1593 = vshrl.u32 %v1575, %v1591
        %v1594 = vor.u32 %v1592, %v1593
        %v1595 = vsub.s32 4294967266, %v1590
        %v1596 = vadd.s32 %v1595, 127
        %v1597 = vshll.u32 %v1596, 23
        %v1598 = vor.u32 4788187, %v1597
        %v1599 = vand.u32 2147483647, %v1598
        %v1601 = vcvt.s32.f32 %v1594
        %v1602 = vmul.f32 %v1601, %v1599
        %v1603 = vxor.u32 %v1602, 2147483648
        %v1604 = vsel %vm1521, %v1603, %v1602
        %v1605 = vsub.s32 4, %v1581
        %v1606 = vsel %vm1521, %v1605, %v1581
        %v1607 = vsel %vm1520, %v457, %v1604
        %v1608 = vsel %vm1520, 0, %v1606
        %v1609 = vcosq.f32.pop %v1607
        %v1610 = vsinq.f32.pop %v1607
        %vm1611 = vweird.f32 %v457
        %v1612 = vadd.s32 %v1608, 3
        %v1613 = vand.u32 %v1612, 3
        %vm1614 = vcmp.lt.s32.totalorder %v1613, 2
        %vm1615 = vcmp.eq.s32.totalorder %v1613, 0
        %v1616 = vxor.u32 %v1610, 2147483648
        %v1617 = vsel %vm1615, %v1609, %v1616
        %vm1618 = vcmp.eq.s32.totalorder %v1613, 2
        %v1619 = vxor.u32 %v1609, 2147483648
        %v1620 = vsel %vm1618, %v1619, %v1610
        %v1621 = vsel %vm1614, %v1617, %v1620
        %v1622 = vsel %vm1611, nan, %v1621
        %v1623 = vand.u32 2147483647, %v458
        %vm1624 = vcmp.le.f32.partialorder %v1623, 0.7853982
        %vm1625 = vcmp.lt.s32.totalorder %v458, 0
        %v1626 = vand.u32 %v458, 2139095040
        %v1627 = vshrl.u32 %v1626, 23
        %v1628 = vsub.s32 %v1627, 127
        %v1629 = vand.u32 2147483647, %v458
        %v1630 = vand.u32 %v1629, 8388607
        %v1631 = vor.u32 %v1630, 8388608
        %v1632 = vsub.s32 0, %v1631
        %v1633 = vadd.s32 %v1628, 1
        %vm1634 = vcmp.gt.s32.totalorder %v1633, 0
        %v1635 = vsel %vm1634, %v1633, 0
        %v1636 = vshrl.u32 %v1635, 5
        %v1637 = vand.u32 %v1635, 31
        %v1638 = vsub.s32 32, %v1637
        %v1639 = vshrl.u32 683565275, %v1638
        %v1640 = vshll.u32 683565275, %v1637
        %v1641 = vshrl.u32 2475754826, %v1638
        %v1642 = vor.u32 %v1640, %v1641
        %v1643 = vshll.u32 2475754826, %v1637
        %v1644 = vshrl.u32 2131351028, %v1638
        %v1645 = vor.u32 %v1643, %v1644
        %v1646 = vshll.u32 2131351028, %v1637
        %v1647 = vshrl.u32 2102212464, %v1638
        %v1648 = vor.u32 %v1646, %v1647
        %v1649 = vshll.u32 2102212464, %v1637
        %v1650 = vshrl.u32 920167782, %v1638
        %v1651 = vor.u32 %v1649, %v1650
        %v1652 = vshll.u32 920167782, %v1637
        %v1653 = vshrl.u32 1326507024, %v1638
        %v1654 = vor.u32 %v1652, %v1653
        %vm1655 = vcmp.lt.s32.totalorder %v1636, 1
        %vm1656 = vcmp.lt.s32.totalorder %v1636, 2
        %vm1657 = vcmp.lt.s32.totalorder %v1636, 3
        %vm1658 = vcmp.lt.s32.totalorder %v1636, 4
        %v1659 = vsel %vm1655, %v1639, %v1642
        %v1660 = vsel %vm1658, %v1648, 2102212464
        %v1661 = vsel %vm1657, %v1645, %v1660
        %v1662 = vsel %vm1656, %v1659, %v1661
        %v1663 = vsel %vm1655, %v1642, %v1645
        %v1664 = vsel %vm1658, %v1651, 920167782
        %v1665 = vsel %vm1657, %v1648, %v1664
        %v1666 = vsel %vm1656, %v1663, %v1665
        %v1667 = vsel %vm1655, %v1645, %v1648
        %v1668 = vsel %vm1658, %v1654, 1326507024
        %v1669 = vsel %vm1657, %v1651, %v1668
        %v1670 = vsel %vm1656, %v1667, %v1669
        %v1671 = vshll.u32 %v1631, 8
        %v1672 = vmul.u32.u64.compose %v1671, %v1670
        %v1673 = vextract.low.u32 %v1672
        %v1674 = vextract.high.u32 %v1672
        %v1675 = vmul.u32.u64.compose %v1671, %v1666
        %v1676 = vextract.low.u32 %v1675
        %v1677 = vextract.high.u32 %v1675
        %v1678 = vmul.u32 %v1671, %v1662
        %v1679 = vadd.s32 %v1674, %v1676
        %vm1680 = vc.u32 %v1674, %v1676
        %v1681 = vadd.s32 %v1677, 1
        %v1682 = vsel %vm1680, %v1681, %v1677
        %v1683 = vadd.s32 %v1678, %v1682
        %v1684 = vadd.s32 %v1683, 536870912
        %v1685 = vshrl.u32 %v1684, 30
        %v1686 = vshll.u32 %v1685, 30
        %v1687 = vsub.s32 %v1683, %v1686
        %vm1688 = vcmp.lt.s32.totalorder %v1687, 0
        %v1689 = vsub.s32 0, %v1687
        %v1690 = vsel %vm1688, %v1689, %v1687
        %v1691 = vclz %v1690
        %v1692 = vsub.s32 %v1691, 2
        %vm1693 = vcmp.gt.s32.totalorder 0, %v1692
        %v1694 = vsel %vm1693, 0, %v1692
        %v1695 = vsub.s32 32, %v1694
        %v1696 = vshll.u32 %v1687, %v1694
        %v1697 = vshrl.u32 %v1679, %v1695
        %v1698 = vor.u32 %v1696, %v1697
        %v1699 = vsub.s32 4294967266, %v1694
        %v1700 = vadd.s32 %v1699, 127
        %v1701 = vshll.u32 %v1700, 23
        %v1702 = vor.u32 4788187, %v1701
        %v1703 = vand.u32 2147483647, %v1702
        %v1705 = vcvt.s32.f32 %v1698
        %v1706 = vmul.f32 %v1705, %v1703
        %v1707 = vxor.u32 %v1706, 2147483648
        %v1708 = vsel %vm1625, %v1707, %v1706
        %v1709 = vsub.s32 4, %v1685
        %v1710 = vsel %vm1625, %v1709, %v1685
        %v1711 = vsel %vm1624, %v458, %v1708
        %v1712 = vsel %vm1624, 0, %v1710
        %v1713 = vcosq.f32.pop %v1711
        %v1714 = vsinq.f32.pop %v1711
        %vm1715 = vweird.f32 %v458
        %v1716 = vadd.s32 %v1712, 3
        %v1717 = vand.u32 %v1716, 3
        %vm1718 = vcmp.lt.s32.totalorder %v1717, 2
        %vm1719 = vcmp.eq.s32.totalorder %v1717, 0
        %v1720 = vxor.u32 %v1714, 2147483648
        %v1721 = vsel %vm1719, %v1713, %v1720
        %vm1722 = vcmp.eq.s32.totalorder %v1717, 2
        %v1723 = vxor.u32 %v1713, 2147483648
        %v1724 = vsel %vm1722, %v1723, %v1714
        %v1725 = vsel %vm1718, %v1721, %v1724
        %v1726 = vsel %vm1715, nan, %v1725
        %v1727 = vand.u32 2147483647, %v459
        %vm1728 = vcmp.le.f32.partialorder %v1727, 0.7853982
        %vm1729 = vcmp.lt.s32.totalorder %v459, 0
        %v1730 = vand.u32 %v459, 2139095040
        %v1731 = vshrl.u32 %v1730, 23
        %v1732 = vsub.s32 %v1731, 127
        %v1733 = vand.u32 2147483647, %v459
        %v1734 = vand.u32 %v1733, 8388607
        %v1735 = vor.u32 %v1734, 8388608
        %v1736 = vsub.s32 0, %v1735
        %v1737 = vadd.s32 %v1732, 1
        %vm1738 = vcmp.gt.s32.totalorder %v1737, 0
        %v1739 = vsel %vm1738, %v1737, 0
        %v1740 = vshrl.u32 %v1739, 5
        %v1741 = vand.u32 %v1739, 31
        %v1742 = vsub.s32 32, %v1741
        %v1743 = vshrl.u32 683565275, %v1742
        %v1744 = vshll.u32 683565275, %v1741
        %v1745 = vshrl.u32 2475754826, %v1742
        %v1746 = vor.u32 %v1744, %v1745
        %v1747 = vshll.u32 2475754826, %v1741
        %v1748 = vshrl.u32 2131351028, %v1742
        %v1749 = vor.u32 %v1747, %v1748
        %v1750 = vshll.u32 2131351028, %v1741
        %v1751 = vshrl.u32 2102212464, %v1742
        %v1752 = vor.u32 %v1750, %v1751
        %v1753 = vshll.u32 2102212464, %v1741
        %v1754 = vshrl.u32 920167782, %v1742
        %v1755 = vor.u32 %v1753, %v1754
        %v1756 = vshll.u32 920167782, %v1741
        %v1757 = vshrl.u32 1326507024, %v1742
        %v1758 = vor.u32 %v1756, %v1757
        %vm1759 = vcmp.lt.s32.totalorder %v1740, 1
        %vm1760 = vcmp.lt.s32.totalorder %v1740, 2
        %vm1761 = vcmp.lt.s32.totalorder %v1740, 3
        %vm1762 = vcmp.lt.s32.totalorder %v1740, 4
        %v1763 = vsel %vm1759, %v1743, %v1746
        %v1764 = vsel %vm1762, %v1752, 2102212464
        %v1765 = vsel %vm1761, %v1749, %v1764
        %v1766 = vsel %vm1760, %v1763, %v1765
        %v1767 = vsel %vm1759, %v1746, %v1749
        %v1768 = vsel %vm1762, %v1755, 920167782
        %v1769 = vsel %vm1761, %v1752, %v1768
        %v1770 = vsel %vm1760, %v1767, %v1769
        %v1771 = vsel %vm1759, %v1749, %v1752
        %v1772 = vsel %vm1762, %v1758, 1326507024
        %v1773 = vsel %vm1761, %v1755, %v1772
        %v1774 = vsel %vm1760, %v1771, %v1773
        %v1775 = vshll.u32 %v1735, 8
        %v1776 = vmul.u32.u64.compose %v1775, %v1774
        %v1777 = vextract.low.u32 %v1776
        %v1778 = vextract.high.u32 %v1776
        %v1779 = vmul.u32.u64.compose %v1775, %v1770
        %v1780 = vextract.low.u32 %v1779
        %v1781 = vextract.high.u32 %v1779
        %v1782 = vmul.u32 %v1775, %v1766
        %v1783 = vadd.s32 %v1778, %v1780
        %vm1784 = vc.u32 %v1778, %v1780
        %v1785 = vadd.s32 %v1781, 1
        %v1786 = vsel %vm1784, %v1785, %v1781
        %v1787 = vadd.s32 %v1782, %v1786
        %v1788 = vadd.s32 %v1787, 536870912
        %v1789 = vshrl.u32 %v1788, 30
        %v1790 = vshll.u32 %v1789, 30
        %v1791 = vsub.s32 %v1787, %v1790
        %vm1792 = vcmp.lt.s32.totalorder %v1791, 0
        %v1793 = vsub.s32 0, %v1791
        %v1794 = vsel %vm1792, %v1793, %v1791
        %v1795 = vclz %v1794
        %v1796 = vsub.s32 %v1795, 2
        %vm1797 = vcmp.gt.s32.totalorder 0, %v1796
        %v1798 = vsel %vm1797, 0, %v1796
        %v1799 = vsub.s32 32, %v1798
        %v1800 = vshll.u32 %v1791, %v1798
        %v1801 = vshrl.u32 %v1783, %v1799
        %v1802 = vor.u32 %v1800, %v1801
        %v1803 = vsub.s32 4294967266, %v1798
        %v1804 = vadd.s32 %v1803, 127
        %v1805 = vshll.u32 %v1804, 23
        %v1806 = vor.u32 4788187, %v1805
        %v1807 = vand.u32 2147483647, %v1806
        %v1809 = vcvt.s32.f32 %v1802
        %v1810 = vmul.f32 %v1809, %v1807
        %v1811 = vxor.u32 %v1810, 2147483648
        %v1812 = vsel %vm1729, %v1811, %v1810
        %v1813 = vsub.s32 4, %v1789
        %v1814 = vsel %vm1729, %v1813, %v1789
        %v1815 = vsel %vm1728, %v459, %v1812
        %v1816 = vsel %vm1728, 0, %v1814
        %v1817 = vcosq.f32.pop %v1815
        %v1818 = vsinq.f32.pop %v1815
        %vm1819 = vweird.f32 %v459
        %v1820 = vadd.s32 %v1816, 3
        %v1821 = vand.u32 %v1820, 3
        %vm1822 = vcmp.lt.s32.totalorder %v1821, 2
        %vm1823 = vcmp.eq.s32.totalorder %v1821, 0
        %v1824 = vxor.u32 %v1818, 2147483648
        %v1825 = vsel %vm1823, %v1817, %v1824
        %vm1826 = vcmp.eq.s32.totalorder %v1821, 2
        %v1827 = vxor.u32 %v1817, 2147483648
        %v1828 = vsel %vm1826, %v1827, %v1818
        %v1829 = vsel %vm1822, %v1825, %v1828
        %v1830 = vsel %vm1819, nan, %v1829
        %v1831 = vand.u32 2147483647, %v460
        %vm1832 = vcmp.le.f32.partialorder %v1831, 0.7853982
        %vm1833 = vcmp.lt.s32.totalorder %v460, 0
        %v1834 = vand.u32 %v460, 2139095040
        %v1835 = vshrl.u32 %v1834, 23
        %v1836 = vsub.s32 %v1835, 127
        %v1837 = vand.u32 2147483647, %v460
        %v1838 = vand.u32 %v1837, 8388607
        %v1839 = vor.u32 %v1838, 8388608
        %v1840 = vsub.s32 0, %v1839
        %v1841 = vadd.s32 %v1836, 1
        %vm1842 = vcmp.gt.s32.totalorder %v1841, 0
        %v1843 = vsel %vm1842, %v1841, 0
        %v1844 = vshrl.u32 %v1843, 5
        %v1845 = vand.u32 %v1843, 31
        %v1846 = vsub.s32 32, %v1845
        %v1847 = vshrl.u32 683565275, %v1846
        %v1848 = vshll.u32 683565275, %v1845
        %v1849 = vshrl.u32 2475754826, %v1846
        %v1850 = vor.u32 %v1848, %v1849
        %v1851 = vshll.u32 2475754826, %v1845
        %v1852 = vshrl.u32 2131351028, %v1846
        %v1853 = vor.u32 %v1851, %v1852
        %v1854 = vshll.u32 2131351028, %v1845
        %v1855 = vshrl.u32 2102212464, %v1846
        %v1856 = vor.u32 %v1854, %v1855
        %v1857 = vshll.u32 2102212464, %v1845
        %v1858 = vshrl.u32 920167782, %v1846
        %v1859 = vor.u32 %v1857, %v1858
        %v1860 = vshll.u32 920167782, %v1845
        %v1861 = vshrl.u32 1326507024, %v1846
        %v1862 = vor.u32 %v1860, %v1861
        %vm1863 = vcmp.lt.s32.totalorder %v1844, 1
        %vm1864 = vcmp.lt.s32.totalorder %v1844, 2
        %vm1865 = vcmp.lt.s32.totalorder %v1844, 3
        %vm1866 = vcmp.lt.s32.totalorder %v1844, 4
        %v1867 = vsel %vm1863, %v1847, %v1850
        %v1868 = vsel %vm1866, %v1856, 2102212464
        %v1869 = vsel %vm1865, %v1853, %v1868
        %v1870 = vsel %vm1864, %v1867, %v1869
        %v1871 = vsel %vm1863, %v1850, %v1853
        %v1872 = vsel %vm1866, %v1859, 920167782
        %v1873 = vsel %vm1865, %v1856, %v1872
        %v1874 = vsel %vm1864, %v1871, %v1873
        %v1875 = vsel %vm1863, %v1853, %v1856
        %v1876 = vsel %vm1866, %v1862, 1326507024
        %v1877 = vsel %vm1865, %v1859, %v1876
        %v1878 = vsel %vm1864, %v1875, %v1877
        %v1879 = vshll.u32 %v1839, 8
        %v1880 = vmul.u32.u64.compose %v1879, %v1878
        %v1881 = vextract.low.u32 %v1880
        %v1882 = vextract.high.u32 %v1880
        %v1883 = vmul.u32.u64.compose %v1879, %v1874
        %v1884 = vextract.low.u32 %v1883
        %v1885 = vextract.high.u32 %v1883
        %v1886 = vmul.u32 %v1879, %v1870
        %v1887 = vadd.s32 %v1882, %v1884
        %vm1888 = vc.u32 %v1882, %v1884
        %v1889 = vadd.s32 %v1885, 1
        %v1890 = vsel %vm1888, %v1889, %v1885
        %v1891 = vadd.s32 %v1886, %v1890
        %v1892 = vadd.s32 %v1891, 536870912
        %v1893 = vshrl.u32 %v1892, 30
        %v1894 = vshll.u32 %v1893, 30
        %v1895 = vsub.s32 %v1891, %v1894
        %vm1896 = vcmp.lt.s32.totalorder %v1895, 0
        %v1897 = vsub.s32 0, %v1895
        %v1898 = vsel %vm1896, %v1897, %v1895
        %v1899 = vclz %v1898
        %v1900 = vsub.s32 %v1899, 2
        %vm1901 = vcmp.gt.s32.totalorder 0, %v1900
        %v1902 = vsel %vm1901, 0, %v1900
        %v1903 = vsub.s32 32, %v1902
        %v1904 = vshll.u32 %v1895, %v1902
        %v1905 = vshrl.u32 %v1887, %v1903
        %v1906 = vor.u32 %v1904, %v1905
        %v1907 = vsub.s32 4294967266, %v1902
        %v1908 = vadd.s32 %v1907, 127
        %v1909 = vshll.u32 %v1908, 23
        %v1910 = vor.u32 4788187, %v1909
        %v1911 = vand.u32 2147483647, %v1910
        %v1913 = vcvt.s32.f32 %v1906
        %v1914 = vmul.f32 %v1913, %v1911
        %v1915 = vxor.u32 %v1914, 2147483648
        %v1916 = vsel %vm1833, %v1915, %v1914
        %v1917 = vsub.s32 4, %v1893
        %v1918 = vsel %vm1833, %v1917, %v1893
        %v1919 = vsel %vm1832, %v460, %v1916
        %v1920 = vsel %vm1832, 0, %v1918
        %v1921 = vcosq.f32.pop %v1919
        %v1922 = vsinq.f32.pop %v1919
        %vm1923 = vweird.f32 %v460
        %v1924 = vadd.s32 %v1920, 3
        %v1925 = vand.u32 %v1924, 3
        %vm1926 = vcmp.lt.s32.totalorder %v1925, 2
        %vm1927 = vcmp.eq.s32.totalorder %v1925, 0
        %v1928 = vxor.u32 %v1922, 2147483648
        %v1929 = vsel %vm1927, %v1921, %v1928
        %vm1930 = vcmp.eq.s32.totalorder %v1925, 2
        %v1931 = vxor.u32 %v1921, 2147483648
        %v1932 = vsel %vm1930, %v1931, %v1922
        %v1933 = vsel %vm1926, %v1929, %v1932
        %v1934 = vsel %vm1923, nan, %v1933
        %v1935 = vand.u32 2147483647, %v461
        %vm1936 = vcmp.le.f32.partialorder %v1935, 0.7853982
        %vm1937 = vcmp.lt.s32.totalorder %v461, 0
        %v1938 = vand.u32 %v461, 2139095040
        %v1939 = vshrl.u32 %v1938, 23
        %v1940 = vsub.s32 %v1939, 127
        %v1941 = vand.u32 2147483647, %v461
        %v1942 = vand.u32 %v1941, 8388607
        %v1943 = vor.u32 %v1942, 8388608
        %v1944 = vsub.s32 0, %v1943
        %v1945 = vadd.s32 %v1940, 1
        %vm1946 = vcmp.gt.s32.totalorder %v1945, 0
        %v1947 = vsel %vm1946, %v1945, 0
        %v1948 = vshrl.u32 %v1947, 5
        %v1949 = vand.u32 %v1947, 31
        %v1950 = vsub.s32 32, %v1949
        %v1951 = vshrl.u32 683565275, %v1950
        %v1952 = vshll.u32 683565275, %v1949
        %v1953 = vshrl.u32 2475754826, %v1950
        %v1954 = vor.u32 %v1952, %v1953
        %v1955 = vshll.u32 2475754826, %v1949
        %v1956 = vshrl.u32 2131351028, %v1950
        %v1957 = vor.u32 %v1955, %v1956
        %v1958 = vshll.u32 2131351028, %v1949
        %v1959 = vshrl.u32 2102212464, %v1950
        %v1960 = vor.u32 %v1958, %v1959
        %v1961 = vshll.u32 2102212464, %v1949
        %v1962 = vshrl.u32 920167782, %v1950
        %v1963 = vor.u32 %v1961, %v1962
        %v1964 = vshll.u32 920167782, %v1949
        %v1965 = vshrl.u32 1326507024, %v1950
        %v1966 = vor.u32 %v1964, %v1965
        %vm1967 = vcmp.lt.s32.totalorder %v1948, 1
        %vm1968 = vcmp.lt.s32.totalorder %v1948, 2
        %vm1969 = vcmp.lt.s32.totalorder %v1948, 3
        %vm1970 = vcmp.lt.s32.totalorder %v1948, 4
        %v1971 = vsel %vm1967, %v1951, %v1954
        %v1972 = vsel %vm1970, %v1960, 2102212464
        %v1973 = vsel %vm1969, %v1957, %v1972
        %v1974 = vsel %vm1968, %v1971, %v1973
        %v1975 = vsel %vm1967, %v1954, %v1957
        %v1976 = vsel %vm1970, %v1963, 920167782
        %v1977 = vsel %vm1969, %v1960, %v1976
        %v1978 = vsel %vm1968, %v1975, %v1977
        %v1979 = vsel %vm1967, %v1957, %v1960
        %v1980 = vsel %vm1970, %v1966, 1326507024
        %v1981 = vsel %vm1969, %v1963, %v1980
        %v1982 = vsel %vm1968, %v1979, %v1981
        %v1983 = vshll.u32 %v1943, 8
        %v1984 = vmul.u32.u64.compose %v1983, %v1982
        %v1985 = vextract.low.u32 %v1984
        %v1986 = vextract.high.u32 %v1984
        %v1987 = vmul.u32.u64.compose %v1983, %v1978
        %v1988 = vextract.low.u32 %v1987
        %v1989 = vextract.high.u32 %v1987
        %v1990 = vmul.u32 %v1983, %v1974
        %v1991 = vadd.s32 %v1986, %v1988
        %vm1992 = vc.u32 %v1986, %v1988
        %v1993 = vadd.s32 %v1989, 1
        %v1994 = vsel %vm1992, %v1993, %v1989
        %v1995 = vadd.s32 %v1990, %v1994
        %v1996 = vadd.s32 %v1995, 536870912
        %v1997 = vshrl.u32 %v1996, 30
        %v1998 = vshll.u32 %v1997, 30
        %v1999 = vsub.s32 %v1995, %v1998
        %vm2000 = vcmp.lt.s32.totalorder %v1999, 0
        %v2001 = vsub.s32 0, %v1999
        %v2002 = vsel %vm2000, %v2001, %v1999
        %v2003 = vclz %v2002
        %v2004 = vsub.s32 %v2003, 2
        %vm2005 = vcmp.gt.s32.totalorder 0, %v2004
        %v2006 = vsel %vm2005, 0, %v2004
        %v2007 = vsub.s32 32, %v2006
        %v2008 = vshll.u32 %v1999, %v2006
        %v2009 = vshrl.u32 %v1991, %v2007
        %v2010 = vor.u32 %v2008, %v2009
        %v2011 = vsub.s32 4294967266, %v2006
        %v2012 = vadd.s32 %v2011, 127
        %v2013 = vshll.u32 %v2012, 23
        %v2014 = vor.u32 4788187, %v2013
        %v2015 = vand.u32 2147483647, %v2014
        %v2017 = vcvt.s32.f32 %v2010
        %v2018 = vmul.f32 %v2017, %v2015
        %v2019 = vxor.u32 %v2018, 2147483648
        %v2020 = vsel %vm1937, %v2019, %v2018
        %v2021 = vsub.s32 4, %v1997
        %v2022 = vsel %vm1937, %v2021, %v1997
        %v2023 = vsel %vm1936, %v461, %v2020
        %v2024 = vsel %vm1936, 0, %v2022
        %v2025 = vcosq.f32.pop %v2023
        %v2026 = vsinq.f32.pop %v2023
        %vm2027 = vweird.f32 %v461
        %v2028 = vadd.s32 %v2024, 3
        %v2029 = vand.u32 %v2028, 3
        %vm2030 = vcmp.lt.s32.totalorder %v2029, 2
        %vm2031 = vcmp.eq.s32.totalorder %v2029, 0
        %v2032 = vxor.u32 %v2026, 2147483648
        %v2033 = vsel %vm2031, %v2025, %v2032
        %vm2034 = vcmp.eq.s32.totalorder %v2029, 2
        %v2035 = vxor.u32 %v2025, 2147483648
        %v2036 = vsel %vm2034, %v2035, %v2026
        %v2037 = vsel %vm2030, %v2033, %v2036
        %v2038 = vsel %vm2027, nan, %v2037
        %v2039 = vand.u32 2147483647, %v462
        %vm2040 = vcmp.le.f32.partialorder %v2039, 0.7853982
        %vm2041 = vcmp.lt.s32.totalorder %v462, 0
        %v2042 = vand.u32 %v462, 2139095040
        %v2043 = vshrl.u32 %v2042, 23
        %v2044 = vsub.s32 %v2043, 127
        %v2045 = vand.u32 2147483647, %v462
        %v2046 = vand.u32 %v2045, 8388607
        %v2047 = vor.u32 %v2046, 8388608
        %v2048 = vsub.s32 0, %v2047
        %v2049 = vadd.s32 %v2044, 1
        %vm2050 = vcmp.gt.s32.totalorder %v2049, 0
        %v2051 = vsel %vm2050, %v2049, 0
        %v2052 = vshrl.u32 %v2051, 5
        %v2053 = vand.u32 %v2051, 31
        %v2054 = vsub.s32 32, %v2053
        %v2055 = vshrl.u32 683565275, %v2054
        %v2056 = vshll.u32 683565275, %v2053
        %v2057 = vshrl.u32 2475754826, %v2054
        %v2058 = vor.u32 %v2056, %v2057
        %v2059 = vshll.u32 2475754826, %v2053
        %v2060 = vshrl.u32 2131351028, %v2054
        %v2061 = vor.u32 %v2059, %v2060
        %v2062 = vshll.u32 2131351028, %v2053
        %v2063 = vshrl.u32 2102212464, %v2054
        %v2064 = vor.u32 %v2062, %v2063
        %v2065 = vshll.u32 2102212464, %v2053
        %v2066 = vshrl.u32 920167782, %v2054
        %v2067 = vor.u32 %v2065, %v2066
        %v2068 = vshll.u32 920167782, %v2053
        %v2069 = vshrl.u32 1326507024, %v2054
        %v2070 = vor.u32 %v2068, %v2069
        %vm2071 = vcmp.lt.s32.totalorder %v2052, 1
        %vm2072 = vcmp.lt.s32.totalorder %v2052, 2
        %vm2073 = vcmp.lt.s32.totalorder %v2052, 3
        %vm2074 = vcmp.lt.s32.totalorder %v2052, 4
        %v2075 = vsel %vm2071, %v2055, %v2058
        %v2076 = vsel %vm2074, %v2064, 2102212464
        %v2077 = vsel %vm2073, %v2061, %v2076
        %v2078 = vsel %vm2072, %v2075, %v2077
        %v2079 = vsel %vm2071, %v2058, %v2061
        %v2080 = vsel %vm2074, %v2067, 920167782
        %v2081 = vsel %vm2073, %v2064, %v2080
        %v2082 = vsel %vm2072, %v2079, %v2081
        %v2083 = vsel %vm2071, %v2061, %v2064
        %v2084 = vsel %vm2074, %v2070, 1326507024
        %v2085 = vsel %vm2073, %v2067, %v2084
        %v2086 = vsel %vm2072, %v2083, %v2085
        %v2087 = vshll.u32 %v2047, 8
        %v2088 = vmul.u32.u64.compose %v2087, %v2086
        %v2089 = vextract.low.u32 %v2088
        %v2090 = vextract.high.u32 %v2088
        %v2091 = vmul.u32.u64.compose %v2087, %v2082
        %v2092 = vextract.low.u32 %v2091
        %v2093 = vextract.high.u32 %v2091
        %v2094 = vmul.u32 %v2087, %v2078
        %v2095 = vadd.s32 %v2090, %v2092
        %vm2096 = vc.u32 %v2090, %v2092
        %v2097 = vadd.s32 %v2093, 1
        %v2098 = vsel %vm2096, %v2097, %v2093
        %v2099 = vadd.s32 %v2094, %v2098
        %v2100 = vadd.s32 %v2099, 536870912
        %v2101 = vshrl.u32 %v2100, 30
        %v2102 = vshll.u32 %v2101, 30
        %v2103 = vsub.s32 %v2099, %v2102
        %vm2104 = vcmp.lt.s32.totalorder %v2103, 0
        %v2105 = vsub.s32 0, %v2103
        %v2106 = vsel %vm2104, %v2105, %v2103
        %v2107 = vclz %v2106
        %v2108 = vsub.s32 %v2107, 2
        %vm2109 = vcmp.gt.s32.totalorder 0, %v2108
        %v2110 = vsel %vm2109, 0, %v2108
        %v2111 = vsub.s32 32, %v2110
        %v2112 = vshll.u32 %v2103, %v2110
        %v2113 = vshrl.u32 %v2095, %v2111
        %v2114 = vor.u32 %v2112, %v2113
        %v2115 = vsub.s32 4294967266, %v2110
        %v2116 = vadd.s32 %v2115, 127
        %v2117 = vshll.u32 %v2116, 23
        %v2118 = vor.u32 4788187, %v2117
        %v2119 = vand.u32 2147483647, %v2118
        %v2121 = vcvt.s32.f32 %v2114
        %v2122 = vmul.f32 %v2121, %v2119
        %v2123 = vxor.u32 %v2122, 2147483648
        %v2124 = vsel %vm2041, %v2123, %v2122
        %v2125 = vsub.s32 4, %v2101
        %v2126 = vsel %vm2041, %v2125, %v2101
        %v2127 = vsel %vm2040, %v462, %v2124
        %v2128 = vsel %vm2040, 0, %v2126
        %v2129 = vcosq.f32.pop %v2127
        %v2130 = vsinq.f32.pop %v2127
        %vm2131 = vweird.f32 %v462
        %v2132 = vadd.s32 %v2128, 3
        %v2133 = vand.u32 %v2132, 3
        %vm2134 = vcmp.lt.s32.totalorder %v2133, 2
        %vm2135 = vcmp.eq.s32.totalorder %v2133, 0
        %v2136 = vxor.u32 %v2130, 2147483648
        %v2137 = vsel %vm2135, %v2129, %v2136
        %vm2138 = vcmp.eq.s32.totalorder %v2133, 2
        %v2139 = vxor.u32 %v2129, 2147483648
        %v2140 = vsel %vm2138, %v2139, %v2130
        %v2141 = vsel %vm2134, %v2137, %v2140
        %v2142 = vsel %vm2131, nan, %v2141
        %v2143 = vand.u32 2147483647, %v463
        %vm2144 = vcmp.le.f32.partialorder %v2143, 0.7853982
        %vm2145 = vcmp.lt.s32.totalorder %v463, 0
        %v2146 = vand.u32 %v463, 2139095040
        %v2147 = vshrl.u32 %v2146, 23
        %v2148 = vsub.s32 %v2147, 127
        %v2149 = vand.u32 2147483647, %v463
        %v2150 = vand.u32 %v2149, 8388607
        %v2151 = vor.u32 %v2150, 8388608
        %v2152 = vsub.s32 0, %v2151
        %v2153 = vadd.s32 %v2148, 1
        %vm2154 = vcmp.gt.s32.totalorder %v2153, 0
        %v2155 = vsel %vm2154, %v2153, 0
        %v2156 = vshrl.u32 %v2155, 5
        %v2157 = vand.u32 %v2155, 31
        %v2158 = vsub.s32 32, %v2157
        %v2159 = vshrl.u32 683565275, %v2158
        %v2160 = vshll.u32 683565275, %v2157
        %v2161 = vshrl.u32 2475754826, %v2158
        %v2162 = vor.u32 %v2160, %v2161
        %v2163 = vshll.u32 2475754826, %v2157
        %v2164 = vshrl.u32 2131351028, %v2158
        %v2165 = vor.u32 %v2163, %v2164
        %v2166 = vshll.u32 2131351028, %v2157
        %v2167 = vshrl.u32 2102212464, %v2158
        %v2168 = vor.u32 %v2166, %v2167
        %v2169 = vshll.u32 2102212464, %v2157
        %v2170 = vshrl.u32 920167782, %v2158
        %v2171 = vor.u32 %v2169, %v2170
        %v2172 = vshll.u32 920167782, %v2157
        %v2173 = vshrl.u32 1326507024, %v2158
        %v2174 = vor.u32 %v2172, %v2173
        %vm2175 = vcmp.lt.s32.totalorder %v2156, 1
        %vm2176 = vcmp.lt.s32.totalorder %v2156, 2
        %vm2177 = vcmp.lt.s32.totalorder %v2156, 3
        %vm2178 = vcmp.lt.s32.totalorder %v2156, 4
        %v2179 = vsel %vm2175, %v2159, %v2162
        %v2180 = vsel %vm2178, %v2168, 2102212464
        %v2181 = vsel %vm2177, %v2165, %v2180
        %v2182 = vsel %vm2176, %v2179, %v2181
        %v2183 = vsel %vm2175, %v2162, %v2165
        %v2184 = vsel %vm2178, %v2171, 920167782
        %v2185 = vsel %vm2177, %v2168, %v2184
        %v2186 = vsel %vm2176, %v2183, %v2185
        %v2187 = vsel %vm2175, %v2165, %v2168
        %v2188 = vsel %vm2178, %v2174, 1326507024
        %v2189 = vsel %vm2177, %v2171, %v2188
        %v2190 = vsel %vm2176, %v2187, %v2189
        %v2191 = vshll.u32 %v2151, 8
        %v2192 = vmul.u32.u64.compose %v2191, %v2190
        %v2193 = vextract.low.u32 %v2192
        %v2194 = vextract.high.u32 %v2192
        %v2195 = vmul.u32.u64.compose %v2191, %v2186
        %v2196 = vextract.low.u32 %v2195
        %v2197 = vextract.high.u32 %v2195
        %v2198 = vmul.u32 %v2191, %v2182
        %v2199 = vadd.s32 %v2194, %v2196
        %vm2200 = vc.u32 %v2194, %v2196
        %v2201 = vadd.s32 %v2197, 1
        %v2202 = vsel %vm2200, %v2201, %v2197
        %v2203 = vadd.s32 %v2198, %v2202
        %v2204 = vadd.s32 %v2203, 536870912
        %v2205 = vshrl.u32 %v2204, 30
        %v2206 = vshll.u32 %v2205, 30
        %v2207 = vsub.s32 %v2203, %v2206
        %vm2208 = vcmp.lt.s32.totalorder %v2207, 0
        %v2209 = vsub.s32 0, %v2207
        %v2210 = vsel %vm2208, %v2209, %v2207
        %v2211 = vclz %v2210
        %v2212 = vsub.s32 %v2211, 2
        %vm2213 = vcmp.gt.s32.totalorder 0, %v2212
        %v2214 = vsel %vm2213, 0, %v2212
        %v2215 = vsub.s32 32, %v2214
        %v2216 = vshll.u32 %v2207, %v2214
        %v2217 = vshrl.u32 %v2199, %v2215
        %v2218 = vor.u32 %v2216, %v2217
        %v2219 = vsub.s32 4294967266, %v2214
        %v2220 = vadd.s32 %v2219, 127
        %v2221 = vshll.u32 %v2220, 23
        %v2222 = vor.u32 4788187, %v2221
        %v2223 = vand.u32 2147483647, %v2222
        %v2225 = vcvt.s32.f32 %v2218
        %v2226 = vmul.f32 %v2225, %v2223
        %v2227 = vxor.u32 %v2226, 2147483648
        %v2228 = vsel %vm2145, %v2227, %v2226
        %v2229 = vsub.s32 4, %v2205
        %v2230 = vsel %vm2145, %v2229, %v2205
        %v2231 = vsel %vm2144, %v463, %v2228
        %v2232 = vsel %vm2144, 0, %v2230
        %v2233 = vcosq.f32.pop %v2231
        %v2234 = vsinq.f32.pop %v2231
        %vm2235 = vweird.f32 %v463
        %v2236 = vadd.s32 %v2232, 3
        %v2237 = vand.u32 %v2236, 3
        %vm2238 = vcmp.lt.s32.totalorder %v2237, 2
        %vm2239 = vcmp.eq.s32.totalorder %v2237, 0
        %v2240 = vxor.u32 %v2234, 2147483648
        %v2241 = vsel %vm2239, %v2233, %v2240
        %vm2242 = vcmp.eq.s32.totalorder %v2237, 2
        %v2243 = vxor.u32 %v2233, 2147483648
        %v2244 = vsel %vm2242, %v2243, %v2234
        %v2245 = vsel %vm2238, %v2241, %v2244
        %v2246 = vsel %vm2235, nan, %v2245
        %v2247 = vand.u32 2147483647, %v464
        %vm2248 = vcmp.le.f32.partialorder %v2247, 0.7853982
        %vm2249 = vcmp.lt.s32.totalorder %v464, 0
        %v2250 = vand.u32 %v464, 2139095040
        %v2251 = vshrl.u32 %v2250, 23
        %v2252 = vsub.s32 %v2251, 127
        %v2253 = vand.u32 2147483647, %v464
        %v2254 = vand.u32 %v2253, 8388607
        %v2255 = vor.u32 %v2254, 8388608
        %v2256 = vsub.s32 0, %v2255
        %v2257 = vadd.s32 %v2252, 1
        %vm2258 = vcmp.gt.s32.totalorder %v2257, 0
        %v2259 = vsel %vm2258, %v2257, 0
        %v2260 = vshrl.u32 %v2259, 5
        %v2261 = vand.u32 %v2259, 31
        %v2262 = vsub.s32 32, %v2261
        %v2263 = vshrl.u32 683565275, %v2262
        %v2264 = vshll.u32 683565275, %v2261
        %v2265 = vshrl.u32 2475754826, %v2262
        %v2266 = vor.u32 %v2264, %v2265
        %v2267 = vshll.u32 2475754826, %v2261
        %v2268 = vshrl.u32 2131351028, %v2262
        %v2269 = vor.u32 %v2267, %v2268
        %v2270 = vshll.u32 2131351028, %v2261
        %v2271 = vshrl.u32 2102212464, %v2262
        %v2272 = vor.u32 %v2270, %v2271
        %v2273 = vshll.u32 2102212464, %v2261
        %v2274 = vshrl.u32 920167782, %v2262
        %v2275 = vor.u32 %v2273, %v2274
        %v2276 = vshll.u32 920167782, %v2261
        %v2277 = vshrl.u32 1326507024, %v2262
        %v2278 = vor.u32 %v2276, %v2277
        %vm2279 = vcmp.lt.s32.totalorder %v2260, 1
        %vm2280 = vcmp.lt.s32.totalorder %v2260, 2
        %vm2281 = vcmp.lt.s32.totalorder %v2260, 3
        %vm2282 = vcmp.lt.s32.totalorder %v2260, 4
        %v2283 = vsel %vm2279, %v2263, %v2266
        %v2284 = vsel %vm2282, %v2272, 2102212464
        %v2285 = vsel %vm2281, %v2269, %v2284
        %v2286 = vsel %vm2280, %v2283, %v2285
        %v2287 = vsel %vm2279, %v2266, %v2269
        %v2288 = vsel %vm2282, %v2275, 920167782
        %v2289 = vsel %vm2281, %v2272, %v2288
        %v2290 = vsel %vm2280, %v2287, %v2289
        %v2291 = vsel %vm2279, %v2269, %v2272
        %v2292 = vsel %vm2282, %v2278, 1326507024
        %v2293 = vsel %vm2281, %v2275, %v2292
        %v2294 = vsel %vm2280, %v2291, %v2293
        %v2295 = vshll.u32 %v2255, 8
        %v2296 = vmul.u32.u64.compose %v2295, %v2294
        %v2297 = vextract.low.u32 %v2296
        %v2298 = vextract.high.u32 %v2296
        %v2299 = vmul.u32.u64.compose %v2295, %v2290
        %v2300 = vextract.low.u32 %v2299
        %v2301 = vextract.high.u32 %v2299
        %v2302 = vmul.u32 %v2295, %v2286
        %v2303 = vadd.s32 %v2298, %v2300
        %vm2304 = vc.u32 %v2298, %v2300
        %v2305 = vadd.s32 %v2301, 1
        %v2306 = vsel %vm2304, %v2305, %v2301
        %v2307 = vadd.s32 %v2302, %v2306
        %v2308 = vadd.s32 %v2307, 536870912
        %v2309 = vshrl.u32 %v2308, 30
        %v2310 = vshll.u32 %v2309, 30
        %v2311 = vsub.s32 %v2307, %v2310
        %vm2312 = vcmp.lt.s32.totalorder %v2311, 0
        %v2313 = vsub.s32 0, %v2311
        %v2314 = vsel %vm2312, %v2313, %v2311
        %v2315 = vclz %v2314
        %v2316 = vsub.s32 %v2315, 2
        %vm2317 = vcmp.gt.s32.totalorder 0, %v2316
        %v2318 = vsel %vm2317, 0, %v2316
        %v2319 = vsub.s32 32, %v2318
        %v2320 = vshll.u32 %v2311, %v2318
        %v2321 = vshrl.u32 %v2303, %v2319
        %v2322 = vor.u32 %v2320, %v2321
        %v2323 = vsub.s32 4294967266, %v2318
        %v2324 = vadd.s32 %v2323, 127
        %v2325 = vshll.u32 %v2324, 23
        %v2326 = vor.u32 4788187, %v2325
        %v2327 = vand.u32 2147483647, %v2326
        %v2329 = vcvt.s32.f32 %v2322
        %v2330 = vmul.f32 %v2329, %v2327
        %v2331 = vxor.u32 %v2330, 2147483648
        %v2332 = vsel %vm2249, %v2331, %v2330
        %v2333 = vsub.s32 4, %v2309
        %v2334 = vsel %vm2249, %v2333, %v2309
        %v2335 = vsel %vm2248, %v464, %v2332
        %v2336 = vsel %vm2248, 0, %v2334
        %v2337 = vcosq.f32.pop %v2335
        %v2338 = vsinq.f32.pop %v2335
        %vm2339 = vweird.f32 %v464
        %v2340 = vadd.s32 %v2336, 3
        %v2341 = vand.u32 %v2340, 3
        %vm2342 = vcmp.lt.s32.totalorder %v2341, 2
        %vm2343 = vcmp.eq.s32.totalorder %v2341, 0
        %v2344 = vxor.u32 %v2338, 2147483648
        %v2345 = vsel %vm2343, %v2337, %v2344
        %vm2346 = vcmp.eq.s32.totalorder %v2341, 2
        %v2347 = vxor.u32 %v2337, 2147483648
        %v2348 = vsel %vm2346, %v2347, %v2338
        %v2349 = vsel %vm2342, %v2345, %v2348
        %v2350 = vsel %vm2339, nan, %v2349
        %v2351 = vand.u32 2147483647, %v465
        %vm2352 = vcmp.le.f32.partialorder %v2351, 0.7853982
        %vm2353 = vcmp.lt.s32.totalorder %v465, 0
        %v2354 = vand.u32 %v465, 2139095040
        %v2355 = vshrl.u32 %v2354, 23
        %v2356 = vsub.s32 %v2355, 127
        %v2357 = vand.u32 2147483647, %v465
        %v2358 = vand.u32 %v2357, 8388607
        %v2359 = vor.u32 %v2358, 8388608
        %v2360 = vsub.s32 0, %v2359
        %v2361 = vadd.s32 %v2356, 1
        %vm2362 = vcmp.gt.s32.totalorder %v2361, 0
        %v2363 = vsel %vm2362, %v2361, 0
        %v2364 = vshrl.u32 %v2363, 5
        %v2365 = vand.u32 %v2363, 31
        %v2366 = vsub.s32 32, %v2365
        %v2367 = vshrl.u32 683565275, %v2366
        %v2368 = vshll.u32 683565275, %v2365
        %v2369 = vshrl.u32 2475754826, %v2366
        %v2370 = vor.u32 %v2368, %v2369
        %v2371 = vshll.u32 2475754826, %v2365
        %v2372 = vshrl.u32 2131351028, %v2366
        %v2373 = vor.u32 %v2371, %v2372
        %v2374 = vshll.u32 2131351028, %v2365
        %v2375 = vshrl.u32 2102212464, %v2366
        %v2376 = vor.u32 %v2374, %v2375
        %v2377 = vshll.u32 2102212464, %v2365
        %v2378 = vshrl.u32 920167782, %v2366
        %v2379 = vor.u32 %v2377, %v2378
        %v2380 = vshll.u32 920167782, %v2365
        %v2381 = vshrl.u32 1326507024, %v2366
        %v2382 = vor.u32 %v2380, %v2381
        %vm2383 = vcmp.lt.s32.totalorder %v2364, 1
        %vm2384 = vcmp.lt.s32.totalorder %v2364, 2
        %vm2385 = vcmp.lt.s32.totalorder %v2364, 3
        %vm2386 = vcmp.lt.s32.totalorder %v2364, 4
        %v2387 = vsel %vm2383, %v2367, %v2370
        %v2388 = vsel %vm2386, %v2376, 2102212464
        %v2389 = vsel %vm2385, %v2373, %v2388
        %v2390 = vsel %vm2384, %v2387, %v2389
        %v2391 = vsel %vm2383, %v2370, %v2373
        %v2392 = vsel %vm2386, %v2379, 920167782
        %v2393 = vsel %vm2385, %v2376, %v2392
        %v2394 = vsel %vm2384, %v2391, %v2393
        %v2395 = vsel %vm2383, %v2373, %v2376
        %v2396 = vsel %vm2386, %v2382, 1326507024
        %v2397 = vsel %vm2385, %v2379, %v2396
        %v2398 = vsel %vm2384, %v2395, %v2397
        %v2399 = vshll.u32 %v2359, 8
        %v2400 = vmul.u32.u64.compose %v2399, %v2398
        %v2401 = vextract.low.u32 %v2400
        %v2402 = vextract.high.u32 %v2400
        %v2403 = vmul.u32.u64.compose %v2399, %v2394
        %v2404 = vextract.low.u32 %v2403
        %v2405 = vextract.high.u32 %v2403
        %v2406 = vmul.u32 %v2399, %v2390
        %v2407 = vadd.s32 %v2402, %v2404
        %vm2408 = vc.u32 %v2402, %v2404
        %v2409 = vadd.s32 %v2405, 1
        %v2410 = vsel %vm2408, %v2409, %v2405
        %v2411 = vadd.s32 %v2406, %v2410
        %v2412 = vadd.s32 %v2411, 536870912
        %v2413 = vshrl.u32 %v2412, 30
        %v2414 = vshll.u32 %v2413, 30
        %v2415 = vsub.s32 %v2411, %v2414
        %vm2416 = vcmp.lt.s32.totalorder %v2415, 0
        %v2417 = vsub.s32 0, %v2415
        %v2418 = vsel %vm2416, %v2417, %v2415
        %v2419 = vclz %v2418
        %v2420 = vsub.s32 %v2419, 2
        %vm2421 = vcmp.gt.s32.totalorder 0, %v2420
        %v2422 = vsel %vm2421, 0, %v2420
        %v2423 = vsub.s32 32, %v2422
        %v2424 = vshll.u32 %v2415, %v2422
        %v2425 = vshrl.u32 %v2407, %v2423
        %v2426 = vor.u32 %v2424, %v2425
        %v2427 = vsub.s32 4294967266, %v2422
        %v2428 = vadd.s32 %v2427, 127
        %v2429 = vshll.u32 %v2428, 23
        %v2430 = vor.u32 4788187, %v2429
        %v2431 = vand.u32 2147483647, %v2430
        %v2433 = vcvt.s32.f32 %v2426
        %v2434 = vmul.f32 %v2433, %v2431
        %v2435 = vxor.u32 %v2434, 2147483648
        %v2436 = vsel %vm2353, %v2435, %v2434
        %v2437 = vsub.s32 4, %v2413
        %v2438 = vsel %vm2353, %v2437, %v2413
        %v2439 = vsel %vm2352, %v465, %v2436
        %v2440 = vsel %vm2352, 0, %v2438
        %v2441 = vcosq.f32.pop %v2439
        %v2442 = vsinq.f32.pop %v2439
        %vm2443 = vweird.f32 %v465
        %v2444 = vadd.s32 %v2440, 3
        %v2445 = vand.u32 %v2444, 3
        %vm2446 = vcmp.lt.s32.totalorder %v2445, 2
        %vm2447 = vcmp.eq.s32.totalorder %v2445, 0
        %v2448 = vxor.u32 %v2442, 2147483648
        %v2449 = vsel %vm2447, %v2441, %v2448
        %vm2450 = vcmp.eq.s32.totalorder %v2445, 2
        %v2451 = vxor.u32 %v2441, 2147483648
        %v2452 = vsel %vm2450, %v2451, %v2442
        %v2453 = vsel %vm2446, %v2449, %v2452
        %v2454 = vsel %vm2443, nan, %v2453
        %v2455 = vand.u32 2147483647, %v466
        %vm2456 = vcmp.le.f32.partialorder %v2455, 0.7853982
        %vm2457 = vcmp.lt.s32.totalorder %v466, 0
        %v2458 = vand.u32 %v466, 2139095040
        %v2459 = vshrl.u32 %v2458, 23
        %v2460 = vsub.s32 %v2459, 127
        %v2461 = vand.u32 2147483647, %v466
        %v2462 = vand.u32 %v2461, 8388607
        %v2463 = vor.u32 %v2462, 8388608
        %v2464 = vsub.s32 0, %v2463
        %v2465 = vadd.s32 %v2460, 1
        %vm2466 = vcmp.gt.s32.totalorder %v2465, 0
        %v2467 = vsel %vm2466, %v2465, 0
        %v2468 = vshrl.u32 %v2467, 5
        %v2469 = vand.u32 %v2467, 31
        %v2470 = vsub.s32 32, %v2469
        %v2471 = vshrl.u32 683565275, %v2470
        %v2472 = vshll.u32 683565275, %v2469
        %v2473 = vshrl.u32 2475754826, %v2470
        %v2474 = vor.u32 %v2472, %v2473
        %v2475 = vshll.u32 2475754826, %v2469
        %v2476 = vshrl.u32 2131351028, %v2470
        %v2477 = vor.u32 %v2475, %v2476
        %v2478 = vshll.u32 2131351028, %v2469
        %v2479 = vshrl.u32 2102212464, %v2470
        %v2480 = vor.u32 %v2478, %v2479
        %v2481 = vshll.u32 2102212464, %v2469
        %v2482 = vshrl.u32 920167782, %v2470
        %v2483 = vor.u32 %v2481, %v2482
        %v2484 = vshll.u32 920167782, %v2469
        %v2485 = vshrl.u32 1326507024, %v2470
        %v2486 = vor.u32 %v2484, %v2485
        %vm2487 = vcmp.lt.s32.totalorder %v2468, 1
        %vm2488 = vcmp.lt.s32.totalorder %v2468, 2
        %vm2489 = vcmp.lt.s32.totalorder %v2468, 3
        %vm2490 = vcmp.lt.s32.totalorder %v2468, 4
        %v2491 = vsel %vm2487, %v2471, %v2474
        %v2492 = vsel %vm2490, %v2480, 2102212464
        %v2493 = vsel %vm2489, %v2477, %v2492
        %v2494 = vsel %vm2488, %v2491, %v2493
        %v2495 = vsel %vm2487, %v2474, %v2477
        %v2496 = vsel %vm2490, %v2483, 920167782
        %v2497 = vsel %vm2489, %v2480, %v2496
        %v2498 = vsel %vm2488, %v2495, %v2497
        %v2499 = vsel %vm2487, %v2477, %v2480
        %v2500 = vsel %vm2490, %v2486, 1326507024
        %v2501 = vsel %vm2489, %v2483, %v2500
        %v2502 = vsel %vm2488, %v2499, %v2501
        %v2503 = vshll.u32 %v2463, 8
        %v2504 = vmul.u32.u64.compose %v2503, %v2502
        %v2505 = vextract.low.u32 %v2504
        %v2506 = vextract.high.u32 %v2504
        %v2507 = vmul.u32.u64.compose %v2503, %v2498
        %v2508 = vextract.low.u32 %v2507
        %v2509 = vextract.high.u32 %v2507
        %v2510 = vmul.u32 %v2503, %v2494
        %v2511 = vadd.s32 %v2506, %v2508
        %vm2512 = vc.u32 %v2506, %v2508
        %v2513 = vadd.s32 %v2509, 1
        %v2514 = vsel %vm2512, %v2513, %v2509
        %v2515 = vadd.s32 %v2510, %v2514
        %v2516 = vadd.s32 %v2515, 536870912
        %v2517 = vshrl.u32 %v2516, 30
        %v2518 = vshll.u32 %v2517, 30
        %v2519 = vsub.s32 %v2515, %v2518
        %vm2520 = vcmp.lt.s32.totalorder %v2519, 0
        %v2521 = vsub.s32 0, %v2519
        %v2522 = vsel %vm2520, %v2521, %v2519
        %v2523 = vclz %v2522
        %v2524 = vsub.s32 %v2523, 2
        %vm2525 = vcmp.gt.s32.totalorder 0, %v2524
        %v2526 = vsel %vm2525, 0, %v2524
        %v2527 = vsub.s32 32, %v2526
        %v2528 = vshll.u32 %v2519, %v2526
        %v2529 = vshrl.u32 %v2511, %v2527
        %v2530 = vor.u32 %v2528, %v2529
        %v2531 = vsub.s32 4294967266, %v2526
        %v2532 = vadd.s32 %v2531, 127
        %v2533 = vshll.u32 %v2532, 23
        %v2534 = vor.u32 4788187, %v2533
        %v2535 = vand.u32 2147483647, %v2534
        %v2537 = vcvt.s32.f32 %v2530
        %v2538 = vmul.f32 %v2537, %v2535
        %v2539 = vxor.u32 %v2538, 2147483648
        %v2540 = vsel %vm2457, %v2539, %v2538
        %v2541 = vsub.s32 4, %v2517
        %v2542 = vsel %vm2457, %v2541, %v2517
        %v2543 = vsel %vm2456, %v466, %v2540
        %v2544 = vsel %vm2456, 0, %v2542
        %v2545 = vcosq.f32.pop %v2543
        %v2546 = vsinq.f32.pop %v2543
        %vm2547 = vweird.f32 %v466
        %v2548 = vadd.s32 %v2544, 3
        %v2549 = vand.u32 %v2548, 3
        %vm2550 = vcmp.lt.s32.totalorder %v2549, 2
        %vm2551 = vcmp.eq.s32.totalorder %v2549, 0
        %v2552 = vxor.u32 %v2546, 2147483648
        %v2553 = vsel %vm2551, %v2545, %v2552
        %vm2554 = vcmp.eq.s32.totalorder %v2549, 2
        %v2555 = vxor.u32 %v2545, 2147483648
        %v2556 = vsel %vm2554, %v2555, %v2546
        %v2557 = vsel %vm2550, %v2553, %v2556
        %v2558 = vsel %vm2547, nan, %v2557
        %v2559 = vand.u32 2147483647, %v467
        %vm2560 = vcmp.le.f32.partialorder %v2559, 0.7853982
        %vm2561 = vcmp.lt.s32.totalorder %v467, 0
        %v2562 = vand.u32 %v467, 2139095040
        %v2563 = vshrl.u32 %v2562, 23
        %v2564 = vsub.s32 %v2563, 127
        %v2565 = vand.u32 2147483647, %v467
        %v2566 = vand.u32 %v2565, 8388607
        %v2567 = vor.u32 %v2566, 8388608
        %v2568 = vsub.s32 0, %v2567
        %v2569 = vadd.s32 %v2564, 1
        %vm2570 = vcmp.gt.s32.totalorder %v2569, 0
        %v2571 = vsel %vm2570, %v2569, 0
        %v2572 = vshrl.u32 %v2571, 5
        %v2573 = vand.u32 %v2571, 31
        %v2574 = vsub.s32 32, %v2573
        %v2575 = vshrl.u32 683565275, %v2574
        %v2576 = vshll.u32 683565275, %v2573
        %v2577 = vshrl.u32 2475754826, %v2574
        %v2578 = vor.u32 %v2576, %v2577
        %v2579 = vshll.u32 2475754826, %v2573
        %v2580 = vshrl.u32 2131351028, %v2574
        %v2581 = vor.u32 %v2579, %v2580
        %v2582 = vshll.u32 2131351028, %v2573
        %v2583 = vshrl.u32 2102212464, %v2574
        %v2584 = vor.u32 %v2582, %v2583
        %v2585 = vshll.u32 2102212464, %v2573
        %v2586 = vshrl.u32 920167782, %v2574
        %v2587 = vor.u32 %v2585, %v2586
        %v2588 = vshll.u32 920167782, %v2573
        %v2589 = vshrl.u32 1326507024, %v2574
        %v2590 = vor.u32 %v2588, %v2589
        %vm2591 = vcmp.lt.s32.totalorder %v2572, 1
        %vm2592 = vcmp.lt.s32.totalorder %v2572, 2
        %vm2593 = vcmp.lt.s32.totalorder %v2572, 3
        %vm2594 = vcmp.lt.s32.totalorder %v2572, 4
        %v2595 = vsel %vm2591, %v2575, %v2578
        %v2596 = vsel %vm2594, %v2584, 2102212464
        %v2597 = vsel %vm2593, %v2581, %v2596
        %v2598 = vsel %vm2592, %v2595, %v2597
        %v2599 = vsel %vm2591, %v2578, %v2581
        %v2600 = vsel %vm2594, %v2587, 920167782
        %v2601 = vsel %vm2593, %v2584, %v2600
        %v2602 = vsel %vm2592, %v2599, %v2601
        %v2603 = vsel %vm2591, %v2581, %v2584
        %v2604 = vsel %vm2594, %v2590, 1326507024
        %v2605 = vsel %vm2593, %v2587, %v2604
        %v2606 = vsel %vm2592, %v2603, %v2605
        %v2607 = vshll.u32 %v2567, 8
        %v2608 = vmul.u32.u64.compose %v2607, %v2606
        %v2609 = vextract.low.u32 %v2608
        %v2610 = vextract.high.u32 %v2608
        %v2611 = vmul.u32.u64.compose %v2607, %v2602
        %v2612 = vextract.low.u32 %v2611
        %v2613 = vextract.high.u32 %v2611
        %v2614 = vmul.u32 %v2607, %v2598
        %v2615 = vadd.s32 %v2610, %v2612
        %vm2616 = vc.u32 %v2610, %v2612
        %v2617 = vadd.s32 %v2613, 1
        %v2618 = vsel %vm2616, %v2617, %v2613
        %v2619 = vadd.s32 %v2614, %v2618
        %v2620 = vadd.s32 %v2619, 536870912
        %v2621 = vshrl.u32 %v2620, 30
        %v2622 = vshll.u32 %v2621, 30
        %v2623 = vsub.s32 %v2619, %v2622
        %vm2624 = vcmp.lt.s32.totalorder %v2623, 0
        %v2625 = vsub.s32 0, %v2623
        %v2626 = vsel %vm2624, %v2625, %v2623
        %v2627 = vclz %v2626
        %v2628 = vsub.s32 %v2627, 2
        %vm2629 = vcmp.gt.s32.totalorder 0, %v2628
        %v2630 = vsel %vm2629, 0, %v2628
        %v2631 = vsub.s32 32, %v2630
        %v2632 = vshll.u32 %v2623, %v2630
        %v2633 = vshrl.u32 %v2615, %v2631
        %v2634 = vor.u32 %v2632, %v2633
        %v2635 = vsub.s32 4294967266, %v2630
        %v2636 = vadd.s32 %v2635, 127
        %v2637 = vshll.u32 %v2636, 23
        %v2638 = vor.u32 4788187, %v2637
        %v2639 = vand.u32 2147483647, %v2638
        %v2641 = vcvt.s32.f32 %v2634
        %v2642 = vmul.f32 %v2641, %v2639
        %v2643 = vxor.u32 %v2642, 2147483648
        %v2644 = vsel %vm2561, %v2643, %v2642
        %v2645 = vsub.s32 4, %v2621
        %v2646 = vsel %vm2561, %v2645, %v2621
        %v2647 = vsel %vm2560, %v467, %v2644
        %v2648 = vsel %vm2560, 0, %v2646
        %v2649 = vcosq.f32.pop %v2647
        %v2650 = vsinq.f32.pop %v2647
        %vm2651 = vweird.f32 %v467
        %v2652 = vadd.s32 %v2648, 3
        %v2653 = vand.u32 %v2652, 3
        %vm2654 = vcmp.lt.s32.totalorder %v2653, 2
        %vm2655 = vcmp.eq.s32.totalorder %v2653, 0
        %v2656 = vxor.u32 %v2650, 2147483648
        %v2657 = vsel %vm2655, %v2649, %v2656
        %vm2658 = vcmp.eq.s32.totalorder %v2653, 2
        %v2659 = vxor.u32 %v2649, 2147483648
        %v2660 = vsel %vm2658, %v2659, %v2650
        %v2661 = vsel %vm2654, %v2657, %v2660
        %v2662 = vsel %vm2651, nan, %v2661
        %v2663 = vand.u32 2147483647, %v468
        %vm2664 = vcmp.le.f32.partialorder %v2663, 0.7853982
        %vm2665 = vcmp.lt.s32.totalorder %v468, 0
        %v2666 = vand.u32 %v468, 2139095040
        %v2667 = vshrl.u32 %v2666, 23
        %v2668 = vsub.s32 %v2667, 127
        %v2669 = vand.u32 2147483647, %v468
        %v2670 = vand.u32 %v2669, 8388607
        %v2671 = vor.u32 %v2670, 8388608
        %v2672 = vsub.s32 0, %v2671
        %v2673 = vadd.s32 %v2668, 1
        %vm2674 = vcmp.gt.s32.totalorder %v2673, 0
        %v2675 = vsel %vm2674, %v2673, 0
        %v2676 = vshrl.u32 %v2675, 5
        %v2677 = vand.u32 %v2675, 31
        %v2678 = vsub.s32 32, %v2677
        %v2679 = vshrl.u32 683565275, %v2678
        %v2680 = vshll.u32 683565275, %v2677
        %v2681 = vshrl.u32 2475754826, %v2678
        %v2682 = vor.u32 %v2680, %v2681
        %v2683 = vshll.u32 2475754826, %v2677
        %v2684 = vshrl.u32 2131351028, %v2678
        %v2685 = vor.u32 %v2683, %v2684
        %v2686 = vshll.u32 2131351028, %v2677
        %v2687 = vshrl.u32 2102212464, %v2678
        %v2688 = vor.u32 %v2686, %v2687
        %v2689 = vshll.u32 2102212464, %v2677
        %v2690 = vshrl.u32 920167782, %v2678
        %v2691 = vor.u32 %v2689, %v2690
        %v2692 = vshll.u32 920167782, %v2677
        %v2693 = vshrl.u32 1326507024, %v2678
        %v2694 = vor.u32 %v2692, %v2693
        %vm2695 = vcmp.lt.s32.totalorder %v2676, 1
        %vm2696 = vcmp.lt.s32.totalorder %v2676, 2
        %vm2697 = vcmp.lt.s32.totalorder %v2676, 3
        %vm2698 = vcmp.lt.s32.totalorder %v2676, 4
        %v2699 = vsel %vm2695, %v2679, %v2682
        %v2700 = vsel %vm2698, %v2688, 2102212464
        %v2701 = vsel %vm2697, %v2685, %v2700
        %v2702 = vsel %vm2696, %v2699, %v2701
        %v2703 = vsel %vm2695, %v2682, %v2685
        %v2704 = vsel %vm2698, %v2691, 920167782
        %v2705 = vsel %vm2697, %v2688, %v2704
        %v2706 = vsel %vm2696, %v2703, %v2705
        %v2707 = vsel %vm2695, %v2685, %v2688
        %v2708 = vsel %vm2698, %v2694, 1326507024
        %v2709 = vsel %vm2697, %v2691, %v2708
        %v2710 = vsel %vm2696, %v2707, %v2709
        %v2711 = vshll.u32 %v2671, 8
        %v2712 = vmul.u32.u64.compose %v2711, %v2710
        %v2713 = vextract.low.u32 %v2712
        %v2714 = vextract.high.u32 %v2712
        %v2715 = vmul.u32.u64.compose %v2711, %v2706
        %v2716 = vextract.low.u32 %v2715
        %v2717 = vextract.high.u32 %v2715
        %v2718 = vmul.u32 %v2711, %v2702
        %v2719 = vadd.s32 %v2714, %v2716
        %vm2720 = vc.u32 %v2714, %v2716
        %v2721 = vadd.s32 %v2717, 1
        %v2722 = vsel %vm2720, %v2721, %v2717
        %v2723 = vadd.s32 %v2718, %v2722
        %v2724 = vadd.s32 %v2723, 536870912
        %v2725 = vshrl.u32 %v2724, 30
        %v2726 = vshll.u32 %v2725, 30
        %v2727 = vsub.s32 %v2723, %v2726
        %vm2728 = vcmp.lt.s32.totalorder %v2727, 0
        %v2729 = vsub.s32 0, %v2727
        %v2730 = vsel %vm2728, %v2729, %v2727
        %v2731 = vclz %v2730
        %v2732 = vsub.s32 %v2731, 2
        %vm2733 = vcmp.gt.s32.totalorder 0, %v2732
        %v2734 = vsel %vm2733, 0, %v2732
        %v2735 = vsub.s32 32, %v2734
        %v2736 = vshll.u32 %v2727, %v2734
        %v2737 = vshrl.u32 %v2719, %v2735
        %v2738 = vor.u32 %v2736, %v2737
        %v2739 = vsub.s32 4294967266, %v2734
        %v2740 = vadd.s32 %v2739, 127
        %v2741 = vshll.u32 %v2740, 23
        %v2742 = vor.u32 4788187, %v2741
        %v2743 = vand.u32 2147483647, %v2742
        %v2745 = vcvt.s32.f32 %v2738
        %v2746 = vmul.f32 %v2745, %v2743
        %v2747 = vxor.u32 %v2746, 2147483648
        %v2748 = vsel %vm2665, %v2747, %v2746
        %v2749 = vsub.s32 4, %v2725
        %v2750 = vsel %vm2665, %v2749, %v2725
        %v2751 = vsel %vm2664, %v468, %v2748
        %v2752 = vsel %vm2664, 0, %v2750
        %v2753 = vcosq.f32.pop %v2751
        %v2754 = vsinq.f32.pop %v2751
        %vm2755 = vweird.f32 %v468
        %v2756 = vadd.s32 %v2752, 3
        %v2757 = vand.u32 %v2756, 3
        %vm2758 = vcmp.lt.s32.totalorder %v2757, 2
        %vm2759 = vcmp.eq.s32.totalorder %v2757, 0
        %v2760 = vxor.u32 %v2754, 2147483648
        %v2761 = vsel %vm2759, %v2753, %v2760
        %vm2762 = vcmp.eq.s32.totalorder %v2757, 2
        %v2763 = vxor.u32 %v2753, 2147483648
        %v2764 = vsel %vm2762, %v2763, %v2754
        %v2765 = vsel %vm2758, %v2761, %v2764
        %v2766 = vsel %vm2755, nan, %v2765
        %v2767 = vand.u32 2147483647, %v469
        %vm2768 = vcmp.le.f32.partialorder %v2767, 0.7853982
        %vm2769 = vcmp.lt.s32.totalorder %v469, 0
        %v2770 = vand.u32 %v469, 2139095040
        %v2771 = vshrl.u32 %v2770, 23
        %v2772 = vsub.s32 %v2771, 127
        %v2773 = vand.u32 2147483647, %v469
        %v2774 = vand.u32 %v2773, 8388607
        %v2775 = vor.u32 %v2774, 8388608
        %v2776 = vsub.s32 0, %v2775
        %v2777 = vadd.s32 %v2772, 1
        %vm2778 = vcmp.gt.s32.totalorder %v2777, 0
        %v2779 = vsel %vm2778, %v2777, 0
        %v2780 = vshrl.u32 %v2779, 5
        %v2781 = vand.u32 %v2779, 31
        %v2782 = vsub.s32 32, %v2781
        %v2783 = vshrl.u32 683565275, %v2782
        %v2784 = vshll.u32 683565275, %v2781
        %v2785 = vshrl.u32 2475754826, %v2782
        %v2786 = vor.u32 %v2784, %v2785
        %v2787 = vshll.u32 2475754826, %v2781
        %v2788 = vshrl.u32 2131351028, %v2782
        %v2789 = vor.u32 %v2787, %v2788
        %v2790 = vshll.u32 2131351028, %v2781
        %v2791 = vshrl.u32 2102212464, %v2782
        %v2792 = vor.u32 %v2790, %v2791
        %v2793 = vshll.u32 2102212464, %v2781
        %v2794 = vshrl.u32 920167782, %v2782
        %v2795 = vor.u32 %v2793, %v2794
        %v2796 = vshll.u32 920167782, %v2781
        %v2797 = vshrl.u32 1326507024, %v2782
        %v2798 = vor.u32 %v2796, %v2797
        %vm2799 = vcmp.lt.s32.totalorder %v2780, 1
        %vm2800 = vcmp.lt.s32.totalorder %v2780, 2
        %vm2801 = vcmp.lt.s32.totalorder %v2780, 3
        %vm2802 = vcmp.lt.s32.totalorder %v2780, 4
        %v2803 = vsel %vm2799, %v2783, %v2786
        %v2804 = vsel %vm2802, %v2792, 2102212464
        %v2805 = vsel %vm2801, %v2789, %v2804
        %v2806 = vsel %vm2800, %v2803, %v2805
        %v2807 = vsel %vm2799, %v2786, %v2789
        %v2808 = vsel %vm2802, %v2795, 920167782
        %v2809 = vsel %vm2801, %v2792, %v2808
        %v2810 = vsel %vm2800, %v2807, %v2809
        %v2811 = vsel %vm2799, %v2789, %v2792
        %v2812 = vsel %vm2802, %v2798, 1326507024
        %v2813 = vsel %vm2801, %v2795, %v2812
        %v2814 = vsel %vm2800, %v2811, %v2813
        %v2815 = vshll.u32 %v2775, 8
        %v2816 = vmul.u32.u64.compose %v2815, %v2814
        %v2817 = vextract.low.u32 %v2816
        %v2818 = vextract.high.u32 %v2816
        %v2819 = vmul.u32.u64.compose %v2815, %v2810
        %v2820 = vextract.low.u32 %v2819
        %v2821 = vextract.high.u32 %v2819
        %v2822 = vmul.u32 %v2815, %v2806
        %v2823 = vadd.s32 %v2818, %v2820
        %vm2824 = vc.u32 %v2818, %v2820
        %v2825 = vadd.s32 %v2821, 1
        %v2826 = vsel %vm2824, %v2825, %v2821
        %v2827 = vadd.s32 %v2822, %v2826
        %v2828 = vadd.s32 %v2827, 536870912
        %v2829 = vshrl.u32 %v2828, 30
        %v2830 = vshll.u32 %v2829, 30
        %v2831 = vsub.s32 %v2827, %v2830
        %vm2832 = vcmp.lt.s32.totalorder %v2831, 0
        %v2833 = vsub.s32 0, %v2831
        %v2834 = vsel %vm2832, %v2833, %v2831
        %v2835 = vclz %v2834
        %v2836 = vsub.s32 %v2835, 2
        %vm2837 = vcmp.gt.s32.totalorder 0, %v2836
        %v2838 = vsel %vm2837, 0, %v2836
        %v2839 = vsub.s32 32, %v2838
        %v2840 = vshll.u32 %v2831, %v2838
        %v2841 = vshrl.u32 %v2823, %v2839
        %v2842 = vor.u32 %v2840, %v2841
        %v2843 = vsub.s32 4294967266, %v2838
        %v2844 = vadd.s32 %v2843, 127
        %v2845 = vshll.u32 %v2844, 23
        %v2846 = vor.u32 4788187, %v2845
        %v2847 = vand.u32 2147483647, %v2846
        %v2849 = vcvt.s32.f32 %v2842
        %v2850 = vmul.f32 %v2849, %v2847
        %v2851 = vxor.u32 %v2850, 2147483648
        %v2852 = vsel %vm2769, %v2851, %v2850
        %v2853 = vsub.s32 4, %v2829
        %v2854 = vsel %vm2769, %v2853, %v2829
        %v2855 = vsel %vm2768, %v469, %v2852
        %v2856 = vsel %vm2768, 0, %v2854
        %v2857 = vcosq.f32.pop %v2855
        %v2858 = vsinq.f32.pop %v2855
        %vm2859 = vweird.f32 %v469
        %v2860 = vadd.s32 %v2856, 3
        %v2861 = vand.u32 %v2860, 3
        %vm2862 = vcmp.lt.s32.totalorder %v2861, 2
        %vm2863 = vcmp.eq.s32.totalorder %v2861, 0
        %v2864 = vxor.u32 %v2858, 2147483648
        %v2865 = vsel %vm2863, %v2857, %v2864
        %vm2866 = vcmp.eq.s32.totalorder %v2861, 2
        %v2867 = vxor.u32 %v2857, 2147483648
        %v2868 = vsel %vm2866, %v2867, %v2858
        %v2869 = vsel %vm2862, %v2865, %v2868
        %v2870 = vsel %vm2859, nan, %v2869
        %v2871 = vand.u32 2147483647, %v470
        %vm2872 = vcmp.le.f32.partialorder %v2871, 0.7853982
        %vm2873 = vcmp.lt.s32.totalorder %v470, 0
        %v2874 = vand.u32 %v470, 2139095040
        %v2875 = vshrl.u32 %v2874, 23
        %v2876 = vsub.s32 %v2875, 127
        %v2877 = vand.u32 2147483647, %v470
        %v2878 = vand.u32 %v2877, 8388607
        %v2879 = vor.u32 %v2878, 8388608
        %v2880 = vsub.s32 0, %v2879
        %v2881 = vadd.s32 %v2876, 1
        %vm2882 = vcmp.gt.s32.totalorder %v2881, 0
        %v2883 = vsel %vm2882, %v2881, 0
        %v2884 = vshrl.u32 %v2883, 5
        %v2885 = vand.u32 %v2883, 31
        %v2886 = vsub.s32 32, %v2885
        %v2887 = vshrl.u32 683565275, %v2886
        %v2888 = vshll.u32 683565275, %v2885
        %v2889 = vshrl.u32 2475754826, %v2886
        %v2890 = vor.u32 %v2888, %v2889
        %v2891 = vshll.u32 2475754826, %v2885
        %v2892 = vshrl.u32 2131351028, %v2886
        %v2893 = vor.u32 %v2891, %v2892
        %v2894 = vshll.u32 2131351028, %v2885
        %v2895 = vshrl.u32 2102212464, %v2886
        %v2896 = vor.u32 %v2894, %v2895
        %v2897 = vshll.u32 2102212464, %v2885
        %v2898 = vshrl.u32 920167782, %v2886
        %v2899 = vor.u32 %v2897, %v2898
        %v2900 = vshll.u32 920167782, %v2885
        %v2901 = vshrl.u32 1326507024, %v2886
        %v2902 = vor.u32 %v2900, %v2901
        %vm2903 = vcmp.lt.s32.totalorder %v2884, 1
        %vm2904 = vcmp.lt.s32.totalorder %v2884, 2
        %vm2905 = vcmp.lt.s32.totalorder %v2884, 3
        %vm2906 = vcmp.lt.s32.totalorder %v2884, 4
        %v2907 = vsel %vm2903, %v2887, %v2890
        %v2908 = vsel %vm2906, %v2896, 2102212464
        %v2909 = vsel %vm2905, %v2893, %v2908
        %v2910 = vsel %vm2904, %v2907, %v2909
        %v2911 = vsel %vm2903, %v2890, %v2893
        %v2912 = vsel %vm2906, %v2899, 920167782
        %v2913 = vsel %vm2905, %v2896, %v2912
        %v2914 = vsel %vm2904, %v2911, %v2913
        %v2915 = vsel %vm2903, %v2893, %v2896
        %v2916 = vsel %vm2906, %v2902, 1326507024
        %v2917 = vsel %vm2905, %v2899, %v2916
        %v2918 = vsel %vm2904, %v2915, %v2917
        %v2919 = vshll.u32 %v2879, 8
        %v2920 = vmul.u32.u64.compose %v2919, %v2918
        %v2921 = vextract.low.u32 %v2920
        %v2922 = vextract.high.u32 %v2920
        %v2923 = vmul.u32.u64.compose %v2919, %v2914
        %v2924 = vextract.low.u32 %v2923
        %v2925 = vextract.high.u32 %v2923
        %v2926 = vmul.u32 %v2919, %v2910
        %v2927 = vadd.s32 %v2922, %v2924
        %vm2928 = vc.u32 %v2922, %v2924
        %v2929 = vadd.s32 %v2925, 1
        %v2930 = vsel %vm2928, %v2929, %v2925
        %v2931 = vadd.s32 %v2926, %v2930
        %v2932 = vadd.s32 %v2931, 536870912
        %v2933 = vshrl.u32 %v2932, 30
        %v2934 = vshll.u32 %v2933, 30
        %v2935 = vsub.s32 %v2931, %v2934
        %vm2936 = vcmp.lt.s32.totalorder %v2935, 0
        %v2937 = vsub.s32 0, %v2935
        %v2938 = vsel %vm2936, %v2937, %v2935
        %v2939 = vclz %v2938
        %v2940 = vsub.s32 %v2939, 2
        %vm2941 = vcmp.gt.s32.totalorder 0, %v2940
        %v2942 = vsel %vm2941, 0, %v2940
        %v2943 = vsub.s32 32, %v2942
        %v2944 = vshll.u32 %v2935, %v2942
        %v2945 = vshrl.u32 %v2927, %v2943
        %v2946 = vor.u32 %v2944, %v2945
        %v2947 = vsub.s32 4294967266, %v2942
        %v2948 = vadd.s32 %v2947, 127
        %v2949 = vshll.u32 %v2948, 23
        %v2950 = vor.u32 4788187, %v2949
        %v2951 = vand.u32 2147483647, %v2950
        %v2953 = vcvt.s32.f32 %v2946
        %v2954 = vmul.f32 %v2953, %v2951
        %v2955 = vxor.u32 %v2954, 2147483648
        %v2956 = vsel %vm2873, %v2955, %v2954
        %v2957 = vsub.s32 4, %v2933
        %v2958 = vsel %vm2873, %v2957, %v2933
        %v2959 = vsel %vm2872, %v470, %v2956
        %v2960 = vsel %vm2872, 0, %v2958
        %v2961 = vcosq.f32.pop %v2959
        %v2962 = vsinq.f32.pop %v2959
        %vm2963 = vweird.f32 %v470
        %v2964 = vadd.s32 %v2960, 3
        %v2965 = vand.u32 %v2964, 3
        %vm2966 = vcmp.lt.s32.totalorder %v2965, 2
        %vm2967 = vcmp.eq.s32.totalorder %v2965, 0
        %v2968 = vxor.u32 %v2962, 2147483648
        %v2969 = vsel %vm2967, %v2961, %v2968
        %vm2970 = vcmp.eq.s32.totalorder %v2965, 2
        %v2971 = vxor.u32 %v2961, 2147483648
        %v2972 = vsel %vm2970, %v2971, %v2962
        %v2973 = vsel %vm2966, %v2969, %v2972
        %v2974 = vsel %vm2963, nan, %v2973
        %v2975 = vand.u32 2147483647, %v471
        %vm2976 = vcmp.le.f32.partialorder %v2975, 0.7853982
        %vm2977 = vcmp.lt.s32.totalorder %v471, 0
        %v2978 = vand.u32 %v471, 2139095040
        %v2979 = vshrl.u32 %v2978, 23
        %v2980 = vsub.s32 %v2979, 127
        %v2981 = vand.u32 2147483647, %v471
        %v2982 = vand.u32 %v2981, 8388607
        %v2983 = vor.u32 %v2982, 8388608
        %v2984 = vsub.s32 0, %v2983
        %v2985 = vadd.s32 %v2980, 1
        %vm2986 = vcmp.gt.s32.totalorder %v2985, 0
        %v2987 = vsel %vm2986, %v2985, 0
        %v2988 = vshrl.u32 %v2987, 5
        %v2989 = vand.u32 %v2987, 31
        %v2990 = vsub.s32 32, %v2989
        %v2991 = vshrl.u32 683565275, %v2990
        %v2992 = vshll.u32 683565275, %v2989
        %v2993 = vshrl.u32 2475754826, %v2990
        %v2994 = vor.u32 %v2992, %v2993
        %v2995 = vshll.u32 2475754826, %v2989
        %v2996 = vshrl.u32 2131351028, %v2990
        %v2997 = vor.u32 %v2995, %v2996
        %v2998 = vshll.u32 2131351028, %v2989
        %v2999 = vshrl.u32 2102212464, %v2990
        %v3000 = vor.u32 %v2998, %v2999
        %v3001 = vshll.u32 2102212464, %v2989
        %v3002 = vshrl.u32 920167782, %v2990
        %v3003 = vor.u32 %v3001, %v3002
        %v3004 = vshll.u32 920167782, %v2989
        %v3005 = vshrl.u32 1326507024, %v2990
        %v3006 = vor.u32 %v3004, %v3005
        %vm3007 = vcmp.lt.s32.totalorder %v2988, 1
        %vm3008 = vcmp.lt.s32.totalorder %v2988, 2
        %vm3009 = vcmp.lt.s32.totalorder %v2988, 3
        %vm3010 = vcmp.lt.s32.totalorder %v2988, 4
        %v3011 = vsel %vm3007, %v2991, %v2994
        %v3012 = vsel %vm3010, %v3000, 2102212464
        %v3013 = vsel %vm3009, %v2997, %v3012
        %v3014 = vsel %vm3008, %v3011, %v3013
        %v3015 = vsel %vm3007, %v2994, %v2997
        %v3016 = vsel %vm3010, %v3003, 920167782
        %v3017 = vsel %vm3009, %v3000, %v3016
        %v3018 = vsel %vm3008, %v3015, %v3017
        %v3019 = vsel %vm3007, %v2997, %v3000
        %v3020 = vsel %vm3010, %v3006, 1326507024
        %v3021 = vsel %vm3009, %v3003, %v3020
        %v3022 = vsel %vm3008, %v3019, %v3021
        %v3023 = vshll.u32 %v2983, 8
        %v3024 = vmul.u32.u64.compose %v3023, %v3022
        %v3025 = vextract.low.u32 %v3024
        %v3026 = vextract.high.u32 %v3024
        %v3027 = vmul.u32.u64.compose %v3023, %v3018
        %v3028 = vextract.low.u32 %v3027
        %v3029 = vextract.high.u32 %v3027
        %v3030 = vmul.u32 %v3023, %v3014
        %v3031 = vadd.s32 %v3026, %v3028
        %vm3032 = vc.u32 %v3026, %v3028
        %v3033 = vadd.s32 %v3029, 1
        %v3034 = vsel %vm3032, %v3033, %v3029
        %v3035 = vadd.s32 %v3030, %v3034
        %v3036 = vadd.s32 %v3035, 536870912
        %v3037 = vshrl.u32 %v3036, 30
        %v3038 = vshll.u32 %v3037, 30
        %v3039 = vsub.s32 %v3035, %v3038
        %vm3040 = vcmp.lt.s32.totalorder %v3039, 0
        %v3041 = vsub.s32 0, %v3039
        %v3042 = vsel %vm3040, %v3041, %v3039
        %v3043 = vclz %v3042
        %v3044 = vsub.s32 %v3043, 2
        %vm3045 = vcmp.gt.s32.totalorder 0, %v3044
        %v3046 = vsel %vm3045, 0, %v3044
        %v3047 = vsub.s32 32, %v3046
        %v3048 = vshll.u32 %v3039, %v3046
        %v3049 = vshrl.u32 %v3031, %v3047
        %v3050 = vor.u32 %v3048, %v3049
        %v3051 = vsub.s32 4294967266, %v3046
        %v3052 = vadd.s32 %v3051, 127
        %v3053 = vshll.u32 %v3052, 23
        %v3054 = vor.u32 4788187, %v3053
        %v3055 = vand.u32 2147483647, %v3054
        %v3057 = vcvt.s32.f32 %v3050
        %v3058 = vmul.f32 %v3057, %v3055
        %v3059 = vxor.u32 %v3058, 2147483648
        %v3060 = vsel %vm2977, %v3059, %v3058
        %v3061 = vsub.s32 4, %v3037
        %v3062 = vsel %vm2977, %v3061, %v3037
        %v3063 = vsel %vm2976, %v471, %v3060
        %v3064 = vsel %vm2976, 0, %v3062
        %v3065 = vcosq.f32.pop %v3063
        %v3066 = vsinq.f32.pop %v3063
        %vm3067 = vweird.f32 %v471
        %v3068 = vadd.s32 %v3064, 3
        %v3069 = vand.u32 %v3068, 3
        %vm3070 = vcmp.lt.s32.totalorder %v3069, 2
        %vm3071 = vcmp.eq.s32.totalorder %v3069, 0
        %v3072 = vxor.u32 %v3066, 2147483648
        %v3073 = vsel %vm3071, %v3065, %v3072
        %vm3074 = vcmp.eq.s32.totalorder %v3069, 2
        %v3075 = vxor.u32 %v3065, 2147483648
        %v3076 = vsel %vm3074, %v3075, %v3066
        %v3077 = vsel %vm3070, %v3073, %v3076
        %v3078 = vsel %vm3067, nan, %v3077
        %v3079 = vand.u32 2147483647, %v472
        %vm3080 = vcmp.le.f32.partialorder %v3079, 0.7853982
        %vm3081 = vcmp.lt.s32.totalorder %v472, 0
        %v3082 = vand.u32 %v472, 2139095040
        %v3083 = vshrl.u32 %v3082, 23
        %v3084 = vsub.s32 %v3083, 127
        %v3085 = vand.u32 2147483647, %v472
        %v3086 = vand.u32 %v3085, 8388607
        %v3087 = vor.u32 %v3086, 8388608
        %v3088 = vsub.s32 0, %v3087
        %v3089 = vadd.s32 %v3084, 1
        %vm3090 = vcmp.gt.s32.totalorder %v3089, 0
        %v3091 = vsel %vm3090, %v3089, 0
        %v3092 = vshrl.u32 %v3091, 5
        %v3093 = vand.u32 %v3091, 31
        %v3094 = vsub.s32 32, %v3093
        %v3095 = vshrl.u32 683565275, %v3094
        %v3096 = vshll.u32 683565275, %v3093
        %v3097 = vshrl.u32 2475754826, %v3094
        %v3098 = vor.u32 %v3096, %v3097
        %v3099 = vshll.u32 2475754826, %v3093
        %v3100 = vshrl.u32 2131351028, %v3094
        %v3101 = vor.u32 %v3099, %v3100
        %v3102 = vshll.u32 2131351028, %v3093
        %v3103 = vshrl.u32 2102212464, %v3094
        %v3104 = vor.u32 %v3102, %v3103
        %v3105 = vshll.u32 2102212464, %v3093
        %v3106 = vshrl.u32 920167782, %v3094
        %v3107 = vor.u32 %v3105, %v3106
        %v3108 = vshll.u32 920167782, %v3093
        %v3109 = vshrl.u32 1326507024, %v3094
        %v3110 = vor.u32 %v3108, %v3109
        %vm3111 = vcmp.lt.s32.totalorder %v3092, 1
        %vm3112 = vcmp.lt.s32.totalorder %v3092, 2
        %vm3113 = vcmp.lt.s32.totalorder %v3092, 3
        %vm3114 = vcmp.lt.s32.totalorder %v3092, 4
        %v3115 = vsel %vm3111, %v3095, %v3098
        %v3116 = vsel %vm3114, %v3104, 2102212464
        %v3117 = vsel %vm3113, %v3101, %v3116
        %v3118 = vsel %vm3112, %v3115, %v3117
        %v3119 = vsel %vm3111, %v3098, %v3101
        %v3120 = vsel %vm3114, %v3107, 920167782
        %v3121 = vsel %vm3113, %v3104, %v3120
        %v3122 = vsel %vm3112, %v3119, %v3121
        %v3123 = vsel %vm3111, %v3101, %v3104
        %v3124 = vsel %vm3114, %v3110, 1326507024
        %v3125 = vsel %vm3113, %v3107, %v3124
        %v3126 = vsel %vm3112, %v3123, %v3125
        %v3127 = vshll.u32 %v3087, 8
        %v3128 = vmul.u32.u64.compose %v3127, %v3126
        %v3129 = vextract.low.u32 %v3128
        %v3130 = vextract.high.u32 %v3128
        %v3131 = vmul.u32.u64.compose %v3127, %v3122
        %v3132 = vextract.low.u32 %v3131
        %v3133 = vextract.high.u32 %v3131
        %v3134 = vmul.u32 %v3127, %v3118
        %v3135 = vadd.s32 %v3130, %v3132
        %vm3136 = vc.u32 %v3130, %v3132
        %v3137 = vadd.s32 %v3133, 1
        %v3138 = vsel %vm3136, %v3137, %v3133
        %v3139 = vadd.s32 %v3134, %v3138
        %v3140 = vadd.s32 %v3139, 536870912
        %v3141 = vshrl.u32 %v3140, 30
        %v3142 = vshll.u32 %v3141, 30
        %v3143 = vsub.s32 %v3139, %v3142
        %vm3144 = vcmp.lt.s32.totalorder %v3143, 0
        %v3145 = vsub.s32 0, %v3143
        %v3146 = vsel %vm3144, %v3145, %v3143
        %v3147 = vclz %v3146
        %v3148 = vsub.s32 %v3147, 2
        %vm3149 = vcmp.gt.s32.totalorder 0, %v3148
        %v3150 = vsel %vm3149, 0, %v3148
        %v3151 = vsub.s32 32, %v3150
        %v3152 = vshll.u32 %v3143, %v3150
        %v3153 = vshrl.u32 %v3135, %v3151
        %v3154 = vor.u32 %v3152, %v3153
        %v3155 = vsub.s32 4294967266, %v3150
        %v3156 = vadd.s32 %v3155, 127
        %v3157 = vshll.u32 %v3156, 23
        %v3158 = vor.u32 4788187, %v3157
        %v3159 = vand.u32 2147483647, %v3158
        %v3161 = vcvt.s32.f32 %v3154
        %v3162 = vmul.f32 %v3161, %v3159
        %v3163 = vxor.u32 %v3162, 2147483648
        %v3164 = vsel %vm3081, %v3163, %v3162
        %v3165 = vsub.s32 4, %v3141
        %v3166 = vsel %vm3081, %v3165, %v3141
        %v3167 = vsel %vm3080, %v472, %v3164
        %v3168 = vsel %vm3080, 0, %v3166
        %v3169 = vcosq.f32.pop %v3167
        %v3170 = vsinq.f32.pop %v3167
        %vm3171 = vweird.f32 %v472
        %v3172 = vadd.s32 %v3168, 3
        %v3173 = vand.u32 %v3172, 3
        %vm3174 = vcmp.lt.s32.totalorder %v3173, 2
        %vm3175 = vcmp.eq.s32.totalorder %v3173, 0
        %v3176 = vxor.u32 %v3170, 2147483648
        %v3177 = vsel %vm3175, %v3169, %v3176
        %vm3178 = vcmp.eq.s32.totalorder %v3173, 2
        %v3179 = vxor.u32 %v3169, 2147483648
        %v3180 = vsel %vm3178, %v3179, %v3170
        %v3181 = vsel %vm3174, %v3177, %v3180
        %v3182 = vsel %vm3171, nan, %v3181
        %v3183 = vand.u32 2147483647, %v473
        %vm3184 = vcmp.le.f32.partialorder %v3183, 0.7853982
        %vm3185 = vcmp.lt.s32.totalorder %v473, 0
        %v3186 = vand.u32 %v473, 2139095040
        %v3187 = vshrl.u32 %v3186, 23
        %v3188 = vsub.s32 %v3187, 127
        %v3189 = vand.u32 2147483647, %v473
        %v3190 = vand.u32 %v3189, 8388607
        %v3191 = vor.u32 %v3190, 8388608
        %v3192 = vsub.s32 0, %v3191
        %v3193 = vadd.s32 %v3188, 1
        %vm3194 = vcmp.gt.s32.totalorder %v3193, 0
        %v3195 = vsel %vm3194, %v3193, 0
        %v3196 = vshrl.u32 %v3195, 5
        %v3197 = vand.u32 %v3195, 31
        %v3198 = vsub.s32 32, %v3197
        %v3199 = vshrl.u32 683565275, %v3198
        %v3200 = vshll.u32 683565275, %v3197
        %v3201 = vshrl.u32 2475754826, %v3198
        %v3202 = vor.u32 %v3200, %v3201
        %v3203 = vshll.u32 2475754826, %v3197
        %v3204 = vshrl.u32 2131351028, %v3198
        %v3205 = vor.u32 %v3203, %v3204
        %v3206 = vshll.u32 2131351028, %v3197
        %v3207 = vshrl.u32 2102212464, %v3198
        %v3208 = vor.u32 %v3206, %v3207
        %v3209 = vshll.u32 2102212464, %v3197
        %v3210 = vshrl.u32 920167782, %v3198
        %v3211 = vor.u32 %v3209, %v3210
        %v3212 = vshll.u32 920167782, %v3197
        %v3213 = vshrl.u32 1326507024, %v3198
        %v3214 = vor.u32 %v3212, %v3213
        %vm3215 = vcmp.lt.s32.totalorder %v3196, 1
        %vm3216 = vcmp.lt.s32.totalorder %v3196, 2
        %vm3217 = vcmp.lt.s32.totalorder %v3196, 3
        %vm3218 = vcmp.lt.s32.totalorder %v3196, 4
        %v3219 = vsel %vm3215, %v3199, %v3202
        %v3220 = vsel %vm3218, %v3208, 2102212464
        %v3221 = vsel %vm3217, %v3205, %v3220
        %v3222 = vsel %vm3216, %v3219, %v3221
        %v3223 = vsel %vm3215, %v3202, %v3205
        %v3224 = vsel %vm3218, %v3211, 920167782
        %v3225 = vsel %vm3217, %v3208, %v3224
        %v3226 = vsel %vm3216, %v3223, %v3225
        %v3227 = vsel %vm3215, %v3205, %v3208
        %v3228 = vsel %vm3218, %v3214, 1326507024
        %v3229 = vsel %vm3217, %v3211, %v3228
        %v3230 = vsel %vm3216, %v3227, %v3229
        %v3231 = vshll.u32 %v3191, 8
        %v3232 = vmul.u32.u64.compose %v3231, %v3230
        %v3233 = vextract.low.u32 %v3232
        %v3234 = vextract.high.u32 %v3232
        %v3235 = vmul.u32.u64.compose %v3231, %v3226
        %v3236 = vextract.low.u32 %v3235
        %v3237 = vextract.high.u32 %v3235
        %v3238 = vmul.u32 %v3231, %v3222
        %v3239 = vadd.s32 %v3234, %v3236
        %vm3240 = vc.u32 %v3234, %v3236
        %v3241 = vadd.s32 %v3237, 1
        %v3242 = vsel %vm3240, %v3241, %v3237
        %v3243 = vadd.s32 %v3238, %v3242
        %v3244 = vadd.s32 %v3243, 536870912
        %v3245 = vshrl.u32 %v3244, 30
        %v3246 = vshll.u32 %v3245, 30
        %v3247 = vsub.s32 %v3243, %v3246
        %vm3248 = vcmp.lt.s32.totalorder %v3247, 0
        %v3249 = vsub.s32 0, %v3247
        %v3250 = vsel %vm3248, %v3249, %v3247
        %v3251 = vclz %v3250
        %v3252 = vsub.s32 %v3251, 2
        %vm3253 = vcmp.gt.s32.totalorder 0, %v3252
        %v3254 = vsel %vm3253, 0, %v3252
        %v3255 = vsub.s32 32, %v3254
        %v3256 = vshll.u32 %v3247, %v3254
        %v3257 = vshrl.u32 %v3239, %v3255
        %v3258 = vor.u32 %v3256, %v3257
        %v3259 = vsub.s32 4294967266, %v3254
        %v3260 = vadd.s32 %v3259, 127
        %v3261 = vshll.u32 %v3260, 23
        %v3262 = vor.u32 4788187, %v3261
        %v3263 = vand.u32 2147483647, %v3262
        %v3265 = vcvt.s32.f32 %v3258
        %v3266 = vmul.f32 %v3265, %v3263
        %v3267 = vxor.u32 %v3266, 2147483648
        %v3268 = vsel %vm3185, %v3267, %v3266
        %v3269 = vsub.s32 4, %v3245
        %v3270 = vsel %vm3185, %v3269, %v3245
        %v3271 = vsel %vm3184, %v473, %v3268
        %v3272 = vsel %vm3184, 0, %v3270
        %v3273 = vcosq.f32.pop %v3271
        %v3274 = vsinq.f32.pop %v3271
        %vm3275 = vweird.f32 %v473
        %v3276 = vadd.s32 %v3272, 3
        %v3277 = vand.u32 %v3276, 3
        %vm3278 = vcmp.lt.s32.totalorder %v3277, 2
        %vm3279 = vcmp.eq.s32.totalorder %v3277, 0
        %v3280 = vxor.u32 %v3274, 2147483648
        %v3281 = vsel %vm3279, %v3273, %v3280
        %vm3282 = vcmp.eq.s32.totalorder %v3277, 2
        %v3283 = vxor.u32 %v3273, 2147483648
        %v3284 = vsel %vm3282, %v3283, %v3274
        %v3285 = vsel %vm3278, %v3281, %v3284
        %v3286 = vsel %vm3275, nan, %v3285
        %v3287 = vand.u32 2147483647, %v474
        %vm3288 = vcmp.le.f32.partialorder %v3287, 0.7853982
        %vm3289 = vcmp.lt.s32.totalorder %v474, 0
        %v3290 = vand.u32 %v474, 2139095040
        %v3291 = vshrl.u32 %v3290, 23
        %v3292 = vsub.s32 %v3291, 127
        %v3293 = vand.u32 2147483647, %v474
        %v3294 = vand.u32 %v3293, 8388607
        %v3295 = vor.u32 %v3294, 8388608
        %v3296 = vsub.s32 0, %v3295
        %v3297 = vadd.s32 %v3292, 1
        %vm3298 = vcmp.gt.s32.totalorder %v3297, 0
        %v3299 = vsel %vm3298, %v3297, 0
        %v3300 = vshrl.u32 %v3299, 5
        %v3301 = vand.u32 %v3299, 31
        %v3302 = vsub.s32 32, %v3301
        %v3303 = vshrl.u32 683565275, %v3302
        %v3304 = vshll.u32 683565275, %v3301
        %v3305 = vshrl.u32 2475754826, %v3302
        %v3306 = vor.u32 %v3304, %v3305
        %v3307 = vshll.u32 2475754826, %v3301
        %v3308 = vshrl.u32 2131351028, %v3302
        %v3309 = vor.u32 %v3307, %v3308
        %v3310 = vshll.u32 2131351028, %v3301
        %v3311 = vshrl.u32 2102212464, %v3302
        %v3312 = vor.u32 %v3310, %v3311
        %v3313 = vshll.u32 2102212464, %v3301
        %v3314 = vshrl.u32 920167782, %v3302
        %v3315 = vor.u32 %v3313, %v3314
        %v3316 = vshll.u32 920167782, %v3301
        %v3317 = vshrl.u32 1326507024, %v3302
        %v3318 = vor.u32 %v3316, %v3317
        %vm3319 = vcmp.lt.s32.totalorder %v3300, 1
        %vm3320 = vcmp.lt.s32.totalorder %v3300, 2
        %vm3321 = vcmp.lt.s32.totalorder %v3300, 3
        %vm3322 = vcmp.lt.s32.totalorder %v3300, 4
        %v3323 = vsel %vm3319, %v3303, %v3306
        %v3324 = vsel %vm3322, %v3312, 2102212464
        %v3325 = vsel %vm3321, %v3309, %v3324
        %v3326 = vsel %vm3320, %v3323, %v3325
        %v3327 = vsel %vm3319, %v3306, %v3309
        %v3328 = vsel %vm3322, %v3315, 920167782
        %v3329 = vsel %vm3321, %v3312, %v3328
        %v3330 = vsel %vm3320, %v3327, %v3329
        %v3331 = vsel %vm3319, %v3309, %v3312
        %v3332 = vsel %vm3322, %v3318, 1326507024
        %v3333 = vsel %vm3321, %v3315, %v3332
        %v3334 = vsel %vm3320, %v3331, %v3333
        %v3335 = vshll.u32 %v3295, 8
        %v3336 = vmul.u32.u64.compose %v3335, %v3334
        %v3337 = vextract.low.u32 %v3336
        %v3338 = vextract.high.u32 %v3336
        %v3339 = vmul.u32.u64.compose %v3335, %v3330
        %v3340 = vextract.low.u32 %v3339
        %v3341 = vextract.high.u32 %v3339
        %v3342 = vmul.u32 %v3335, %v3326
        %v3343 = vadd.s32 %v3338, %v3340
        %vm3344 = vc.u32 %v3338, %v3340
        %v3345 = vadd.s32 %v3341, 1
        %v3346 = vsel %vm3344, %v3345, %v3341
        %v3347 = vadd.s32 %v3342, %v3346
        %v3348 = vadd.s32 %v3347, 536870912
        %v3349 = vshrl.u32 %v3348, 30
        %v3350 = vshll.u32 %v3349, 30
        %v3351 = vsub.s32 %v3347, %v3350
        %vm3352 = vcmp.lt.s32.totalorder %v3351, 0
        %v3353 = vsub.s32 0, %v3351
        %v3354 = vsel %vm3352, %v3353, %v3351
        %v3355 = vclz %v3354
        %v3356 = vsub.s32 %v3355, 2
        %vm3357 = vcmp.gt.s32.totalorder 0, %v3356
        %v3358 = vsel %vm3357, 0, %v3356
        %v3359 = vsub.s32 32, %v3358
        %v3360 = vshll.u32 %v3351, %v3358
        %v3361 = vshrl.u32 %v3343, %v3359
        %v3362 = vor.u32 %v3360, %v3361
        %v3363 = vsub.s32 4294967266, %v3358
        %v3364 = vadd.s32 %v3363, 127
        %v3365 = vshll.u32 %v3364, 23
        %v3366 = vor.u32 4788187, %v3365
        %v3367 = vand.u32 2147483647, %v3366
        %v3369 = vcvt.s32.f32 %v3362
        %v3370 = vmul.f32 %v3369, %v3367
        %v3371 = vxor.u32 %v3370, 2147483648
        %v3372 = vsel %vm3289, %v3371, %v3370
        %v3373 = vsub.s32 4, %v3349
        %v3374 = vsel %vm3289, %v3373, %v3349
        %v3375 = vsel %vm3288, %v474, %v3372
        %v3376 = vsel %vm3288, 0, %v3374
        %v3377 = vcosq.f32.pop %v3375
        %v3378 = vsinq.f32.pop %v3375
        %vm3379 = vweird.f32 %v474
        %v3380 = vadd.s32 %v3376, 3
        %v3381 = vand.u32 %v3380, 3
        %vm3382 = vcmp.lt.s32.totalorder %v3381, 2
        %vm3383 = vcmp.eq.s32.totalorder %v3381, 0
        %v3384 = vxor.u32 %v3378, 2147483648
        %v3385 = vsel %vm3383, %v3377, %v3384
        %vm3386 = vcmp.eq.s32.totalorder %v3381, 2
        %v3387 = vxor.u32 %v3377, 2147483648
        %v3388 = vsel %vm3386, %v3387, %v3378
        %v3389 = vsel %vm3382, %v3385, %v3388
        %v3390 = vsel %vm3379, nan, %v3389
        %v3391 = vand.u32 2147483647, %v475
        %vm3392 = vcmp.le.f32.partialorder %v3391, 0.7853982
        %vm3393 = vcmp.lt.s32.totalorder %v475, 0
        %v3394 = vand.u32 %v475, 2139095040
        %v3395 = vshrl.u32 %v3394, 23
        %v3396 = vsub.s32 %v3395, 127
        %v3397 = vand.u32 2147483647, %v475
        %v3398 = vand.u32 %v3397, 8388607
        %v3399 = vor.u32 %v3398, 8388608
        %v3400 = vsub.s32 0, %v3399
        %v3401 = vadd.s32 %v3396, 1
        %vm3402 = vcmp.gt.s32.totalorder %v3401, 0
        %v3403 = vsel %vm3402, %v3401, 0
        %v3404 = vshrl.u32 %v3403, 5
        %v3405 = vand.u32 %v3403, 31
        %v3406 = vsub.s32 32, %v3405
        %v3407 = vshrl.u32 683565275, %v3406
        %v3408 = vshll.u32 683565275, %v3405
        %v3409 = vshrl.u32 2475754826, %v3406
        %v3410 = vor.u32 %v3408, %v3409
        %v3411 = vshll.u32 2475754826, %v3405
        %v3412 = vshrl.u32 2131351028, %v3406
        %v3413 = vor.u32 %v3411, %v3412
        %v3414 = vshll.u32 2131351028, %v3405
        %v3415 = vshrl.u32 2102212464, %v3406
        %v3416 = vor.u32 %v3414, %v3415
        %v3417 = vshll.u32 2102212464, %v3405
        %v3418 = vshrl.u32 920167782, %v3406
        %v3419 = vor.u32 %v3417, %v3418
        %v3420 = vshll.u32 920167782, %v3405
        %v3421 = vshrl.u32 1326507024, %v3406
        %v3422 = vor.u32 %v3420, %v3421
        %vm3423 = vcmp.lt.s32.totalorder %v3404, 1
        %vm3424 = vcmp.lt.s32.totalorder %v3404, 2
        %vm3425 = vcmp.lt.s32.totalorder %v3404, 3
        %vm3426 = vcmp.lt.s32.totalorder %v3404, 4
        %v3427 = vsel %vm3423, %v3407, %v3410
        %v3428 = vsel %vm3426, %v3416, 2102212464
        %v3429 = vsel %vm3425, %v3413, %v3428
        %v3430 = vsel %vm3424, %v3427, %v3429
        %v3431 = vsel %vm3423, %v3410, %v3413
        %v3432 = vsel %vm3426, %v3419, 920167782
        %v3433 = vsel %vm3425, %v3416, %v3432
        %v3434 = vsel %vm3424, %v3431, %v3433
        %v3435 = vsel %vm3423, %v3413, %v3416
        %v3436 = vsel %vm3426, %v3422, 1326507024
        %v3437 = vsel %vm3425, %v3419, %v3436
        %v3438 = vsel %vm3424, %v3435, %v3437
        %v3439 = vshll.u32 %v3399, 8
        %v3440 = vmul.u32.u64.compose %v3439, %v3438
        %v3441 = vextract.low.u32 %v3440
        %v3442 = vextract.high.u32 %v3440
        %v3443 = vmul.u32.u64.compose %v3439, %v3434
        %v3444 = vextract.low.u32 %v3443
        %v3445 = vextract.high.u32 %v3443
        %v3446 = vmul.u32 %v3439, %v3430
        %v3447 = vadd.s32 %v3442, %v3444
        %vm3448 = vc.u32 %v3442, %v3444
        %v3449 = vadd.s32 %v3445, 1
        %v3450 = vsel %vm3448, %v3449, %v3445
        %v3451 = vadd.s32 %v3446, %v3450
        %v3452 = vadd.s32 %v3451, 536870912
        %v3453 = vshrl.u32 %v3452, 30
        %v3454 = vshll.u32 %v3453, 30
        %v3455 = vsub.s32 %v3451, %v3454
        %vm3456 = vcmp.lt.s32.totalorder %v3455, 0
        %v3457 = vsub.s32 0, %v3455
        %v3458 = vsel %vm3456, %v3457, %v3455
        %v3459 = vclz %v3458
        %v3460 = vsub.s32 %v3459, 2
        %vm3461 = vcmp.gt.s32.totalorder 0, %v3460
        %v3462 = vsel %vm3461, 0, %v3460
        %v3463 = vsub.s32 32, %v3462
        %v3464 = vshll.u32 %v3455, %v3462
        %v3465 = vshrl.u32 %v3447, %v3463
        %v3466 = vor.u32 %v3464, %v3465
        %v3467 = vsub.s32 4294967266, %v3462
        %v3468 = vadd.s32 %v3467, 127
        %v3469 = vshll.u32 %v3468, 23
        %v3470 = vor.u32 4788187, %v3469
        %v3471 = vand.u32 2147483647, %v3470
        %v3473 = vcvt.s32.f32 %v3466
        %v3474 = vmul.f32 %v3473, %v3471
        %v3475 = vxor.u32 %v3474, 2147483648
        %v3476 = vsel %vm3393, %v3475, %v3474
        %v3477 = vsub.s32 4, %v3453
        %v3478 = vsel %vm3393, %v3477, %v3453
        %v3479 = vsel %vm3392, %v475, %v3476
        %v3480 = vsel %vm3392, 0, %v3478
        %v3481 = vcosq.f32.pop %v3479
        %v3482 = vsinq.f32.pop %v3479
        %vm3483 = vweird.f32 %v475
        %v3484 = vadd.s32 %v3480, 3
        %v3485 = vand.u32 %v3484, 3
        %vm3486 = vcmp.lt.s32.totalorder %v3485, 2
        %vm3487 = vcmp.eq.s32.totalorder %v3485, 0
        %v3488 = vxor.u32 %v3482, 2147483648
        %v3489 = vsel %vm3487, %v3481, %v3488
        %vm3490 = vcmp.eq.s32.totalorder %v3485, 2
        %v3491 = vxor.u32 %v3481, 2147483648
        %v3492 = vsel %vm3490, %v3491, %v3482
        %v3493 = vsel %vm3486, %v3489, %v3492
        %v3494 = vsel %vm3483, nan, %v3493
        %v3495 = vand.u32 2147483647, %v476
        %vm3496 = vcmp.le.f32.partialorder %v3495, 0.7853982
        %vm3497 = vcmp.lt.s32.totalorder %v476, 0
        %v3498 = vand.u32 %v476, 2139095040
        %v3499 = vshrl.u32 %v3498, 23
        %v3500 = vsub.s32 %v3499, 127
        %v3501 = vand.u32 2147483647, %v476
        %v3502 = vand.u32 %v3501, 8388607
        %v3503 = vor.u32 %v3502, 8388608
        %v3504 = vsub.s32 0, %v3503
        %v3505 = vadd.s32 %v3500, 1
        %vm3506 = vcmp.gt.s32.totalorder %v3505, 0
        %v3507 = vsel %vm3506, %v3505, 0
        %v3508 = vshrl.u32 %v3507, 5
        %v3509 = vand.u32 %v3507, 31
        %v3510 = vsub.s32 32, %v3509
        %v3511 = vshrl.u32 683565275, %v3510
        %v3512 = vshll.u32 683565275, %v3509
        %v3513 = vshrl.u32 2475754826, %v3510
        %v3514 = vor.u32 %v3512, %v3513
        %v3515 = vshll.u32 2475754826, %v3509
        %v3516 = vshrl.u32 2131351028, %v3510
        %v3517 = vor.u32 %v3515, %v3516
        %v3518 = vshll.u32 2131351028, %v3509
        %v3519 = vshrl.u32 2102212464, %v3510
        %v3520 = vor.u32 %v3518, %v3519
        %v3521 = vshll.u32 2102212464, %v3509
        %v3522 = vshrl.u32 920167782, %v3510
        %v3523 = vor.u32 %v3521, %v3522
        %v3524 = vshll.u32 920167782, %v3509
        %v3525 = vshrl.u32 1326507024, %v3510
        %v3526 = vor.u32 %v3524, %v3525
        %vm3527 = vcmp.lt.s32.totalorder %v3508, 1
        %vm3528 = vcmp.lt.s32.totalorder %v3508, 2
        %vm3529 = vcmp.lt.s32.totalorder %v3508, 3
        %vm3530 = vcmp.lt.s32.totalorder %v3508, 4
        %v3531 = vsel %vm3527, %v3511, %v3514
        %v3532 = vsel %vm3530, %v3520, 2102212464
        %v3533 = vsel %vm3529, %v3517, %v3532
        %v3534 = vsel %vm3528, %v3531, %v3533
        %v3535 = vsel %vm3527, %v3514, %v3517
        %v3536 = vsel %vm3530, %v3523, 920167782
        %v3537 = vsel %vm3529, %v3520, %v3536
        %v3538 = vsel %vm3528, %v3535, %v3537
        %v3539 = vsel %vm3527, %v3517, %v3520
        %v3540 = vsel %vm3530, %v3526, 1326507024
        %v3541 = vsel %vm3529, %v3523, %v3540
        %v3542 = vsel %vm3528, %v3539, %v3541
        %v3543 = vshll.u32 %v3503, 8
        %v3544 = vmul.u32.u64.compose %v3543, %v3542
        %v3545 = vextract.low.u32 %v3544
        %v3546 = vextract.high.u32 %v3544
        %v3547 = vmul.u32.u64.compose %v3543, %v3538
        %v3548 = vextract.low.u32 %v3547
        %v3549 = vextract.high.u32 %v3547
        %v3550 = vmul.u32 %v3543, %v3534
        %v3551 = vadd.s32 %v3546, %v3548
        %vm3552 = vc.u32 %v3546, %v3548
        %v3553 = vadd.s32 %v3549, 1
        %v3554 = vsel %vm3552, %v3553, %v3549
        %v3555 = vadd.s32 %v3550, %v3554
        %v3556 = vadd.s32 %v3555, 536870912
        %v3557 = vshrl.u32 %v3556, 30
        %v3558 = vshll.u32 %v3557, 30
        %v3559 = vsub.s32 %v3555, %v3558
        %vm3560 = vcmp.lt.s32.totalorder %v3559, 0
        %v3561 = vsub.s32 0, %v3559
        %v3562 = vsel %vm3560, %v3561, %v3559
        %v3563 = vclz %v3562
        %v3564 = vsub.s32 %v3563, 2
        %vm3565 = vcmp.gt.s32.totalorder 0, %v3564
        %v3566 = vsel %vm3565, 0, %v3564
        %v3567 = vsub.s32 32, %v3566
        %v3568 = vshll.u32 %v3559, %v3566
        %v3569 = vshrl.u32 %v3551, %v3567
        %v3570 = vor.u32 %v3568, %v3569
        %v3571 = vsub.s32 4294967266, %v3566
        %v3572 = vadd.s32 %v3571, 127
        %v3573 = vshll.u32 %v3572, 23
        %v3574 = vor.u32 4788187, %v3573
        %v3575 = vand.u32 2147483647, %v3574
        %v3577 = vcvt.s32.f32 %v3570
        %v3578 = vmul.f32 %v3577, %v3575
        %v3579 = vxor.u32 %v3578, 2147483648
        %v3580 = vsel %vm3497, %v3579, %v3578
        %v3581 = vsub.s32 4, %v3557
        %v3582 = vsel %vm3497, %v3581, %v3557
        %v3583 = vsel %vm3496, %v476, %v3580
        %v3584 = vsel %vm3496, 0, %v3582
        %v3585 = vcosq.f32.pop %v3583
        %v3586 = vsinq.f32.pop %v3583
        %vm3587 = vweird.f32 %v476
        %v3588 = vadd.s32 %v3584, 3
        %v3589 = vand.u32 %v3588, 3
        %vm3590 = vcmp.lt.s32.totalorder %v3589, 2
        %vm3591 = vcmp.eq.s32.totalorder %v3589, 0
        %v3592 = vxor.u32 %v3586, 2147483648
        %v3593 = vsel %vm3591, %v3585, %v3592
        %vm3594 = vcmp.eq.s32.totalorder %v3589, 2
        %v3595 = vxor.u32 %v3585, 2147483648
        %v3596 = vsel %vm3594, %v3595, %v3586
        %v3597 = vsel %vm3590, %v3593, %v3596
        %v3598 = vsel %vm3587, nan, %v3597
        %v3599 = vand.u32 2147483647, %v477
        %vm3600 = vcmp.le.f32.partialorder %v3599, 0.7853982
        %vm3601 = vcmp.lt.s32.totalorder %v477, 0
        %v3602 = vand.u32 %v477, 2139095040
        %v3603 = vshrl.u32 %v3602, 23
        %v3604 = vsub.s32 %v3603, 127
        %v3605 = vand.u32 2147483647, %v477
        %v3606 = vand.u32 %v3605, 8388607
        %v3607 = vor.u32 %v3606, 8388608
        %v3608 = vsub.s32 0, %v3607
        %v3609 = vadd.s32 %v3604, 1
        %vm3610 = vcmp.gt.s32.totalorder %v3609, 0
        %v3611 = vsel %vm3610, %v3609, 0
        %v3612 = vshrl.u32 %v3611, 5
        %v3613 = vand.u32 %v3611, 31
        %v3614 = vsub.s32 32, %v3613
        %v3615 = vshrl.u32 683565275, %v3614
        %v3616 = vshll.u32 683565275, %v3613
        %v3617 = vshrl.u32 2475754826, %v3614
        %v3618 = vor.u32 %v3616, %v3617
        %v3619 = vshll.u32 2475754826, %v3613
        %v3620 = vshrl.u32 2131351028, %v3614
        %v3621 = vor.u32 %v3619, %v3620
        %v3622 = vshll.u32 2131351028, %v3613
        %v3623 = vshrl.u32 2102212464, %v3614
        %v3624 = vor.u32 %v3622, %v3623
        %v3625 = vshll.u32 2102212464, %v3613
        %v3626 = vshrl.u32 920167782, %v3614
        %v3627 = vor.u32 %v3625, %v3626
        %v3628 = vshll.u32 920167782, %v3613
        %v3629 = vshrl.u32 1326507024, %v3614
        %v3630 = vor.u32 %v3628, %v3629
        %vm3631 = vcmp.lt.s32.totalorder %v3612, 1
        %vm3632 = vcmp.lt.s32.totalorder %v3612, 2
        %vm3633 = vcmp.lt.s32.totalorder %v3612, 3
        %vm3634 = vcmp.lt.s32.totalorder %v3612, 4
        %v3635 = vsel %vm3631, %v3615, %v3618
        %v3636 = vsel %vm3634, %v3624, 2102212464
        %v3637 = vsel %vm3633, %v3621, %v3636
        %v3638 = vsel %vm3632, %v3635, %v3637
        %v3639 = vsel %vm3631, %v3618, %v3621
        %v3640 = vsel %vm3634, %v3627, 920167782
        %v3641 = vsel %vm3633, %v3624, %v3640
        %v3642 = vsel %vm3632, %v3639, %v3641
        %v3643 = vsel %vm3631, %v3621, %v3624
        %v3644 = vsel %vm3634, %v3630, 1326507024
        %v3645 = vsel %vm3633, %v3627, %v3644
        %v3646 = vsel %vm3632, %v3643, %v3645
        %v3647 = vshll.u32 %v3607, 8
        %v3648 = vmul.u32.u64.compose %v3647, %v3646
        %v3649 = vextract.low.u32 %v3648
        %v3650 = vextract.high.u32 %v3648
        %v3651 = vmul.u32.u64.compose %v3647, %v3642
        %v3652 = vextract.low.u32 %v3651
        %v3653 = vextract.high.u32 %v3651
        %v3654 = vmul.u32 %v3647, %v3638
        %v3655 = vadd.s32 %v3650, %v3652
        %vm3656 = vc.u32 %v3650, %v3652
        %v3657 = vadd.s32 %v3653, 1
        %v3658 = vsel %vm3656, %v3657, %v3653
        %v3659 = vadd.s32 %v3654, %v3658
        %v3660 = vadd.s32 %v3659, 536870912
        %v3661 = vshrl.u32 %v3660, 30
        %v3662 = vshll.u32 %v3661, 30
        %v3663 = vsub.s32 %v3659, %v3662
        %vm3664 = vcmp.lt.s32.totalorder %v3663, 0
        %v3665 = vsub.s32 0, %v3663
        %v3666 = vsel %vm3664, %v3665, %v3663
        %v3667 = vclz %v3666
        %v3668 = vsub.s32 %v3667, 2
        %vm3669 = vcmp.gt.s32.totalorder 0, %v3668
        %v3670 = vsel %vm3669, 0, %v3668
        %v3671 = vsub.s32 32, %v3670
        %v3672 = vshll.u32 %v3663, %v3670
        %v3673 = vshrl.u32 %v3655, %v3671
        %v3674 = vor.u32 %v3672, %v3673
        %v3675 = vsub.s32 4294967266, %v3670
        %v3676 = vadd.s32 %v3675, 127
        %v3677 = vshll.u32 %v3676, 23
        %v3678 = vor.u32 4788187, %v3677
        %v3679 = vand.u32 2147483647, %v3678
        %v3681 = vcvt.s32.f32 %v3674
        %v3682 = vmul.f32 %v3681, %v3679
        %v3683 = vxor.u32 %v3682, 2147483648
        %v3684 = vsel %vm3601, %v3683, %v3682
        %v3685 = vsub.s32 4, %v3661
        %v3686 = vsel %vm3601, %v3685, %v3661
        %v3687 = vsel %vm3600, %v477, %v3684
        %v3688 = vsel %vm3600, 0, %v3686
        %v3689 = vcosq.f32.pop %v3687
        %v3690 = vsinq.f32.pop %v3687
        %vm3691 = vweird.f32 %v477
        %v3692 = vadd.s32 %v3688, 3
        %v3693 = vand.u32 %v3692, 3
        %vm3694 = vcmp.lt.s32.totalorder %v3693, 2
        %vm3695 = vcmp.eq.s32.totalorder %v3693, 0
        %v3696 = vxor.u32 %v3690, 2147483648
        %v3697 = vsel %vm3695, %v3689, %v3696
        %vm3698 = vcmp.eq.s32.totalorder %v3693, 2
        %v3699 = vxor.u32 %v3689, 2147483648
        %v3700 = vsel %vm3698, %v3699, %v3690
        %v3701 = vsel %vm3694, %v3697, %v3700
        %v3702 = vsel %vm3691, nan, %v3701
        %v3703 = vand.u32 2147483647, %v478
        %vm3704 = vcmp.le.f32.partialorder %v3703, 0.7853982
        %vm3705 = vcmp.lt.s32.totalorder %v478, 0
        %v3706 = vand.u32 %v478, 2139095040
        %v3707 = vshrl.u32 %v3706, 23
        %v3708 = vsub.s32 %v3707, 127
        %v3709 = vand.u32 2147483647, %v478
        %v3710 = vand.u32 %v3709, 8388607
        %v3711 = vor.u32 %v3710, 8388608
        %v3712 = vsub.s32 0, %v3711
        %v3713 = vadd.s32 %v3708, 1
        %vm3714 = vcmp.gt.s32.totalorder %v3713, 0
        %v3715 = vsel %vm3714, %v3713, 0
        %v3716 = vshrl.u32 %v3715, 5
        %v3717 = vand.u32 %v3715, 31
        %v3718 = vsub.s32 32, %v3717
        %v3719 = vshrl.u32 683565275, %v3718
        %v3720 = vshll.u32 683565275, %v3717
        %v3721 = vshrl.u32 2475754826, %v3718
        %v3722 = vor.u32 %v3720, %v3721
        %v3723 = vshll.u32 2475754826, %v3717
        %v3724 = vshrl.u32 2131351028, %v3718
        %v3725 = vor.u32 %v3723, %v3724
        %v3726 = vshll.u32 2131351028, %v3717
        %v3727 = vshrl.u32 2102212464, %v3718
        %v3728 = vor.u32 %v3726, %v3727
        %v3729 = vshll.u32 2102212464, %v3717
        %v3730 = vshrl.u32 920167782, %v3718
        %v3731 = vor.u32 %v3729, %v3730
        %v3732 = vshll.u32 920167782, %v3717
        %v3733 = vshrl.u32 1326507024, %v3718
        %v3734 = vor.u32 %v3732, %v3733
        %vm3735 = vcmp.lt.s32.totalorder %v3716, 1
        %vm3736 = vcmp.lt.s32.totalorder %v3716, 2
        %vm3737 = vcmp.lt.s32.totalorder %v3716, 3
        %vm3738 = vcmp.lt.s32.totalorder %v3716, 4
        %v3739 = vsel %vm3735, %v3719, %v3722
        %v3740 = vsel %vm3738, %v3728, 2102212464
        %v3741 = vsel %vm3737, %v3725, %v3740
        %v3742 = vsel %vm3736, %v3739, %v3741
        %v3743 = vsel %vm3735, %v3722, %v3725
        %v3744 = vsel %vm3738, %v3731, 920167782
        %v3745 = vsel %vm3737, %v3728, %v3744
        %v3746 = vsel %vm3736, %v3743, %v3745
        %v3747 = vsel %vm3735, %v3725, %v3728
        %v3748 = vsel %vm3738, %v3734, 1326507024
        %v3749 = vsel %vm3737, %v3731, %v3748
        %v3750 = vsel %vm3736, %v3747, %v3749
        %v3751 = vshll.u32 %v3711, 8
        %v3752 = vmul.u32.u64.compose %v3751, %v3750
        %v3753 = vextract.low.u32 %v3752
        %v3754 = vextract.high.u32 %v3752
        %v3755 = vmul.u32.u64.compose %v3751, %v3746
        %v3756 = vextract.low.u32 %v3755
        %v3757 = vextract.high.u32 %v3755
        %v3758 = vmul.u32 %v3751, %v3742
        %v3759 = vadd.s32 %v3754, %v3756
        %vm3760 = vc.u32 %v3754, %v3756
        %v3761 = vadd.s32 %v3757, 1
        %v3762 = vsel %vm3760, %v3761, %v3757
        %v3763 = vadd.s32 %v3758, %v3762
        %v3764 = vadd.s32 %v3763, 536870912
        %v3765 = vshrl.u32 %v3764, 30
        %v3766 = vshll.u32 %v3765, 30
        %v3767 = vsub.s32 %v3763, %v3766
        %vm3768 = vcmp.lt.s32.totalorder %v3767, 0
        %v3769 = vsub.s32 0, %v3767
        %v3770 = vsel %vm3768, %v3769, %v3767
        %v3771 = vclz %v3770
        %v3772 = vsub.s32 %v3771, 2
        %vm3773 = vcmp.gt.s32.totalorder 0, %v3772
        %v3774 = vsel %vm3773, 0, %v3772
        %v3775 = vsub.s32 32, %v3774
        %v3776 = vshll.u32 %v3767, %v3774
        %v3777 = vshrl.u32 %v3759, %v3775
        %v3778 = vor.u32 %v3776, %v3777
        %v3779 = vsub.s32 4294967266, %v3774
        %v3780 = vadd.s32 %v3779, 127
        %v3781 = vshll.u32 %v3780, 23
        %v3782 = vor.u32 4788187, %v3781
        %v3783 = vand.u32 2147483647, %v3782
        %v3785 = vcvt.s32.f32 %v3778
        %v3786 = vmul.f32 %v3785, %v3783
        %v3787 = vxor.u32 %v3786, 2147483648
        %v3788 = vsel %vm3705, %v3787, %v3786
        %v3789 = vsub.s32 4, %v3765
        %v3790 = vsel %vm3705, %v3789, %v3765
        %v3791 = vsel %vm3704, %v478, %v3788
        %v3792 = vsel %vm3704, 0, %v3790
        %v3793 = vcosq.f32.pop %v3791
        %v3794 = vsinq.f32.pop %v3791
        %vm3795 = vweird.f32 %v478
        %v3796 = vadd.s32 %v3792, 3
        %v3797 = vand.u32 %v3796, 3
        %vm3798 = vcmp.lt.s32.totalorder %v3797, 2
        %vm3799 = vcmp.eq.s32.totalorder %v3797, 0
        %v3800 = vxor.u32 %v3794, 2147483648
        %v3801 = vsel %vm3799, %v3793, %v3800
        %vm3802 = vcmp.eq.s32.totalorder %v3797, 2
        %v3803 = vxor.u32 %v3793, 2147483648
        %v3804 = vsel %vm3802, %v3803, %v3794
        %v3805 = vsel %vm3798, %v3801, %v3804
        %v3806 = vsel %vm3795, nan, %v3805
        %v3807 = vsel %vm220, 1, 0
        %v3808 = vsel %vm221, 1, 0
        %v3809 = vsel %vm222, 1, 0
        %v3810 = vsel %vm223, 1, 0
        %vm3811 = vcmp.eq.s32.totalorder %v3807, 1
        %vm3812 = vcmp.eq.s32.totalorder %v3808, 1
        %vm3813 = vcmp.eq.s32.totalorder %v3809, 1
        %vm3814 = vcmp.eq.s32.totalorder %v3810, 1
        %v3815 = vsel %vm3811, %v447, %v582
        %v3816 = vsel %vm3811, %v448, %v686
        %v3817 = vsel %vm3811, %v449, %v790
        %v3818 = vsel %vm3811, %v450, %v894
        %v3819 = vsel %vm3811, %v451, %v998
        %v3820 = vsel %vm3811, %v452, %v1102
        %v3821 = vsel %vm3811, %v453, %v1206
        %v3822 = vsel %vm3811, %v454, %v1310
        %v3823 = vsel %vm3812, %v455, %v1414
        %v3824 = vsel %vm3812, %v456, %v1518
        %v3825 = vsel %vm3812, %v457, %v1622
        %v3826 = vsel %vm3812, %v458, %v1726
        %v3827 = vsel %vm3812, %v459, %v1830
        %v3828 = vsel %vm3812, %v460, %v1934
        %v3829 = vsel %vm3812, %v461, %v2038
        %v3830 = vsel %vm3812, %v462, %v2142
        %v3831 = vsel %vm3813, %v463, %v2246
        %v3832 = vsel %vm3813, %v464, %v2350
        %v3833 = vsel %vm3813, %v465, %v2454
        %v3834 = vsel %vm3813, %v466, %v2558
        %v3835 = vsel %vm3813, %v467, %v2662
        %v3836 = vsel %vm3813, %v468, %v2766
        %v3837 = vsel %vm3813, %v469, %v2870
        %v3838 = vsel %vm3813, %v470, %v2974
        %v3839 = vsel %vm3814, %v471, %v3078
        %v3840 = vsel %vm3814, %v472, %v3182
        %v3841 = vsel %vm3814, %v473, %v3286
        %v3842 = vsel %vm3814, %v474, %v3390
        %v3843 = vsel %vm3814, %v475, %v3494
        %v3844 = vsel %vm3814, %v476, %v3598
        %v3845 = vsel %vm3814, %v477, %v3702
        %v3846 = vsel %vm3814, %v478, %v3806
        %3847 = vst [vmem:[%s132] sm:$0xff] %v3815
        %3848 = vst [vmem:[%s132 + $0x8] sm:$0xff] %v3816
        %3849 = vst [vmem:[%s132 + $0x10] sm:$0xff] %v3817
        %3850 = vst [vmem:[%s132 + $0x18] sm:$0xff] %v3818
        %3851 = vst [vmem:[%s132 + $0x20] sm:$0xff] %v3819
        %3852 = vst [vmem:[%s132 + $0x28] sm:$0xff] %v3820
        %3853 = vst [vmem:[%s132 + $0x30] sm:$0xff] %v3821
        %3854 = vst [vmem:[%s132 + $0x38] sm:$0xff] %v3822
        %3855 = vst [vmem:[%s132 + $0x80] sm:$0xff] %v3823
        %3856 = vst [vmem:[%s132 + $0x88] sm:$0xff] %v3824
        %3857 = vst [vmem:[%s132 + $0x90] sm:$0xff] %v3825
        %3858 = vst [vmem:[%s132 + $0x98] sm:$0xff] %v3826
        %3859 = vst [vmem:[%s132 + $0xa0] sm:$0xff] %v3827
        %3860 = vst [vmem:[%s132 + $0xa8] sm:$0xff] %v3828
        %3861 = vst [vmem:[%s132 + $0xb0] sm:$0xff] %v3829
        %3862 = vst [vmem:[%s132 + $0xb8] sm:$0xff] %v3830
        %3863 = vst [vmem:[%s132 + $0x100] sm:$0xff] %v3831
        %3864 = vst [vmem:[%s132 + $0x108] sm:$0xff] %v3832
        %3865 = vst [vmem:[%s132 + $0x110] sm:$0xff] %v3833
        %3866 = vst [vmem:[%s132 + $0x118] sm:$0xff] %v3834
        %3867 = vst [vmem:[%s132 + $0x120] sm:$0xff] %v3835
        %3868 = vst [vmem:[%s132 + $0x128] sm:$0xff] %v3836
        %3869 = vst [vmem:[%s132 + $0x130] sm:$0xff] %v3837
        %3870 = vst [vmem:[%s132 + $0x138] sm:$0xff] %v3838
        %3871 = vst [vmem:[%s132 + $0x180] sm:$0x7] %v3839
        %3872 = vst [vmem:[%s132 + $0x188] sm:$0x7] %v3840
        %3873 = vst [vmem:[%s132 + $0x190] sm:$0x7] %v3841
        %3874 = vst [vmem:[%s132 + $0x198] sm:$0x7] %v3842
        %3875 = vst [vmem:[%s132 + $0x1a0] sm:$0x7] %v3843
        %3876 = vst [vmem:[%s132 + $0x1a8] sm:$0x7] %v3844
        %3877 = vst [vmem:[%s132 + $0x1b0] sm:$0x7] %v3845
        %3878 = vst [vmem:[%s132 + $0x1b8] sm:$0x7] %v3846
        %s3879 = scalar_lea.vmem %s114, 32 [#allocation2]
        %v3880 = vld [vmem:[%s3879] sm:$0x77]
        %v3881 = vld [vmem:[%s3879 + $0x8] sm:$0x77]
        %v3882 = vld [vmem:[%s3879 + $0x10] sm:$0x77]
        %v3883 = vld [vmem:[%s3879 + $0x18] sm:$0x77]
        %v3888 = vcombine.high %v3880, %v3880
        %v3889 = vcombine.high %v3881, %v3881
        %v3890 = vcombine.high %v3882, %v3882
        %v3891 = vcombine.high %v3883, %v3883
        %v3896 = vrot.slane %v3880, 5
        %v3897 = vrot.slane %v3888, 5
        %v3898 = vrot.slane %v3881, 5
        %v3899 = vrot.slane %v3889, 5
        %v3900 = vrot.slane %v3882, 5
        %v3901 = vrot.slane %v3890, 5
        %v3902 = vrot.slane %v3883, 5
        %v3903 = vrot.slane %v3891, 5
        %v3912 = vrot.slane %v3880, 2
        %v3913 = vrot.slane %v3888, 2
        %v3914 = vrot.slane %v3881, 2
        %v3915 = vrot.slane %v3889, 2
        %v3916 = vrot.slane %v3882, 2
        %v3917 = vrot.slane %v3890, 2
        %v3918 = vrot.slane %v3883, 2
        %v3919 = vrot.slane %v3891, 2
        %v3928 = vrot.slane %v3880, 7
        %v3929 = vrot.slane %v3888, 7
        %v3930 = vrot.slane %v3881, 7
        %v3931 = vrot.slane %v3889, 7
        %v3932 = vrot.slane %v3882, 7
        %v3933 = vrot.slane %v3890, 7
        %v3934 = vrot.slane %v3883, 7
        %v3935 = vrot.slane %v3891, 7
        %v3944 = vcombine.low %v3880, %v3880
        %v3945 = vcombine.low %v3881, %v3881
        %v3946 = vcombine.low %v3882, %v3882
        %v3947 = vcombine.low %v3883, %v3883
        %v3952 = vrot.slane %v3880, 1
        %v3953 = vrot.slane %v3888, 1
        %v3954 = vrot.slane %v3881, 1
        %v3955 = vrot.slane %v3889, 1
        %v3956 = vrot.slane %v3882, 1
        %v3957 = vrot.slane %v3890, 1
        %v3958 = vrot.slane %v3883, 1
        %v3959 = vrot.slane %v3891, 1
        %v3968 = vrot.slane %v3880, 6
        %v3969 = vrot.slane %v3888, 6
        %v3970 = vrot.slane %v3881, 6
        %v3971 = vrot.slane %v3889, 6
        %v3972 = vrot.slane %v3882, 6
        %v3973 = vrot.slane %v3890, 6
        %v3974 = vrot.slane %v3883, 6
        %v3975 = vrot.slane %v3891, 6
        %v3984 = vrot.slane %v3880, 3
        %v3985 = vrot.slane %v3888, 3
        %v3986 = vrot.slane %v3881, 3
        %v3987 = vrot.slane %v3889, 3
        %v3988 = vrot.slane %v3882, 3
        %v3989 = vrot.slane %v3890, 3
        %v3990 = vrot.slane %v3883, 3
        %v3991 = vrot.slane %v3891, 3
        %v4000 = vsel %vm352, %v3880, %v3896
        %v4001 = vsel %vm352, %v3888, %v3897
        %v4002 = vsel %vm352, %v3881, %v3898
        %v4003 = vsel %vm352, %v3889, %v3899
        %v4004 = vsel %vm352, %v3882, %v3900
        %v4005 = vsel %vm352, %v3890, %v3901
        %v4006 = vsel %vm352, %v3883, %v3902
        %v4007 = vsel %vm352, %v3891, %v3903
        %v4008 = vsel %vm361, %v4000, %v3912
        %v4009 = vsel %vm361, %v4001, %v3913
        %v4010 = vsel %vm361, %v4002, %v3914
        %v4011 = vsel %vm361, %v4003, %v3915
        %v4012 = vsel %vm361, %v4004, %v3916
        %v4013 = vsel %vm361, %v4005, %v3917
        %v4014 = vsel %vm361, %v4006, %v3918
        %v4015 = vsel %vm361, %v4007, %v3919
        %v4016 = vsel %vm370, %v3912, %v3928
        %v4017 = vsel %vm370, %v3913, %v3929
        %v4018 = vsel %vm370, %v3914, %v3930
        %v4019 = vsel %vm370, %v3915, %v3931
        %v4020 = vsel %vm370, %v3916, %v3932
        %v4021 = vsel %vm370, %v3917, %v3933
        %v4022 = vsel %vm370, %v3918, %v3934
        %v4023 = vsel %vm370, %v3919, %v3935
        %v4024 = vsel %vm379, %v4016, %v3944
        %v4025 = vsel %vm379, %v4017, %v3880
        %v4026 = vsel %vm379, %v4018, %v3945
        %v4027 = vsel %vm379, %v4019, %v3881
        %v4028 = vsel %vm379, %v4020, %v3946
        %v4029 = vsel %vm379, %v4021, %v3882
        %v4030 = vsel %vm379, %v4022, %v3947
        %v4031 = vsel %vm379, %v4023, %v3883
        %v4032 = vsel %vm388, %v4024, %v3952
        %v4033 = vsel %vm388, %v4025, %v3953
        %v4034 = vsel %vm388, %v4026, %v3954
        %v4035 = vsel %vm388, %v4027, %v3955
        %v4036 = vsel %vm388, %v4028, %v3956
        %v4037 = vsel %vm388, %v4029, %v3957
        %v4038 = vsel %vm388, %v4030, %v3958
        %v4039 = vsel %vm388, %v4031, %v3959
        %v4040 = vsel %vm397, %v3952, %v3968
        %v4041 = vsel %vm397, %v3953, %v3969
        %v4042 = vsel %vm397, %v3954, %v3970
        %v4043 = vsel %vm397, %v3955, %v3971
        %v4044 = vsel %vm397, %v3956, %v3972
        %v4045 = vsel %vm397, %v3957, %v3973
        %v4046 = vsel %vm397, %v3958, %v3974
        %v4047 = vsel %vm397, %v3959, %v3975
        %v4048 = vsel %vm406, %v4040, %v3984
        %v4049 = vsel %vm406, %v4041, %v3985
        %v4050 = vsel %vm406, %v4042, %v3986
        %v4051 = vsel %vm406, %v4043, %v3987
        %v4052 = vsel %vm406, %v4044, %v3988
        %v4053 = vsel %vm406, %v4045, %v3989
        %v4054 = vsel %vm406, %v4046, %v3990
        %v4055 = vsel %vm406, %v4047, %v3991
        %v4056 = vmul.f32 %v224, %v4008
        %v4057 = vmul.f32 %v224, %v4009
        %v4058 = vmul.f32 %v224, %v4010
        %v4059 = vmul.f32 %v224, %v4011
        %v4060 = vmul.f32 %v224, %v4012
        %v4061 = vmul.f32 %v224, %v4013
        %v4062 = vmul.f32 %v224, %v4014
        %v4063 = vmul.f32 %v224, %v4015
        %v4064 = vmul.f32 %v225, %v4032
        %v4065 = vmul.f32 %v225, %v4033
        %v4066 = vmul.f32 %v225, %v4034
        %v4067 = vmul.f32 %v225, %v4035
        %v4068 = vmul.f32 %v225, %v4036
        %v4069 = vmul.f32 %v225, %v4037
        %v4070 = vmul.f32 %v225, %v4038
        %v4071 = vmul.f32 %v225, %v4039
        %v4072 = vmul.f32 %v226, %v4048
        %v4073 = vmul.f32 %v226, %v4049
        %v4074 = vmul.f32 %v226, %v4050
        %v4075 = vmul.f32 %v226, %v4051
        %v4076 = vmul.f32 %v226, %v4052
        %v4077 = vmul.f32 %v226, %v4053
        %v4078 = vmul.f32 %v226, %v4054
        %v4079 = vmul.f32 %v226, %v4055
        %v4080 = vmul.f32 %v227, %v3880
        %v4081 = vmul.f32 %v227, %v3888
        %v4082 = vmul.f32 %v227, %v3881
        %v4083 = vmul.f32 %v227, %v3889
        %v4084 = vmul.f32 %v227, %v3882
        %v4085 = vmul.f32 %v227, %v3890
        %v4086 = vmul.f32 %v227, %v3883
        %v4087 = vmul.f32 %v227, %v3891
        %v4088 = vadd.f32 %v4056, %v228
        %v4089 = vadd.f32 %v4057, %v228
        %v4090 = vadd.f32 %v4058, %v228
        %v4091 = vadd.f32 %v4059, %v228
        %v4092 = vadd.f32 %v4060, %v228
        %v4093 = vadd.f32 %v4061, %v228
        %v4094 = vadd.f32 %v4062, %v228
        %v4095 = vadd.f32 %v4063, %v228
        %v4096 = vadd.f32 %v4064, %v229
        %v4097 = vadd.f32 %v4065, %v229
        %v4098 = vadd.f32 %v4066, %v229
        %v4099 = vadd.f32 %v4067, %v229
        %v4100 = vadd.f32 %v4068, %v229
        %v4101 = vadd.f32 %v4069, %v229
        %v4102 = vadd.f32 %v4070, %v229
        %v4103 = vadd.f32 %v4071, %v229
        %v4104 = vadd.f32 %v4072, %v230
        %v4105 = vadd.f32 %v4073, %v230
        %v4106 = vadd.f32 %v4074, %v230
        %v4107 = vadd.f32 %v4075, %v230
        %v4108 = vadd.f32 %v4076, %v230
        %v4109 = vadd.f32 %v4077, %v230
        %v4110 = vadd.f32 %v4078, %v230
        %v4111 = vadd.f32 %v4079, %v230
        %v4112 = vadd.f32 %v4080, %v231
        %v4113 = vadd.f32 %v4081, %v231
        %v4114 = vadd.f32 %v4082, %v231
        %v4115 = vadd.f32 %v4083, %v231
        %v4116 = vadd.f32 %v4084, %v231
        %v4117 = vadd.f32 %v4085, %v231
        %v4118 = vadd.f32 %v4086, %v231
        %v4119 = vadd.f32 %v4087, %v231
        %v4120 = vand.u32 2147483647, %v4088
        %vm4121 = vcmp.le.f32.partialorder %v4120, 0.7853982
        %vm4122 = vcmp.lt.s32.totalorder %v4088, 0
        %v4123 = vand.u32 %v4088, 2139095040
        %v4124 = vshrl.u32 %v4123, 23
        %v4125 = vsub.s32 %v4124, 127
        %v4126 = vand.u32 2147483647, %v4088
        %v4127 = vand.u32 %v4126, 8388607
        %v4128 = vor.u32 %v4127, 8388608
        %v4129 = vsub.s32 0, %v4128
        %v4130 = vadd.s32 %v4125, 1
        %vm4131 = vcmp.gt.s32.totalorder %v4130, 0
        %v4132 = vsel %vm4131, %v4130, 0
        %v4133 = vshrl.u32 %v4132, 5
        %v4134 = vand.u32 %v4132, 31
        %v4135 = vsub.s32 32, %v4134
        %v4136 = vshrl.u32 683565275, %v4135
        %v4137 = vshll.u32 683565275, %v4134
        %v4138 = vshrl.u32 2475754826, %v4135
        %v4139 = vor.u32 %v4137, %v4138
        %v4140 = vshll.u32 2475754826, %v4134
        %v4141 = vshrl.u32 2131351028, %v4135
        %v4142 = vor.u32 %v4140, %v4141
        %v4143 = vshll.u32 2131351028, %v4134
        %v4144 = vshrl.u32 2102212464, %v4135
        %v4145 = vor.u32 %v4143, %v4144
        %v4146 = vshll.u32 2102212464, %v4134
        %v4147 = vshrl.u32 920167782, %v4135
        %v4148 = vor.u32 %v4146, %v4147
        %v4149 = vshll.u32 920167782, %v4134
        %v4150 = vshrl.u32 1326507024, %v4135
        %v4151 = vor.u32 %v4149, %v4150
        %vm4152 = vcmp.lt.s32.totalorder %v4133, 1
        %vm4153 = vcmp.lt.s32.totalorder %v4133, 2
        %vm4154 = vcmp.lt.s32.totalorder %v4133, 3
        %vm4155 = vcmp.lt.s32.totalorder %v4133, 4
        %v4156 = vsel %vm4152, %v4136, %v4139
        %v4157 = vsel %vm4155, %v4145, 2102212464
        %v4158 = vsel %vm4154, %v4142, %v4157
        %v4159 = vsel %vm4153, %v4156, %v4158
        %v4160 = vsel %vm4152, %v4139, %v4142
        %v4161 = vsel %vm4155, %v4148, 920167782
        %v4162 = vsel %vm4154, %v4145, %v4161
        %v4163 = vsel %vm4153, %v4160, %v4162
        %v4164 = vsel %vm4152, %v4142, %v4145
        %v4165 = vsel %vm4155, %v4151, 1326507024
        %v4166 = vsel %vm4154, %v4148, %v4165
        %v4167 = vsel %vm4153, %v4164, %v4166
        %v4168 = vshll.u32 %v4128, 8
        %v4169 = vmul.u32.u64.compose %v4168, %v4167
        %v4170 = vextract.low.u32 %v4169
        %v4171 = vextract.high.u32 %v4169
        %v4172 = vmul.u32.u64.compose %v4168, %v4163
        %v4173 = vextract.low.u32 %v4172
        %v4174 = vextract.high.u32 %v4172
        %v4175 = vmul.u32 %v4168, %v4159
        %v4176 = vadd.s32 %v4171, %v4173
        %vm4177 = vc.u32 %v4171, %v4173
        %v4178 = vadd.s32 %v4174, 1
        %v4179 = vsel %vm4177, %v4178, %v4174
        %v4180 = vadd.s32 %v4175, %v4179
        %v4181 = vadd.s32 %v4180, 536870912
        %v4182 = vshrl.u32 %v4181, 30
        %v4183 = vshll.u32 %v4182, 30
        %v4184 = vsub.s32 %v4180, %v4183
        %vm4185 = vcmp.lt.s32.totalorder %v4184, 0
        %v4186 = vsub.s32 0, %v4184
        %v4187 = vsel %vm4185, %v4186, %v4184
        %v4188 = vclz %v4187
        %v4189 = vsub.s32 %v4188, 2
        %vm4190 = vcmp.gt.s32.totalorder 0, %v4189
        %v4191 = vsel %vm4190, 0, %v4189
        %v4192 = vsub.s32 32, %v4191
        %v4193 = vshll.u32 %v4184, %v4191
        %v4194 = vshrl.u32 %v4176, %v4192
        %v4195 = vor.u32 %v4193, %v4194
        %v4196 = vsub.s32 4294967266, %v4191
        %v4197 = vadd.s32 %v4196, 127
        %v4198 = vshll.u32 %v4197, 23
        %v4199 = vor.u32 4788187, %v4198
        %v4200 = vand.u32 2147483647, %v4199
        %v4202 = vcvt.s32.f32 %v4195
        %v4203 = vmul.f32 %v4202, %v4200
        %v4204 = vxor.u32 %v4203, 2147483648
        %v4205 = vsel %vm4122, %v4204, %v4203
        %v4206 = vsub.s32 4, %v4182
        %v4207 = vsel %vm4122, %v4206, %v4182
        %v4208 = vsel %vm4121, %v4088, %v4205
        %v4209 = vsel %vm4121, 0, %v4207
        %v4210 = vcosq.f32.pop %v4208
        %v4211 = vsinq.f32.pop %v4208
        %vm4212 = vweird.f32 %v4088
        %v4213 = vadd.s32 %v4209, 3
        %v4214 = vand.u32 %v4213, 3
        %vm4215 = vcmp.lt.s32.totalorder %v4214, 2
        %vm4216 = vcmp.eq.s32.totalorder %v4214, 0
        %v4217 = vxor.u32 %v4211, 2147483648
        %v4218 = vsel %vm4216, %v4210, %v4217
        %vm4219 = vcmp.eq.s32.totalorder %v4214, 2
        %v4220 = vxor.u32 %v4210, 2147483648
        %v4221 = vsel %vm4219, %v4220, %v4211
        %v4222 = vsel %vm4215, %v4218, %v4221
        %v4223 = vsel %vm4212, nan, %v4222
        %v4224 = vand.u32 2147483647, %v4089
        %vm4225 = vcmp.le.f32.partialorder %v4224, 0.7853982
        %vm4226 = vcmp.lt.s32.totalorder %v4089, 0
        %v4227 = vand.u32 %v4089, 2139095040
        %v4228 = vshrl.u32 %v4227, 23
        %v4229 = vsub.s32 %v4228, 127
        %v4230 = vand.u32 2147483647, %v4089
        %v4231 = vand.u32 %v4230, 8388607
        %v4232 = vor.u32 %v4231, 8388608
        %v4233 = vsub.s32 0, %v4232
        %v4234 = vadd.s32 %v4229, 1
        %vm4235 = vcmp.gt.s32.totalorder %v4234, 0
        %v4236 = vsel %vm4235, %v4234, 0
        %v4237 = vshrl.u32 %v4236, 5
        %v4238 = vand.u32 %v4236, 31
        %v4239 = vsub.s32 32, %v4238
        %v4240 = vshrl.u32 683565275, %v4239
        %v4241 = vshll.u32 683565275, %v4238
        %v4242 = vshrl.u32 2475754826, %v4239
        %v4243 = vor.u32 %v4241, %v4242
        %v4244 = vshll.u32 2475754826, %v4238
        %v4245 = vshrl.u32 2131351028, %v4239
        %v4246 = vor.u32 %v4244, %v4245
        %v4247 = vshll.u32 2131351028, %v4238
        %v4248 = vshrl.u32 2102212464, %v4239
        %v4249 = vor.u32 %v4247, %v4248
        %v4250 = vshll.u32 2102212464, %v4238
        %v4251 = vshrl.u32 920167782, %v4239
        %v4252 = vor.u32 %v4250, %v4251
        %v4253 = vshll.u32 920167782, %v4238
        %v4254 = vshrl.u32 1326507024, %v4239
        %v4255 = vor.u32 %v4253, %v4254
        %vm4256 = vcmp.lt.s32.totalorder %v4237, 1
        %vm4257 = vcmp.lt.s32.totalorder %v4237, 2
        %vm4258 = vcmp.lt.s32.totalorder %v4237, 3
        %vm4259 = vcmp.lt.s32.totalorder %v4237, 4
        %v4260 = vsel %vm4256, %v4240, %v4243
        %v4261 = vsel %vm4259, %v4249, 2102212464
        %v4262 = vsel %vm4258, %v4246, %v4261
        %v4263 = vsel %vm4257, %v4260, %v4262
        %v4264 = vsel %vm4256, %v4243, %v4246
        %v4265 = vsel %vm4259, %v4252, 920167782
        %v4266 = vsel %vm4258, %v4249, %v4265
        %v4267 = vsel %vm4257, %v4264, %v4266
        %v4268 = vsel %vm4256, %v4246, %v4249
        %v4269 = vsel %vm4259, %v4255, 1326507024
        %v4270 = vsel %vm4258, %v4252, %v4269
        %v4271 = vsel %vm4257, %v4268, %v4270
        %v4272 = vshll.u32 %v4232, 8
        %v4273 = vmul.u32.u64.compose %v4272, %v4271
        %v4274 = vextract.low.u32 %v4273
        %v4275 = vextract.high.u32 %v4273
        %v4276 = vmul.u32.u64.compose %v4272, %v4267
        %v4277 = vextract.low.u32 %v4276
        %v4278 = vextract.high.u32 %v4276
        %v4279 = vmul.u32 %v4272, %v4263
        %v4280 = vadd.s32 %v4275, %v4277
        %vm4281 = vc.u32 %v4275, %v4277
        %v4282 = vadd.s32 %v4278, 1
        %v4283 = vsel %vm4281, %v4282, %v4278
        %v4284 = vadd.s32 %v4279, %v4283
        %v4285 = vadd.s32 %v4284, 536870912
        %v4286 = vshrl.u32 %v4285, 30
        %v4287 = vshll.u32 %v4286, 30
        %v4288 = vsub.s32 %v4284, %v4287
        %vm4289 = vcmp.lt.s32.totalorder %v4288, 0
        %v4290 = vsub.s32 0, %v4288
        %v4291 = vsel %vm4289, %v4290, %v4288
        %v4292 = vclz %v4291
        %v4293 = vsub.s32 %v4292, 2
        %vm4294 = vcmp.gt.s32.totalorder 0, %v4293
        %v4295 = vsel %vm4294, 0, %v4293
        %v4296 = vsub.s32 32, %v4295
        %v4297 = vshll.u32 %v4288, %v4295
        %v4298 = vshrl.u32 %v4280, %v4296
        %v4299 = vor.u32 %v4297, %v4298
        %v4300 = vsub.s32 4294967266, %v4295
        %v4301 = vadd.s32 %v4300, 127
        %v4302 = vshll.u32 %v4301, 23
        %v4303 = vor.u32 4788187, %v4302
        %v4304 = vand.u32 2147483647, %v4303
        %v4306 = vcvt.s32.f32 %v4299
        %v4307 = vmul.f32 %v4306, %v4304
        %v4308 = vxor.u32 %v4307, 2147483648
        %v4309 = vsel %vm4226, %v4308, %v4307
        %v4310 = vsub.s32 4, %v4286
        %v4311 = vsel %vm4226, %v4310, %v4286
        %v4312 = vsel %vm4225, %v4089, %v4309
        %v4313 = vsel %vm4225, 0, %v4311
        %v4314 = vcosq.f32.pop %v4312
        %v4315 = vsinq.f32.pop %v4312
        %vm4316 = vweird.f32 %v4089
        %v4317 = vadd.s32 %v4313, 3
        %v4318 = vand.u32 %v4317, 3
        %vm4319 = vcmp.lt.s32.totalorder %v4318, 2
        %vm4320 = vcmp.eq.s32.totalorder %v4318, 0
        %v4321 = vxor.u32 %v4315, 2147483648
        %v4322 = vsel %vm4320, %v4314, %v4321
        %vm4323 = vcmp.eq.s32.totalorder %v4318, 2
        %v4324 = vxor.u32 %v4314, 2147483648
        %v4325 = vsel %vm4323, %v4324, %v4315
        %v4326 = vsel %vm4319, %v4322, %v4325
        %v4327 = vsel %vm4316, nan, %v4326
        %v4328 = vand.u32 2147483647, %v4090
        %vm4329 = vcmp.le.f32.partialorder %v4328, 0.7853982
        %vm4330 = vcmp.lt.s32.totalorder %v4090, 0
        %v4331 = vand.u32 %v4090, 2139095040
        %v4332 = vshrl.u32 %v4331, 23
        %v4333 = vsub.s32 %v4332, 127
        %v4334 = vand.u32 2147483647, %v4090
        %v4335 = vand.u32 %v4334, 8388607
        %v4336 = vor.u32 %v4335, 8388608
        %v4337 = vsub.s32 0, %v4336
        %v4338 = vadd.s32 %v4333, 1
        %vm4339 = vcmp.gt.s32.totalorder %v4338, 0
        %v4340 = vsel %vm4339, %v4338, 0
        %v4341 = vshrl.u32 %v4340, 5
        %v4342 = vand.u32 %v4340, 31
        %v4343 = vsub.s32 32, %v4342
        %v4344 = vshrl.u32 683565275, %v4343
        %v4345 = vshll.u32 683565275, %v4342
        %v4346 = vshrl.u32 2475754826, %v4343
        %v4347 = vor.u32 %v4345, %v4346
        %v4348 = vshll.u32 2475754826, %v4342
        %v4349 = vshrl.u32 2131351028, %v4343
        %v4350 = vor.u32 %v4348, %v4349
        %v4351 = vshll.u32 2131351028, %v4342
        %v4352 = vshrl.u32 2102212464, %v4343
        %v4353 = vor.u32 %v4351, %v4352
        %v4354 = vshll.u32 2102212464, %v4342
        %v4355 = vshrl.u32 920167782, %v4343
        %v4356 = vor.u32 %v4354, %v4355
        %v4357 = vshll.u32 920167782, %v4342
        %v4358 = vshrl.u32 1326507024, %v4343
        %v4359 = vor.u32 %v4357, %v4358
        %vm4360 = vcmp.lt.s32.totalorder %v4341, 1
        %vm4361 = vcmp.lt.s32.totalorder %v4341, 2
        %vm4362 = vcmp.lt.s32.totalorder %v4341, 3
        %vm4363 = vcmp.lt.s32.totalorder %v4341, 4
        %v4364 = vsel %vm4360, %v4344, %v4347
        %v4365 = vsel %vm4363, %v4353, 2102212464
        %v4366 = vsel %vm4362, %v4350, %v4365
        %v4367 = vsel %vm4361, %v4364, %v4366
        %v4368 = vsel %vm4360, %v4347, %v4350
        %v4369 = vsel %vm4363, %v4356, 920167782
        %v4370 = vsel %vm4362, %v4353, %v4369
        %v4371 = vsel %vm4361, %v4368, %v4370
        %v4372 = vsel %vm4360, %v4350, %v4353
        %v4373 = vsel %vm4363, %v4359, 1326507024
        %v4374 = vsel %vm4362, %v4356, %v4373
        %v4375 = vsel %vm4361, %v4372, %v4374
        %v4376 = vshll.u32 %v4336, 8
        %v4377 = vmul.u32.u64.compose %v4376, %v4375
        %v4378 = vextract.low.u32 %v4377
        %v4379 = vextract.high.u32 %v4377
        %v4380 = vmul.u32.u64.compose %v4376, %v4371
        %v4381 = vextract.low.u32 %v4380
        %v4382 = vextract.high.u32 %v4380
        %v4383 = vmul.u32 %v4376, %v4367
        %v4384 = vadd.s32 %v4379, %v4381
        %vm4385 = vc.u32 %v4379, %v4381
        %v4386 = vadd.s32 %v4382, 1
        %v4387 = vsel %vm4385, %v4386, %v4382
        %v4388 = vadd.s32 %v4383, %v4387
        %v4389 = vadd.s32 %v4388, 536870912
        %v4390 = vshrl.u32 %v4389, 30
        %v4391 = vshll.u32 %v4390, 30
        %v4392 = vsub.s32 %v4388, %v4391
        %vm4393 = vcmp.lt.s32.totalorder %v4392, 0
        %v4394 = vsub.s32 0, %v4392
        %v4395 = vsel %vm4393, %v4394, %v4392
        %v4396 = vclz %v4395
        %v4397 = vsub.s32 %v4396, 2
        %vm4398 = vcmp.gt.s32.totalorder 0, %v4397
        %v4399 = vsel %vm4398, 0, %v4397
        %v4400 = vsub.s32 32, %v4399
        %v4401 = vshll.u32 %v4392, %v4399
        %v4402 = vshrl.u32 %v4384, %v4400
        %v4403 = vor.u32 %v4401, %v4402
        %v4404 = vsub.s32 4294967266, %v4399
        %v4405 = vadd.s32 %v4404, 127
        %v4406 = vshll.u32 %v4405, 23
        %v4407 = vor.u32 4788187, %v4406
        %v4408 = vand.u32 2147483647, %v4407
        %v4410 = vcvt.s32.f32 %v4403
        %v4411 = vmul.f32 %v4410, %v4408
        %v4412 = vxor.u32 %v4411, 2147483648
        %v4413 = vsel %vm4330, %v4412, %v4411
        %v4414 = vsub.s32 4, %v4390
        %v4415 = vsel %vm4330, %v4414, %v4390
        %v4416 = vsel %vm4329, %v4090, %v4413
        %v4417 = vsel %vm4329, 0, %v4415
        %v4418 = vcosq.f32.pop %v4416
        %v4419 = vsinq.f32.pop %v4416
        %vm4420 = vweird.f32 %v4090
        %v4421 = vadd.s32 %v4417, 3
        %v4422 = vand.u32 %v4421, 3
        %vm4423 = vcmp.lt.s32.totalorder %v4422, 2
        %vm4424 = vcmp.eq.s32.totalorder %v4422, 0
        %v4425 = vxor.u32 %v4419, 2147483648
        %v4426 = vsel %vm4424, %v4418, %v4425
        %vm4427 = vcmp.eq.s32.totalorder %v4422, 2
        %v4428 = vxor.u32 %v4418, 2147483648
        %v4429 = vsel %vm4427, %v4428, %v4419
        %v4430 = vsel %vm4423, %v4426, %v4429
        %v4431 = vsel %vm4420, nan, %v4430
        %v4432 = vand.u32 2147483647, %v4091
        %vm4433 = vcmp.le.f32.partialorder %v4432, 0.7853982
        %vm4434 = vcmp.lt.s32.totalorder %v4091, 0
        %v4435 = vand.u32 %v4091, 2139095040
        %v4436 = vshrl.u32 %v4435, 23
        %v4437 = vsub.s32 %v4436, 127
        %v4438 = vand.u32 2147483647, %v4091
        %v4439 = vand.u32 %v4438, 8388607
        %v4440 = vor.u32 %v4439, 8388608
        %v4441 = vsub.s32 0, %v4440
        %v4442 = vadd.s32 %v4437, 1
        %vm4443 = vcmp.gt.s32.totalorder %v4442, 0
        %v4444 = vsel %vm4443, %v4442, 0
        %v4445 = vshrl.u32 %v4444, 5
        %v4446 = vand.u32 %v4444, 31
        %v4447 = vsub.s32 32, %v4446
        %v4448 = vshrl.u32 683565275, %v4447
        %v4449 = vshll.u32 683565275, %v4446
        %v4450 = vshrl.u32 2475754826, %v4447
        %v4451 = vor.u32 %v4449, %v4450
        %v4452 = vshll.u32 2475754826, %v4446
        %v4453 = vshrl.u32 2131351028, %v4447
        %v4454 = vor.u32 %v4452, %v4453
        %v4455 = vshll.u32 2131351028, %v4446
        %v4456 = vshrl.u32 2102212464, %v4447
        %v4457 = vor.u32 %v4455, %v4456
        %v4458 = vshll.u32 2102212464, %v4446
        %v4459 = vshrl.u32 920167782, %v4447
        %v4460 = vor.u32 %v4458, %v4459
        %v4461 = vshll.u32 920167782, %v4446
        %v4462 = vshrl.u32 1326507024, %v4447
        %v4463 = vor.u32 %v4461, %v4462
        %vm4464 = vcmp.lt.s32.totalorder %v4445, 1
        %vm4465 = vcmp.lt.s32.totalorder %v4445, 2
        %vm4466 = vcmp.lt.s32.totalorder %v4445, 3
        %vm4467 = vcmp.lt.s32.totalorder %v4445, 4
        %v4468 = vsel %vm4464, %v4448, %v4451
        %v4469 = vsel %vm4467, %v4457, 2102212464
        %v4470 = vsel %vm4466, %v4454, %v4469
        %v4471 = vsel %vm4465, %v4468, %v4470
        %v4472 = vsel %vm4464, %v4451, %v4454
        %v4473 = vsel %vm4467, %v4460, 920167782
        %v4474 = vsel %vm4466, %v4457, %v4473
        %v4475 = vsel %vm4465, %v4472, %v4474
        %v4476 = vsel %vm4464, %v4454, %v4457
        %v4477 = vsel %vm4467, %v4463, 1326507024
        %v4478 = vsel %vm4466, %v4460, %v4477
        %v4479 = vsel %vm4465, %v4476, %v4478
        %v4480 = vshll.u32 %v4440, 8
        %v4481 = vmul.u32.u64.compose %v4480, %v4479
        %v4482 = vextract.low.u32 %v4481
        %v4483 = vextract.high.u32 %v4481
        %v4484 = vmul.u32.u64.compose %v4480, %v4475
        %v4485 = vextract.low.u32 %v4484
        %v4486 = vextract.high.u32 %v4484
        %v4487 = vmul.u32 %v4480, %v4471
        %v4488 = vadd.s32 %v4483, %v4485
        %vm4489 = vc.u32 %v4483, %v4485
        %v4490 = vadd.s32 %v4486, 1
        %v4491 = vsel %vm4489, %v4490, %v4486
        %v4492 = vadd.s32 %v4487, %v4491
        %v4493 = vadd.s32 %v4492, 536870912
        %v4494 = vshrl.u32 %v4493, 30
        %v4495 = vshll.u32 %v4494, 30
        %v4496 = vsub.s32 %v4492, %v4495
        %vm4497 = vcmp.lt.s32.totalorder %v4496, 0
        %v4498 = vsub.s32 0, %v4496
        %v4499 = vsel %vm4497, %v4498, %v4496
        %v4500 = vclz %v4499
        %v4501 = vsub.s32 %v4500, 2
        %vm4502 = vcmp.gt.s32.totalorder 0, %v4501
        %v4503 = vsel %vm4502, 0, %v4501
        %v4504 = vsub.s32 32, %v4503
        %v4505 = vshll.u32 %v4496, %v4503
        %v4506 = vshrl.u32 %v4488, %v4504
        %v4507 = vor.u32 %v4505, %v4506
        %v4508 = vsub.s32 4294967266, %v4503
        %v4509 = vadd.s32 %v4508, 127
        %v4510 = vshll.u32 %v4509, 23
        %v4511 = vor.u32 4788187, %v4510
        %v4512 = vand.u32 2147483647, %v4511
        %v4514 = vcvt.s32.f32 %v4507
        %v4515 = vmul.f32 %v4514, %v4512
        %v4516 = vxor.u32 %v4515, 2147483648
        %v4517 = vsel %vm4434, %v4516, %v4515
        %v4518 = vsub.s32 4, %v4494
        %v4519 = vsel %vm4434, %v4518, %v4494
        %v4520 = vsel %vm4433, %v4091, %v4517
        %v4521 = vsel %vm4433, 0, %v4519
        %v4522 = vcosq.f32.pop %v4520
        %v4523 = vsinq.f32.pop %v4520
        %vm4524 = vweird.f32 %v4091
        %v4525 = vadd.s32 %v4521, 3
        %v4526 = vand.u32 %v4525, 3
        %vm4527 = vcmp.lt.s32.totalorder %v4526, 2
        %vm4528 = vcmp.eq.s32.totalorder %v4526, 0
        %v4529 = vxor.u32 %v4523, 2147483648
        %v4530 = vsel %vm4528, %v4522, %v4529
        %vm4531 = vcmp.eq.s32.totalorder %v4526, 2
        %v4532 = vxor.u32 %v4522, 2147483648
        %v4533 = vsel %vm4531, %v4532, %v4523
        %v4534 = vsel %vm4527, %v4530, %v4533
        %v4535 = vsel %vm4524, nan, %v4534
        %v4536 = vand.u32 2147483647, %v4092
        %vm4537 = vcmp.le.f32.partialorder %v4536, 0.7853982
        %vm4538 = vcmp.lt.s32.totalorder %v4092, 0
        %v4539 = vand.u32 %v4092, 2139095040
        %v4540 = vshrl.u32 %v4539, 23
        %v4541 = vsub.s32 %v4540, 127
        %v4542 = vand.u32 2147483647, %v4092
        %v4543 = vand.u32 %v4542, 8388607
        %v4544 = vor.u32 %v4543, 8388608
        %v4545 = vsub.s32 0, %v4544
        %v4546 = vadd.s32 %v4541, 1
        %vm4547 = vcmp.gt.s32.totalorder %v4546, 0
        %v4548 = vsel %vm4547, %v4546, 0
        %v4549 = vshrl.u32 %v4548, 5
        %v4550 = vand.u32 %v4548, 31
        %v4551 = vsub.s32 32, %v4550
        %v4552 = vshrl.u32 683565275, %v4551
        %v4553 = vshll.u32 683565275, %v4550
        %v4554 = vshrl.u32 2475754826, %v4551
        %v4555 = vor.u32 %v4553, %v4554
        %v4556 = vshll.u32 2475754826, %v4550
        %v4557 = vshrl.u32 2131351028, %v4551
        %v4558 = vor.u32 %v4556, %v4557
        %v4559 = vshll.u32 2131351028, %v4550
        %v4560 = vshrl.u32 2102212464, %v4551
        %v4561 = vor.u32 %v4559, %v4560
        %v4562 = vshll.u32 2102212464, %v4550
        %v4563 = vshrl.u32 920167782, %v4551
        %v4564 = vor.u32 %v4562, %v4563
        %v4565 = vshll.u32 920167782, %v4550
        %v4566 = vshrl.u32 1326507024, %v4551
        %v4567 = vor.u32 %v4565, %v4566
        %vm4568 = vcmp.lt.s32.totalorder %v4549, 1
        %vm4569 = vcmp.lt.s32.totalorder %v4549, 2
        %vm4570 = vcmp.lt.s32.totalorder %v4549, 3
        %vm4571 = vcmp.lt.s32.totalorder %v4549, 4
        %v4572 = vsel %vm4568, %v4552, %v4555
        %v4573 = vsel %vm4571, %v4561, 2102212464
        %v4574 = vsel %vm4570, %v4558, %v4573
        %v4575 = vsel %vm4569, %v4572, %v4574
        %v4576 = vsel %vm4568, %v4555, %v4558
        %v4577 = vsel %vm4571, %v4564, 920167782
        %v4578 = vsel %vm4570, %v4561, %v4577
        %v4579 = vsel %vm4569, %v4576, %v4578
        %v4580 = vsel %vm4568, %v4558, %v4561
        %v4581 = vsel %vm4571, %v4567, 1326507024
        %v4582 = vsel %vm4570, %v4564, %v4581
        %v4583 = vsel %vm4569, %v4580, %v4582
        %v4584 = vshll.u32 %v4544, 8
        %v4585 = vmul.u32.u64.compose %v4584, %v4583
        %v4586 = vextract.low.u32 %v4585
        %v4587 = vextract.high.u32 %v4585
        %v4588 = vmul.u32.u64.compose %v4584, %v4579
        %v4589 = vextract.low.u32 %v4588
        %v4590 = vextract.high.u32 %v4588
        %v4591 = vmul.u32 %v4584, %v4575
        %v4592 = vadd.s32 %v4587, %v4589
        %vm4593 = vc.u32 %v4587, %v4589
        %v4594 = vadd.s32 %v4590, 1
        %v4595 = vsel %vm4593, %v4594, %v4590
        %v4596 = vadd.s32 %v4591, %v4595
        %v4597 = vadd.s32 %v4596, 536870912
        %v4598 = vshrl.u32 %v4597, 30
        %v4599 = vshll.u32 %v4598, 30
        %v4600 = vsub.s32 %v4596, %v4599
        %vm4601 = vcmp.lt.s32.totalorder %v4600, 0
        %v4602 = vsub.s32 0, %v4600
        %v4603 = vsel %vm4601, %v4602, %v4600
        %v4604 = vclz %v4603
        %v4605 = vsub.s32 %v4604, 2
        %vm4606 = vcmp.gt.s32.totalorder 0, %v4605
        %v4607 = vsel %vm4606, 0, %v4605
        %v4608 = vsub.s32 32, %v4607
        %v4609 = vshll.u32 %v4600, %v4607
        %v4610 = vshrl.u32 %v4592, %v4608
        %v4611 = vor.u32 %v4609, %v4610
        %v4612 = vsub.s32 4294967266, %v4607
        %v4613 = vadd.s32 %v4612, 127
        %v4614 = vshll.u32 %v4613, 23
        %v4615 = vor.u32 4788187, %v4614
        %v4616 = vand.u32 2147483647, %v4615
        %v4618 = vcvt.s32.f32 %v4611
        %v4619 = vmul.f32 %v4618, %v4616
        %v4620 = vxor.u32 %v4619, 2147483648
        %v4621 = vsel %vm4538, %v4620, %v4619
        %v4622 = vsub.s32 4, %v4598
        %v4623 = vsel %vm4538, %v4622, %v4598
        %v4624 = vsel %vm4537, %v4092, %v4621
        %v4625 = vsel %vm4537, 0, %v4623
        %v4626 = vcosq.f32.pop %v4624
        %v4627 = vsinq.f32.pop %v4624
        %vm4628 = vweird.f32 %v4092
        %v4629 = vadd.s32 %v4625, 3
        %v4630 = vand.u32 %v4629, 3
        %vm4631 = vcmp.lt.s32.totalorder %v4630, 2
        %vm4632 = vcmp.eq.s32.totalorder %v4630, 0
        %v4633 = vxor.u32 %v4627, 2147483648
        %v4634 = vsel %vm4632, %v4626, %v4633
        %vm4635 = vcmp.eq.s32.totalorder %v4630, 2
        %v4636 = vxor.u32 %v4626, 2147483648
        %v4637 = vsel %vm4635, %v4636, %v4627
        %v4638 = vsel %vm4631, %v4634, %v4637
        %v4639 = vsel %vm4628, nan, %v4638
        %v4640 = vand.u32 2147483647, %v4093
        %vm4641 = vcmp.le.f32.partialorder %v4640, 0.7853982
        %vm4642 = vcmp.lt.s32.totalorder %v4093, 0
        %v4643 = vand.u32 %v4093, 2139095040
        %v4644 = vshrl.u32 %v4643, 23
        %v4645 = vsub.s32 %v4644, 127
        %v4646 = vand.u32 2147483647, %v4093
        %v4647 = vand.u32 %v4646, 8388607
        %v4648 = vor.u32 %v4647, 8388608
        %v4649 = vsub.s32 0, %v4648
        %v4650 = vadd.s32 %v4645, 1
        %vm4651 = vcmp.gt.s32.totalorder %v4650, 0
        %v4652 = vsel %vm4651, %v4650, 0
        %v4653 = vshrl.u32 %v4652, 5
        %v4654 = vand.u32 %v4652, 31
        %v4655 = vsub.s32 32, %v4654
        %v4656 = vshrl.u32 683565275, %v4655
        %v4657 = vshll.u32 683565275, %v4654
        %v4658 = vshrl.u32 2475754826, %v4655
        %v4659 = vor.u32 %v4657, %v4658
        %v4660 = vshll.u32 2475754826, %v4654
        %v4661 = vshrl.u32 2131351028, %v4655
        %v4662 = vor.u32 %v4660, %v4661
        %v4663 = vshll.u32 2131351028, %v4654
        %v4664 = vshrl.u32 2102212464, %v4655
        %v4665 = vor.u32 %v4663, %v4664
        %v4666 = vshll.u32 2102212464, %v4654
        %v4667 = vshrl.u32 920167782, %v4655
        %v4668 = vor.u32 %v4666, %v4667
        %v4669 = vshll.u32 920167782, %v4654
        %v4670 = vshrl.u32 1326507024, %v4655
        %v4671 = vor.u32 %v4669, %v4670
        %vm4672 = vcmp.lt.s32.totalorder %v4653, 1
        %vm4673 = vcmp.lt.s32.totalorder %v4653, 2
        %vm4674 = vcmp.lt.s32.totalorder %v4653, 3
        %vm4675 = vcmp.lt.s32.totalorder %v4653, 4
        %v4676 = vsel %vm4672, %v4656, %v4659
        %v4677 = vsel %vm4675, %v4665, 2102212464
        %v4678 = vsel %vm4674, %v4662, %v4677
        %v4679 = vsel %vm4673, %v4676, %v4678
        %v4680 = vsel %vm4672, %v4659, %v4662
        %v4681 = vsel %vm4675, %v4668, 920167782
        %v4682 = vsel %vm4674, %v4665, %v4681
        %v4683 = vsel %vm4673, %v4680, %v4682
        %v4684 = vsel %vm4672, %v4662, %v4665
        %v4685 = vsel %vm4675, %v4671, 1326507024
        %v4686 = vsel %vm4674, %v4668, %v4685
        %v4687 = vsel %vm4673, %v4684, %v4686
        %v4688 = vshll.u32 %v4648, 8
        %v4689 = vmul.u32.u64.compose %v4688, %v4687
        %v4690 = vextract.low.u32 %v4689
        %v4691 = vextract.high.u32 %v4689
        %v4692 = vmul.u32.u64.compose %v4688, %v4683
        %v4693 = vextract.low.u32 %v4692
        %v4694 = vextract.high.u32 %v4692
        %v4695 = vmul.u32 %v4688, %v4679
        %v4696 = vadd.s32 %v4691, %v4693
        %vm4697 = vc.u32 %v4691, %v4693
        %v4698 = vadd.s32 %v4694, 1
        %v4699 = vsel %vm4697, %v4698, %v4694
        %v4700 = vadd.s32 %v4695, %v4699
        %v4701 = vadd.s32 %v4700, 536870912
        %v4702 = vshrl.u32 %v4701, 30
        %v4703 = vshll.u32 %v4702, 30
        %v4704 = vsub.s32 %v4700, %v4703
        %vm4705 = vcmp.lt.s32.totalorder %v4704, 0
        %v4706 = vsub.s32 0, %v4704
        %v4707 = vsel %vm4705, %v4706, %v4704
        %v4708 = vclz %v4707
        %v4709 = vsub.s32 %v4708, 2
        %vm4710 = vcmp.gt.s32.totalorder 0, %v4709
        %v4711 = vsel %vm4710, 0, %v4709
        %v4712 = vsub.s32 32, %v4711
        %v4713 = vshll.u32 %v4704, %v4711
        %v4714 = vshrl.u32 %v4696, %v4712
        %v4715 = vor.u32 %v4713, %v4714
        %v4716 = vsub.s32 4294967266, %v4711
        %v4717 = vadd.s32 %v4716, 127
        %v4718 = vshll.u32 %v4717, 23
        %v4719 = vor.u32 4788187, %v4718
        %v4720 = vand.u32 2147483647, %v4719
        %v4722 = vcvt.s32.f32 %v4715
        %v4723 = vmul.f32 %v4722, %v4720
        %v4724 = vxor.u32 %v4723, 2147483648
        %v4725 = vsel %vm4642, %v4724, %v4723
        %v4726 = vsub.s32 4, %v4702
        %v4727 = vsel %vm4642, %v4726, %v4702
        %v4728 = vsel %vm4641, %v4093, %v4725
        %v4729 = vsel %vm4641, 0, %v4727
        %v4730 = vcosq.f32.pop %v4728
        %v4731 = vsinq.f32.pop %v4728
        %vm4732 = vweird.f32 %v4093
        %v4733 = vadd.s32 %v4729, 3
        %v4734 = vand.u32 %v4733, 3
        %vm4735 = vcmp.lt.s32.totalorder %v4734, 2
        %vm4736 = vcmp.eq.s32.totalorder %v4734, 0
        %v4737 = vxor.u32 %v4731, 2147483648
        %v4738 = vsel %vm4736, %v4730, %v4737
        %vm4739 = vcmp.eq.s32.totalorder %v4734, 2
        %v4740 = vxor.u32 %v4730, 2147483648
        %v4741 = vsel %vm4739, %v4740, %v4731
        %v4742 = vsel %vm4735, %v4738, %v4741
        %v4743 = vsel %vm4732, nan, %v4742
        %v4744 = vand.u32 2147483647, %v4094
        %vm4745 = vcmp.le.f32.partialorder %v4744, 0.7853982
        %vm4746 = vcmp.lt.s32.totalorder %v4094, 0
        %v4747 = vand.u32 %v4094, 2139095040
        %v4748 = vshrl.u32 %v4747, 23
        %v4749 = vsub.s32 %v4748, 127
        %v4750 = vand.u32 2147483647, %v4094
        %v4751 = vand.u32 %v4750, 8388607
        %v4752 = vor.u32 %v4751, 8388608
        %v4753 = vsub.s32 0, %v4752
        %v4754 = vadd.s32 %v4749, 1
        %vm4755 = vcmp.gt.s32.totalorder %v4754, 0
        %v4756 = vsel %vm4755, %v4754, 0
        %v4757 = vshrl.u32 %v4756, 5
        %v4758 = vand.u32 %v4756, 31
        %v4759 = vsub.s32 32, %v4758
        %v4760 = vshrl.u32 683565275, %v4759
        %v4761 = vshll.u32 683565275, %v4758
        %v4762 = vshrl.u32 2475754826, %v4759
        %v4763 = vor.u32 %v4761, %v4762
        %v4764 = vshll.u32 2475754826, %v4758
        %v4765 = vshrl.u32 2131351028, %v4759
        %v4766 = vor.u32 %v4764, %v4765
        %v4767 = vshll.u32 2131351028, %v4758
        %v4768 = vshrl.u32 2102212464, %v4759
        %v4769 = vor.u32 %v4767, %v4768
        %v4770 = vshll.u32 2102212464, %v4758
        %v4771 = vshrl.u32 920167782, %v4759
        %v4772 = vor.u32 %v4770, %v4771
        %v4773 = vshll.u32 920167782, %v4758
        %v4774 = vshrl.u32 1326507024, %v4759
        %v4775 = vor.u32 %v4773, %v4774
        %vm4776 = vcmp.lt.s32.totalorder %v4757, 1
        %vm4777 = vcmp.lt.s32.totalorder %v4757, 2
        %vm4778 = vcmp.lt.s32.totalorder %v4757, 3
        %vm4779 = vcmp.lt.s32.totalorder %v4757, 4
        %v4780 = vsel %vm4776, %v4760, %v4763
        %v4781 = vsel %vm4779, %v4769, 2102212464
        %v4782 = vsel %vm4778, %v4766, %v4781
        %v4783 = vsel %vm4777, %v4780, %v4782
        %v4784 = vsel %vm4776, %v4763, %v4766
        %v4785 = vsel %vm4779, %v4772, 920167782
        %v4786 = vsel %vm4778, %v4769, %v4785
        %v4787 = vsel %vm4777, %v4784, %v4786
        %v4788 = vsel %vm4776, %v4766, %v4769
        %v4789 = vsel %vm4779, %v4775, 1326507024
        %v4790 = vsel %vm4778, %v4772, %v4789
        %v4791 = vsel %vm4777, %v4788, %v4790
        %v4792 = vshll.u32 %v4752, 8
        %v4793 = vmul.u32.u64.compose %v4792, %v4791
        %v4794 = vextract.low.u32 %v4793
        %v4795 = vextract.high.u32 %v4793
        %v4796 = vmul.u32.u64.compose %v4792, %v4787
        %v4797 = vextract.low.u32 %v4796
        %v4798 = vextract.high.u32 %v4796
        %v4799 = vmul.u32 %v4792, %v4783
        %v4800 = vadd.s32 %v4795, %v4797
        %vm4801 = vc.u32 %v4795, %v4797
        %v4802 = vadd.s32 %v4798, 1
        %v4803 = vsel %vm4801, %v4802, %v4798
        %v4804 = vadd.s32 %v4799, %v4803
        %v4805 = vadd.s32 %v4804, 536870912
        %v4806 = vshrl.u32 %v4805, 30
        %v4807 = vshll.u32 %v4806, 30
        %v4808 = vsub.s32 %v4804, %v4807
        %vm4809 = vcmp.lt.s32.totalorder %v4808, 0
        %v4810 = vsub.s32 0, %v4808
        %v4811 = vsel %vm4809, %v4810, %v4808
        %v4812 = vclz %v4811
        %v4813 = vsub.s32 %v4812, 2
        %vm4814 = vcmp.gt.s32.totalorder 0, %v4813
        %v4815 = vsel %vm4814, 0, %v4813
        %v4816 = vsub.s32 32, %v4815
        %v4817 = vshll.u32 %v4808, %v4815
        %v4818 = vshrl.u32 %v4800, %v4816
        %v4819 = vor.u32 %v4817, %v4818
        %v4820 = vsub.s32 4294967266, %v4815
        %v4821 = vadd.s32 %v4820, 127
        %v4822 = vshll.u32 %v4821, 23
        %v4823 = vor.u32 4788187, %v4822
        %v4824 = vand.u32 2147483647, %v4823
        %v4826 = vcvt.s32.f32 %v4819
        %v4827 = vmul.f32 %v4826, %v4824
        %v4828 = vxor.u32 %v4827, 2147483648
        %v4829 = vsel %vm4746, %v4828, %v4827
        %v4830 = vsub.s32 4, %v4806
        %v4831 = vsel %vm4746, %v4830, %v4806
        %v4832 = vsel %vm4745, %v4094, %v4829
        %v4833 = vsel %vm4745, 0, %v4831
        %v4834 = vcosq.f32.pop %v4832
        %v4835 = vsinq.f32.pop %v4832
        %vm4836 = vweird.f32 %v4094
        %v4837 = vadd.s32 %v4833, 3
        %v4838 = vand.u32 %v4837, 3
        %vm4839 = vcmp.lt.s32.totalorder %v4838, 2
        %vm4840 = vcmp.eq.s32.totalorder %v4838, 0
        %v4841 = vxor.u32 %v4835, 2147483648
        %v4842 = vsel %vm4840, %v4834, %v4841
        %vm4843 = vcmp.eq.s32.totalorder %v4838, 2
        %v4844 = vxor.u32 %v4834, 2147483648
        %v4845 = vsel %vm4843, %v4844, %v4835
        %v4846 = vsel %vm4839, %v4842, %v4845
        %v4847 = vsel %vm4836, nan, %v4846
        %v4848 = vand.u32 2147483647, %v4095
        %vm4849 = vcmp.le.f32.partialorder %v4848, 0.7853982
        %vm4850 = vcmp.lt.s32.totalorder %v4095, 0
        %v4851 = vand.u32 %v4095, 2139095040
        %v4852 = vshrl.u32 %v4851, 23
        %v4853 = vsub.s32 %v4852, 127
        %v4854 = vand.u32 2147483647, %v4095
        %v4855 = vand.u32 %v4854, 8388607
        %v4856 = vor.u32 %v4855, 8388608
        %v4857 = vsub.s32 0, %v4856
        %v4858 = vadd.s32 %v4853, 1
        %vm4859 = vcmp.gt.s32.totalorder %v4858, 0
        %v4860 = vsel %vm4859, %v4858, 0
        %v4861 = vshrl.u32 %v4860, 5
        %v4862 = vand.u32 %v4860, 31
        %v4863 = vsub.s32 32, %v4862
        %v4864 = vshrl.u32 683565275, %v4863
        %v4865 = vshll.u32 683565275, %v4862
        %v4866 = vshrl.u32 2475754826, %v4863
        %v4867 = vor.u32 %v4865, %v4866
        %v4868 = vshll.u32 2475754826, %v4862
        %v4869 = vshrl.u32 2131351028, %v4863
        %v4870 = vor.u32 %v4868, %v4869
        %v4871 = vshll.u32 2131351028, %v4862
        %v4872 = vshrl.u32 2102212464, %v4863
        %v4873 = vor.u32 %v4871, %v4872
        %v4874 = vshll.u32 2102212464, %v4862
        %v4875 = vshrl.u32 920167782, %v4863
        %v4876 = vor.u32 %v4874, %v4875
        %v4877 = vshll.u32 920167782, %v4862
        %v4878 = vshrl.u32 1326507024, %v4863
        %v4879 = vor.u32 %v4877, %v4878
        %vm4880 = vcmp.lt.s32.totalorder %v4861, 1
        %vm4881 = vcmp.lt.s32.totalorder %v4861, 2
        %vm4882 = vcmp.lt.s32.totalorder %v4861, 3
        %vm4883 = vcmp.lt.s32.totalorder %v4861, 4
        %v4884 = vsel %vm4880, %v4864, %v4867
        %v4885 = vsel %vm4883, %v4873, 2102212464
        %v4886 = vsel %vm4882, %v4870, %v4885
        %v4887 = vsel %vm4881, %v4884, %v4886
        %v4888 = vsel %vm4880, %v4867, %v4870
        %v4889 = vsel %vm4883, %v4876, 920167782
        %v4890 = vsel %vm4882, %v4873, %v4889
        %v4891 = vsel %vm4881, %v4888, %v4890
        %v4892 = vsel %vm4880, %v4870, %v4873
        %v4893 = vsel %vm4883, %v4879, 1326507024
        %v4894 = vsel %vm4882, %v4876, %v4893
        %v4895 = vsel %vm4881, %v4892, %v4894
        %v4896 = vshll.u32 %v4856, 8
        %v4897 = vmul.u32.u64.compose %v4896, %v4895
        %v4898 = vextract.low.u32 %v4897
        %v4899 = vextract.high.u32 %v4897
        %v4900 = vmul.u32.u64.compose %v4896, %v4891
        %v4901 = vextract.low.u32 %v4900
        %v4902 = vextract.high.u32 %v4900
        %v4903 = vmul.u32 %v4896, %v4887
        %v4904 = vadd.s32 %v4899, %v4901
        %vm4905 = vc.u32 %v4899, %v4901
        %v4906 = vadd.s32 %v4902, 1
        %v4907 = vsel %vm4905, %v4906, %v4902
        %v4908 = vadd.s32 %v4903, %v4907
        %v4909 = vadd.s32 %v4908, 536870912
        %v4910 = vshrl.u32 %v4909, 30
        %v4911 = vshll.u32 %v4910, 30
        %v4912 = vsub.s32 %v4908, %v4911
        %vm4913 = vcmp.lt.s32.totalorder %v4912, 0
        %v4914 = vsub.s32 0, %v4912
        %v4915 = vsel %vm4913, %v4914, %v4912
        %v4916 = vclz %v4915
        %v4917 = vsub.s32 %v4916, 2
        %vm4918 = vcmp.gt.s32.totalorder 0, %v4917
        %v4919 = vsel %vm4918, 0, %v4917
        %v4920 = vsub.s32 32, %v4919
        %v4921 = vshll.u32 %v4912, %v4919
        %v4922 = vshrl.u32 %v4904, %v4920
        %v4923 = vor.u32 %v4921, %v4922
        %v4924 = vsub.s32 4294967266, %v4919
        %v4925 = vadd.s32 %v4924, 127
        %v4926 = vshll.u32 %v4925, 23
        %v4927 = vor.u32 4788187, %v4926
        %v4928 = vand.u32 2147483647, %v4927
        %v4930 = vcvt.s32.f32 %v4923
        %v4931 = vmul.f32 %v4930, %v4928
        %v4932 = vxor.u32 %v4931, 2147483648
        %v4933 = vsel %vm4850, %v4932, %v4931
        %v4934 = vsub.s32 4, %v4910
        %v4935 = vsel %vm4850, %v4934, %v4910
        %v4936 = vsel %vm4849, %v4095, %v4933
        %v4937 = vsel %vm4849, 0, %v4935
        %v4938 = vcosq.f32.pop %v4936
        %v4939 = vsinq.f32.pop %v4936
        %vm4940 = vweird.f32 %v4095
        %v4941 = vadd.s32 %v4937, 3
        %v4942 = vand.u32 %v4941, 3
        %vm4943 = vcmp.lt.s32.totalorder %v4942, 2
        %vm4944 = vcmp.eq.s32.totalorder %v4942, 0
        %v4945 = vxor.u32 %v4939, 2147483648
        %v4946 = vsel %vm4944, %v4938, %v4945
        %vm4947 = vcmp.eq.s32.totalorder %v4942, 2
        %v4948 = vxor.u32 %v4938, 2147483648
        %v4949 = vsel %vm4947, %v4948, %v4939
        %v4950 = vsel %vm4943, %v4946, %v4949
        %v4951 = vsel %vm4940, nan, %v4950
        %v4952 = vand.u32 2147483647, %v4096
        %vm4953 = vcmp.le.f32.partialorder %v4952, 0.7853982
        %vm4954 = vcmp.lt.s32.totalorder %v4096, 0
        %v4955 = vand.u32 %v4096, 2139095040
        %v4956 = vshrl.u32 %v4955, 23
        %v4957 = vsub.s32 %v4956, 127
        %v4958 = vand.u32 2147483647, %v4096
        %v4959 = vand.u32 %v4958, 8388607
        %v4960 = vor.u32 %v4959, 8388608
        %v4961 = vsub.s32 0, %v4960
        %v4962 = vadd.s32 %v4957, 1
        %vm4963 = vcmp.gt.s32.totalorder %v4962, 0
        %v4964 = vsel %vm4963, %v4962, 0
        %v4965 = vshrl.u32 %v4964, 5
        %v4966 = vand.u32 %v4964, 31
        %v4967 = vsub.s32 32, %v4966
        %v4968 = vshrl.u32 683565275, %v4967
        %v4969 = vshll.u32 683565275, %v4966
        %v4970 = vshrl.u32 2475754826, %v4967
        %v4971 = vor.u32 %v4969, %v4970
        %v4972 = vshll.u32 2475754826, %v4966
        %v4973 = vshrl.u32 2131351028, %v4967
        %v4974 = vor.u32 %v4972, %v4973
        %v4975 = vshll.u32 2131351028, %v4966
        %v4976 = vshrl.u32 2102212464, %v4967
        %v4977 = vor.u32 %v4975, %v4976
        %v4978 = vshll.u32 2102212464, %v4966
        %v4979 = vshrl.u32 920167782, %v4967
        %v4980 = vor.u32 %v4978, %v4979
        %v4981 = vshll.u32 920167782, %v4966
        %v4982 = vshrl.u32 1326507024, %v4967
        %v4983 = vor.u32 %v4981, %v4982
        %vm4984 = vcmp.lt.s32.totalorder %v4965, 1
        %vm4985 = vcmp.lt.s32.totalorder %v4965, 2
        %vm4986 = vcmp.lt.s32.totalorder %v4965, 3
        %vm4987 = vcmp.lt.s32.totalorder %v4965, 4
        %v4988 = vsel %vm4984, %v4968, %v4971
        %v4989 = vsel %vm4987, %v4977, 2102212464
        %v4990 = vsel %vm4986, %v4974, %v4989
        %v4991 = vsel %vm4985, %v4988, %v4990
        %v4992 = vsel %vm4984, %v4971, %v4974
        %v4993 = vsel %vm4987, %v4980, 920167782
        %v4994 = vsel %vm4986, %v4977, %v4993
        %v4995 = vsel %vm4985, %v4992, %v4994
        %v4996 = vsel %vm4984, %v4974, %v4977
        %v4997 = vsel %vm4987, %v4983, 1326507024
        %v4998 = vsel %vm4986, %v4980, %v4997
        %v4999 = vsel %vm4985, %v4996, %v4998
        %v5000 = vshll.u32 %v4960, 8
        %v5001 = vmul.u32.u64.compose %v5000, %v4999
        %v5002 = vextract.low.u32 %v5001
        %v5003 = vextract.high.u32 %v5001
        %v5004 = vmul.u32.u64.compose %v5000, %v4995
        %v5005 = vextract.low.u32 %v5004
        %v5006 = vextract.high.u32 %v5004
        %v5007 = vmul.u32 %v5000, %v4991
        %v5008 = vadd.s32 %v5003, %v5005
        %vm5009 = vc.u32 %v5003, %v5005
        %v5010 = vadd.s32 %v5006, 1
        %v5011 = vsel %vm5009, %v5010, %v5006
        %v5012 = vadd.s32 %v5007, %v5011
        %v5013 = vadd.s32 %v5012, 536870912
        %v5014 = vshrl.u32 %v5013, 30
        %v5015 = vshll.u32 %v5014, 30
        %v5016 = vsub.s32 %v5012, %v5015
        %vm5017 = vcmp.lt.s32.totalorder %v5016, 0
        %v5018 = vsub.s32 0, %v5016
        %v5019 = vsel %vm5017, %v5018, %v5016
        %v5020 = vclz %v5019
        %v5021 = vsub.s32 %v5020, 2
        %vm5022 = vcmp.gt.s32.totalorder 0, %v5021
        %v5023 = vsel %vm5022, 0, %v5021
        %v5024 = vsub.s32 32, %v5023
        %v5025 = vshll.u32 %v5016, %v5023
        %v5026 = vshrl.u32 %v5008, %v5024
        %v5027 = vor.u32 %v5025, %v5026
        %v5028 = vsub.s32 4294967266, %v5023
        %v5029 = vadd.s32 %v5028, 127
        %v5030 = vshll.u32 %v5029, 23
        %v5031 = vor.u32 4788187, %v5030
        %v5032 = vand.u32 2147483647, %v5031
        %v5034 = vcvt.s32.f32 %v5027
        %v5035 = vmul.f32 %v5034, %v5032
        %v5036 = vxor.u32 %v5035, 2147483648
        %v5037 = vsel %vm4954, %v5036, %v5035
        %v5038 = vsub.s32 4, %v5014
        %v5039 = vsel %vm4954, %v5038, %v5014
        %v5040 = vsel %vm4953, %v4096, %v5037
        %v5041 = vsel %vm4953, 0, %v5039
        %v5042 = vcosq.f32.pop %v5040
        %v5043 = vsinq.f32.pop %v5040
        %vm5044 = vweird.f32 %v4096
        %v5045 = vadd.s32 %v5041, 3
        %v5046 = vand.u32 %v5045, 3
        %vm5047 = vcmp.lt.s32.totalorder %v5046, 2
        %vm5048 = vcmp.eq.s32.totalorder %v5046, 0
        %v5049 = vxor.u32 %v5043, 2147483648
        %v5050 = vsel %vm5048, %v5042, %v5049
        %vm5051 = vcmp.eq.s32.totalorder %v5046, 2
        %v5052 = vxor.u32 %v5042, 2147483648
        %v5053 = vsel %vm5051, %v5052, %v5043
        %v5054 = vsel %vm5047, %v5050, %v5053
        %v5055 = vsel %vm5044, nan, %v5054
        %v5056 = vand.u32 2147483647, %v4097
        %vm5057 = vcmp.le.f32.partialorder %v5056, 0.7853982
        %vm5058 = vcmp.lt.s32.totalorder %v4097, 0
        %v5059 = vand.u32 %v4097, 2139095040
        %v5060 = vshrl.u32 %v5059, 23
        %v5061 = vsub.s32 %v5060, 127
        %v5062 = vand.u32 2147483647, %v4097
        %v5063 = vand.u32 %v5062, 8388607
        %v5064 = vor.u32 %v5063, 8388608
        %v5065 = vsub.s32 0, %v5064
        %v5066 = vadd.s32 %v5061, 1
        %vm5067 = vcmp.gt.s32.totalorder %v5066, 0
        %v5068 = vsel %vm5067, %v5066, 0
        %v5069 = vshrl.u32 %v5068, 5
        %v5070 = vand.u32 %v5068, 31
        %v5071 = vsub.s32 32, %v5070
        %v5072 = vshrl.u32 683565275, %v5071
        %v5073 = vshll.u32 683565275, %v5070
        %v5074 = vshrl.u32 2475754826, %v5071
        %v5075 = vor.u32 %v5073, %v5074
        %v5076 = vshll.u32 2475754826, %v5070
        %v5077 = vshrl.u32 2131351028, %v5071
        %v5078 = vor.u32 %v5076, %v5077
        %v5079 = vshll.u32 2131351028, %v5070
        %v5080 = vshrl.u32 2102212464, %v5071
        %v5081 = vor.u32 %v5079, %v5080
        %v5082 = vshll.u32 2102212464, %v5070
        %v5083 = vshrl.u32 920167782, %v5071
        %v5084 = vor.u32 %v5082, %v5083
        %v5085 = vshll.u32 920167782, %v5070
        %v5086 = vshrl.u32 1326507024, %v5071
        %v5087 = vor.u32 %v5085, %v5086
        %vm5088 = vcmp.lt.s32.totalorder %v5069, 1
        %vm5089 = vcmp.lt.s32.totalorder %v5069, 2
        %vm5090 = vcmp.lt.s32.totalorder %v5069, 3
        %vm5091 = vcmp.lt.s32.totalorder %v5069, 4
        %v5092 = vsel %vm5088, %v5072, %v5075
        %v5093 = vsel %vm5091, %v5081, 2102212464
        %v5094 = vsel %vm5090, %v5078, %v5093
        %v5095 = vsel %vm5089, %v5092, %v5094
        %v5096 = vsel %vm5088, %v5075, %v5078
        %v5097 = vsel %vm5091, %v5084, 920167782
        %v5098 = vsel %vm5090, %v5081, %v5097
        %v5099 = vsel %vm5089, %v5096, %v5098
        %v5100 = vsel %vm5088, %v5078, %v5081
        %v5101 = vsel %vm5091, %v5087, 1326507024
        %v5102 = vsel %vm5090, %v5084, %v5101
        %v5103 = vsel %vm5089, %v5100, %v5102
        %v5104 = vshll.u32 %v5064, 8
        %v5105 = vmul.u32.u64.compose %v5104, %v5103
        %v5106 = vextract.low.u32 %v5105
        %v5107 = vextract.high.u32 %v5105
        %v5108 = vmul.u32.u64.compose %v5104, %v5099
        %v5109 = vextract.low.u32 %v5108
        %v5110 = vextract.high.u32 %v5108
        %v5111 = vmul.u32 %v5104, %v5095
        %v5112 = vadd.s32 %v5107, %v5109
        %vm5113 = vc.u32 %v5107, %v5109
        %v5114 = vadd.s32 %v5110, 1
        %v5115 = vsel %vm5113, %v5114, %v5110
        %v5116 = vadd.s32 %v5111, %v5115
        %v5117 = vadd.s32 %v5116, 536870912
        %v5118 = vshrl.u32 %v5117, 30
        %v5119 = vshll.u32 %v5118, 30
        %v5120 = vsub.s32 %v5116, %v5119
        %vm5121 = vcmp.lt.s32.totalorder %v5120, 0
        %v5122 = vsub.s32 0, %v5120
        %v5123 = vsel %vm5121, %v5122, %v5120
        %v5124 = vclz %v5123
        %v5125 = vsub.s32 %v5124, 2
        %vm5126 = vcmp.gt.s32.totalorder 0, %v5125
        %v5127 = vsel %vm5126, 0, %v5125
        %v5128 = vsub.s32 32, %v5127
        %v5129 = vshll.u32 %v5120, %v5127
        %v5130 = vshrl.u32 %v5112, %v5128
        %v5131 = vor.u32 %v5129, %v5130
        %v5132 = vsub.s32 4294967266, %v5127
        %v5133 = vadd.s32 %v5132, 127
        %v5134 = vshll.u32 %v5133, 23
        %v5135 = vor.u32 4788187, %v5134
        %v5136 = vand.u32 2147483647, %v5135
        %v5138 = vcvt.s32.f32 %v5131
        %v5139 = vmul.f32 %v5138, %v5136
        %v5140 = vxor.u32 %v5139, 2147483648
        %v5141 = vsel %vm5058, %v5140, %v5139
        %v5142 = vsub.s32 4, %v5118
        %v5143 = vsel %vm5058, %v5142, %v5118
        %v5144 = vsel %vm5057, %v4097, %v5141
        %v5145 = vsel %vm5057, 0, %v5143
        %v5146 = vcosq.f32.pop %v5144
        %v5147 = vsinq.f32.pop %v5144
        %vm5148 = vweird.f32 %v4097
        %v5149 = vadd.s32 %v5145, 3
        %v5150 = vand.u32 %v5149, 3
        %vm5151 = vcmp.lt.s32.totalorder %v5150, 2
        %vm5152 = vcmp.eq.s32.totalorder %v5150, 0
        %v5153 = vxor.u32 %v5147, 2147483648
        %v5154 = vsel %vm5152, %v5146, %v5153
        %vm5155 = vcmp.eq.s32.totalorder %v5150, 2
        %v5156 = vxor.u32 %v5146, 2147483648
        %v5157 = vsel %vm5155, %v5156, %v5147
        %v5158 = vsel %vm5151, %v5154, %v5157
        %v5159 = vsel %vm5148, nan, %v5158
        %v5160 = vand.u32 2147483647, %v4098
        %vm5161 = vcmp.le.f32.partialorder %v5160, 0.7853982
        %vm5162 = vcmp.lt.s32.totalorder %v4098, 0
        %v5163 = vand.u32 %v4098, 2139095040
        %v5164 = vshrl.u32 %v5163, 23
        %v5165 = vsub.s32 %v5164, 127
        %v5166 = vand.u32 2147483647, %v4098
        %v5167 = vand.u32 %v5166, 8388607
        %v5168 = vor.u32 %v5167, 8388608
        %v5169 = vsub.s32 0, %v5168
        %v5170 = vadd.s32 %v5165, 1
        %vm5171 = vcmp.gt.s32.totalorder %v5170, 0
        %v5172 = vsel %vm5171, %v5170, 0
        %v5173 = vshrl.u32 %v5172, 5
        %v5174 = vand.u32 %v5172, 31
        %v5175 = vsub.s32 32, %v5174
        %v5176 = vshrl.u32 683565275, %v5175
        %v5177 = vshll.u32 683565275, %v5174
        %v5178 = vshrl.u32 2475754826, %v5175
        %v5179 = vor.u32 %v5177, %v5178
        %v5180 = vshll.u32 2475754826, %v5174
        %v5181 = vshrl.u32 2131351028, %v5175
        %v5182 = vor.u32 %v5180, %v5181
        %v5183 = vshll.u32 2131351028, %v5174
        %v5184 = vshrl.u32 2102212464, %v5175
        %v5185 = vor.u32 %v5183, %v5184
        %v5186 = vshll.u32 2102212464, %v5174
        %v5187 = vshrl.u32 920167782, %v5175
        %v5188 = vor.u32 %v5186, %v5187
        %v5189 = vshll.u32 920167782, %v5174
        %v5190 = vshrl.u32 1326507024, %v5175
        %v5191 = vor.u32 %v5189, %v5190
        %vm5192 = vcmp.lt.s32.totalorder %v5173, 1
        %vm5193 = vcmp.lt.s32.totalorder %v5173, 2
        %vm5194 = vcmp.lt.s32.totalorder %v5173, 3
        %vm5195 = vcmp.lt.s32.totalorder %v5173, 4
        %v5196 = vsel %vm5192, %v5176, %v5179
        %v5197 = vsel %vm5195, %v5185, 2102212464
        %v5198 = vsel %vm5194, %v5182, %v5197
        %v5199 = vsel %vm5193, %v5196, %v5198
        %v5200 = vsel %vm5192, %v5179, %v5182
        %v5201 = vsel %vm5195, %v5188, 920167782
        %v5202 = vsel %vm5194, %v5185, %v5201
        %v5203 = vsel %vm5193, %v5200, %v5202
        %v5204 = vsel %vm5192, %v5182, %v5185
        %v5205 = vsel %vm5195, %v5191, 1326507024
        %v5206 = vsel %vm5194, %v5188, %v5205
        %v5207 = vsel %vm5193, %v5204, %v5206
        %v5208 = vshll.u32 %v5168, 8
        %v5209 = vmul.u32.u64.compose %v5208, %v5207
        %v5210 = vextract.low.u32 %v5209
        %v5211 = vextract.high.u32 %v5209
        %v5212 = vmul.u32.u64.compose %v5208, %v5203
        %v5213 = vextract.low.u32 %v5212
        %v5214 = vextract.high.u32 %v5212
        %v5215 = vmul.u32 %v5208, %v5199
        %v5216 = vadd.s32 %v5211, %v5213
        %vm5217 = vc.u32 %v5211, %v5213
        %v5218 = vadd.s32 %v5214, 1
        %v5219 = vsel %vm5217, %v5218, %v5214
        %v5220 = vadd.s32 %v5215, %v5219
        %v5221 = vadd.s32 %v5220, 536870912
        %v5222 = vshrl.u32 %v5221, 30
        %v5223 = vshll.u32 %v5222, 30
        %v5224 = vsub.s32 %v5220, %v5223
        %vm5225 = vcmp.lt.s32.totalorder %v5224, 0
        %v5226 = vsub.s32 0, %v5224
        %v5227 = vsel %vm5225, %v5226, %v5224
        %v5228 = vclz %v5227
        %v5229 = vsub.s32 %v5228, 2
        %vm5230 = vcmp.gt.s32.totalorder 0, %v5229
        %v5231 = vsel %vm5230, 0, %v5229
        %v5232 = vsub.s32 32, %v5231
        %v5233 = vshll.u32 %v5224, %v5231
        %v5234 = vshrl.u32 %v5216, %v5232
        %v5235 = vor.u32 %v5233, %v5234
        %v5236 = vsub.s32 4294967266, %v5231
        %v5237 = vadd.s32 %v5236, 127
        %v5238 = vshll.u32 %v5237, 23
        %v5239 = vor.u32 4788187, %v5238
        %v5240 = vand.u32 2147483647, %v5239
        %v5242 = vcvt.s32.f32 %v5235
        %v5243 = vmul.f32 %v5242, %v5240
        %v5244 = vxor.u32 %v5243, 2147483648
        %v5245 = vsel %vm5162, %v5244, %v5243
        %v5246 = vsub.s32 4, %v5222
        %v5247 = vsel %vm5162, %v5246, %v5222
        %v5248 = vsel %vm5161, %v4098, %v5245
        %v5249 = vsel %vm5161, 0, %v5247
        %v5250 = vcosq.f32.pop %v5248
        %v5251 = vsinq.f32.pop %v5248
        %vm5252 = vweird.f32 %v4098
        %v5253 = vadd.s32 %v5249, 3
        %v5254 = vand.u32 %v5253, 3
        %vm5255 = vcmp.lt.s32.totalorder %v5254, 2
        %vm5256 = vcmp.eq.s32.totalorder %v5254, 0
        %v5257 = vxor.u32 %v5251, 2147483648
        %v5258 = vsel %vm5256, %v5250, %v5257
        %vm5259 = vcmp.eq.s32.totalorder %v5254, 2
        %v5260 = vxor.u32 %v5250, 2147483648
        %v5261 = vsel %vm5259, %v5260, %v5251
        %v5262 = vsel %vm5255, %v5258, %v5261
        %v5263 = vsel %vm5252, nan, %v5262
        %v5264 = vand.u32 2147483647, %v4099
        %vm5265 = vcmp.le.f32.partialorder %v5264, 0.7853982
        %vm5266 = vcmp.lt.s32.totalorder %v4099, 0
        %v5267 = vand.u32 %v4099, 2139095040
        %v5268 = vshrl.u32 %v5267, 23
        %v5269 = vsub.s32 %v5268, 127
        %v5270 = vand.u32 2147483647, %v4099
        %v5271 = vand.u32 %v5270, 8388607
        %v5272 = vor.u32 %v5271, 8388608
        %v5273 = vsub.s32 0, %v5272
        %v5274 = vadd.s32 %v5269, 1
        %vm5275 = vcmp.gt.s32.totalorder %v5274, 0
        %v5276 = vsel %vm5275, %v5274, 0
        %v5277 = vshrl.u32 %v5276, 5
        %v5278 = vand.u32 %v5276, 31
        %v5279 = vsub.s32 32, %v5278
        %v5280 = vshrl.u32 683565275, %v5279
        %v5281 = vshll.u32 683565275, %v5278
        %v5282 = vshrl.u32 2475754826, %v5279
        %v5283 = vor.u32 %v5281, %v5282
        %v5284 = vshll.u32 2475754826, %v5278
        %v5285 = vshrl.u32 2131351028, %v5279
        %v5286 = vor.u32 %v5284, %v5285
        %v5287 = vshll.u32 2131351028, %v5278
        %v5288 = vshrl.u32 2102212464, %v5279
        %v5289 = vor.u32 %v5287, %v5288
        %v5290 = vshll.u32 2102212464, %v5278
        %v5291 = vshrl.u32 920167782, %v5279
        %v5292 = vor.u32 %v5290, %v5291
        %v5293 = vshll.u32 920167782, %v5278
        %v5294 = vshrl.u32 1326507024, %v5279
        %v5295 = vor.u32 %v5293, %v5294
        %vm5296 = vcmp.lt.s32.totalorder %v5277, 1
        %vm5297 = vcmp.lt.s32.totalorder %v5277, 2
        %vm5298 = vcmp.lt.s32.totalorder %v5277, 3
        %vm5299 = vcmp.lt.s32.totalorder %v5277, 4
        %v5300 = vsel %vm5296, %v5280, %v5283
        %v5301 = vsel %vm5299, %v5289, 2102212464
        %v5302 = vsel %vm5298, %v5286, %v5301
        %v5303 = vsel %vm5297, %v5300, %v5302
        %v5304 = vsel %vm5296, %v5283, %v5286
        %v5305 = vsel %vm5299, %v5292, 920167782
        %v5306 = vsel %vm5298, %v5289, %v5305
        %v5307 = vsel %vm5297, %v5304, %v5306
        %v5308 = vsel %vm5296, %v5286, %v5289
        %v5309 = vsel %vm5299, %v5295, 1326507024
        %v5310 = vsel %vm5298, %v5292, %v5309
        %v5311 = vsel %vm5297, %v5308, %v5310
        %v5312 = vshll.u32 %v5272, 8
        %v5313 = vmul.u32.u64.compose %v5312, %v5311
        %v5314 = vextract.low.u32 %v5313
        %v5315 = vextract.high.u32 %v5313
        %v5316 = vmul.u32.u64.compose %v5312, %v5307
        %v5317 = vextract.low.u32 %v5316
        %v5318 = vextract.high.u32 %v5316
        %v5319 = vmul.u32 %v5312, %v5303
        %v5320 = vadd.s32 %v5315, %v5317
        %vm5321 = vc.u32 %v5315, %v5317
        %v5322 = vadd.s32 %v5318, 1
        %v5323 = vsel %vm5321, %v5322, %v5318
        %v5324 = vadd.s32 %v5319, %v5323
        %v5325 = vadd.s32 %v5324, 536870912
        %v5326 = vshrl.u32 %v5325, 30
        %v5327 = vshll.u32 %v5326, 30
        %v5328 = vsub.s32 %v5324, %v5327
        %vm5329 = vcmp.lt.s32.totalorder %v5328, 0
        %v5330 = vsub.s32 0, %v5328
        %v5331 = vsel %vm5329, %v5330, %v5328
        %v5332 = vclz %v5331
        %v5333 = vsub.s32 %v5332, 2
        %vm5334 = vcmp.gt.s32.totalorder 0, %v5333
        %v5335 = vsel %vm5334, 0, %v5333
        %v5336 = vsub.s32 32, %v5335
        %v5337 = vshll.u32 %v5328, %v5335
        %v5338 = vshrl.u32 %v5320, %v5336
        %v5339 = vor.u32 %v5337, %v5338
        %v5340 = vsub.s32 4294967266, %v5335
        %v5341 = vadd.s32 %v5340, 127
        %v5342 = vshll.u32 %v5341, 23
        %v5343 = vor.u32 4788187, %v5342
        %v5344 = vand.u32 2147483647, %v5343
        %v5346 = vcvt.s32.f32 %v5339
        %v5347 = vmul.f32 %v5346, %v5344
        %v5348 = vxor.u32 %v5347, 2147483648
        %v5349 = vsel %vm5266, %v5348, %v5347
        %v5350 = vsub.s32 4, %v5326
        %v5351 = vsel %vm5266, %v5350, %v5326
        %v5352 = vsel %vm5265, %v4099, %v5349
        %v5353 = vsel %vm5265, 0, %v5351
        %v5354 = vcosq.f32.pop %v5352
        %v5355 = vsinq.f32.pop %v5352
        %vm5356 = vweird.f32 %v4099
        %v5357 = vadd.s32 %v5353, 3
        %v5358 = vand.u32 %v5357, 3
        %vm5359 = vcmp.lt.s32.totalorder %v5358, 2
        %vm5360 = vcmp.eq.s32.totalorder %v5358, 0
        %v5361 = vxor.u32 %v5355, 2147483648
        %v5362 = vsel %vm5360, %v5354, %v5361
        %vm5363 = vcmp.eq.s32.totalorder %v5358, 2
        %v5364 = vxor.u32 %v5354, 2147483648
        %v5365 = vsel %vm5363, %v5364, %v5355
        %v5366 = vsel %vm5359, %v5362, %v5365
        %v5367 = vsel %vm5356, nan, %v5366
        %v5368 = vand.u32 2147483647, %v4100
        %vm5369 = vcmp.le.f32.partialorder %v5368, 0.7853982
        %vm5370 = vcmp.lt.s32.totalorder %v4100, 0
        %v5371 = vand.u32 %v4100, 2139095040
        %v5372 = vshrl.u32 %v5371, 23
        %v5373 = vsub.s32 %v5372, 127
        %v5374 = vand.u32 2147483647, %v4100
        %v5375 = vand.u32 %v5374, 8388607
        %v5376 = vor.u32 %v5375, 8388608
        %v5377 = vsub.s32 0, %v5376
        %v5378 = vadd.s32 %v5373, 1
        %vm5379 = vcmp.gt.s32.totalorder %v5378, 0
        %v5380 = vsel %vm5379, %v5378, 0
        %v5381 = vshrl.u32 %v5380, 5
        %v5382 = vand.u32 %v5380, 31
        %v5383 = vsub.s32 32, %v5382
        %v5384 = vshrl.u32 683565275, %v5383
        %v5385 = vshll.u32 683565275, %v5382
        %v5386 = vshrl.u32 2475754826, %v5383
        %v5387 = vor.u32 %v5385, %v5386
        %v5388 = vshll.u32 2475754826, %v5382
        %v5389 = vshrl.u32 2131351028, %v5383
        %v5390 = vor.u32 %v5388, %v5389
        %v5391 = vshll.u32 2131351028, %v5382
        %v5392 = vshrl.u32 2102212464, %v5383
        %v5393 = vor.u32 %v5391, %v5392
        %v5394 = vshll.u32 2102212464, %v5382
        %v5395 = vshrl.u32 920167782, %v5383
        %v5396 = vor.u32 %v5394, %v5395
        %v5397 = vshll.u32 920167782, %v5382
        %v5398 = vshrl.u32 1326507024, %v5383
        %v5399 = vor.u32 %v5397, %v5398
        %vm5400 = vcmp.lt.s32.totalorder %v5381, 1
        %vm5401 = vcmp.lt.s32.totalorder %v5381, 2
        %vm5402 = vcmp.lt.s32.totalorder %v5381, 3
        %vm5403 = vcmp.lt.s32.totalorder %v5381, 4
        %v5404 = vsel %vm5400, %v5384, %v5387
        %v5405 = vsel %vm5403, %v5393, 2102212464
        %v5406 = vsel %vm5402, %v5390, %v5405
        %v5407 = vsel %vm5401, %v5404, %v5406
        %v5408 = vsel %vm5400, %v5387, %v5390
        %v5409 = vsel %vm5403, %v5396, 920167782
        %v5410 = vsel %vm5402, %v5393, %v5409
        %v5411 = vsel %vm5401, %v5408, %v5410
        %v5412 = vsel %vm5400, %v5390, %v5393
        %v5413 = vsel %vm5403, %v5399, 1326507024
        %v5414 = vsel %vm5402, %v5396, %v5413
        %v5415 = vsel %vm5401, %v5412, %v5414
        %v5416 = vshll.u32 %v5376, 8
        %v5417 = vmul.u32.u64.compose %v5416, %v5415
        %v5418 = vextract.low.u32 %v5417
        %v5419 = vextract.high.u32 %v5417
        %v5420 = vmul.u32.u64.compose %v5416, %v5411
        %v5421 = vextract.low.u32 %v5420
        %v5422 = vextract.high.u32 %v5420
        %v5423 = vmul.u32 %v5416, %v5407
        %v5424 = vadd.s32 %v5419, %v5421
        %vm5425 = vc.u32 %v5419, %v5421
        %v5426 = vadd.s32 %v5422, 1
        %v5427 = vsel %vm5425, %v5426, %v5422
        %v5428 = vadd.s32 %v5423, %v5427
        %v5429 = vadd.s32 %v5428, 536870912
        %v5430 = vshrl.u32 %v5429, 30
        %v5431 = vshll.u32 %v5430, 30
        %v5432 = vsub.s32 %v5428, %v5431
        %vm5433 = vcmp.lt.s32.totalorder %v5432, 0
        %v5434 = vsub.s32 0, %v5432
        %v5435 = vsel %vm5433, %v5434, %v5432
        %v5436 = vclz %v5435
        %v5437 = vsub.s32 %v5436, 2
        %vm5438 = vcmp.gt.s32.totalorder 0, %v5437
        %v5439 = vsel %vm5438, 0, %v5437
        %v5440 = vsub.s32 32, %v5439
        %v5441 = vshll.u32 %v5432, %v5439
        %v5442 = vshrl.u32 %v5424, %v5440
        %v5443 = vor.u32 %v5441, %v5442
        %v5444 = vsub.s32 4294967266, %v5439
        %v5445 = vadd.s32 %v5444, 127
        %v5446 = vshll.u32 %v5445, 23
        %v5447 = vor.u32 4788187, %v5446
        %v5448 = vand.u32 2147483647, %v5447
        %v5450 = vcvt.s32.f32 %v5443
        %v5451 = vmul.f32 %v5450, %v5448
        %v5452 = vxor.u32 %v5451, 2147483648
        %v5453 = vsel %vm5370, %v5452, %v5451
        %v5454 = vsub.s32 4, %v5430
        %v5455 = vsel %vm5370, %v5454, %v5430
        %v5456 = vsel %vm5369, %v4100, %v5453
        %v5457 = vsel %vm5369, 0, %v5455
        %v5458 = vcosq.f32.pop %v5456
        %v5459 = vsinq.f32.pop %v5456
        %vm5460 = vweird.f32 %v4100
        %v5461 = vadd.s32 %v5457, 3
        %v5462 = vand.u32 %v5461, 3
        %vm5463 = vcmp.lt.s32.totalorder %v5462, 2
        %vm5464 = vcmp.eq.s32.totalorder %v5462, 0
        %v5465 = vxor.u32 %v5459, 2147483648
        %v5466 = vsel %vm5464, %v5458, %v5465
        %vm5467 = vcmp.eq.s32.totalorder %v5462, 2
        %v5468 = vxor.u32 %v5458, 2147483648
        %v5469 = vsel %vm5467, %v5468, %v5459
        %v5470 = vsel %vm5463, %v5466, %v5469
        %v5471 = vsel %vm5460, nan, %v5470
        %v5472 = vand.u32 2147483647, %v4101
        %vm5473 = vcmp.le.f32.partialorder %v5472, 0.7853982
        %vm5474 = vcmp.lt.s32.totalorder %v4101, 0
        %v5475 = vand.u32 %v4101, 2139095040
        %v5476 = vshrl.u32 %v5475, 23
        %v5477 = vsub.s32 %v5476, 127
        %v5478 = vand.u32 2147483647, %v4101
        %v5479 = vand.u32 %v5478, 8388607
        %v5480 = vor.u32 %v5479, 8388608
        %v5481 = vsub.s32 0, %v5480
        %v5482 = vadd.s32 %v5477, 1
        %vm5483 = vcmp.gt.s32.totalorder %v5482, 0
        %v5484 = vsel %vm5483, %v5482, 0
        %v5485 = vshrl.u32 %v5484, 5
        %v5486 = vand.u32 %v5484, 31
        %v5487 = vsub.s32 32, %v5486
        %v5488 = vshrl.u32 683565275, %v5487
        %v5489 = vshll.u32 683565275, %v5486
        %v5490 = vshrl.u32 2475754826, %v5487
        %v5491 = vor.u32 %v5489, %v5490
        %v5492 = vshll.u32 2475754826, %v5486
        %v5493 = vshrl.u32 2131351028, %v5487
        %v5494 = vor.u32 %v5492, %v5493
        %v5495 = vshll.u32 2131351028, %v5486
        %v5496 = vshrl.u32 2102212464, %v5487
        %v5497 = vor.u32 %v5495, %v5496
        %v5498 = vshll.u32 2102212464, %v5486
        %v5499 = vshrl.u32 920167782, %v5487
        %v5500 = vor.u32 %v5498, %v5499
        %v5501 = vshll.u32 920167782, %v5486
        %v5502 = vshrl.u32 1326507024, %v5487
        %v5503 = vor.u32 %v5501, %v5502
        %vm5504 = vcmp.lt.s32.totalorder %v5485, 1
        %vm5505 = vcmp.lt.s32.totalorder %v5485, 2
        %vm5506 = vcmp.lt.s32.totalorder %v5485, 3
        %vm5507 = vcmp.lt.s32.totalorder %v5485, 4
        %v5508 = vsel %vm5504, %v5488, %v5491
        %v5509 = vsel %vm5507, %v5497, 2102212464
        %v5510 = vsel %vm5506, %v5494, %v5509
        %v5511 = vsel %vm5505, %v5508, %v5510
        %v5512 = vsel %vm5504, %v5491, %v5494
        %v5513 = vsel %vm5507, %v5500, 920167782
        %v5514 = vsel %vm5506, %v5497, %v5513
        %v5515 = vsel %vm5505, %v5512, %v5514
        %v5516 = vsel %vm5504, %v5494, %v5497
        %v5517 = vsel %vm5507, %v5503, 1326507024
        %v5518 = vsel %vm5506, %v5500, %v5517
        %v5519 = vsel %vm5505, %v5516, %v5518
        %v5520 = vshll.u32 %v5480, 8
        %v5521 = vmul.u32.u64.compose %v5520, %v5519
        %v5522 = vextract.low.u32 %v5521
        %v5523 = vextract.high.u32 %v5521
        %v5524 = vmul.u32.u64.compose %v5520, %v5515
        %v5525 = vextract.low.u32 %v5524
        %v5526 = vextract.high.u32 %v5524
        %v5527 = vmul.u32 %v5520, %v5511
        %v5528 = vadd.s32 %v5523, %v5525
        %vm5529 = vc.u32 %v5523, %v5525
        %v5530 = vadd.s32 %v5526, 1
        %v5531 = vsel %vm5529, %v5530, %v5526
        %v5532 = vadd.s32 %v5527, %v5531
        %v5533 = vadd.s32 %v5532, 536870912
        %v5534 = vshrl.u32 %v5533, 30
        %v5535 = vshll.u32 %v5534, 30
        %v5536 = vsub.s32 %v5532, %v5535
        %vm5537 = vcmp.lt.s32.totalorder %v5536, 0
        %v5538 = vsub.s32 0, %v5536
        %v5539 = vsel %vm5537, %v5538, %v5536
        %v5540 = vclz %v5539
        %v5541 = vsub.s32 %v5540, 2
        %vm5542 = vcmp.gt.s32.totalorder 0, %v5541
        %v5543 = vsel %vm5542, 0, %v5541
        %v5544 = vsub.s32 32, %v5543
        %v5545 = vshll.u32 %v5536, %v5543
        %v5546 = vshrl.u32 %v5528, %v5544
        %v5547 = vor.u32 %v5545, %v5546
        %v5548 = vsub.s32 4294967266, %v5543
        %v5549 = vadd.s32 %v5548, 127
        %v5550 = vshll.u32 %v5549, 23
        %v5551 = vor.u32 4788187, %v5550
        %v5552 = vand.u32 2147483647, %v5551
        %v5554 = vcvt.s32.f32 %v5547
        %v5555 = vmul.f32 %v5554, %v5552
        %v5556 = vxor.u32 %v5555, 2147483648
        %v5557 = vsel %vm5474, %v5556, %v5555
        %v5558 = vsub.s32 4, %v5534
        %v5559 = vsel %vm5474, %v5558, %v5534
        %v5560 = vsel %vm5473, %v4101, %v5557
        %v5561 = vsel %vm5473, 0, %v5559
        %v5562 = vcosq.f32.pop %v5560
        %v5563 = vsinq.f32.pop %v5560
        %vm5564 = vweird.f32 %v4101
        %v5565 = vadd.s32 %v5561, 3
        %v5566 = vand.u32 %v5565, 3
        %vm5567 = vcmp.lt.s32.totalorder %v5566, 2
        %vm5568 = vcmp.eq.s32.totalorder %v5566, 0
        %v5569 = vxor.u32 %v5563, 2147483648
        %v5570 = vsel %vm5568, %v5562, %v5569
        %vm5571 = vcmp.eq.s32.totalorder %v5566, 2
        %v5572 = vxor.u32 %v5562, 2147483648
        %v5573 = vsel %vm5571, %v5572, %v5563
        %v5574 = vsel %vm5567, %v5570, %v5573
        %v5575 = vsel %vm5564, nan, %v5574
        %v5576 = vand.u32 2147483647, %v4102
        %vm5577 = vcmp.le.f32.partialorder %v5576, 0.7853982
        %vm5578 = vcmp.lt.s32.totalorder %v4102, 0
        %v5579 = vand.u32 %v4102, 2139095040
        %v5580 = vshrl.u32 %v5579, 23
        %v5581 = vsub.s32 %v5580, 127
        %v5582 = vand.u32 2147483647, %v4102
        %v5583 = vand.u32 %v5582, 8388607
        %v5584 = vor.u32 %v5583, 8388608
        %v5585 = vsub.s32 0, %v5584
        %v5586 = vadd.s32 %v5581, 1
        %vm5587 = vcmp.gt.s32.totalorder %v5586, 0
        %v5588 = vsel %vm5587, %v5586, 0
        %v5589 = vshrl.u32 %v5588, 5
        %v5590 = vand.u32 %v5588, 31
        %v5591 = vsub.s32 32, %v5590
        %v5592 = vshrl.u32 683565275, %v5591
        %v5593 = vshll.u32 683565275, %v5590
        %v5594 = vshrl.u32 2475754826, %v5591
        %v5595 = vor.u32 %v5593, %v5594
        %v5596 = vshll.u32 2475754826, %v5590
        %v5597 = vshrl.u32 2131351028, %v5591
        %v5598 = vor.u32 %v5596, %v5597
        %v5599 = vshll.u32 2131351028, %v5590
        %v5600 = vshrl.u32 2102212464, %v5591
        %v5601 = vor.u32 %v5599, %v5600
        %v5602 = vshll.u32 2102212464, %v5590
        %v5603 = vshrl.u32 920167782, %v5591
        %v5604 = vor.u32 %v5602, %v5603
        %v5605 = vshll.u32 920167782, %v5590
        %v5606 = vshrl.u32 1326507024, %v5591
        %v5607 = vor.u32 %v5605, %v5606
        %vm5608 = vcmp.lt.s32.totalorder %v5589, 1
        %vm5609 = vcmp.lt.s32.totalorder %v5589, 2
        %vm5610 = vcmp.lt.s32.totalorder %v5589, 3
        %vm5611 = vcmp.lt.s32.totalorder %v5589, 4
        %v5612 = vsel %vm5608, %v5592, %v5595
        %v5613 = vsel %vm5611, %v5601, 2102212464
        %v5614 = vsel %vm5610, %v5598, %v5613
        %v5615 = vsel %vm5609, %v5612, %v5614
        %v5616 = vsel %vm5608, %v5595, %v5598
        %v5617 = vsel %vm5611, %v5604, 920167782
        %v5618 = vsel %vm5610, %v5601, %v5617
        %v5619 = vsel %vm5609, %v5616, %v5618
        %v5620 = vsel %vm5608, %v5598, %v5601
        %v5621 = vsel %vm5611, %v5607, 1326507024
        %v5622 = vsel %vm5610, %v5604, %v5621
        %v5623 = vsel %vm5609, %v5620, %v5622
        %v5624 = vshll.u32 %v5584, 8
        %v5625 = vmul.u32.u64.compose %v5624, %v5623
        %v5626 = vextract.low.u32 %v5625
        %v5627 = vextract.high.u32 %v5625
        %v5628 = vmul.u32.u64.compose %v5624, %v5619
        %v5629 = vextract.low.u32 %v5628
        %v5630 = vextract.high.u32 %v5628
        %v5631 = vmul.u32 %v5624, %v5615
        %v5632 = vadd.s32 %v5627, %v5629
        %vm5633 = vc.u32 %v5627, %v5629
        %v5634 = vadd.s32 %v5630, 1
        %v5635 = vsel %vm5633, %v5634, %v5630
        %v5636 = vadd.s32 %v5631, %v5635
        %v5637 = vadd.s32 %v5636, 536870912
        %v5638 = vshrl.u32 %v5637, 30
        %v5639 = vshll.u32 %v5638, 30
        %v5640 = vsub.s32 %v5636, %v5639
        %vm5641 = vcmp.lt.s32.totalorder %v5640, 0
        %v5642 = vsub.s32 0, %v5640
        %v5643 = vsel %vm5641, %v5642, %v5640
        %v5644 = vclz %v5643
        %v5645 = vsub.s32 %v5644, 2
        %vm5646 = vcmp.gt.s32.totalorder 0, %v5645
        %v5647 = vsel %vm5646, 0, %v5645
        %v5648 = vsub.s32 32, %v5647
        %v5649 = vshll.u32 %v5640, %v5647
        %v5650 = vshrl.u32 %v5632, %v5648
        %v5651 = vor.u32 %v5649, %v5650
        %v5652 = vsub.s32 4294967266, %v5647
        %v5653 = vadd.s32 %v5652, 127
        %v5654 = vshll.u32 %v5653, 23
        %v5655 = vor.u32 4788187, %v5654
        %v5656 = vand.u32 2147483647, %v5655
        %v5658 = vcvt.s32.f32 %v5651
        %v5659 = vmul.f32 %v5658, %v5656
        %v5660 = vxor.u32 %v5659, 2147483648
        %v5661 = vsel %vm5578, %v5660, %v5659
        %v5662 = vsub.s32 4, %v5638
        %v5663 = vsel %vm5578, %v5662, %v5638
        %v5664 = vsel %vm5577, %v4102, %v5661
        %v5665 = vsel %vm5577, 0, %v5663
        %v5666 = vcosq.f32.pop %v5664
        %v5667 = vsinq.f32.pop %v5664
        %vm5668 = vweird.f32 %v4102
        %v5669 = vadd.s32 %v5665, 3
        %v5670 = vand.u32 %v5669, 3
        %vm5671 = vcmp.lt.s32.totalorder %v5670, 2
        %vm5672 = vcmp.eq.s32.totalorder %v5670, 0
        %v5673 = vxor.u32 %v5667, 2147483648
        %v5674 = vsel %vm5672, %v5666, %v5673
        %vm5675 = vcmp.eq.s32.totalorder %v5670, 2
        %v5676 = vxor.u32 %v5666, 2147483648
        %v5677 = vsel %vm5675, %v5676, %v5667
        %v5678 = vsel %vm5671, %v5674, %v5677
        %v5679 = vsel %vm5668, nan, %v5678
        %v5680 = vand.u32 2147483647, %v4103
        %vm5681 = vcmp.le.f32.partialorder %v5680, 0.7853982
        %vm5682 = vcmp.lt.s32.totalorder %v4103, 0
        %v5683 = vand.u32 %v4103, 2139095040
        %v5684 = vshrl.u32 %v5683, 23
        %v5685 = vsub.s32 %v5684, 127
        %v5686 = vand.u32 2147483647, %v4103
        %v5687 = vand.u32 %v5686, 8388607
        %v5688 = vor.u32 %v5687, 8388608
        %v5689 = vsub.s32 0, %v5688
        %v5690 = vadd.s32 %v5685, 1
        %vm5691 = vcmp.gt.s32.totalorder %v5690, 0
        %v5692 = vsel %vm5691, %v5690, 0
        %v5693 = vshrl.u32 %v5692, 5
        %v5694 = vand.u32 %v5692, 31
        %v5695 = vsub.s32 32, %v5694
        %v5696 = vshrl.u32 683565275, %v5695
        %v5697 = vshll.u32 683565275, %v5694
        %v5698 = vshrl.u32 2475754826, %v5695
        %v5699 = vor.u32 %v5697, %v5698
        %v5700 = vshll.u32 2475754826, %v5694
        %v5701 = vshrl.u32 2131351028, %v5695
        %v5702 = vor.u32 %v5700, %v5701
        %v5703 = vshll.u32 2131351028, %v5694
        %v5704 = vshrl.u32 2102212464, %v5695
        %v5705 = vor.u32 %v5703, %v5704
        %v5706 = vshll.u32 2102212464, %v5694
        %v5707 = vshrl.u32 920167782, %v5695
        %v5708 = vor.u32 %v5706, %v5707
        %v5709 = vshll.u32 920167782, %v5694
        %v5710 = vshrl.u32 1326507024, %v5695
        %v5711 = vor.u32 %v5709, %v5710
        %vm5712 = vcmp.lt.s32.totalorder %v5693, 1
        %vm5713 = vcmp.lt.s32.totalorder %v5693, 2
        %vm5714 = vcmp.lt.s32.totalorder %v5693, 3
        %vm5715 = vcmp.lt.s32.totalorder %v5693, 4
        %v5716 = vsel %vm5712, %v5696, %v5699
        %v5717 = vsel %vm5715, %v5705, 2102212464
        %v5718 = vsel %vm5714, %v5702, %v5717
        %v5719 = vsel %vm5713, %v5716, %v5718
        %v5720 = vsel %vm5712, %v5699, %v5702
        %v5721 = vsel %vm5715, %v5708, 920167782
        %v5722 = vsel %vm5714, %v5705, %v5721
        %v5723 = vsel %vm5713, %v5720, %v5722
        %v5724 = vsel %vm5712, %v5702, %v5705
        %v5725 = vsel %vm5715, %v5711, 1326507024
        %v5726 = vsel %vm5714, %v5708, %v5725
        %v5727 = vsel %vm5713, %v5724, %v5726
        %v5728 = vshll.u32 %v5688, 8
        %v5729 = vmul.u32.u64.compose %v5728, %v5727
        %v5730 = vextract.low.u32 %v5729
        %v5731 = vextract.high.u32 %v5729
        %v5732 = vmul.u32.u64.compose %v5728, %v5723
        %v5733 = vextract.low.u32 %v5732
        %v5734 = vextract.high.u32 %v5732
        %v5735 = vmul.u32 %v5728, %v5719
        %v5736 = vadd.s32 %v5731, %v5733
        %vm5737 = vc.u32 %v5731, %v5733
        %v5738 = vadd.s32 %v5734, 1
        %v5739 = vsel %vm5737, %v5738, %v5734
        %v5740 = vadd.s32 %v5735, %v5739
        %v5741 = vadd.s32 %v5740, 536870912
        %v5742 = vshrl.u32 %v5741, 30
        %v5743 = vshll.u32 %v5742, 30
        %v5744 = vsub.s32 %v5740, %v5743
        %vm5745 = vcmp.lt.s32.totalorder %v5744, 0
        %v5746 = vsub.s32 0, %v5744
        %v5747 = vsel %vm5745, %v5746, %v5744
        %v5748 = vclz %v5747
        %v5749 = vsub.s32 %v5748, 2
        %vm5750 = vcmp.gt.s32.totalorder 0, %v5749
        %v5751 = vsel %vm5750, 0, %v5749
        %v5752 = vsub.s32 32, %v5751
        %v5753 = vshll.u32 %v5744, %v5751
        %v5754 = vshrl.u32 %v5736, %v5752
        %v5755 = vor.u32 %v5753, %v5754
        %v5756 = vsub.s32 4294967266, %v5751
        %v5757 = vadd.s32 %v5756, 127
        %v5758 = vshll.u32 %v5757, 23
        %v5759 = vor.u32 4788187, %v5758
        %v5760 = vand.u32 2147483647, %v5759
        %v5762 = vcvt.s32.f32 %v5755
        %v5763 = vmul.f32 %v5762, %v5760
        %v5764 = vxor.u32 %v5763, 2147483648
        %v5765 = vsel %vm5682, %v5764, %v5763
        %v5766 = vsub.s32 4, %v5742
        %v5767 = vsel %vm5682, %v5766, %v5742
        %v5768 = vsel %vm5681, %v4103, %v5765
        %v5769 = vsel %vm5681, 0, %v5767
        %v5770 = vcosq.f32.pop %v5768
        %v5771 = vsinq.f32.pop %v5768
        %vm5772 = vweird.f32 %v4103
        %v5773 = vadd.s32 %v5769, 3
        %v5774 = vand.u32 %v5773, 3
        %vm5775 = vcmp.lt.s32.totalorder %v5774, 2
        %vm5776 = vcmp.eq.s32.totalorder %v5774, 0
        %v5777 = vxor.u32 %v5771, 2147483648
        %v5778 = vsel %vm5776, %v5770, %v5777
        %vm5779 = vcmp.eq.s32.totalorder %v5774, 2
        %v5780 = vxor.u32 %v5770, 2147483648
        %v5781 = vsel %vm5779, %v5780, %v5771
        %v5782 = vsel %vm5775, %v5778, %v5781
        %v5783 = vsel %vm5772, nan, %v5782
        %v5784 = vand.u32 2147483647, %v4104
        %vm5785 = vcmp.le.f32.partialorder %v5784, 0.7853982
        %vm5786 = vcmp.lt.s32.totalorder %v4104, 0
        %v5787 = vand.u32 %v4104, 2139095040
        %v5788 = vshrl.u32 %v5787, 23
        %v5789 = vsub.s32 %v5788, 127
        %v5790 = vand.u32 2147483647, %v4104
        %v5791 = vand.u32 %v5790, 8388607
        %v5792 = vor.u32 %v5791, 8388608
        %v5793 = vsub.s32 0, %v5792
        %v5794 = vadd.s32 %v5789, 1
        %vm5795 = vcmp.gt.s32.totalorder %v5794, 0
        %v5796 = vsel %vm5795, %v5794, 0
        %v5797 = vshrl.u32 %v5796, 5
        %v5798 = vand.u32 %v5796, 31
        %v5799 = vsub.s32 32, %v5798
        %v5800 = vshrl.u32 683565275, %v5799
        %v5801 = vshll.u32 683565275, %v5798
        %v5802 = vshrl.u32 2475754826, %v5799
        %v5803 = vor.u32 %v5801, %v5802
        %v5804 = vshll.u32 2475754826, %v5798
        %v5805 = vshrl.u32 2131351028, %v5799
        %v5806 = vor.u32 %v5804, %v5805
        %v5807 = vshll.u32 2131351028, %v5798
        %v5808 = vshrl.u32 2102212464, %v5799
        %v5809 = vor.u32 %v5807, %v5808
        %v5810 = vshll.u32 2102212464, %v5798
        %v5811 = vshrl.u32 920167782, %v5799
        %v5812 = vor.u32 %v5810, %v5811
        %v5813 = vshll.u32 920167782, %v5798
        %v5814 = vshrl.u32 1326507024, %v5799
        %v5815 = vor.u32 %v5813, %v5814
        %vm5816 = vcmp.lt.s32.totalorder %v5797, 1
        %vm5817 = vcmp.lt.s32.totalorder %v5797, 2
        %vm5818 = vcmp.lt.s32.totalorder %v5797, 3
        %vm5819 = vcmp.lt.s32.totalorder %v5797, 4
        %v5820 = vsel %vm5816, %v5800, %v5803
        %v5821 = vsel %vm5819, %v5809, 2102212464
        %v5822 = vsel %vm5818, %v5806, %v5821
        %v5823 = vsel %vm5817, %v5820, %v5822
        %v5824 = vsel %vm5816, %v5803, %v5806
        %v5825 = vsel %vm5819, %v5812, 920167782
        %v5826 = vsel %vm5818, %v5809, %v5825
        %v5827 = vsel %vm5817, %v5824, %v5826
        %v5828 = vsel %vm5816, %v5806, %v5809
        %v5829 = vsel %vm5819, %v5815, 1326507024
        %v5830 = vsel %vm5818, %v5812, %v5829
        %v5831 = vsel %vm5817, %v5828, %v5830
        %v5832 = vshll.u32 %v5792, 8
        %v5833 = vmul.u32.u64.compose %v5832, %v5831
        %v5834 = vextract.low.u32 %v5833
        %v5835 = vextract.high.u32 %v5833
        %v5836 = vmul.u32.u64.compose %v5832, %v5827
        %v5837 = vextract.low.u32 %v5836
        %v5838 = vextract.high.u32 %v5836
        %v5839 = vmul.u32 %v5832, %v5823
        %v5840 = vadd.s32 %v5835, %v5837
        %vm5841 = vc.u32 %v5835, %v5837
        %v5842 = vadd.s32 %v5838, 1
        %v5843 = vsel %vm5841, %v5842, %v5838
        %v5844 = vadd.s32 %v5839, %v5843
        %v5845 = vadd.s32 %v5844, 536870912
        %v5846 = vshrl.u32 %v5845, 30
        %v5847 = vshll.u32 %v5846, 30
        %v5848 = vsub.s32 %v5844, %v5847
        %vm5849 = vcmp.lt.s32.totalorder %v5848, 0
        %v5850 = vsub.s32 0, %v5848
        %v5851 = vsel %vm5849, %v5850, %v5848
        %v5852 = vclz %v5851
        %v5853 = vsub.s32 %v5852, 2
        %vm5854 = vcmp.gt.s32.totalorder 0, %v5853
        %v5855 = vsel %vm5854, 0, %v5853
        %v5856 = vsub.s32 32, %v5855
        %v5857 = vshll.u32 %v5848, %v5855
        %v5858 = vshrl.u32 %v5840, %v5856
        %v5859 = vor.u32 %v5857, %v5858
        %v5860 = vsub.s32 4294967266, %v5855
        %v5861 = vadd.s32 %v5860, 127
        %v5862 = vshll.u32 %v5861, 23
        %v5863 = vor.u32 4788187, %v5862
        %v5864 = vand.u32 2147483647, %v5863
        %v5866 = vcvt.s32.f32 %v5859
        %v5867 = vmul.f32 %v5866, %v5864
        %v5868 = vxor.u32 %v5867, 2147483648
        %v5869 = vsel %vm5786, %v5868, %v5867
        %v5870 = vsub.s32 4, %v5846
        %v5871 = vsel %vm5786, %v5870, %v5846
        %v5872 = vsel %vm5785, %v4104, %v5869
        %v5873 = vsel %vm5785, 0, %v5871
        %v5874 = vcosq.f32.pop %v5872
        %v5875 = vsinq.f32.pop %v5872
        %vm5876 = vweird.f32 %v4104
        %v5877 = vadd.s32 %v5873, 3
        %v5878 = vand.u32 %v5877, 3
        %vm5879 = vcmp.lt.s32.totalorder %v5878, 2
        %vm5880 = vcmp.eq.s32.totalorder %v5878, 0
        %v5881 = vxor.u32 %v5875, 2147483648
        %v5882 = vsel %vm5880, %v5874, %v5881
        %vm5883 = vcmp.eq.s32.totalorder %v5878, 2
        %v5884 = vxor.u32 %v5874, 2147483648
        %v5885 = vsel %vm5883, %v5884, %v5875
        %v5886 = vsel %vm5879, %v5882, %v5885
        %v5887 = vsel %vm5876, nan, %v5886
        %v5888 = vand.u32 2147483647, %v4105
        %vm5889 = vcmp.le.f32.partialorder %v5888, 0.7853982
        %vm5890 = vcmp.lt.s32.totalorder %v4105, 0
        %v5891 = vand.u32 %v4105, 2139095040
        %v5892 = vshrl.u32 %v5891, 23
        %v5893 = vsub.s32 %v5892, 127
        %v5894 = vand.u32 2147483647, %v4105
        %v5895 = vand.u32 %v5894, 8388607
        %v5896 = vor.u32 %v5895, 8388608
        %v5897 = vsub.s32 0, %v5896
        %v5898 = vadd.s32 %v5893, 1
        %vm5899 = vcmp.gt.s32.totalorder %v5898, 0
        %v5900 = vsel %vm5899, %v5898, 0
        %v5901 = vshrl.u32 %v5900, 5
        %v5902 = vand.u32 %v5900, 31
        %v5903 = vsub.s32 32, %v5902
        %v5904 = vshrl.u32 683565275, %v5903
        %v5905 = vshll.u32 683565275, %v5902
        %v5906 = vshrl.u32 2475754826, %v5903
        %v5907 = vor.u32 %v5905, %v5906
        %v5908 = vshll.u32 2475754826, %v5902
        %v5909 = vshrl.u32 2131351028, %v5903
        %v5910 = vor.u32 %v5908, %v5909
        %v5911 = vshll.u32 2131351028, %v5902
        %v5912 = vshrl.u32 2102212464, %v5903
        %v5913 = vor.u32 %v5911, %v5912
        %v5914 = vshll.u32 2102212464, %v5902
        %v5915 = vshrl.u32 920167782, %v5903
        %v5916 = vor.u32 %v5914, %v5915
        %v5917 = vshll.u32 920167782, %v5902
        %v5918 = vshrl.u32 1326507024, %v5903
        %v5919 = vor.u32 %v5917, %v5918
        %vm5920 = vcmp.lt.s32.totalorder %v5901, 1
        %vm5921 = vcmp.lt.s32.totalorder %v5901, 2
        %vm5922 = vcmp.lt.s32.totalorder %v5901, 3
        %vm5923 = vcmp.lt.s32.totalorder %v5901, 4
        %v5924 = vsel %vm5920, %v5904, %v5907
        %v5925 = vsel %vm5923, %v5913, 2102212464
        %v5926 = vsel %vm5922, %v5910, %v5925
        %v5927 = vsel %vm5921, %v5924, %v5926
        %v5928 = vsel %vm5920, %v5907, %v5910
        %v5929 = vsel %vm5923, %v5916, 920167782
        %v5930 = vsel %vm5922, %v5913, %v5929
        %v5931 = vsel %vm5921, %v5928, %v5930
        %v5932 = vsel %vm5920, %v5910, %v5913
        %v5933 = vsel %vm5923, %v5919, 1326507024
        %v5934 = vsel %vm5922, %v5916, %v5933
        %v5935 = vsel %vm5921, %v5932, %v5934
        %v5936 = vshll.u32 %v5896, 8
        %v5937 = vmul.u32.u64.compose %v5936, %v5935
        %v5938 = vextract.low.u32 %v5937
        %v5939 = vextract.high.u32 %v5937
        %v5940 = vmul.u32.u64.compose %v5936, %v5931
        %v5941 = vextract.low.u32 %v5940
        %v5942 = vextract.high.u32 %v5940
        %v5943 = vmul.u32 %v5936, %v5927
        %v5944 = vadd.s32 %v5939, %v5941
        %vm5945 = vc.u32 %v5939, %v5941
        %v5946 = vadd.s32 %v5942, 1
        %v5947 = vsel %vm5945, %v5946, %v5942
        %v5948 = vadd.s32 %v5943, %v5947
        %v5949 = vadd.s32 %v5948, 536870912
        %v5950 = vshrl.u32 %v5949, 30
        %v5951 = vshll.u32 %v5950, 30
        %v5952 = vsub.s32 %v5948, %v5951
        %vm5953 = vcmp.lt.s32.totalorder %v5952, 0
        %v5954 = vsub.s32 0, %v5952
        %v5955 = vsel %vm5953, %v5954, %v5952
        %v5956 = vclz %v5955
        %v5957 = vsub.s32 %v5956, 2
        %vm5958 = vcmp.gt.s32.totalorder 0, %v5957
        %v5959 = vsel %vm5958, 0, %v5957
        %v5960 = vsub.s32 32, %v5959
        %v5961 = vshll.u32 %v5952, %v5959
        %v5962 = vshrl.u32 %v5944, %v5960
        %v5963 = vor.u32 %v5961, %v5962
        %v5964 = vsub.s32 4294967266, %v5959
        %v5965 = vadd.s32 %v5964, 127
        %v5966 = vshll.u32 %v5965, 23
        %v5967 = vor.u32 4788187, %v5966
        %v5968 = vand.u32 2147483647, %v5967
        %v5970 = vcvt.s32.f32 %v5963
        %v5971 = vmul.f32 %v5970, %v5968
        %v5972 = vxor.u32 %v5971, 2147483648
        %v5973 = vsel %vm5890, %v5972, %v5971
        %v5974 = vsub.s32 4, %v5950
        %v5975 = vsel %vm5890, %v5974, %v5950
        %v5976 = vsel %vm5889, %v4105, %v5973
        %v5977 = vsel %vm5889, 0, %v5975
        %v5978 = vcosq.f32.pop %v5976
        %v5979 = vsinq.f32.pop %v5976
        %vm5980 = vweird.f32 %v4105
        %v5981 = vadd.s32 %v5977, 3
        %v5982 = vand.u32 %v5981, 3
        %vm5983 = vcmp.lt.s32.totalorder %v5982, 2
        %vm5984 = vcmp.eq.s32.totalorder %v5982, 0
        %v5985 = vxor.u32 %v5979, 2147483648
        %v5986 = vsel %vm5984, %v5978, %v5985
        %vm5987 = vcmp.eq.s32.totalorder %v5982, 2
        %v5988 = vxor.u32 %v5978, 2147483648
        %v5989 = vsel %vm5987, %v5988, %v5979
        %v5990 = vsel %vm5983, %v5986, %v5989
        %v5991 = vsel %vm5980, nan, %v5990
        %v5992 = vand.u32 2147483647, %v4106
        %vm5993 = vcmp.le.f32.partialorder %v5992, 0.7853982
        %vm5994 = vcmp.lt.s32.totalorder %v4106, 0
        %v5995 = vand.u32 %v4106, 2139095040
        %v5996 = vshrl.u32 %v5995, 23
        %v5997 = vsub.s32 %v5996, 127
        %v5998 = vand.u32 2147483647, %v4106
        %v5999 = vand.u32 %v5998, 8388607
        %v6000 = vor.u32 %v5999, 8388608
        %v6001 = vsub.s32 0, %v6000
        %v6002 = vadd.s32 %v5997, 1
        %vm6003 = vcmp.gt.s32.totalorder %v6002, 0
        %v6004 = vsel %vm6003, %v6002, 0
        %v6005 = vshrl.u32 %v6004, 5
        %v6006 = vand.u32 %v6004, 31
        %v6007 = vsub.s32 32, %v6006
        %v6008 = vshrl.u32 683565275, %v6007
        %v6009 = vshll.u32 683565275, %v6006
        %v6010 = vshrl.u32 2475754826, %v6007
        %v6011 = vor.u32 %v6009, %v6010
        %v6012 = vshll.u32 2475754826, %v6006
        %v6013 = vshrl.u32 2131351028, %v6007
        %v6014 = vor.u32 %v6012, %v6013
        %v6015 = vshll.u32 2131351028, %v6006
        %v6016 = vshrl.u32 2102212464, %v6007
        %v6017 = vor.u32 %v6015, %v6016
        %v6018 = vshll.u32 2102212464, %v6006
        %v6019 = vshrl.u32 920167782, %v6007
        %v6020 = vor.u32 %v6018, %v6019
        %v6021 = vshll.u32 920167782, %v6006
        %v6022 = vshrl.u32 1326507024, %v6007
        %v6023 = vor.u32 %v6021, %v6022
        %vm6024 = vcmp.lt.s32.totalorder %v6005, 1
        %vm6025 = vcmp.lt.s32.totalorder %v6005, 2
        %vm6026 = vcmp.lt.s32.totalorder %v6005, 3
        %vm6027 = vcmp.lt.s32.totalorder %v6005, 4
        %v6028 = vsel %vm6024, %v6008, %v6011
        %v6029 = vsel %vm6027, %v6017, 2102212464
        %v6030 = vsel %vm6026, %v6014, %v6029
        %v6031 = vsel %vm6025, %v6028, %v6030
        %v6032 = vsel %vm6024, %v6011, %v6014
        %v6033 = vsel %vm6027, %v6020, 920167782
        %v6034 = vsel %vm6026, %v6017, %v6033
        %v6035 = vsel %vm6025, %v6032, %v6034
        %v6036 = vsel %vm6024, %v6014, %v6017
        %v6037 = vsel %vm6027, %v6023, 1326507024
        %v6038 = vsel %vm6026, %v6020, %v6037
        %v6039 = vsel %vm6025, %v6036, %v6038
        %v6040 = vshll.u32 %v6000, 8
        %v6041 = vmul.u32.u64.compose %v6040, %v6039
        %v6042 = vextract.low.u32 %v6041
        %v6043 = vextract.high.u32 %v6041
        %v6044 = vmul.u32.u64.compose %v6040, %v6035
        %v6045 = vextract.low.u32 %v6044
        %v6046 = vextract.high.u32 %v6044
        %v6047 = vmul.u32 %v6040, %v6031
        %v6048 = vadd.s32 %v6043, %v6045
        %vm6049 = vc.u32 %v6043, %v6045
        %v6050 = vadd.s32 %v6046, 1
        %v6051 = vsel %vm6049, %v6050, %v6046
        %v6052 = vadd.s32 %v6047, %v6051
        %v6053 = vadd.s32 %v6052, 536870912
        %v6054 = vshrl.u32 %v6053, 30
        %v6055 = vshll.u32 %v6054, 30
        %v6056 = vsub.s32 %v6052, %v6055
        %vm6057 = vcmp.lt.s32.totalorder %v6056, 0
        %v6058 = vsub.s32 0, %v6056
        %v6059 = vsel %vm6057, %v6058, %v6056
        %v6060 = vclz %v6059
        %v6061 = vsub.s32 %v6060, 2
        %vm6062 = vcmp.gt.s32.totalorder 0, %v6061
        %v6063 = vsel %vm6062, 0, %v6061
        %v6064 = vsub.s32 32, %v6063
        %v6065 = vshll.u32 %v6056, %v6063
        %v6066 = vshrl.u32 %v6048, %v6064
        %v6067 = vor.u32 %v6065, %v6066
        %v6068 = vsub.s32 4294967266, %v6063
        %v6069 = vadd.s32 %v6068, 127
        %v6070 = vshll.u32 %v6069, 23
        %v6071 = vor.u32 4788187, %v6070
        %v6072 = vand.u32 2147483647, %v6071
        %v6074 = vcvt.s32.f32 %v6067
        %v6075 = vmul.f32 %v6074, %v6072
        %v6076 = vxor.u32 %v6075, 2147483648
        %v6077 = vsel %vm5994, %v6076, %v6075
        %v6078 = vsub.s32 4, %v6054
        %v6079 = vsel %vm5994, %v6078, %v6054
        %v6080 = vsel %vm5993, %v4106, %v6077
        %v6081 = vsel %vm5993, 0, %v6079
        %v6082 = vcosq.f32.pop %v6080
        %v6083 = vsinq.f32.pop %v6080
        %vm6084 = vweird.f32 %v4106
        %v6085 = vadd.s32 %v6081, 3
        %v6086 = vand.u32 %v6085, 3
        %vm6087 = vcmp.lt.s32.totalorder %v6086, 2
        %vm6088 = vcmp.eq.s32.totalorder %v6086, 0
        %v6089 = vxor.u32 %v6083, 2147483648
        %v6090 = vsel %vm6088, %v6082, %v6089
        %vm6091 = vcmp.eq.s32.totalorder %v6086, 2
        %v6092 = vxor.u32 %v6082, 2147483648
        %v6093 = vsel %vm6091, %v6092, %v6083
        %v6094 = vsel %vm6087, %v6090, %v6093
        %v6095 = vsel %vm6084, nan, %v6094
        %v6096 = vand.u32 2147483647, %v4107
        %vm6097 = vcmp.le.f32.partialorder %v6096, 0.7853982
        %vm6098 = vcmp.lt.s32.totalorder %v4107, 0
        %v6099 = vand.u32 %v4107, 2139095040
        %v6100 = vshrl.u32 %v6099, 23
        %v6101 = vsub.s32 %v6100, 127
        %v6102 = vand.u32 2147483647, %v4107
        %v6103 = vand.u32 %v6102, 8388607
        %v6104 = vor.u32 %v6103, 8388608
        %v6105 = vsub.s32 0, %v6104
        %v6106 = vadd.s32 %v6101, 1
        %vm6107 = vcmp.gt.s32.totalorder %v6106, 0
        %v6108 = vsel %vm6107, %v6106, 0
        %v6109 = vshrl.u32 %v6108, 5
        %v6110 = vand.u32 %v6108, 31
        %v6111 = vsub.s32 32, %v6110
        %v6112 = vshrl.u32 683565275, %v6111
        %v6113 = vshll.u32 683565275, %v6110
        %v6114 = vshrl.u32 2475754826, %v6111
        %v6115 = vor.u32 %v6113, %v6114
        %v6116 = vshll.u32 2475754826, %v6110
        %v6117 = vshrl.u32 2131351028, %v6111
        %v6118 = vor.u32 %v6116, %v6117
        %v6119 = vshll.u32 2131351028, %v6110
        %v6120 = vshrl.u32 2102212464, %v6111
        %v6121 = vor.u32 %v6119, %v6120
        %v6122 = vshll.u32 2102212464, %v6110
        %v6123 = vshrl.u32 920167782, %v6111
        %v6124 = vor.u32 %v6122, %v6123
        %v6125 = vshll.u32 920167782, %v6110
        %v6126 = vshrl.u32 1326507024, %v6111
        %v6127 = vor.u32 %v6125, %v6126
        %vm6128 = vcmp.lt.s32.totalorder %v6109, 1
        %vm6129 = vcmp.lt.s32.totalorder %v6109, 2
        %vm6130 = vcmp.lt.s32.totalorder %v6109, 3
        %vm6131 = vcmp.lt.s32.totalorder %v6109, 4
        %v6132 = vsel %vm6128, %v6112, %v6115
        %v6133 = vsel %vm6131, %v6121, 2102212464
        %v6134 = vsel %vm6130, %v6118, %v6133
        %v6135 = vsel %vm6129, %v6132, %v6134
        %v6136 = vsel %vm6128, %v6115, %v6118
        %v6137 = vsel %vm6131, %v6124, 920167782
        %v6138 = vsel %vm6130, %v6121, %v6137
        %v6139 = vsel %vm6129, %v6136, %v6138
        %v6140 = vsel %vm6128, %v6118, %v6121
        %v6141 = vsel %vm6131, %v6127, 1326507024
        %v6142 = vsel %vm6130, %v6124, %v6141
        %v6143 = vsel %vm6129, %v6140, %v6142
        %v6144 = vshll.u32 %v6104, 8
        %v6145 = vmul.u32.u64.compose %v6144, %v6143
        %v6146 = vextract.low.u32 %v6145
        %v6147 = vextract.high.u32 %v6145
        %v6148 = vmul.u32.u64.compose %v6144, %v6139
        %v6149 = vextract.low.u32 %v6148
        %v6150 = vextract.high.u32 %v6148
        %v6151 = vmul.u32 %v6144, %v6135
        %v6152 = vadd.s32 %v6147, %v6149
        %vm6153 = vc.u32 %v6147, %v6149
        %v6154 = vadd.s32 %v6150, 1
        %v6155 = vsel %vm6153, %v6154, %v6150
        %v6156 = vadd.s32 %v6151, %v6155
        %v6157 = vadd.s32 %v6156, 536870912
        %v6158 = vshrl.u32 %v6157, 30
        %v6159 = vshll.u32 %v6158, 30
        %v6160 = vsub.s32 %v6156, %v6159
        %vm6161 = vcmp.lt.s32.totalorder %v6160, 0
        %v6162 = vsub.s32 0, %v6160
        %v6163 = vsel %vm6161, %v6162, %v6160
        %v6164 = vclz %v6163
        %v6165 = vsub.s32 %v6164, 2
        %vm6166 = vcmp.gt.s32.totalorder 0, %v6165
        %v6167 = vsel %vm6166, 0, %v6165
        %v6168 = vsub.s32 32, %v6167
        %v6169 = vshll.u32 %v6160, %v6167
        %v6170 = vshrl.u32 %v6152, %v6168
        %v6171 = vor.u32 %v6169, %v6170
        %v6172 = vsub.s32 4294967266, %v6167
        %v6173 = vadd.s32 %v6172, 127
        %v6174 = vshll.u32 %v6173, 23
        %v6175 = vor.u32 4788187, %v6174
        %v6176 = vand.u32 2147483647, %v6175
        %v6178 = vcvt.s32.f32 %v6171
        %v6179 = vmul.f32 %v6178, %v6176
        %v6180 = vxor.u32 %v6179, 2147483648
        %v6181 = vsel %vm6098, %v6180, %v6179
        %v6182 = vsub.s32 4, %v6158
        %v6183 = vsel %vm6098, %v6182, %v6158
        %v6184 = vsel %vm6097, %v4107, %v6181
        %v6185 = vsel %vm6097, 0, %v6183
        %v6186 = vcosq.f32.pop %v6184
        %v6187 = vsinq.f32.pop %v6184
        %vm6188 = vweird.f32 %v4107
        %v6189 = vadd.s32 %v6185, 3
        %v6190 = vand.u32 %v6189, 3
        %vm6191 = vcmp.lt.s32.totalorder %v6190, 2
        %vm6192 = vcmp.eq.s32.totalorder %v6190, 0
        %v6193 = vxor.u32 %v6187, 2147483648
        %v6194 = vsel %vm6192, %v6186, %v6193
        %vm6195 = vcmp.eq.s32.totalorder %v6190, 2
        %v6196 = vxor.u32 %v6186, 2147483648
        %v6197 = vsel %vm6195, %v6196, %v6187
        %v6198 = vsel %vm6191, %v6194, %v6197
        %v6199 = vsel %vm6188, nan, %v6198
        %v6200 = vand.u32 2147483647, %v4108
        %vm6201 = vcmp.le.f32.partialorder %v6200, 0.7853982
        %vm6202 = vcmp.lt.s32.totalorder %v4108, 0
        %v6203 = vand.u32 %v4108, 2139095040
        %v6204 = vshrl.u32 %v6203, 23
        %v6205 = vsub.s32 %v6204, 127
        %v6206 = vand.u32 2147483647, %v4108
        %v6207 = vand.u32 %v6206, 8388607
        %v6208 = vor.u32 %v6207, 8388608
        %v6209 = vsub.s32 0, %v6208
        %v6210 = vadd.s32 %v6205, 1
        %vm6211 = vcmp.gt.s32.totalorder %v6210, 0
        %v6212 = vsel %vm6211, %v6210, 0
        %v6213 = vshrl.u32 %v6212, 5
        %v6214 = vand.u32 %v6212, 31
        %v6215 = vsub.s32 32, %v6214
        %v6216 = vshrl.u32 683565275, %v6215
        %v6217 = vshll.u32 683565275, %v6214
        %v6218 = vshrl.u32 2475754826, %v6215
        %v6219 = vor.u32 %v6217, %v6218
        %v6220 = vshll.u32 2475754826, %v6214
        %v6221 = vshrl.u32 2131351028, %v6215
        %v6222 = vor.u32 %v6220, %v6221
        %v6223 = vshll.u32 2131351028, %v6214
        %v6224 = vshrl.u32 2102212464, %v6215
        %v6225 = vor.u32 %v6223, %v6224
        %v6226 = vshll.u32 2102212464, %v6214
        %v6227 = vshrl.u32 920167782, %v6215
        %v6228 = vor.u32 %v6226, %v6227
        %v6229 = vshll.u32 920167782, %v6214
        %v6230 = vshrl.u32 1326507024, %v6215
        %v6231 = vor.u32 %v6229, %v6230
        %vm6232 = vcmp.lt.s32.totalorder %v6213, 1
        %vm6233 = vcmp.lt.s32.totalorder %v6213, 2
        %vm6234 = vcmp.lt.s32.totalorder %v6213, 3
        %vm6235 = vcmp.lt.s32.totalorder %v6213, 4
        %v6236 = vsel %vm6232, %v6216, %v6219
        %v6237 = vsel %vm6235, %v6225, 2102212464
        %v6238 = vsel %vm6234, %v6222, %v6237
        %v6239 = vsel %vm6233, %v6236, %v6238
        %v6240 = vsel %vm6232, %v6219, %v6222
        %v6241 = vsel %vm6235, %v6228, 920167782
        %v6242 = vsel %vm6234, %v6225, %v6241
        %v6243 = vsel %vm6233, %v6240, %v6242
        %v6244 = vsel %vm6232, %v6222, %v6225
        %v6245 = vsel %vm6235, %v6231, 1326507024
        %v6246 = vsel %vm6234, %v6228, %v6245
        %v6247 = vsel %vm6233, %v6244, %v6246
        %v6248 = vshll.u32 %v6208, 8
        %v6249 = vmul.u32.u64.compose %v6248, %v6247
        %v6250 = vextract.low.u32 %v6249
        %v6251 = vextract.high.u32 %v6249
        %v6252 = vmul.u32.u64.compose %v6248, %v6243
        %v6253 = vextract.low.u32 %v6252
        %v6254 = vextract.high.u32 %v6252
        %v6255 = vmul.u32 %v6248, %v6239
        %v6256 = vadd.s32 %v6251, %v6253
        %vm6257 = vc.u32 %v6251, %v6253
        %v6258 = vadd.s32 %v6254, 1
        %v6259 = vsel %vm6257, %v6258, %v6254
        %v6260 = vadd.s32 %v6255, %v6259
        %v6261 = vadd.s32 %v6260, 536870912
        %v6262 = vshrl.u32 %v6261, 30
        %v6263 = vshll.u32 %v6262, 30
        %v6264 = vsub.s32 %v6260, %v6263
        %vm6265 = vcmp.lt.s32.totalorder %v6264, 0
        %v6266 = vsub.s32 0, %v6264
        %v6267 = vsel %vm6265, %v6266, %v6264
        %v6268 = vclz %v6267
        %v6269 = vsub.s32 %v6268, 2
        %vm6270 = vcmp.gt.s32.totalorder 0, %v6269
        %v6271 = vsel %vm6270, 0, %v6269
        %v6272 = vsub.s32 32, %v6271
        %v6273 = vshll.u32 %v6264, %v6271
        %v6274 = vshrl.u32 %v6256, %v6272
        %v6275 = vor.u32 %v6273, %v6274
        %v6276 = vsub.s32 4294967266, %v6271
        %v6277 = vadd.s32 %v6276, 127
        %v6278 = vshll.u32 %v6277, 23
        %v6279 = vor.u32 4788187, %v6278
        %v6280 = vand.u32 2147483647, %v6279
        %v6282 = vcvt.s32.f32 %v6275
        %v6283 = vmul.f32 %v6282, %v6280
        %v6284 = vxor.u32 %v6283, 2147483648
        %v6285 = vsel %vm6202, %v6284, %v6283
        %v6286 = vsub.s32 4, %v6262
        %v6287 = vsel %vm6202, %v6286, %v6262
        %v6288 = vsel %vm6201, %v4108, %v6285
        %v6289 = vsel %vm6201, 0, %v6287
        %v6290 = vcosq.f32.pop %v6288
        %v6291 = vsinq.f32.pop %v6288
        %vm6292 = vweird.f32 %v4108
        %v6293 = vadd.s32 %v6289, 3
        %v6294 = vand.u32 %v6293, 3
        %vm6295 = vcmp.lt.s32.totalorder %v6294, 2
        %vm6296 = vcmp.eq.s32.totalorder %v6294, 0
        %v6297 = vxor.u32 %v6291, 2147483648
        %v6298 = vsel %vm6296, %v6290, %v6297
        %vm6299 = vcmp.eq.s32.totalorder %v6294, 2
        %v6300 = vxor.u32 %v6290, 2147483648
        %v6301 = vsel %vm6299, %v6300, %v6291
        %v6302 = vsel %vm6295, %v6298, %v6301
        %v6303 = vsel %vm6292, nan, %v6302
        %v6304 = vand.u32 2147483647, %v4109
        %vm6305 = vcmp.le.f32.partialorder %v6304, 0.7853982
        %vm6306 = vcmp.lt.s32.totalorder %v4109, 0
        %v6307 = vand.u32 %v4109, 2139095040
        %v6308 = vshrl.u32 %v6307, 23
        %v6309 = vsub.s32 %v6308, 127
        %v6310 = vand.u32 2147483647, %v4109
        %v6311 = vand.u32 %v6310, 8388607
        %v6312 = vor.u32 %v6311, 8388608
        %v6313 = vsub.s32 0, %v6312
        %v6314 = vadd.s32 %v6309, 1
        %vm6315 = vcmp.gt.s32.totalorder %v6314, 0
        %v6316 = vsel %vm6315, %v6314, 0
        %v6317 = vshrl.u32 %v6316, 5
        %v6318 = vand.u32 %v6316, 31
        %v6319 = vsub.s32 32, %v6318
        %v6320 = vshrl.u32 683565275, %v6319
        %v6321 = vshll.u32 683565275, %v6318
        %v6322 = vshrl.u32 2475754826, %v6319
        %v6323 = vor.u32 %v6321, %v6322
        %v6324 = vshll.u32 2475754826, %v6318
        %v6325 = vshrl.u32 2131351028, %v6319
        %v6326 = vor.u32 %v6324, %v6325
        %v6327 = vshll.u32 2131351028, %v6318
        %v6328 = vshrl.u32 2102212464, %v6319
        %v6329 = vor.u32 %v6327, %v6328
        %v6330 = vshll.u32 2102212464, %v6318
        %v6331 = vshrl.u32 920167782, %v6319
        %v6332 = vor.u32 %v6330, %v6331
        %v6333 = vshll.u32 920167782, %v6318
        %v6334 = vshrl.u32 1326507024, %v6319
        %v6335 = vor.u32 %v6333, %v6334
        %vm6336 = vcmp.lt.s32.totalorder %v6317, 1
        %vm6337 = vcmp.lt.s32.totalorder %v6317, 2
        %vm6338 = vcmp.lt.s32.totalorder %v6317, 3
        %vm6339 = vcmp.lt.s32.totalorder %v6317, 4
        %v6340 = vsel %vm6336, %v6320, %v6323
        %v6341 = vsel %vm6339, %v6329, 2102212464
        %v6342 = vsel %vm6338, %v6326, %v6341
        %v6343 = vsel %vm6337, %v6340, %v6342
        %v6344 = vsel %vm6336, %v6323, %v6326
        %v6345 = vsel %vm6339, %v6332, 920167782
        %v6346 = vsel %vm6338, %v6329, %v6345
        %v6347 = vsel %vm6337, %v6344, %v6346
        %v6348 = vsel %vm6336, %v6326, %v6329
        %v6349 = vsel %vm6339, %v6335, 1326507024
        %v6350 = vsel %vm6338, %v6332, %v6349
        %v6351 = vsel %vm6337, %v6348, %v6350
        %v6352 = vshll.u32 %v6312, 8
        %v6353 = vmul.u32.u64.compose %v6352, %v6351
        %v6354 = vextract.low.u32 %v6353
        %v6355 = vextract.high.u32 %v6353
        %v6356 = vmul.u32.u64.compose %v6352, %v6347
        %v6357 = vextract.low.u32 %v6356
        %v6358 = vextract.high.u32 %v6356
        %v6359 = vmul.u32 %v6352, %v6343
        %v6360 = vadd.s32 %v6355, %v6357
        %vm6361 = vc.u32 %v6355, %v6357
        %v6362 = vadd.s32 %v6358, 1
        %v6363 = vsel %vm6361, %v6362, %v6358
        %v6364 = vadd.s32 %v6359, %v6363
        %v6365 = vadd.s32 %v6364, 536870912
        %v6366 = vshrl.u32 %v6365, 30
        %v6367 = vshll.u32 %v6366, 30
        %v6368 = vsub.s32 %v6364, %v6367
        %vm6369 = vcmp.lt.s32.totalorder %v6368, 0
        %v6370 = vsub.s32 0, %v6368
        %v6371 = vsel %vm6369, %v6370, %v6368
        %v6372 = vclz %v6371
        %v6373 = vsub.s32 %v6372, 2
        %vm6374 = vcmp.gt.s32.totalorder 0, %v6373
        %v6375 = vsel %vm6374, 0, %v6373
        %v6376 = vsub.s32 32, %v6375
        %v6377 = vshll.u32 %v6368, %v6375
        %v6378 = vshrl.u32 %v6360, %v6376
        %v6379 = vor.u32 %v6377, %v6378
        %v6380 = vsub.s32 4294967266, %v6375
        %v6381 = vadd.s32 %v6380, 127
        %v6382 = vshll.u32 %v6381, 23
        %v6383 = vor.u32 4788187, %v6382
        %v6384 = vand.u32 2147483647, %v6383
        %v6386 = vcvt.s32.f32 %v6379
        %v6387 = vmul.f32 %v6386, %v6384
        %v6388 = vxor.u32 %v6387, 2147483648
        %v6389 = vsel %vm6306, %v6388, %v6387
        %v6390 = vsub.s32 4, %v6366
        %v6391 = vsel %vm6306, %v6390, %v6366
        %v6392 = vsel %vm6305, %v4109, %v6389
        %v6393 = vsel %vm6305, 0, %v6391
        %v6394 = vcosq.f32.pop %v6392
        %v6395 = vsinq.f32.pop %v6392
        %vm6396 = vweird.f32 %v4109
        %v6397 = vadd.s32 %v6393, 3
        %v6398 = vand.u32 %v6397, 3
        %vm6399 = vcmp.lt.s32.totalorder %v6398, 2
        %vm6400 = vcmp.eq.s32.totalorder %v6398, 0
        %v6401 = vxor.u32 %v6395, 2147483648
        %v6402 = vsel %vm6400, %v6394, %v6401
        %vm6403 = vcmp.eq.s32.totalorder %v6398, 2
        %v6404 = vxor.u32 %v6394, 2147483648
        %v6405 = vsel %vm6403, %v6404, %v6395
        %v6406 = vsel %vm6399, %v6402, %v6405
        %v6407 = vsel %vm6396, nan, %v6406
        %v6408 = vand.u32 2147483647, %v4110
        %vm6409 = vcmp.le.f32.partialorder %v6408, 0.7853982
        %vm6410 = vcmp.lt.s32.totalorder %v4110, 0
        %v6411 = vand.u32 %v4110, 2139095040
        %v6412 = vshrl.u32 %v6411, 23
        %v6413 = vsub.s32 %v6412, 127
        %v6414 = vand.u32 2147483647, %v4110
        %v6415 = vand.u32 %v6414, 8388607
        %v6416 = vor.u32 %v6415, 8388608
        %v6417 = vsub.s32 0, %v6416
        %v6418 = vadd.s32 %v6413, 1
        %vm6419 = vcmp.gt.s32.totalorder %v6418, 0
        %v6420 = vsel %vm6419, %v6418, 0
        %v6421 = vshrl.u32 %v6420, 5
        %v6422 = vand.u32 %v6420, 31
        %v6423 = vsub.s32 32, %v6422
        %v6424 = vshrl.u32 683565275, %v6423
        %v6425 = vshll.u32 683565275, %v6422
        %v6426 = vshrl.u32 2475754826, %v6423
        %v6427 = vor.u32 %v6425, %v6426
        %v6428 = vshll.u32 2475754826, %v6422
        %v6429 = vshrl.u32 2131351028, %v6423
        %v6430 = vor.u32 %v6428, %v6429
        %v6431 = vshll.u32 2131351028, %v6422
        %v6432 = vshrl.u32 2102212464, %v6423
        %v6433 = vor.u32 %v6431, %v6432
        %v6434 = vshll.u32 2102212464, %v6422
        %v6435 = vshrl.u32 920167782, %v6423
        %v6436 = vor.u32 %v6434, %v6435
        %v6437 = vshll.u32 920167782, %v6422
        %v6438 = vshrl.u32 1326507024, %v6423
        %v6439 = vor.u32 %v6437, %v6438
        %vm6440 = vcmp.lt.s32.totalorder %v6421, 1
        %vm6441 = vcmp.lt.s32.totalorder %v6421, 2
        %vm6442 = vcmp.lt.s32.totalorder %v6421, 3
        %vm6443 = vcmp.lt.s32.totalorder %v6421, 4
        %v6444 = vsel %vm6440, %v6424, %v6427
        %v6445 = vsel %vm6443, %v6433, 2102212464
        %v6446 = vsel %vm6442, %v6430, %v6445
        %v6447 = vsel %vm6441, %v6444, %v6446
        %v6448 = vsel %vm6440, %v6427, %v6430
        %v6449 = vsel %vm6443, %v6436, 920167782
        %v6450 = vsel %vm6442, %v6433, %v6449
        %v6451 = vsel %vm6441, %v6448, %v6450
        %v6452 = vsel %vm6440, %v6430, %v6433
        %v6453 = vsel %vm6443, %v6439, 1326507024
        %v6454 = vsel %vm6442, %v6436, %v6453
        %v6455 = vsel %vm6441, %v6452, %v6454
        %v6456 = vshll.u32 %v6416, 8
        %v6457 = vmul.u32.u64.compose %v6456, %v6455
        %v6458 = vextract.low.u32 %v6457
        %v6459 = vextract.high.u32 %v6457
        %v6460 = vmul.u32.u64.compose %v6456, %v6451
        %v6461 = vextract.low.u32 %v6460
        %v6462 = vextract.high.u32 %v6460
        %v6463 = vmul.u32 %v6456, %v6447
        %v6464 = vadd.s32 %v6459, %v6461
        %vm6465 = vc.u32 %v6459, %v6461
        %v6466 = vadd.s32 %v6462, 1
        %v6467 = vsel %vm6465, %v6466, %v6462
        %v6468 = vadd.s32 %v6463, %v6467
        %v6469 = vadd.s32 %v6468, 536870912
        %v6470 = vshrl.u32 %v6469, 30
        %v6471 = vshll.u32 %v6470, 30
        %v6472 = vsub.s32 %v6468, %v6471
        %vm6473 = vcmp.lt.s32.totalorder %v6472, 0
        %v6474 = vsub.s32 0, %v6472
        %v6475 = vsel %vm6473, %v6474, %v6472
        %v6476 = vclz %v6475
        %v6477 = vsub.s32 %v6476, 2
        %vm6478 = vcmp.gt.s32.totalorder 0, %v6477
        %v6479 = vsel %vm6478, 0, %v6477
        %v6480 = vsub.s32 32, %v6479
        %v6481 = vshll.u32 %v6472, %v6479
        %v6482 = vshrl.u32 %v6464, %v6480
        %v6483 = vor.u32 %v6481, %v6482
        %v6484 = vsub.s32 4294967266, %v6479
        %v6485 = vadd.s32 %v6484, 127
        %v6486 = vshll.u32 %v6485, 23
        %v6487 = vor.u32 4788187, %v6486
        %v6488 = vand.u32 2147483647, %v6487
        %v6490 = vcvt.s32.f32 %v6483
        %v6491 = vmul.f32 %v6490, %v6488
        %v6492 = vxor.u32 %v6491, 2147483648
        %v6493 = vsel %vm6410, %v6492, %v6491
        %v6494 = vsub.s32 4, %v6470
        %v6495 = vsel %vm6410, %v6494, %v6470
        %v6496 = vsel %vm6409, %v4110, %v6493
        %v6497 = vsel %vm6409, 0, %v6495
        %v6498 = vcosq.f32.pop %v6496
        %v6499 = vsinq.f32.pop %v6496
        %vm6500 = vweird.f32 %v4110
        %v6501 = vadd.s32 %v6497, 3
        %v6502 = vand.u32 %v6501, 3
        %vm6503 = vcmp.lt.s32.totalorder %v6502, 2
        %vm6504 = vcmp.eq.s32.totalorder %v6502, 0
        %v6505 = vxor.u32 %v6499, 2147483648
        %v6506 = vsel %vm6504, %v6498, %v6505
        %vm6507 = vcmp.eq.s32.totalorder %v6502, 2
        %v6508 = vxor.u32 %v6498, 2147483648
        %v6509 = vsel %vm6507, %v6508, %v6499
        %v6510 = vsel %vm6503, %v6506, %v6509
        %v6511 = vsel %vm6500, nan, %v6510
        %v6512 = vand.u32 2147483647, %v4111
        %vm6513 = vcmp.le.f32.partialorder %v6512, 0.7853982
        %vm6514 = vcmp.lt.s32.totalorder %v4111, 0
        %v6515 = vand.u32 %v4111, 2139095040
        %v6516 = vshrl.u32 %v6515, 23
        %v6517 = vsub.s32 %v6516, 127
        %v6518 = vand.u32 2147483647, %v4111
        %v6519 = vand.u32 %v6518, 8388607
        %v6520 = vor.u32 %v6519, 8388608
        %v6521 = vsub.s32 0, %v6520
        %v6522 = vadd.s32 %v6517, 1
        %vm6523 = vcmp.gt.s32.totalorder %v6522, 0
        %v6524 = vsel %vm6523, %v6522, 0
        %v6525 = vshrl.u32 %v6524, 5
        %v6526 = vand.u32 %v6524, 31
        %v6527 = vsub.s32 32, %v6526
        %v6528 = vshrl.u32 683565275, %v6527
        %v6529 = vshll.u32 683565275, %v6526
        %v6530 = vshrl.u32 2475754826, %v6527
        %v6531 = vor.u32 %v6529, %v6530
        %v6532 = vshll.u32 2475754826, %v6526
        %v6533 = vshrl.u32 2131351028, %v6527
        %v6534 = vor.u32 %v6532, %v6533
        %v6535 = vshll.u32 2131351028, %v6526
        %v6536 = vshrl.u32 2102212464, %v6527
        %v6537 = vor.u32 %v6535, %v6536
        %v6538 = vshll.u32 2102212464, %v6526
        %v6539 = vshrl.u32 920167782, %v6527
        %v6540 = vor.u32 %v6538, %v6539
        %v6541 = vshll.u32 920167782, %v6526
        %v6542 = vshrl.u32 1326507024, %v6527
        %v6543 = vor.u32 %v6541, %v6542
        %vm6544 = vcmp.lt.s32.totalorder %v6525, 1
        %vm6545 = vcmp.lt.s32.totalorder %v6525, 2
        %vm6546 = vcmp.lt.s32.totalorder %v6525, 3
        %vm6547 = vcmp.lt.s32.totalorder %v6525, 4
        %v6548 = vsel %vm6544, %v6528, %v6531
        %v6549 = vsel %vm6547, %v6537, 2102212464
        %v6550 = vsel %vm6546, %v6534, %v6549
        %v6551 = vsel %vm6545, %v6548, %v6550
        %v6552 = vsel %vm6544, %v6531, %v6534
        %v6553 = vsel %vm6547, %v6540, 920167782
        %v6554 = vsel %vm6546, %v6537, %v6553
        %v6555 = vsel %vm6545, %v6552, %v6554
        %v6556 = vsel %vm6544, %v6534, %v6537
        %v6557 = vsel %vm6547, %v6543, 1326507024
        %v6558 = vsel %vm6546, %v6540, %v6557
        %v6559 = vsel %vm6545, %v6556, %v6558
        %v6560 = vshll.u32 %v6520, 8
        %v6561 = vmul.u32.u64.compose %v6560, %v6559
        %v6562 = vextract.low.u32 %v6561
        %v6563 = vextract.high.u32 %v6561
        %v6564 = vmul.u32.u64.compose %v6560, %v6555
        %v6565 = vextract.low.u32 %v6564
        %v6566 = vextract.high.u32 %v6564
        %v6567 = vmul.u32 %v6560, %v6551
        %v6568 = vadd.s32 %v6563, %v6565
        %vm6569 = vc.u32 %v6563, %v6565
        %v6570 = vadd.s32 %v6566, 1
        %v6571 = vsel %vm6569, %v6570, %v6566
        %v6572 = vadd.s32 %v6567, %v6571
        %v6573 = vadd.s32 %v6572, 536870912
        %v6574 = vshrl.u32 %v6573, 30
        %v6575 = vshll.u32 %v6574, 30
        %v6576 = vsub.s32 %v6572, %v6575
        %vm6577 = vcmp.lt.s32.totalorder %v6576, 0
        %v6578 = vsub.s32 0, %v6576
        %v6579 = vsel %vm6577, %v6578, %v6576
        %v6580 = vclz %v6579
        %v6581 = vsub.s32 %v6580, 2
        %vm6582 = vcmp.gt.s32.totalorder 0, %v6581
        %v6583 = vsel %vm6582, 0, %v6581
        %v6584 = vsub.s32 32, %v6583
        %v6585 = vshll.u32 %v6576, %v6583
        %v6586 = vshrl.u32 %v6568, %v6584
        %v6587 = vor.u32 %v6585, %v6586
        %v6588 = vsub.s32 4294967266, %v6583
        %v6589 = vadd.s32 %v6588, 127
        %v6590 = vshll.u32 %v6589, 23
        %v6591 = vor.u32 4788187, %v6590
        %v6592 = vand.u32 2147483647, %v6591
        %v6594 = vcvt.s32.f32 %v6587
        %v6595 = vmul.f32 %v6594, %v6592
        %v6596 = vxor.u32 %v6595, 2147483648
        %v6597 = vsel %vm6514, %v6596, %v6595
        %v6598 = vsub.s32 4, %v6574
        %v6599 = vsel %vm6514, %v6598, %v6574
        %v6600 = vsel %vm6513, %v4111, %v6597
        %v6601 = vsel %vm6513, 0, %v6599
        %v6602 = vcosq.f32.pop %v6600
        %v6603 = vsinq.f32.pop %v6600
        %vm6604 = vweird.f32 %v4111
        %v6605 = vadd.s32 %v6601, 3
        %v6606 = vand.u32 %v6605, 3
        %vm6607 = vcmp.lt.s32.totalorder %v6606, 2
        %vm6608 = vcmp.eq.s32.totalorder %v6606, 0
        %v6609 = vxor.u32 %v6603, 2147483648
        %v6610 = vsel %vm6608, %v6602, %v6609
        %vm6611 = vcmp.eq.s32.totalorder %v6606, 2
        %v6612 = vxor.u32 %v6602, 2147483648
        %v6613 = vsel %vm6611, %v6612, %v6603
        %v6614 = vsel %vm6607, %v6610, %v6613
        %v6615 = vsel %vm6604, nan, %v6614
        %v6616 = vand.u32 2147483647, %v4112
        %vm6617 = vcmp.le.f32.partialorder %v6616, 0.7853982
        %vm6618 = vcmp.lt.s32.totalorder %v4112, 0
        %v6619 = vand.u32 %v4112, 2139095040
        %v6620 = vshrl.u32 %v6619, 23
        %v6621 = vsub.s32 %v6620, 127
        %v6622 = vand.u32 2147483647, %v4112
        %v6623 = vand.u32 %v6622, 8388607
        %v6624 = vor.u32 %v6623, 8388608
        %v6625 = vsub.s32 0, %v6624
        %v6626 = vadd.s32 %v6621, 1
        %vm6627 = vcmp.gt.s32.totalorder %v6626, 0
        %v6628 = vsel %vm6627, %v6626, 0
        %v6629 = vshrl.u32 %v6628, 5
        %v6630 = vand.u32 %v6628, 31
        %v6631 = vsub.s32 32, %v6630
        %v6632 = vshrl.u32 683565275, %v6631
        %v6633 = vshll.u32 683565275, %v6630
        %v6634 = vshrl.u32 2475754826, %v6631
        %v6635 = vor.u32 %v6633, %v6634
        %v6636 = vshll.u32 2475754826, %v6630
        %v6637 = vshrl.u32 2131351028, %v6631
        %v6638 = vor.u32 %v6636, %v6637
        %v6639 = vshll.u32 2131351028, %v6630
        %v6640 = vshrl.u32 2102212464, %v6631
        %v6641 = vor.u32 %v6639, %v6640
        %v6642 = vshll.u32 2102212464, %v6630
        %v6643 = vshrl.u32 920167782, %v6631
        %v6644 = vor.u32 %v6642, %v6643
        %v6645 = vshll.u32 920167782, %v6630
        %v6646 = vshrl.u32 1326507024, %v6631
        %v6647 = vor.u32 %v6645, %v6646
        %vm6648 = vcmp.lt.s32.totalorder %v6629, 1
        %vm6649 = vcmp.lt.s32.totalorder %v6629, 2
        %vm6650 = vcmp.lt.s32.totalorder %v6629, 3
        %vm6651 = vcmp.lt.s32.totalorder %v6629, 4
        %v6652 = vsel %vm6648, %v6632, %v6635
        %v6653 = vsel %vm6651, %v6641, 2102212464
        %v6654 = vsel %vm6650, %v6638, %v6653
        %v6655 = vsel %vm6649, %v6652, %v6654
        %v6656 = vsel %vm6648, %v6635, %v6638
        %v6657 = vsel %vm6651, %v6644, 920167782
        %v6658 = vsel %vm6650, %v6641, %v6657
        %v6659 = vsel %vm6649, %v6656, %v6658
        %v6660 = vsel %vm6648, %v6638, %v6641
        %v6661 = vsel %vm6651, %v6647, 1326507024
        %v6662 = vsel %vm6650, %v6644, %v6661
        %v6663 = vsel %vm6649, %v6660, %v6662
        %v6664 = vshll.u32 %v6624, 8
        %v6665 = vmul.u32.u64.compose %v6664, %v6663
        %v6666 = vextract.low.u32 %v6665
        %v6667 = vextract.high.u32 %v6665
        %v6668 = vmul.u32.u64.compose %v6664, %v6659
        %v6669 = vextract.low.u32 %v6668
        %v6670 = vextract.high.u32 %v6668
        %v6671 = vmul.u32 %v6664, %v6655
        %v6672 = vadd.s32 %v6667, %v6669
        %vm6673 = vc.u32 %v6667, %v6669
        %v6674 = vadd.s32 %v6670, 1
        %v6675 = vsel %vm6673, %v6674, %v6670
        %v6676 = vadd.s32 %v6671, %v6675
        %v6677 = vadd.s32 %v6676, 536870912
        %v6678 = vshrl.u32 %v6677, 30
        %v6679 = vshll.u32 %v6678, 30
        %v6680 = vsub.s32 %v6676, %v6679
        %vm6681 = vcmp.lt.s32.totalorder %v6680, 0
        %v6682 = vsub.s32 0, %v6680
        %v6683 = vsel %vm6681, %v6682, %v6680
        %v6684 = vclz %v6683
        %v6685 = vsub.s32 %v6684, 2
        %vm6686 = vcmp.gt.s32.totalorder 0, %v6685
        %v6687 = vsel %vm6686, 0, %v6685
        %v6688 = vsub.s32 32, %v6687
        %v6689 = vshll.u32 %v6680, %v6687
        %v6690 = vshrl.u32 %v6672, %v6688
        %v6691 = vor.u32 %v6689, %v6690
        %v6692 = vsub.s32 4294967266, %v6687
        %v6693 = vadd.s32 %v6692, 127
        %v6694 = vshll.u32 %v6693, 23
        %v6695 = vor.u32 4788187, %v6694
        %v6696 = vand.u32 2147483647, %v6695
        %v6698 = vcvt.s32.f32 %v6691
        %v6699 = vmul.f32 %v6698, %v6696
        %v6700 = vxor.u32 %v6699, 2147483648
        %v6701 = vsel %vm6618, %v6700, %v6699
        %v6702 = vsub.s32 4, %v6678
        %v6703 = vsel %vm6618, %v6702, %v6678
        %v6704 = vsel %vm6617, %v4112, %v6701
        %v6705 = vsel %vm6617, 0, %v6703
        %v6706 = vcosq.f32.pop %v6704
        %v6707 = vsinq.f32.pop %v6704
        %vm6708 = vweird.f32 %v4112
        %v6709 = vadd.s32 %v6705, 3
        %v6710 = vand.u32 %v6709, 3
        %vm6711 = vcmp.lt.s32.totalorder %v6710, 2
        %vm6712 = vcmp.eq.s32.totalorder %v6710, 0
        %v6713 = vxor.u32 %v6707, 2147483648
        %v6714 = vsel %vm6712, %v6706, %v6713
        %vm6715 = vcmp.eq.s32.totalorder %v6710, 2
        %v6716 = vxor.u32 %v6706, 2147483648
        %v6717 = vsel %vm6715, %v6716, %v6707
        %v6718 = vsel %vm6711, %v6714, %v6717
        %v6719 = vsel %vm6708, nan, %v6718
        %v6720 = vand.u32 2147483647, %v4113
        %vm6721 = vcmp.le.f32.partialorder %v6720, 0.7853982
        %vm6722 = vcmp.lt.s32.totalorder %v4113, 0
        %v6723 = vand.u32 %v4113, 2139095040
        %v6724 = vshrl.u32 %v6723, 23
        %v6725 = vsub.s32 %v6724, 127
        %v6726 = vand.u32 2147483647, %v4113
        %v6727 = vand.u32 %v6726, 8388607
        %v6728 = vor.u32 %v6727, 8388608
        %v6729 = vsub.s32 0, %v6728
        %v6730 = vadd.s32 %v6725, 1
        %vm6731 = vcmp.gt.s32.totalorder %v6730, 0
        %v6732 = vsel %vm6731, %v6730, 0
        %v6733 = vshrl.u32 %v6732, 5
        %v6734 = vand.u32 %v6732, 31
        %v6735 = vsub.s32 32, %v6734
        %v6736 = vshrl.u32 683565275, %v6735
        %v6737 = vshll.u32 683565275, %v6734
        %v6738 = vshrl.u32 2475754826, %v6735
        %v6739 = vor.u32 %v6737, %v6738
        %v6740 = vshll.u32 2475754826, %v6734
        %v6741 = vshrl.u32 2131351028, %v6735
        %v6742 = vor.u32 %v6740, %v6741
        %v6743 = vshll.u32 2131351028, %v6734
        %v6744 = vshrl.u32 2102212464, %v6735
        %v6745 = vor.u32 %v6743, %v6744
        %v6746 = vshll.u32 2102212464, %v6734
        %v6747 = vshrl.u32 920167782, %v6735
        %v6748 = vor.u32 %v6746, %v6747
        %v6749 = vshll.u32 920167782, %v6734
        %v6750 = vshrl.u32 1326507024, %v6735
        %v6751 = vor.u32 %v6749, %v6750
        %vm6752 = vcmp.lt.s32.totalorder %v6733, 1
        %vm6753 = vcmp.lt.s32.totalorder %v6733, 2
        %vm6754 = vcmp.lt.s32.totalorder %v6733, 3
        %vm6755 = vcmp.lt.s32.totalorder %v6733, 4
        %v6756 = vsel %vm6752, %v6736, %v6739
        %v6757 = vsel %vm6755, %v6745, 2102212464
        %v6758 = vsel %vm6754, %v6742, %v6757
        %v6759 = vsel %vm6753, %v6756, %v6758
        %v6760 = vsel %vm6752, %v6739, %v6742
        %v6761 = vsel %vm6755, %v6748, 920167782
        %v6762 = vsel %vm6754, %v6745, %v6761
        %v6763 = vsel %vm6753, %v6760, %v6762
        %v6764 = vsel %vm6752, %v6742, %v6745
        %v6765 = vsel %vm6755, %v6751, 1326507024
        %v6766 = vsel %vm6754, %v6748, %v6765
        %v6767 = vsel %vm6753, %v6764, %v6766
        %v6768 = vshll.u32 %v6728, 8
        %v6769 = vmul.u32.u64.compose %v6768, %v6767
        %v6770 = vextract.low.u32 %v6769
        %v6771 = vextract.high.u32 %v6769
        %v6772 = vmul.u32.u64.compose %v6768, %v6763
        %v6773 = vextract.low.u32 %v6772
        %v6774 = vextract.high.u32 %v6772
        %v6775 = vmul.u32 %v6768, %v6759
        %v6776 = vadd.s32 %v6771, %v6773
        %vm6777 = vc.u32 %v6771, %v6773
        %v6778 = vadd.s32 %v6774, 1
        %v6779 = vsel %vm6777, %v6778, %v6774
        %v6780 = vadd.s32 %v6775, %v6779
        %v6781 = vadd.s32 %v6780, 536870912
        %v6782 = vshrl.u32 %v6781, 30
        %v6783 = vshll.u32 %v6782, 30
        %v6784 = vsub.s32 %v6780, %v6783
        %vm6785 = vcmp.lt.s32.totalorder %v6784, 0
        %v6786 = vsub.s32 0, %v6784
        %v6787 = vsel %vm6785, %v6786, %v6784
        %v6788 = vclz %v6787
        %v6789 = vsub.s32 %v6788, 2
        %vm6790 = vcmp.gt.s32.totalorder 0, %v6789
        %v6791 = vsel %vm6790, 0, %v6789
        %v6792 = vsub.s32 32, %v6791
        %v6793 = vshll.u32 %v6784, %v6791
        %v6794 = vshrl.u32 %v6776, %v6792
        %v6795 = vor.u32 %v6793, %v6794
        %v6796 = vsub.s32 4294967266, %v6791
        %v6797 = vadd.s32 %v6796, 127
        %v6798 = vshll.u32 %v6797, 23
        %v6799 = vor.u32 4788187, %v6798
        %v6800 = vand.u32 2147483647, %v6799
        %v6802 = vcvt.s32.f32 %v6795
        %v6803 = vmul.f32 %v6802, %v6800
        %v6804 = vxor.u32 %v6803, 2147483648
        %v6805 = vsel %vm6722, %v6804, %v6803
        %v6806 = vsub.s32 4, %v6782
        %v6807 = vsel %vm6722, %v6806, %v6782
        %v6808 = vsel %vm6721, %v4113, %v6805
        %v6809 = vsel %vm6721, 0, %v6807
        %v6810 = vcosq.f32.pop %v6808
        %v6811 = vsinq.f32.pop %v6808
        %vm6812 = vweird.f32 %v4113
        %v6813 = vadd.s32 %v6809, 3
        %v6814 = vand.u32 %v6813, 3
        %vm6815 = vcmp.lt.s32.totalorder %v6814, 2
        %vm6816 = vcmp.eq.s32.totalorder %v6814, 0
        %v6817 = vxor.u32 %v6811, 2147483648
        %v6818 = vsel %vm6816, %v6810, %v6817
        %vm6819 = vcmp.eq.s32.totalorder %v6814, 2
        %v6820 = vxor.u32 %v6810, 2147483648
        %v6821 = vsel %vm6819, %v6820, %v6811
        %v6822 = vsel %vm6815, %v6818, %v6821
        %v6823 = vsel %vm6812, nan, %v6822
        %v6824 = vand.u32 2147483647, %v4114
        %vm6825 = vcmp.le.f32.partialorder %v6824, 0.7853982
        %vm6826 = vcmp.lt.s32.totalorder %v4114, 0
        %v6827 = vand.u32 %v4114, 2139095040
        %v6828 = vshrl.u32 %v6827, 23
        %v6829 = vsub.s32 %v6828, 127
        %v6830 = vand.u32 2147483647, %v4114
        %v6831 = vand.u32 %v6830, 8388607
        %v6832 = vor.u32 %v6831, 8388608
        %v6833 = vsub.s32 0, %v6832
        %v6834 = vadd.s32 %v6829, 1
        %vm6835 = vcmp.gt.s32.totalorder %v6834, 0
        %v6836 = vsel %vm6835, %v6834, 0
        %v6837 = vshrl.u32 %v6836, 5
        %v6838 = vand.u32 %v6836, 31
        %v6839 = vsub.s32 32, %v6838
        %v6840 = vshrl.u32 683565275, %v6839
        %v6841 = vshll.u32 683565275, %v6838
        %v6842 = vshrl.u32 2475754826, %v6839
        %v6843 = vor.u32 %v6841, %v6842
        %v6844 = vshll.u32 2475754826, %v6838
        %v6845 = vshrl.u32 2131351028, %v6839
        %v6846 = vor.u32 %v6844, %v6845
        %v6847 = vshll.u32 2131351028, %v6838
        %v6848 = vshrl.u32 2102212464, %v6839
        %v6849 = vor.u32 %v6847, %v6848
        %v6850 = vshll.u32 2102212464, %v6838
        %v6851 = vshrl.u32 920167782, %v6839
        %v6852 = vor.u32 %v6850, %v6851
        %v6853 = vshll.u32 920167782, %v6838
        %v6854 = vshrl.u32 1326507024, %v6839
        %v6855 = vor.u32 %v6853, %v6854
        %vm6856 = vcmp.lt.s32.totalorder %v6837, 1
        %vm6857 = vcmp.lt.s32.totalorder %v6837, 2
        %vm6858 = vcmp.lt.s32.totalorder %v6837, 3
        %vm6859 = vcmp.lt.s32.totalorder %v6837, 4
        %v6860 = vsel %vm6856, %v6840, %v6843
        %v6861 = vsel %vm6859, %v6849, 2102212464
        %v6862 = vsel %vm6858, %v6846, %v6861
        %v6863 = vsel %vm6857, %v6860, %v6862
        %v6864 = vsel %vm6856, %v6843, %v6846
        %v6865 = vsel %vm6859, %v6852, 920167782
        %v6866 = vsel %vm6858, %v6849, %v6865
        %v6867 = vsel %vm6857, %v6864, %v6866
        %v6868 = vsel %vm6856, %v6846, %v6849
        %v6869 = vsel %vm6859, %v6855, 1326507024
        %v6870 = vsel %vm6858, %v6852, %v6869
        %v6871 = vsel %vm6857, %v6868, %v6870
        %v6872 = vshll.u32 %v6832, 8
        %v6873 = vmul.u32.u64.compose %v6872, %v6871
        %v6874 = vextract.low.u32 %v6873
        %v6875 = vextract.high.u32 %v6873
        %v6876 = vmul.u32.u64.compose %v6872, %v6867
        %v6877 = vextract.low.u32 %v6876
        %v6878 = vextract.high.u32 %v6876
        %v6879 = vmul.u32 %v6872, %v6863
        %v6880 = vadd.s32 %v6875, %v6877
        %vm6881 = vc.u32 %v6875, %v6877
        %v6882 = vadd.s32 %v6878, 1
        %v6883 = vsel %vm6881, %v6882, %v6878
        %v6884 = vadd.s32 %v6879, %v6883
        %v6885 = vadd.s32 %v6884, 536870912
        %v6886 = vshrl.u32 %v6885, 30
        %v6887 = vshll.u32 %v6886, 30
        %v6888 = vsub.s32 %v6884, %v6887
        %vm6889 = vcmp.lt.s32.totalorder %v6888, 0
        %v6890 = vsub.s32 0, %v6888
        %v6891 = vsel %vm6889, %v6890, %v6888
        %v6892 = vclz %v6891
        %v6893 = vsub.s32 %v6892, 2
        %vm6894 = vcmp.gt.s32.totalorder 0, %v6893
        %v6895 = vsel %vm6894, 0, %v6893
        %v6896 = vsub.s32 32, %v6895
        %v6897 = vshll.u32 %v6888, %v6895
        %v6898 = vshrl.u32 %v6880, %v6896
        %v6899 = vor.u32 %v6897, %v6898
        %v6900 = vsub.s32 4294967266, %v6895
        %v6901 = vadd.s32 %v6900, 127
        %v6902 = vshll.u32 %v6901, 23
        %v6903 = vor.u32 4788187, %v6902
        %v6904 = vand.u32 2147483647, %v6903
        %v6906 = vcvt.s32.f32 %v6899
        %v6907 = vmul.f32 %v6906, %v6904
        %v6908 = vxor.u32 %v6907, 2147483648
        %v6909 = vsel %vm6826, %v6908, %v6907
        %v6910 = vsub.s32 4, %v6886
        %v6911 = vsel %vm6826, %v6910, %v6886
        %v6912 = vsel %vm6825, %v4114, %v6909
        %v6913 = vsel %vm6825, 0, %v6911
        %v6914 = vcosq.f32.pop %v6912
        %v6915 = vsinq.f32.pop %v6912
        %vm6916 = vweird.f32 %v4114
        %v6917 = vadd.s32 %v6913, 3
        %v6918 = vand.u32 %v6917, 3
        %vm6919 = vcmp.lt.s32.totalorder %v6918, 2
        %vm6920 = vcmp.eq.s32.totalorder %v6918, 0
        %v6921 = vxor.u32 %v6915, 2147483648
        %v6922 = vsel %vm6920, %v6914, %v6921
        %vm6923 = vcmp.eq.s32.totalorder %v6918, 2
        %v6924 = vxor.u32 %v6914, 2147483648
        %v6925 = vsel %vm6923, %v6924, %v6915
        %v6926 = vsel %vm6919, %v6922, %v6925
        %v6927 = vsel %vm6916, nan, %v6926
        %v6928 = vand.u32 2147483647, %v4115
        %vm6929 = vcmp.le.f32.partialorder %v6928, 0.7853982
        %vm6930 = vcmp.lt.s32.totalorder %v4115, 0
        %v6931 = vand.u32 %v4115, 2139095040
        %v6932 = vshrl.u32 %v6931, 23
        %v6933 = vsub.s32 %v6932, 127
        %v6934 = vand.u32 2147483647, %v4115
        %v6935 = vand.u32 %v6934, 8388607
        %v6936 = vor.u32 %v6935, 8388608
        %v6937 = vsub.s32 0, %v6936
        %v6938 = vadd.s32 %v6933, 1
        %vm6939 = vcmp.gt.s32.totalorder %v6938, 0
        %v6940 = vsel %vm6939, %v6938, 0
        %v6941 = vshrl.u32 %v6940, 5
        %v6942 = vand.u32 %v6940, 31
        %v6943 = vsub.s32 32, %v6942
        %v6944 = vshrl.u32 683565275, %v6943
        %v6945 = vshll.u32 683565275, %v6942
        %v6946 = vshrl.u32 2475754826, %v6943
        %v6947 = vor.u32 %v6945, %v6946
        %v6948 = vshll.u32 2475754826, %v6942
        %v6949 = vshrl.u32 2131351028, %v6943
        %v6950 = vor.u32 %v6948, %v6949
        %v6951 = vshll.u32 2131351028, %v6942
        %v6952 = vshrl.u32 2102212464, %v6943
        %v6953 = vor.u32 %v6951, %v6952
        %v6954 = vshll.u32 2102212464, %v6942
        %v6955 = vshrl.u32 920167782, %v6943
        %v6956 = vor.u32 %v6954, %v6955
        %v6957 = vshll.u32 920167782, %v6942
        %v6958 = vshrl.u32 1326507024, %v6943
        %v6959 = vor.u32 %v6957, %v6958
        %vm6960 = vcmp.lt.s32.totalorder %v6941, 1
        %vm6961 = vcmp.lt.s32.totalorder %v6941, 2
        %vm6962 = vcmp.lt.s32.totalorder %v6941, 3
        %vm6963 = vcmp.lt.s32.totalorder %v6941, 4
        %v6964 = vsel %vm6960, %v6944, %v6947
        %v6965 = vsel %vm6963, %v6953, 2102212464
        %v6966 = vsel %vm6962, %v6950, %v6965
        %v6967 = vsel %vm6961, %v6964, %v6966
        %v6968 = vsel %vm6960, %v6947, %v6950
        %v6969 = vsel %vm6963, %v6956, 920167782
        %v6970 = vsel %vm6962, %v6953, %v6969
        %v6971 = vsel %vm6961, %v6968, %v6970
        %v6972 = vsel %vm6960, %v6950, %v6953
        %v6973 = vsel %vm6963, %v6959, 1326507024
        %v6974 = vsel %vm6962, %v6956, %v6973
        %v6975 = vsel %vm6961, %v6972, %v6974
        %v6976 = vshll.u32 %v6936, 8
        %v6977 = vmul.u32.u64.compose %v6976, %v6975
        %v6978 = vextract.low.u32 %v6977
        %v6979 = vextract.high.u32 %v6977
        %v6980 = vmul.u32.u64.compose %v6976, %v6971
        %v6981 = vextract.low.u32 %v6980
        %v6982 = vextract.high.u32 %v6980
        %v6983 = vmul.u32 %v6976, %v6967
        %v6984 = vadd.s32 %v6979, %v6981
        %vm6985 = vc.u32 %v6979, %v6981
        %v6986 = vadd.s32 %v6982, 1
        %v6987 = vsel %vm6985, %v6986, %v6982
        %v6988 = vadd.s32 %v6983, %v6987
        %v6989 = vadd.s32 %v6988, 536870912
        %v6990 = vshrl.u32 %v6989, 30
        %v6991 = vshll.u32 %v6990, 30
        %v6992 = vsub.s32 %v6988, %v6991
        %vm6993 = vcmp.lt.s32.totalorder %v6992, 0
        %v6994 = vsub.s32 0, %v6992
        %v6995 = vsel %vm6993, %v6994, %v6992
        %v6996 = vclz %v6995
        %v6997 = vsub.s32 %v6996, 2
        %vm6998 = vcmp.gt.s32.totalorder 0, %v6997
        %v6999 = vsel %vm6998, 0, %v6997
        %v7000 = vsub.s32 32, %v6999
        %v7001 = vshll.u32 %v6992, %v6999
        %v7002 = vshrl.u32 %v6984, %v7000
        %v7003 = vor.u32 %v7001, %v7002
        %v7004 = vsub.s32 4294967266, %v6999
        %v7005 = vadd.s32 %v7004, 127
        %v7006 = vshll.u32 %v7005, 23
        %v7007 = vor.u32 4788187, %v7006
        %v7008 = vand.u32 2147483647, %v7007
        %v7010 = vcvt.s32.f32 %v7003
        %v7011 = vmul.f32 %v7010, %v7008
        %v7012 = vxor.u32 %v7011, 2147483648
        %v7013 = vsel %vm6930, %v7012, %v7011
        %v7014 = vsub.s32 4, %v6990
        %v7015 = vsel %vm6930, %v7014, %v6990
        %v7016 = vsel %vm6929, %v4115, %v7013
        %v7017 = vsel %vm6929, 0, %v7015
        %v7018 = vcosq.f32.pop %v7016
        %v7019 = vsinq.f32.pop %v7016
        %vm7020 = vweird.f32 %v4115
        %v7021 = vadd.s32 %v7017, 3
        %v7022 = vand.u32 %v7021, 3
        %vm7023 = vcmp.lt.s32.totalorder %v7022, 2
        %vm7024 = vcmp.eq.s32.totalorder %v7022, 0
        %v7025 = vxor.u32 %v7019, 2147483648
        %v7026 = vsel %vm7024, %v7018, %v7025
        %vm7027 = vcmp.eq.s32.totalorder %v7022, 2
        %v7028 = vxor.u32 %v7018, 2147483648
        %v7029 = vsel %vm7027, %v7028, %v7019
        %v7030 = vsel %vm7023, %v7026, %v7029
        %v7031 = vsel %vm7020, nan, %v7030
        %v7032 = vand.u32 2147483647, %v4116
        %vm7033 = vcmp.le.f32.partialorder %v7032, 0.7853982
        %vm7034 = vcmp.lt.s32.totalorder %v4116, 0
        %v7035 = vand.u32 %v4116, 2139095040
        %v7036 = vshrl.u32 %v7035, 23
        %v7037 = vsub.s32 %v7036, 127
        %v7038 = vand.u32 2147483647, %v4116
        %v7039 = vand.u32 %v7038, 8388607
        %v7040 = vor.u32 %v7039, 8388608
        %v7041 = vsub.s32 0, %v7040
        %v7042 = vadd.s32 %v7037, 1
        %vm7043 = vcmp.gt.s32.totalorder %v7042, 0
        %v7044 = vsel %vm7043, %v7042, 0
        %v7045 = vshrl.u32 %v7044, 5
        %v7046 = vand.u32 %v7044, 31
        %v7047 = vsub.s32 32, %v7046
        %v7048 = vshrl.u32 683565275, %v7047
        %v7049 = vshll.u32 683565275, %v7046
        %v7050 = vshrl.u32 2475754826, %v7047
        %v7051 = vor.u32 %v7049, %v7050
        %v7052 = vshll.u32 2475754826, %v7046
        %v7053 = vshrl.u32 2131351028, %v7047
        %v7054 = vor.u32 %v7052, %v7053
        %v7055 = vshll.u32 2131351028, %v7046
        %v7056 = vshrl.u32 2102212464, %v7047
        %v7057 = vor.u32 %v7055, %v7056
        %v7058 = vshll.u32 2102212464, %v7046
        %v7059 = vshrl.u32 920167782, %v7047
        %v7060 = vor.u32 %v7058, %v7059
        %v7061 = vshll.u32 920167782, %v7046
        %v7062 = vshrl.u32 1326507024, %v7047
        %v7063 = vor.u32 %v7061, %v7062
        %vm7064 = vcmp.lt.s32.totalorder %v7045, 1
        %vm7065 = vcmp.lt.s32.totalorder %v7045, 2
        %vm7066 = vcmp.lt.s32.totalorder %v7045, 3
        %vm7067 = vcmp.lt.s32.totalorder %v7045, 4
        %v7068 = vsel %vm7064, %v7048, %v7051
        %v7069 = vsel %vm7067, %v7057, 2102212464
        %v7070 = vsel %vm7066, %v7054, %v7069
        %v7071 = vsel %vm7065, %v7068, %v7070
        %v7072 = vsel %vm7064, %v7051, %v7054
        %v7073 = vsel %vm7067, %v7060, 920167782
        %v7074 = vsel %vm7066, %v7057, %v7073
        %v7075 = vsel %vm7065, %v7072, %v7074
        %v7076 = vsel %vm7064, %v7054, %v7057
        %v7077 = vsel %vm7067, %v7063, 1326507024
        %v7078 = vsel %vm7066, %v7060, %v7077
        %v7079 = vsel %vm7065, %v7076, %v7078
        %v7080 = vshll.u32 %v7040, 8
        %v7081 = vmul.u32.u64.compose %v7080, %v7079
        %v7082 = vextract.low.u32 %v7081
        %v7083 = vextract.high.u32 %v7081
        %v7084 = vmul.u32.u64.compose %v7080, %v7075
        %v7085 = vextract.low.u32 %v7084
        %v7086 = vextract.high.u32 %v7084
        %v7087 = vmul.u32 %v7080, %v7071
        %v7088 = vadd.s32 %v7083, %v7085
        %vm7089 = vc.u32 %v7083, %v7085
        %v7090 = vadd.s32 %v7086, 1
        %v7091 = vsel %vm7089, %v7090, %v7086
        %v7092 = vadd.s32 %v7087, %v7091
        %v7093 = vadd.s32 %v7092, 536870912
        %v7094 = vshrl.u32 %v7093, 30
        %v7095 = vshll.u32 %v7094, 30
        %v7096 = vsub.s32 %v7092, %v7095
        %vm7097 = vcmp.lt.s32.totalorder %v7096, 0
        %v7098 = vsub.s32 0, %v7096
        %v7099 = vsel %vm7097, %v7098, %v7096
        %v7100 = vclz %v7099
        %v7101 = vsub.s32 %v7100, 2
        %vm7102 = vcmp.gt.s32.totalorder 0, %v7101
        %v7103 = vsel %vm7102, 0, %v7101
        %v7104 = vsub.s32 32, %v7103
        %v7105 = vshll.u32 %v7096, %v7103
        %v7106 = vshrl.u32 %v7088, %v7104
        %v7107 = vor.u32 %v7105, %v7106
        %v7108 = vsub.s32 4294967266, %v7103
        %v7109 = vadd.s32 %v7108, 127
        %v7110 = vshll.u32 %v7109, 23
        %v7111 = vor.u32 4788187, %v7110
        %v7112 = vand.u32 2147483647, %v7111
        %v7114 = vcvt.s32.f32 %v7107
        %v7115 = vmul.f32 %v7114, %v7112
        %v7116 = vxor.u32 %v7115, 2147483648
        %v7117 = vsel %vm7034, %v7116, %v7115
        %v7118 = vsub.s32 4, %v7094
        %v7119 = vsel %vm7034, %v7118, %v7094
        %v7120 = vsel %vm7033, %v4116, %v7117
        %v7121 = vsel %vm7033, 0, %v7119
        %v7122 = vcosq.f32.pop %v7120
        %v7123 = vsinq.f32.pop %v7120
        %vm7124 = vweird.f32 %v4116
        %v7125 = vadd.s32 %v7121, 3
        %v7126 = vand.u32 %v7125, 3
        %vm7127 = vcmp.lt.s32.totalorder %v7126, 2
        %vm7128 = vcmp.eq.s32.totalorder %v7126, 0
        %v7129 = vxor.u32 %v7123, 2147483648
        %v7130 = vsel %vm7128, %v7122, %v7129
        %vm7131 = vcmp.eq.s32.totalorder %v7126, 2
        %v7132 = vxor.u32 %v7122, 2147483648
        %v7133 = vsel %vm7131, %v7132, %v7123
        %v7134 = vsel %vm7127, %v7130, %v7133
        %v7135 = vsel %vm7124, nan, %v7134
        %v7136 = vand.u32 2147483647, %v4117
        %vm7137 = vcmp.le.f32.partialorder %v7136, 0.7853982
        %vm7138 = vcmp.lt.s32.totalorder %v4117, 0
        %v7139 = vand.u32 %v4117, 2139095040
        %v7140 = vshrl.u32 %v7139, 23
        %v7141 = vsub.s32 %v7140, 127
        %v7142 = vand.u32 2147483647, %v4117
        %v7143 = vand.u32 %v7142, 8388607
        %v7144 = vor.u32 %v7143, 8388608
        %v7145 = vsub.s32 0, %v7144
        %v7146 = vadd.s32 %v7141, 1
        %vm7147 = vcmp.gt.s32.totalorder %v7146, 0
        %v7148 = vsel %vm7147, %v7146, 0
        %v7149 = vshrl.u32 %v7148, 5
        %v7150 = vand.u32 %v7148, 31
        %v7151 = vsub.s32 32, %v7150
        %v7152 = vshrl.u32 683565275, %v7151
        %v7153 = vshll.u32 683565275, %v7150
        %v7154 = vshrl.u32 2475754826, %v7151
        %v7155 = vor.u32 %v7153, %v7154
        %v7156 = vshll.u32 2475754826, %v7150
        %v7157 = vshrl.u32 2131351028, %v7151
        %v7158 = vor.u32 %v7156, %v7157
        %v7159 = vshll.u32 2131351028, %v7150
        %v7160 = vshrl.u32 2102212464, %v7151
        %v7161 = vor.u32 %v7159, %v7160
        %v7162 = vshll.u32 2102212464, %v7150
        %v7163 = vshrl.u32 920167782, %v7151
        %v7164 = vor.u32 %v7162, %v7163
        %v7165 = vshll.u32 920167782, %v7150
        %v7166 = vshrl.u32 1326507024, %v7151
        %v7167 = vor.u32 %v7165, %v7166
        %vm7168 = vcmp.lt.s32.totalorder %v7149, 1
        %vm7169 = vcmp.lt.s32.totalorder %v7149, 2
        %vm7170 = vcmp.lt.s32.totalorder %v7149, 3
        %vm7171 = vcmp.lt.s32.totalorder %v7149, 4
        %v7172 = vsel %vm7168, %v7152, %v7155
        %v7173 = vsel %vm7171, %v7161, 2102212464
        %v7174 = vsel %vm7170, %v7158, %v7173
        %v7175 = vsel %vm7169, %v7172, %v7174
        %v7176 = vsel %vm7168, %v7155, %v7158
        %v7177 = vsel %vm7171, %v7164, 920167782
        %v7178 = vsel %vm7170, %v7161, %v7177
        %v7179 = vsel %vm7169, %v7176, %v7178
        %v7180 = vsel %vm7168, %v7158, %v7161
        %v7181 = vsel %vm7171, %v7167, 1326507024
        %v7182 = vsel %vm7170, %v7164, %v7181
        %v7183 = vsel %vm7169, %v7180, %v7182
        %v7184 = vshll.u32 %v7144, 8
        %v7185 = vmul.u32.u64.compose %v7184, %v7183
        %v7186 = vextract.low.u32 %v7185
        %v7187 = vextract.high.u32 %v7185
        %v7188 = vmul.u32.u64.compose %v7184, %v7179
        %v7189 = vextract.low.u32 %v7188
        %v7190 = vextract.high.u32 %v7188
        %v7191 = vmul.u32 %v7184, %v7175
        %v7192 = vadd.s32 %v7187, %v7189
        %vm7193 = vc.u32 %v7187, %v7189
        %v7194 = vadd.s32 %v7190, 1
        %v7195 = vsel %vm7193, %v7194, %v7190
        %v7196 = vadd.s32 %v7191, %v7195
        %v7197 = vadd.s32 %v7196, 536870912
        %v7198 = vshrl.u32 %v7197, 30
        %v7199 = vshll.u32 %v7198, 30
        %v7200 = vsub.s32 %v7196, %v7199
        %vm7201 = vcmp.lt.s32.totalorder %v7200, 0
        %v7202 = vsub.s32 0, %v7200
        %v7203 = vsel %vm7201, %v7202, %v7200
        %v7204 = vclz %v7203
        %v7205 = vsub.s32 %v7204, 2
        %vm7206 = vcmp.gt.s32.totalorder 0, %v7205
        %v7207 = vsel %vm7206, 0, %v7205
        %v7208 = vsub.s32 32, %v7207
        %v7209 = vshll.u32 %v7200, %v7207
        %v7210 = vshrl.u32 %v7192, %v7208
        %v7211 = vor.u32 %v7209, %v7210
        %v7212 = vsub.s32 4294967266, %v7207
        %v7213 = vadd.s32 %v7212, 127
        %v7214 = vshll.u32 %v7213, 23
        %v7215 = vor.u32 4788187, %v7214
        %v7216 = vand.u32 2147483647, %v7215
        %v7218 = vcvt.s32.f32 %v7211
        %v7219 = vmul.f32 %v7218, %v7216
        %v7220 = vxor.u32 %v7219, 2147483648
        %v7221 = vsel %vm7138, %v7220, %v7219
        %v7222 = vsub.s32 4, %v7198
        %v7223 = vsel %vm7138, %v7222, %v7198
        %v7224 = vsel %vm7137, %v4117, %v7221
        %v7225 = vsel %vm7137, 0, %v7223
        %v7226 = vcosq.f32.pop %v7224
        %v7227 = vsinq.f32.pop %v7224
        %vm7228 = vweird.f32 %v4117
        %v7229 = vadd.s32 %v7225, 3
        %v7230 = vand.u32 %v7229, 3
        %vm7231 = vcmp.lt.s32.totalorder %v7230, 2
        %vm7232 = vcmp.eq.s32.totalorder %v7230, 0
        %v7233 = vxor.u32 %v7227, 2147483648
        %v7234 = vsel %vm7232, %v7226, %v7233
        %vm7235 = vcmp.eq.s32.totalorder %v7230, 2
        %v7236 = vxor.u32 %v7226, 2147483648
        %v7237 = vsel %vm7235, %v7236, %v7227
        %v7238 = vsel %vm7231, %v7234, %v7237
        %v7239 = vsel %vm7228, nan, %v7238
        %v7240 = vand.u32 2147483647, %v4118
        %vm7241 = vcmp.le.f32.partialorder %v7240, 0.7853982
        %vm7242 = vcmp.lt.s32.totalorder %v4118, 0
        %v7243 = vand.u32 %v4118, 2139095040
        %v7244 = vshrl.u32 %v7243, 23
        %v7245 = vsub.s32 %v7244, 127
        %v7246 = vand.u32 2147483647, %v4118
        %v7247 = vand.u32 %v7246, 8388607
        %v7248 = vor.u32 %v7247, 8388608
        %v7249 = vsub.s32 0, %v7248
        %v7250 = vadd.s32 %v7245, 1
        %vm7251 = vcmp.gt.s32.totalorder %v7250, 0
        %v7252 = vsel %vm7251, %v7250, 0
        %v7253 = vshrl.u32 %v7252, 5
        %v7254 = vand.u32 %v7252, 31
        %v7255 = vsub.s32 32, %v7254
        %v7256 = vshrl.u32 683565275, %v7255
        %v7257 = vshll.u32 683565275, %v7254
        %v7258 = vshrl.u32 2475754826, %v7255
        %v7259 = vor.u32 %v7257, %v7258
        %v7260 = vshll.u32 2475754826, %v7254
        %v7261 = vshrl.u32 2131351028, %v7255
        %v7262 = vor.u32 %v7260, %v7261
        %v7263 = vshll.u32 2131351028, %v7254
        %v7264 = vshrl.u32 2102212464, %v7255
        %v7265 = vor.u32 %v7263, %v7264
        %v7266 = vshll.u32 2102212464, %v7254
        %v7267 = vshrl.u32 920167782, %v7255
        %v7268 = vor.u32 %v7266, %v7267
        %v7269 = vshll.u32 920167782, %v7254
        %v7270 = vshrl.u32 1326507024, %v7255
        %v7271 = vor.u32 %v7269, %v7270
        %vm7272 = vcmp.lt.s32.totalorder %v7253, 1
        %vm7273 = vcmp.lt.s32.totalorder %v7253, 2
        %vm7274 = vcmp.lt.s32.totalorder %v7253, 3
        %vm7275 = vcmp.lt.s32.totalorder %v7253, 4
        %v7276 = vsel %vm7272, %v7256, %v7259
        %v7277 = vsel %vm7275, %v7265, 2102212464
        %v7278 = vsel %vm7274, %v7262, %v7277
        %v7279 = vsel %vm7273, %v7276, %v7278
        %v7280 = vsel %vm7272, %v7259, %v7262
        %v7281 = vsel %vm7275, %v7268, 920167782
        %v7282 = vsel %vm7274, %v7265, %v7281
        %v7283 = vsel %vm7273, %v7280, %v7282
        %v7284 = vsel %vm7272, %v7262, %v7265
        %v7285 = vsel %vm7275, %v7271, 1326507024
        %v7286 = vsel %vm7274, %v7268, %v7285
        %v7287 = vsel %vm7273, %v7284, %v7286
        %v7288 = vshll.u32 %v7248, 8
        %v7289 = vmul.u32.u64.compose %v7288, %v7287
        %v7290 = vextract.low.u32 %v7289
        %v7291 = vextract.high.u32 %v7289
        %v7292 = vmul.u32.u64.compose %v7288, %v7283
        %v7293 = vextract.low.u32 %v7292
        %v7294 = vextract.high.u32 %v7292
        %v7295 = vmul.u32 %v7288, %v7279
        %v7296 = vadd.s32 %v7291, %v7293
        %vm7297 = vc.u32 %v7291, %v7293
        %v7298 = vadd.s32 %v7294, 1
        %v7299 = vsel %vm7297, %v7298, %v7294
        %v7300 = vadd.s32 %v7295, %v7299
        %v7301 = vadd.s32 %v7300, 536870912
        %v7302 = vshrl.u32 %v7301, 30
        %v7303 = vshll.u32 %v7302, 30
        %v7304 = vsub.s32 %v7300, %v7303
        %vm7305 = vcmp.lt.s32.totalorder %v7304, 0
        %v7306 = vsub.s32 0, %v7304
        %v7307 = vsel %vm7305, %v7306, %v7304
        %v7308 = vclz %v7307
        %v7309 = vsub.s32 %v7308, 2
        %vm7310 = vcmp.gt.s32.totalorder 0, %v7309
        %v7311 = vsel %vm7310, 0, %v7309
        %v7312 = vsub.s32 32, %v7311
        %v7313 = vshll.u32 %v7304, %v7311
        %v7314 = vshrl.u32 %v7296, %v7312
        %v7315 = vor.u32 %v7313, %v7314
        %v7316 = vsub.s32 4294967266, %v7311
        %v7317 = vadd.s32 %v7316, 127
        %v7318 = vshll.u32 %v7317, 23
        %v7319 = vor.u32 4788187, %v7318
        %v7320 = vand.u32 2147483647, %v7319
        %v7322 = vcvt.s32.f32 %v7315
        %v7323 = vmul.f32 %v7322, %v7320
        %v7324 = vxor.u32 %v7323, 2147483648
        %v7325 = vsel %vm7242, %v7324, %v7323
        %v7326 = vsub.s32 4, %v7302
        %v7327 = vsel %vm7242, %v7326, %v7302
        %v7328 = vsel %vm7241, %v4118, %v7325
        %v7329 = vsel %vm7241, 0, %v7327
        %v7330 = vcosq.f32.pop %v7328
        %v7331 = vsinq.f32.pop %v7328
        %vm7332 = vweird.f32 %v4118
        %v7333 = vadd.s32 %v7329, 3
        %v7334 = vand.u32 %v7333, 3
        %vm7335 = vcmp.lt.s32.totalorder %v7334, 2
        %vm7336 = vcmp.eq.s32.totalorder %v7334, 0
        %v7337 = vxor.u32 %v7331, 2147483648
        %v7338 = vsel %vm7336, %v7330, %v7337
        %vm7339 = vcmp.eq.s32.totalorder %v7334, 2
        %v7340 = vxor.u32 %v7330, 2147483648
        %v7341 = vsel %vm7339, %v7340, %v7331
        %v7342 = vsel %vm7335, %v7338, %v7341
        %v7343 = vsel %vm7332, nan, %v7342
        %v7344 = vand.u32 2147483647, %v4119
        %vm7345 = vcmp.le.f32.partialorder %v7344, 0.7853982
        %vm7346 = vcmp.lt.s32.totalorder %v4119, 0
        %v7347 = vand.u32 %v4119, 2139095040
        %v7348 = vshrl.u32 %v7347, 23
        %v7349 = vsub.s32 %v7348, 127
        %v7350 = vand.u32 2147483647, %v4119
        %v7351 = vand.u32 %v7350, 8388607
        %v7352 = vor.u32 %v7351, 8388608
        %v7353 = vsub.s32 0, %v7352
        %v7354 = vadd.s32 %v7349, 1
        %vm7355 = vcmp.gt.s32.totalorder %v7354, 0
        %v7356 = vsel %vm7355, %v7354, 0
        %v7357 = vshrl.u32 %v7356, 5
        %v7358 = vand.u32 %v7356, 31
        %v7359 = vsub.s32 32, %v7358
        %v7360 = vshrl.u32 683565275, %v7359
        %v7361 = vshll.u32 683565275, %v7358
        %v7362 = vshrl.u32 2475754826, %v7359
        %v7363 = vor.u32 %v7361, %v7362
        %v7364 = vshll.u32 2475754826, %v7358
        %v7365 = vshrl.u32 2131351028, %v7359
        %v7366 = vor.u32 %v7364, %v7365
        %v7367 = vshll.u32 2131351028, %v7358
        %v7368 = vshrl.u32 2102212464, %v7359
        %v7369 = vor.u32 %v7367, %v7368
        %v7370 = vshll.u32 2102212464, %v7358
        %v7371 = vshrl.u32 920167782, %v7359
        %v7372 = vor.u32 %v7370, %v7371
        %v7373 = vshll.u32 920167782, %v7358
        %v7374 = vshrl.u32 1326507024, %v7359
        %v7375 = vor.u32 %v7373, %v7374
        %vm7376 = vcmp.lt.s32.totalorder %v7357, 1
        %vm7377 = vcmp.lt.s32.totalorder %v7357, 2
        %vm7378 = vcmp.lt.s32.totalorder %v7357, 3
        %vm7379 = vcmp.lt.s32.totalorder %v7357, 4
        %v7380 = vsel %vm7376, %v7360, %v7363
        %v7381 = vsel %vm7379, %v7369, 2102212464
        %v7382 = vsel %vm7378, %v7366, %v7381
        %v7383 = vsel %vm7377, %v7380, %v7382
        %v7384 = vsel %vm7376, %v7363, %v7366
        %v7385 = vsel %vm7379, %v7372, 920167782
        %v7386 = vsel %vm7378, %v7369, %v7385
        %v7387 = vsel %vm7377, %v7384, %v7386
        %v7388 = vsel %vm7376, %v7366, %v7369
        %v7389 = vsel %vm7379, %v7375, 1326507024
        %v7390 = vsel %vm7378, %v7372, %v7389
        %v7391 = vsel %vm7377, %v7388, %v7390
        %v7392 = vshll.u32 %v7352, 8
        %v7393 = vmul.u32.u64.compose %v7392, %v7391
        %v7394 = vextract.low.u32 %v7393
        %v7395 = vextract.high.u32 %v7393
        %v7396 = vmul.u32.u64.compose %v7392, %v7387
        %v7397 = vextract.low.u32 %v7396
        %v7398 = vextract.high.u32 %v7396
        %v7399 = vmul.u32 %v7392, %v7383
        %v7400 = vadd.s32 %v7395, %v7397
        %vm7401 = vc.u32 %v7395, %v7397
        %v7402 = vadd.s32 %v7398, 1
        %v7403 = vsel %vm7401, %v7402, %v7398
        %v7404 = vadd.s32 %v7399, %v7403
        %v7405 = vadd.s32 %v7404, 536870912
        %v7406 = vshrl.u32 %v7405, 30
        %v7407 = vshll.u32 %v7406, 30
        %v7408 = vsub.s32 %v7404, %v7407
        %vm7409 = vcmp.lt.s32.totalorder %v7408, 0
        %v7410 = vsub.s32 0, %v7408
        %v7411 = vsel %vm7409, %v7410, %v7408
        %v7412 = vclz %v7411
        %v7413 = vsub.s32 %v7412, 2
        %vm7414 = vcmp.gt.s32.totalorder 0, %v7413
        %v7415 = vsel %vm7414, 0, %v7413
        %v7416 = vsub.s32 32, %v7415
        %v7417 = vshll.u32 %v7408, %v7415
        %v7418 = vshrl.u32 %v7400, %v7416
        %v7419 = vor.u32 %v7417, %v7418
        %v7420 = vsub.s32 4294967266, %v7415
        %v7421 = vadd.s32 %v7420, 127
        %v7422 = vshll.u32 %v7421, 23
        %v7423 = vor.u32 4788187, %v7422
        %v7424 = vand.u32 2147483647, %v7423
        %v7426 = vcvt.s32.f32 %v7419
        %v7427 = vmul.f32 %v7426, %v7424
        %v7428 = vxor.u32 %v7427, 2147483648
        %v7429 = vsel %vm7346, %v7428, %v7427
        %v7430 = vsub.s32 4, %v7406
        %v7431 = vsel %vm7346, %v7430, %v7406
        %v7432 = vsel %vm7345, %v4119, %v7429
        %v7433 = vsel %vm7345, 0, %v7431
        %v7434 = vcosq.f32.pop %v7432
        %v7435 = vsinq.f32.pop %v7432
        %vm7436 = vweird.f32 %v4119
        %v7437 = vadd.s32 %v7433, 3
        %v7438 = vand.u32 %v7437, 3
        %vm7439 = vcmp.lt.s32.totalorder %v7438, 2
        %vm7440 = vcmp.eq.s32.totalorder %v7438, 0
        %v7441 = vxor.u32 %v7435, 2147483648
        %v7442 = vsel %vm7440, %v7434, %v7441
        %vm7443 = vcmp.eq.s32.totalorder %v7438, 2
        %v7444 = vxor.u32 %v7434, 2147483648
        %v7445 = vsel %vm7443, %v7444, %v7435
        %v7446 = vsel %vm7439, %v7442, %v7445
        %v7447 = vsel %vm7436, nan, %v7446
        %v7448 = vsel %vm3811, %v4088, %v4223
        %v7449 = vsel %vm3811, %v4089, %v4327
        %v7450 = vsel %vm3811, %v4090, %v4431
        %v7451 = vsel %vm3811, %v4091, %v4535
        %v7452 = vsel %vm3811, %v4092, %v4639
        %v7453 = vsel %vm3811, %v4093, %v4743
        %v7454 = vsel %vm3811, %v4094, %v4847
        %v7455 = vsel %vm3811, %v4095, %v4951
        %v7456 = vsel %vm3812, %v4096, %v5055
        %v7457 = vsel %vm3812, %v4097, %v5159
        %v7458 = vsel %vm3812, %v4098, %v5263
        %v7459 = vsel %vm3812, %v4099, %v5367
        %v7460 = vsel %vm3812, %v4100, %v5471
        %v7461 = vsel %vm3812, %v4101, %v5575
        %v7462 = vsel %vm3812, %v4102, %v5679
        %v7463 = vsel %vm3812, %v4103, %v5783
        %v7464 = vsel %vm3813, %v4104, %v5887
        %v7465 = vsel %vm3813, %v4105, %v5991
        %v7466 = vsel %vm3813, %v4106, %v6095
        %v7467 = vsel %vm3813, %v4107, %v6199
        %v7468 = vsel %vm3813, %v4108, %v6303
        %v7469 = vsel %vm3813, %v4109, %v6407
        %v7470 = vsel %vm3813, %v4110, %v6511
        %v7471 = vsel %vm3813, %v4111, %v6615
        %v7472 = vsel %vm3814, %v4112, %v6719
        %v7473 = vsel %vm3814, %v4113, %v6823
        %v7474 = vsel %vm3814, %v4114, %v6927
        %v7475 = vsel %vm3814, %v4115, %v7031
        %v7476 = vsel %vm3814, %v4116, %v7135
        %v7477 = vsel %vm3814, %v4117, %v7239
        %v7478 = vsel %vm3814, %v4118, %v7343
        %v7479 = vsel %vm3814, %v4119, %v7447
        %s7480 = scalar_lea.vmem %s132, 64 [#allocation5]
        %7481 = vst [vmem:[%s7480] sm:$0xff] %v7448
        %7482 = vst [vmem:[%s7480 + $0x8] sm:$0xff] %v7449
        %7483 = vst [vmem:[%s7480 + $0x10] sm:$0xff] %v7450
        %7484 = vst [vmem:[%s7480 + $0x18] sm:$0xff] %v7451
        %7485 = vst [vmem:[%s7480 + $0x20] sm:$0xff] %v7452
        %7486 = vst [vmem:[%s7480 + $0x28] sm:$0xff] %v7453
        %7487 = vst [vmem:[%s7480 + $0x30] sm:$0xff] %v7454
        %7488 = vst [vmem:[%s7480 + $0x38] sm:$0xff] %v7455
        %7489 = vst [vmem:[%s7480 + $0x80] sm:$0xff] %v7456
        %7490 = vst [vmem:[%s7480 + $0x88] sm:$0xff] %v7457
        %7491 = vst [vmem:[%s7480 + $0x90] sm:$0xff] %v7458
        %7492 = vst [vmem:[%s7480 + $0x98] sm:$0xff] %v7459
        %7493 = vst [vmem:[%s7480 + $0xa0] sm:$0xff] %v7460
        %7494 = vst [vmem:[%s7480 + $0xa8] sm:$0xff] %v7461
        %7495 = vst [vmem:[%s7480 + $0xb0] sm:$0xff] %v7462
        %7496 = vst [vmem:[%s7480 + $0xb8] sm:$0xff] %v7463
        %7497 = vst [vmem:[%s7480 + $0x100] sm:$0xff] %v7464
        %7498 = vst [vmem:[%s7480 + $0x108] sm:$0xff] %v7465
        %7499 = vst [vmem:[%s7480 + $0x110] sm:$0xff] %v7466
        %7500 = vst [vmem:[%s7480 + $0x118] sm:$0xff] %v7467
        %7501 = vst [vmem:[%s7480 + $0x120] sm:$0xff] %v7468
        %7502 = vst [vmem:[%s7480 + $0x128] sm:$0xff] %v7469
        %7503 = vst [vmem:[%s7480 + $0x130] sm:$0xff] %v7470
        %7504 = vst [vmem:[%s7480 + $0x138] sm:$0xff] %v7471
        %7505 = vst [vmem:[%s7480 + $0x180] sm:$0x7] %v7472
        %7506 = vst [vmem:[%s7480 + $0x188] sm:$0x7] %v7473
        %7507 = vst [vmem:[%s7480 + $0x190] sm:$0x7] %v7474
        %7508 = vst [vmem:[%s7480 + $0x198] sm:$0x7] %v7475
        %7509 = vst [vmem:[%s7480 + $0x1a0] sm:$0x7] %v7476
        %7510 = vst [vmem:[%s7480 + $0x1a8] sm:$0x7] %v7477
        %7511 = vst [vmem:[%s7480 + $0x1b0] sm:$0x7] %v7478
        %7512 = vst [vmem:[%s7480 + $0x1b8] sm:$0x7] %v7479
        %s7513 = sand.u32 %s52, 1
        %s7514 = scalar_lea.sflag [#allocation4], %s7513
        %s7515 = sand.u32 %s52, 1
        %s7516 = smul.addr %s7515, 512
        %s7517 = scalar_lea.vmem [#allocation5], %s7516
        // Predicated region
        $region29: #{tpu_custom_call.1} parent=23 // pred_check
          %p7518 = pneg %p62
        $region30: #{tpu_custom_call.1} parent=23 // pred_check_branch
          %7520 = sbr.rel (%p7518) target = $region32
        $region31: #{tpu_custom_call.1} parent=23 // pred_region
          %s7521 = smul.u32 16, %s18
          %s7523 = ssub.s32 8192, 8192
          %7524 = vsyncadd %s7514, %s7523
          %s7525 = smul.addr %s7521, 128
          %s7526 = scalar_lea.hbm %s1, %s7525
          %s7527 = sshll.u32 %s7517, 4
          %s7528 = int_to_ptr.vmem [resolvable:$true] %s7527
          %7533 = dma.vmem_to_hbm [thread:$0]  %s7528, 8192, %s7526, %s7514, 2048, 4096, 128
        $region32: #{tpu_custom_call.1} parent=23 // pred_fallthru
          _
      $region24: #{tpu_custom_call.1} parent=5 // pred_fallthru
        _
      %p7534 = scmp.le.s32.totalorder 2, %s13
      // Predicated region
      $region33: #{tpu_custom_call.1} parent=5 // pred_check
        %p7535 = pneg %p7534
      $region34: #{tpu_custom_call.1} parent=5 // pred_check_branch
        %7537 = sbr.rel (%p7535) target = $region36
      $region35: #{tpu_custom_call.1} parent=5 // pred_region
        %s7538 = ssub.s32 %s13, 2
        // Predicated region
        $region37: #{tpu_custom_call.1} parent=35 // pred_check
          %p7539 = pneg %p68
        $region38: #{tpu_custom_call.1} parent=35 // pred_check_branch
          %7541 = sbr.rel (%p7539) target = $region40
        $region39: #{tpu_custom_call.1} parent=35 // pred_region
          %s7542 = sand.u32 %s53, 1
          %s7543 = scalar_lea.sflag [#allocation4], %s7542
          %s7544 = sand.u32 %s53, 1
          %s7545 = smul.addr %s7544, 512
          %s7546 = scalar_lea.vmem [#allocation5], %s7545
          %7547 = dma.done %s7543, 8192
        $region40: #{tpu_custom_call.1} parent=35 // pred_fallthru
          _
      $region36: #{tpu_custom_call.1} parent=5 // pred_fallthru
        _
    $region6: #{tpu_custom_call.1} parent=1 // loop_footer
      %s17 = sadd.s32 1, %s13
    $region7: #{tpu_custom_call.1} parent=1 // loop_footer_branch
      %12 = sbr.rel target = $region3
    $region8: #{tpu_custom_call.1} parent=1 // loop_exit
      _
    %7548 = vsyncpa [#allocation3], 1
    %s7549 = scalar_lea.sflag [#allocation3], 1
    %7550 = vsyncpa %s7549, 1
    %7551 = vsyncpa [#allocation4], 1
    %s7552 = scalar_lea.sflag [#allocation4], 1
    %7553 = vsyncpa %s7552, 1

</llo_original>
